<compile_context>
chip_gen: v6e
topology: v6e:2x2x1
jax: 0.10.0
libtpu: 0.0.40
codegen_flags: <defaults>
</compile_context>

<pallas_src>
import jax
import jax.numpy as jnp
from jax import lax
from jax.experimental import pallas as pl
from jax.experimental.pallas import tpu as pltpu

# ---------------------------------------------------------------------------
# Geometry (fixed by the module: 28x28 inputs, 5x5 kernels, featureDim=32*20*20)
# ---------------------------------------------------------------------------
KSZ = 5
IMG = 28                      # input / reconstruction spatial size
H1 = IMG - KSZ + 1            # 24  (encConv1 out / decConv1 out)
H2 = H1 - KSZ + 1             # 20  (encConv2 out / decFC1 "image")
FEATURE_DIM = 32 * H2 * H2    # 12800

S_ENC = IMG                   # encoder canvas row stride (28)
S_DEC = 32                    # decoder canvas row stride (>= padded input width 32)

PAD_DEC = (KSZ - 1) * S_DEC + (KSZ - 1)     # 132: zero-pad shift / max tap offset (decoder)

L_IN  = IMG * IMG                           # 784 : encoder input canvas
L_C1  = (H1 - 1) * S_ENC + H1               # 668 : encConv1 output canvas
L_C2  = (H2 - 1) * S_ENC + H2               # 552 : encConv2 output canvas
L_DFC = (H1 - 1) * S_DEC + H1               # 760 : decFC1 output canvas (rows 20..23 zero)
L_D1  = (H1 - 1) * S_DEC + H1               # 760 : decConv1 output canvas
L_OUT = IMG * S_DEC                         # 896 : decConv2 output canvas (28 rows x 32)
L_P2  = PAD_DEC + L_OUT                     # 1028: zero-padded decConv1 canvas


# ---------------------------------------------------------------------------
# In-kernel helpers
# ---------------------------------------------------------------------------
def _conv_patches(canvas, stride, out_len, k=KSZ):
    """im2col on a flat canvas value [C, >= (k-1)*(stride+1) + out_len], in VMEM.

    Returns [k*k*C, out_len]; row (dy*k + dx)*C + c holds canvas[c, p + dy*stride + dx]
    for output position p.  Pure static slices + one sublane concat (no HBM traffic).
    """
    _, n = canvas.shape
    assert n >= (k - 1) * (stride + 1) + out_len, (n, stride, out_len)
    taps = []
    for dy in range(k):
        for dx in range(k):
            off = dy * stride + dx
            taps.append(canvas[:, off:off + out_len])
    return jnp.concatenate(taps, axis=0)


# ---------------------------------------------------------------------------
# Fused encoder kernel: conv1 -> conv2 -> (encFC1 || encFC2), one sample / step
# ---------------------------------------------------------------------------
def _encoder_kernel(x_ref, w1_ref, b1_ref, w2_ref, b2_ref, wfc_ref, bfc_ref, out_ref):
    f32, bf16 = jnp.float32, jnp.bfloat16

    # encConv1 + ReLU: one MXU GEMM on the 28-stride canvas.
    x = x_ref[...]                                                   # [Cin, 784] bf16
    p1 = _conv_patches(x, S_ENC, L_C1)                               # [25*Cin, 668]
    y1 = jnp.dot(w1_ref[...], p1, preferred_element_type=f32)        # [16, 668] f32
    y1 = jnp.maximum(y1 + b1_ref[...], 0.0).astype(bf16)

    # encConv2 + ReLU.
    p2 = _conv_patches(y1, S_ENC, L_C2)                              # [400, 552]
    y2 = jnp.dot(w2_ref[...], p2, preferred_element_type=f32)        # [32, 552] f32
    y2 = jnp.maximum(y2 + b2_ref[...], 0.0)

    # encFC1 || encFC2 (fused): the FC weight is pre-scattered into the same
    # canvas layout (zeros at stride-padding columns, so canvas garbage is
    # harmless).  32 VPU broadcast-FMAs + one lane reduction; f32 accumulation.
    z2 = wfc_ref.shape[1]
    acc = jnp.zeros((z2, L_C2), f32)
    for c in range(y2.shape[0]):
        acc = acc + wfc_ref[c].astype(f32) * y2[c:c + 1, :]
    out_ref[...] = jnp.sum(acc, axis=1, keepdims=True) + bfc_ref[...]   # [2Z, 1]


# ---------------------------------------------------------------------------
# Fused decoder kernel: reparam -> decFC1 -> deconv1 -> deconv2, one sample / step
# ---------------------------------------------------------------------------
def _decoder_kernel(mulv_ref, eps_ref, wd1_ref, bd1_ref, wt1_ref, bt1_ref,
                    mask_ref, wt2_ref, bt2_ref, out_ref):
    f32, bf16 = jnp.float32, jnp.bfloat16
    z_dim = eps_ref.shape[0]
    c_out = out_ref.shape[0]

    # Reparameterize: z = mu + exp(logVar/2) * eps.
    # TODO(synk): torch.randn_like is stateful RNG; eps is passed in explicitly.
    mulv = mulv_ref[...]                                             # [2Z, 1] f32
    mu, log_var = mulv[:z_dim, :], mulv[z_dim:, :]
    z = mu + jnp.exp(0.5 * log_var) * eps_ref[...]                   # [Z, 1] f32

    # decFC1 + ReLU, emitted straight into the 32-stride decoder canvas.  The
    # weight/bias canvases are zero outside the valid 20x20 region, so the
    # output canvas is exactly zero there too (safe to use as deconv padding).
    h = bd1_ref[...]                                                 # [32, 760] f32
    for zi in range(z_dim):
        h = h + z[zi:zi + 1, :] * wd1_ref[zi].astype(f32)
    h = jnp.maximum(h, 0.0).astype(bf16)

    # decConv1 (ConvTranspose2d 5x5, stride 1) == valid conv of the zero-padded
    # input with the flipped / in-out-swapped kernel; the (4,4) zero pad is one
    # in-VMEM lane shift because the out-of-range canvas columns are exactly 0.
    pad1 = jnp.concatenate([jnp.zeros((h.shape[0], PAD_DEC), bf16), h], axis=1)  # [32, 892]
    pd1 = _conv_patches(pad1, S_DEC, L_D1)                           # [800, 760]
    y1 = jnp.dot(wt1_ref[...], pd1, preferred_element_type=f32)      # [16, 760] f32
    y1 = jnp.maximum(y1 + bt1_ref[...], 0.0) * mask_ref[...]         # zero stride-pad cols
    y1 = y1.astype(bf16)

    # decConv2 (ConvTranspose2d 5x5) + ReLU.
    pad2 = jnp.concatenate(
        [jnp.zeros((y1.shape[0], PAD_DEC), bf16), y1,
         jnp.zeros((y1.shape[0], L_P2 - PAD_DEC - L_D1), bf16)], axis=1)         # [16, 1028]
    pd2 = _conv_patches(pad2, S_DEC, L_OUT)                          # [400, 896]
    y = jnp.dot(wt2_ref[...], pd2, preferred_element_type=f32)       # [cpad, 896] f32
    y = jnp.maximum(y + bt2_ref[...], 0.0)
    out_ref[...] = y[:c_out, :]                                      # 896 = 7*128 lane-dense


# ---------------------------------------------------------------------------
# pallas_call wrappers (grid = one sample per step, "parallel" for megacore)
# TODO(synk): at very large batch, a multi-sample tile per grid step would
# amortize the ~0.35us per-step cost further; per-sample keeps all in-kernel
# tensors 2-D (no relayout-requiring reshapes) and is ideal at small batch.
# ---------------------------------------------------------------------------
def _encoder_call(xf, params):
    b, c_in, _ = xf.shape
    z2 = params["encFC_b"].shape[0]
    return pl.pallas_call(
        _encoder_kernel,
        out_shape=jax.ShapeDtypeStruct((b, z2, 1), jnp.float32),
        grid=(b,),
        in_specs=[
            pl.BlockSpec((None, c_in, L_IN), lambda i: (i, 0, 0)),
            pl.BlockSpec((16, KSZ * KSZ * c_in), lambda i: (0, 0)),
            pl.BlockSpec((16, 1), lambda i: (0, 0)),
            pl.BlockSpec((32, KSZ * KSZ * 16), lambda i: (0, 0)),
            pl.BlockSpec((32, 1), lambda i: (0, 0)),
            pl.BlockSpec((32, z2, L_C2), lambda i: (0, 0, 0)),
            pl.BlockSpec((z2, 1), lambda i: (0, 0)),
        ],
        out_specs=pl.BlockSpec((None, z2, 1), lambda i: (i, 0, 0)),
        compiler_params=pltpu.CompilerParams(
            dimension_semantics=("parallel",),
            vmem_limit_bytes=32 * 1024 * 1024),
    )(xf, params["encConv1_wT"], params["encConv1_b"],
      params["encConv2_wT"], params["encConv2_b"],
      params["encFC_w"], params["encFC_b"])


def _decoder_call(mulv, eps3, params, c_out):
    b, z2 = mulv.shape[0], mulv.shape[1]
    z_dim = eps3.shape[1]
    c_pad = params["decConv2_wT"].shape[0]
    return pl.pallas_call(
        _decoder_kernel,
        out_shape=jax.ShapeDtypeStruct((b, c_out, L_OUT), jnp.float32),
        grid=(b,),
        in_specs=[
            pl.BlockSpec((None, z2, 1), lambda i: (i, 0, 0)),
            pl.BlockSpec((None, z_dim, 1), lambda i: (i, 0, 0)),
            pl.BlockSpec((z_dim, 32, L_DFC), lambda i: (0, 0, 0)),
            pl.BlockSpec((32, L_DFC), lambda i: (0, 0)),
            pl.BlockSpec((16, KSZ * KSZ * 32), lambda i: (0, 0)),
            pl.BlockSpec((16, 1), lambda i: (0, 0)),
            pl.BlockSpec((1, L_D1), lambda i: (0, 0)),
            pl.BlockSpec((c_pad, KSZ * KSZ * 16), lambda i: (0, 0)),
            pl.BlockSpec((c_pad, 1), lambda i: (0, 0)),
        ],
        out_specs=pl.BlockSpec((None, c_out, L_OUT), lambda i: (i, 0, 0)),
        compiler_params=pltpu.CompilerParams(
            dimension_semantics=("parallel",),
            vmem_limit_bytes=32 * 1024 * 1024),
    )(mulv, eps3, params["decFC1_w"], params["decFC1_b"],
      params["decConv1_wT"], params["decConv1_b"], params["dec_mask"],
      params["decConv2_wT"], params["decConv2_b"])


# ---------------------------------------------------------------------------
# Parameters: PyTorch-layout init + one-time re-layout into kernel layouts
# ---------------------------------------------------------------------------
def init_params(key, z_dim, img_channels=1):
    """Random parameters in the PyTorch layouts of the reference nn.Module."""
    ks = jax.random.split(key, 14)
    s, n, f = 0.05, jax.random.normal, jnp.float32
    return {
        "encConv1_w": s * n(ks[0], (16, img_channels, KSZ, KSZ), f),
        "encConv1_b": s * n(ks[1], (16,), f),
        "encConv2_w": s * n(ks[2], (32, 16, KSZ, KSZ), f),
        "encConv2_b": s * n(ks[3], (32,), f),
        "encFC1_w": s * n(ks[4], (z_dim, FEATURE_DIM), f),     # Linear [out, in]
        "encFC1_b": s * n(ks[5], (z_dim,), f),
        "encFC2_w": s * n(ks[6], (z_dim, FEATURE_DIM), f),
        "encFC2_b": s * n(ks[7], (z_dim,), f),
        "decFC1_w": s * n(ks[8], (FEATURE_DIM, z_dim), f),     # Linear [out, in]
        "decFC1_b": s * n(ks[9], (FEATURE_DIM,), f),
        "decConv1_w": s * n(ks[10], (32, 16, KSZ, KSZ), f),    # ConvT [in, out, kh, kw]
        "decConv1_b": s * n(ks[11], (16,), f),
        "decConv2_w": s * n(ks[12], (16, img_channels, KSZ, KSZ), f),
        "decConv2_b": s * n(ks[13], (img_channels,), f),
    }


def prepare_params(p):
    """One-time weight re-layout + bf16 cast (done once, outside the forward)."""
    bf16, f32 = jnp.bfloat16, jnp.float32

    def conv_wT(w):      # Conv2d [Cout, Cin, 5, 5] -> [Cout, (dy, dx, cin)]
        co, ci = w.shape[0], w.shape[1]
        return jnp.transpose(w, (0, 2, 3, 1)).reshape(co, KSZ * KSZ * ci).astype(bf16)

    def deconv_wT(w):    # ConvTranspose2d [Cin, Cout, 5, 5] -> flipped, [Cout, (dy, dx, cin)]
        ci, co = w.shape[0], w.shape[1]
        wf = jnp.flip(w, axis=(2, 3))
        return jnp.transpose(wf, (1, 2, 3, 0)).reshape(co, KSZ * KSZ * ci).astype(bf16)

    z_dim = p["encFC1_w"].shape[0]
    z2 = 2 * z_dim
    c_out = p["decConv2_w"].shape[1]
    c_pad = max(c_out, 8)   # keep the final GEMM's M dimension a full sublane tile

    # encFC1 || encFC2, scattered into the encoder's 28-stride conv2 output
    # canvas layout [cin=32, 2Z, 552]: lane-dense, zeros at stride-padding cols.
    wfc = jnp.concatenate([p["encFC1_w"], p["encFC2_w"]], axis=0)     # [2Z, 12800]
    wfc = wfc.reshape(z2, 32, H2, H2).transpose(1, 0, 2, 3)           # [32, 2Z, 20, 20]
    wfc = jnp.pad(wfc, ((0, 0), (0, 0), (0, 0), (0, S_ENC - H2)))     # [32, 2Z, 20, 28]
    wfc = wfc.reshape(32, z2, H2 * S_ENC)[:, :, :L_C2].astype(bf16)   # [32, 2Z, 552]
    bfc = jnp.concatenate([p["encFC1_b"], p["encFC2_b"]]).reshape(z2, 1).astype(f32)

    # decFC1, scattered into the decoder's 32-stride canvas [Z, 32, 760] / [32, 760].
    wd = p["decFC1_w"].T.reshape(z_dim, 32, H2, H2)                   # [Z, 32, 20, 20]
    wd = jnp.pad(wd, ((0, 0), (0, 0), (0, 0), (0, S_DEC - H2)))       # [Z, 32, 20, 32]
    wd = wd.reshape(z_dim, 32, H2 * S_DEC)
    wd = jnp.pad(wd, ((0, 0), (0, 0), (0, L_DFC - H2 * S_DEC))).astype(bf16)

    bd = p["decFC1_b"].reshape(32, H2, H2)
    bd = jnp.pad(bd, ((0, 0), (0, 0), (0, S_DEC - H2))).reshape(32, H2 * S_DEC)
    bd = jnp.pad(bd, ((0, 0), (0, L_DFC - H2 * S_DEC))).astype(f32)   # [32, 760]

    # Final deconv: pad Cout (1 -> 8) so GEMM/store rows fill a sublane tile.
    wt2 = jnp.pad(deconv_wT(p["decConv2_w"]), ((0, c_pad - c_out), (0, 0)))
    bt2 = jnp.pad(p["decConv2_b"], (0, c_pad - c_out)).reshape(c_pad, 1).astype(f32)

    # 1/0 mask zeroing the stride-padding columns of the decConv1 output canvas.
    mask = (jnp.arange(L_D1) % S_DEC < H1).astype(f32).reshape(1, L_D1)

    return {
        "encConv1_wT": conv_wT(p["encConv1_w"]),
        "encConv1_b": p["encConv1_b"].reshape(16, 1).astype(f32),
        "encConv2_wT": conv_wT(p["encConv2_w"]),
        "encConv2_b": p["encConv2_b"].reshape(32, 1).astype(f32),
        "encFC_w": wfc,
        "encFC_b": bfc,
        "decFC1_w": wd,
        "decFC1_b": bd,
        "decConv1_wT": deconv_wT(p["decConv1_w"]),
        "decConv1_b": p["decConv1_b"].reshape(16, 1).astype(f32),
        "dec_mask": mask,
        "decConv2_wT": wt2,
        "decConv2_b": bt2,
    }


# ---------------------------------------------------------------------------
# Forward pass (public contract mirrors the PyTorch module)
# ---------------------------------------------------------------------------
def vae_forward(params, x, eps):
    """x: [B, imgChannels, 28, 28] f32; eps: [B, zDim] f32 (explicit randn).
    Returns (out [B, imgChannels, 28, 28], mu [B, zDim], logVar [B, zDim])."""
    b, c_in, h, w = x.shape
    assert (h, w) == (IMG, IMG), "featureDim=32*20*20 implies 28x28 inputs"
    z_dim = eps.shape[-1]

    xf = x.reshape(b, c_in, IMG * IMG).astype(jnp.bfloat16)
    mulv = _encoder_call(xf, params)                      # [B, 2Z, 1] f32
    mu = mulv[:, :z_dim, 0]
    log_var = mulv[:, z_dim:, 0]

    eps3 = eps.reshape(b, z_dim, 1).astype(jnp.float32)
    dec = _decoder_call(mulv, eps3, params, c_in)         # [B, C, 896] f32
    out = dec.reshape(b, c_in, IMG, S_DEC)[:, :, :, :IMG]
    return out, mu, log_var


# ---------------------------------------------------------------------------
# Pure-JAX f32 reference (for a numerical sanity check of the canvas math)
# ---------------------------------------------------------------------------
def _reference_forward(tp, x, eps):
    hi = lax.Precision.HIGHEST
    relu = lambda v: jnp.maximum(v, 0.0)

    def conv(v, w, b):
        y = lax.conv_general_dilated(v, w, (1, 1), "VALID",
                                     dimension_numbers=("NCHW", "OIHW", "NCHW"),
                                     precision=hi)
        return y + b.reshape(1, -1, 1, 1)

    def conv_t(v, w, b):   # ConvTranspose2d(stride=1, pad=0)
        wf = jnp.flip(w, axis=(2, 3)).transpose(1, 0, 2, 3)
        vp = jnp.pad(v, ((0, 0), (0, 0), (4, 4), (4, 4)))
        y = lax.conv_general_dilated(vp, wf, (1, 1), "VALID",
                                     dimension_numbers=("NCHW", "OIHW", "NCHW"),
                                     precision=hi)
        return y + b.reshape(1, -1, 1, 1)

    h = relu(conv(x, tp["encConv1_w"], tp["encConv1_b"]))
    h = relu(conv(h, tp["encConv2_w"], tp["encConv2_b"]))
    hf = h.reshape(x.shape[0], -1)
    mu = jnp.dot(hf, tp["encFC1_w"].T, precision=hi) + tp["encFC1_b"]
    lv = jnp.dot(hf, tp["encFC2_w"].T, precision=hi) + tp["encFC2_b"]
    z = mu + jnp.exp(0.5 * lv) * eps
    d = relu(jnp.dot(z, tp["decFC1_w"].T, precision=hi) + tp["decFC1_b"])
    d = d.reshape(x.shape[0], 32, H2, H2)
    d = relu(conv_t(d, tp["decConv1_w"], tp["decConv1_b"]))
    d = relu(conv_t(d, tp["decConv2_w"], tp["decConv2_b"]))
    return d, mu, lv


if __name__ == "__main__":
    Z_DIM = 16
    B = 2

    key = jax.random.PRNGKey(0)
    k_param, k_x, k_eps = jax.random.split(key, 3)

    torch_layout_params = init_params(k_param, Z_DIM, img_channels=1)
    params = prepare_params(torch_layout_params)

    x = jax.random.normal(k_x, (B, 1, IMG, IMG), jnp.float32)
    eps = jax.random.normal(k_eps, (B, Z_DIM), jnp.float32)

    fwd = jax.jit(vae_forward)
    out, mu, log_var = fwd(params, x, eps)
    jax.block_until_ready((out, mu, log_var))

    assert out.shape == (B, 1, IMG, IMG)
    assert mu.shape == (B, Z_DIM)
    assert log_var.shape == (B, Z_DIM)
    assert bool(jnp.all(jnp.isfinite(out)))

    # Numerical check against a plain-XLA f32 reference (bf16 GEMM operands in
    # the kernels -> generous tolerances).
    ref_out, ref_mu, ref_lv = jax.jit(_reference_forward)(torch_layout_params, x, eps)
    for got, want in ((out, ref_out), (mu, ref_mu), (log_var, ref_lv)):
        assert bool(jnp.allclose(got, want, atol=5e-2, rtol=5e-2)), \
            float(jnp.max(jnp.abs(got - want)))

    print("KERNEL_OK")
</pallas_src>

<mosaic_0001>
module attributes {stable_mosaic.version = 11 : i64} {
  func.func @_encoder_kernel(%arg0: i32, %arg1: memref<1x1x784xbf16, #tpu.memory_space<vmem>>, %arg2: memref<16x25xbf16, #tpu.memory_space<vmem>>, %arg3: memref<16x1xf32, #tpu.memory_space<vmem>>, %arg4: memref<32x400xbf16, #tpu.memory_space<vmem>>, %arg5: memref<32x1xf32, #tpu.memory_space<vmem>>, %arg6: memref<32x32x552xbf16, #tpu.memory_space<vmem>>, %arg7: memref<32x1xf32, #tpu.memory_space<vmem>>, %arg8: memref<1x32x1xf32, #tpu.memory_space<vmem>>) attributes {dimension_semantics = [#tpu.dimension_semantics<parallel>], iteration_bounds = array<i64: 2>, scalar_prefetch = 0 : i64, scratch_operands = 0 : i64, tpu.core_type = #tpu.core_type<tc>, window_params = [{transform_indices = @transform_0, window_bounds = array<i64: 1, 1, 784>}, {pipeline_mode = #tpu.pipeline_mode<synchronous>, transform_indices = @transform_1, window_bounds = array<i64: 16, 25>}, {pipeline_mode = #tpu.pipeline_mode<synchronous>, transform_indices = @transform_2, window_bounds = array<i64: 16, 1>}, {pipeline_mode = #tpu.pipeline_mode<synchronous>, transform_indices = @transform_3, window_bounds = array<i64: 32, 400>}, {pipeline_mode = #tpu.pipeline_mode<synchronous>, transform_indices = @transform_4, window_bounds = array<i64: 32, 1>}, {pipeline_mode = #tpu.pipeline_mode<synchronous>, transform_indices = @transform_5, window_bounds = array<i64: 32, 32, 552>}, {pipeline_mode = #tpu.pipeline_mode<synchronous>, transform_indices = @transform_6, window_bounds = array<i64: 32, 1>}, {transform_indices = @transform_7, window_bounds = array<i64: 1, 32, 1>}]} {
    %c0 = arith.constant 0 : index
    %c0_0 = arith.constant 0 : index
    %c0_1 = arith.constant 0 : index
    %0 = vector.load %arg1[%c0, %c0_0, %c0_1] : memref<1x1x784xbf16, #tpu.memory_space<vmem>>, vector<1x1x784xbf16>
    %1 = vector.shape_cast %0 : vector<1x1x784xbf16> to vector<1x784xbf16>
    %2 = vector.extract_strided_slice %1 {offsets = [0, 0], sizes = [1, 668], strides = [1, 1]} : vector<1x784xbf16> to vector<1x668xbf16>
    %3 = vector.extract_strided_slice %1 {offsets = [0, 1], sizes = [1, 668], strides = [1, 1]} : vector<1x784xbf16> to vector<1x668xbf16>
    %4 = vector.extract_strided_slice %1 {offsets = [0, 2], sizes = [1, 668], strides = [1, 1]} : vector<1x784xbf16> to vector<1x668xbf16>
    %5 = vector.extract_strided_slice %1 {offsets = [0, 3], sizes = [1, 668], strides = [1, 1]} : vector<1x784xbf16> to vector<1x668xbf16>
    %6 = vector.extract_strided_slice %1 {offsets = [0, 4], sizes = [1, 668], strides = [1, 1]} : vector<1x784xbf16> to vector<1x668xbf16>
    %7 = vector.extract_strided_slice %1 {offsets = [0, 28], sizes = [1, 668], strides = [1, 1]} : vector<1x784xbf16> to vector<1x668xbf16>
    %8 = vector.extract_strided_slice %1 {offsets = [0, 29], sizes = [1, 668], strides = [1, 1]} : vector<1x784xbf16> to vector<1x668xbf16>
    %9 = vector.extract_strided_slice %1 {offsets = [0, 30], sizes = [1, 668], strides = [1, 1]} : vector<1x784xbf16> to vector<1x668xbf16>
    %10 = vector.extract_strided_slice %1 {offsets = [0, 31], sizes = [1, 668], strides = [1, 1]} : vector<1x784xbf16> to vector<1x668xbf16>
    %11 = vector.extract_strided_slice %1 {offsets = [0, 32], sizes = [1, 668], strides = [1, 1]} : vector<1x784xbf16> to vector<1x668xbf16>
    %12 = vector.extract_strided_slice %1 {offsets = [0, 56], sizes = [1, 668], strides = [1, 1]} : vector<1x784xbf16> to vector<1x668xbf16>
    %13 = vector.extract_strided_slice %1 {offsets = [0, 57], sizes = [1, 668], strides = [1, 1]} : vector<1x784xbf16> to vector<1x668xbf16>
    %14 = vector.extract_strided_slice %1 {offsets = [0, 58], sizes = [1, 668], strides = [1, 1]} : vector<1x784xbf16> to vector<1x668xbf16>
    %15 = vector.extract_strided_slice %1 {offsets = [0, 59], sizes = [1, 668], strides = [1, 1]} : vector<1x784xbf16> to vector<1x668xbf16>
    %16 = vector.extract_strided_slice %1 {offsets = [0, 60], sizes = [1, 668], strides = [1, 1]} : vector<1x784xbf16> to vector<1x668xbf16>
    %17 = vector.extract_strided_slice %1 {offsets = [0, 84], sizes = [1, 668], strides = [1, 1]} : vector<1x784xbf16> to vector<1x668xbf16>
    %18 = vector.extract_strided_slice %1 {offsets = [0, 85], sizes = [1, 668], strides = [1, 1]} : vector<1x784xbf16> to vector<1x668xbf16>
    %19 = vector.extract_strided_slice %1 {offsets = [0, 86], sizes = [1, 668], strides = [1, 1]} : vector<1x784xbf16> to vector<1x668xbf16>
    %20 = vector.extract_strided_slice %1 {offsets = [0, 87], sizes = [1, 668], strides = [1, 1]} : vector<1x784xbf16> to vector<1x668xbf16>
    %21 = vector.extract_strided_slice %1 {offsets = [0, 88], sizes = [1, 668], strides = [1, 1]} : vector<1x784xbf16> to vector<1x668xbf16>
    %22 = vector.extract_strided_slice %1 {offsets = [0, 112], sizes = [1, 668], strides = [1, 1]} : vector<1x784xbf16> to vector<1x668xbf16>
    %23 = vector.extract_strided_slice %1 {offsets = [0, 113], sizes = [1, 668], strides = [1, 1]} : vector<1x784xbf16> to vector<1x668xbf16>
    %24 = vector.extract_strided_slice %1 {offsets = [0, 114], sizes = [1, 668], strides = [1, 1]} : vector<1x784xbf16> to vector<1x668xbf16>
    %25 = vector.extract_strided_slice %1 {offsets = [0, 115], sizes = [1, 668], strides = [1, 1]} : vector<1x784xbf16> to vector<1x668xbf16>
    %26 = vector.extract_strided_slice %1 {offsets = [0, 116], sizes = [1, 668], strides = [1, 1]} : vector<1x784xbf16> to vector<1x668xbf16>
    %27 = tpu.concatenate %2, %3, %4, %5, %6, %7, %8, %9, %10, %11, %12, %13, %14, %15, %16, %17 in 0 : vector<1x668xbf16>, vector<1x668xbf16>, vector<1x668xbf16>, vector<1x668xbf16>, vector<1x668xbf16>, vector<1x668xbf16>, vector<1x668xbf16>, vector<1x668xbf16>, vector<1x668xbf16>, vector<1x668xbf16>, vector<1x668xbf16>, vector<1x668xbf16>, vector<1x668xbf16>, vector<1x668xbf16>, vector<1x668xbf16>, vector<1x668xbf16> -> vector<16x668xbf16>
    %28 = tpu.concatenate %18, %19, %20, %21, %22, %23, %24, %25, %26 in 0 : vector<1x668xbf16>, vector<1x668xbf16>, vector<1x668xbf16>, vector<1x668xbf16>, vector<1x668xbf16>, vector<1x668xbf16>, vector<1x668xbf16>, vector<1x668xbf16>, vector<1x668xbf16> -> vector<9x668xbf16>
    %29 = tpu.concatenate %27, %28 in 0 : vector<16x668xbf16>, vector<9x668xbf16> -> vector<25x668xbf16>
    %c0_2 = arith.constant 0 : index
    %c0_3 = arith.constant 0 : index
    %30 = vector.load %arg2[%c0_2, %c0_3] : memref<16x25xbf16, #tpu.memory_space<vmem>>, vector<16x25xbf16>
    %cst = arith.constant dense<0.000000e+00> : vector<16x668xf32>
    %31 = tpu.matmul %30, %29, %cst {dimension_numbers = #tpu.dot_dimension_numbers<[1], [0], [0], [1], [0, 0, 1, 1], [], []>} : vector<16x25xbf16>, vector<25x668xbf16>, vector<16x668xf32> -> vector<16x668xf32>
    %c0_4 = arith.constant 0 : index
    %c0_5 = arith.constant 0 : index
    %32 = vector.load %arg3[%c0_4, %c0_5] : memref<16x1xf32, #tpu.memory_space<vmem>>, vector<16x1xf32>
    %33 = vector.broadcast %32 : vector<16x1xf32> to vector<16x668xf32>
    %34 = arith.addf %31, %33 : vector<16x668xf32>
    %cst_6 = arith.constant 0.000000e+00 : f32
    %35 = vector.broadcast %cst_6 : f32 to vector<16x668xf32>
    %36 = arith.maximumf %34, %35 : vector<16x668xf32>
    %37 = arith.truncf %36 : vector<16x668xf32> to vector<16x668xbf16>
    %38 = vector.extract_strided_slice %37 {offsets = [0, 0], sizes = [16, 552], strides = [1, 1]} : vector<16x668xbf16> to vector<16x552xbf16>
    %39 = vector.extract_strided_slice %37 {offsets = [0, 1], sizes = [16, 552], strides = [1, 1]} : vector<16x668xbf16> to vector<16x552xbf16>
    %40 = vector.extract_strided_slice %37 {offsets = [0, 2], sizes = [16, 552], strides = [1, 1]} : vector<16x668xbf16> to vector<16x552xbf16>
    %41 = vector.extract_strided_slice %37 {offsets = [0, 3], sizes = [16, 552], strides = [1, 1]} : vector<16x668xbf16> to vector<16x552xbf16>
    %42 = vector.extract_strided_slice %37 {offsets = [0, 4], sizes = [16, 552], strides = [1, 1]} : vector<16x668xbf16> to vector<16x552xbf16>
    %43 = vector.extract_strided_slice %37 {offsets = [0, 28], sizes = [16, 552], strides = [1, 1]} : vector<16x668xbf16> to vector<16x552xbf16>
    %44 = vector.extract_strided_slice %37 {offsets = [0, 29], sizes = [16, 552], strides = [1, 1]} : vector<16x668xbf16> to vector<16x552xbf16>
    %45 = vector.extract_strided_slice %37 {offsets = [0, 30], sizes = [16, 552], strides = [1, 1]} : vector<16x668xbf16> to vector<16x552xbf16>
    %46 = vector.extract_strided_slice %37 {offsets = [0, 31], sizes = [16, 552], strides = [1, 1]} : vector<16x668xbf16> to vector<16x552xbf16>
    %47 = vector.extract_strided_slice %37 {offsets = [0, 32], sizes = [16, 552], strides = [1, 1]} : vector<16x668xbf16> to vector<16x552xbf16>
    %48 = vector.extract_strided_slice %37 {offsets = [0, 56], sizes = [16, 552], strides = [1, 1]} : vector<16x668xbf16> to vector<16x552xbf16>
    %49 = vector.extract_strided_slice %37 {offsets = [0, 57], sizes = [16, 552], strides = [1, 1]} : vector<16x668xbf16> to vector<16x552xbf16>
    %50 = vector.extract_strided_slice %37 {offsets = [0, 58], sizes = [16, 552], strides = [1, 1]} : vector<16x668xbf16> to vector<16x552xbf16>
    %51 = vector.extract_strided_slice %37 {offsets = [0, 59], sizes = [16, 552], strides = [1, 1]} : vector<16x668xbf16> to vector<16x552xbf16>
    %52 = vector.extract_strided_slice %37 {offsets = [0, 60], sizes = [16, 552], strides = [1, 1]} : vector<16x668xbf16> to vector<16x552xbf16>
    %53 = vector.extract_strided_slice %37 {offsets = [0, 84], sizes = [16, 552], strides = [1, 1]} : vector<16x668xbf16> to vector<16x552xbf16>
    %54 = vector.extract_strided_slice %37 {offsets = [0, 85], sizes = [16, 552], strides = [1, 1]} : vector<16x668xbf16> to vector<16x552xbf16>
    %55 = vector.extract_strided_slice %37 {offsets = [0, 86], sizes = [16, 552], strides = [1, 1]} : vector<16x668xbf16> to vector<16x552xbf16>
    %56 = vector.extract_strided_slice %37 {offsets = [0, 87], sizes = [16, 552], strides = [1, 1]} : vector<16x668xbf16> to vector<16x552xbf16>
    %57 = vector.extract_strided_slice %37 {offsets = [0, 88], sizes = [16, 552], strides = [1, 1]} : vector<16x668xbf16> to vector<16x552xbf16>
    %58 = vector.extract_strided_slice %37 {offsets = [0, 112], sizes = [16, 552], strides = [1, 1]} : vector<16x668xbf16> to vector<16x552xbf16>
    %59 = vector.extract_strided_slice %37 {offsets = [0, 113], sizes = [16, 552], strides = [1, 1]} : vector<16x668xbf16> to vector<16x552xbf16>
    %60 = vector.extract_strided_slice %37 {offsets = [0, 114], sizes = [16, 552], strides = [1, 1]} : vector<16x668xbf16> to vector<16x552xbf16>
    %61 = vector.extract_strided_slice %37 {offsets = [0, 115], sizes = [16, 552], strides = [1, 1]} : vector<16x668xbf16> to vector<16x552xbf16>
    %62 = vector.extract_strided_slice %37 {offsets = [0, 116], sizes = [16, 552], strides = [1, 1]} : vector<16x668xbf16> to vector<16x552xbf16>
    %63 = tpu.concatenate %38, %39, %40, %41, %42, %43, %44, %45, %46, %47, %48, %49, %50, %51, %52, %53 in 0 : vector<16x552xbf16>, vector<16x552xbf16>, vector<16x552xbf16>, vector<16x552xbf16>, vector<16x552xbf16>, vector<16x552xbf16>, vector<16x552xbf16>, vector<16x552xbf16>, vector<16x552xbf16>, vector<16x552xbf16>, vector<16x552xbf16>, vector<16x552xbf16>, vector<16x552xbf16>, vector<16x552xbf16>, vector<16x552xbf16>, vector<16x552xbf16> -> vector<256x552xbf16>
    %64 = tpu.concatenate %54, %55, %56, %57, %58, %59, %60, %61, %62 in 0 : vector<16x552xbf16>, vector<16x552xbf16>, vector<16x552xbf16>, vector<16x552xbf16>, vector<16x552xbf16>, vector<16x552xbf16>, vector<16x552xbf16>, vector<16x552xbf16>, vector<16x552xbf16> -> vector<144x552xbf16>
    %65 = tpu.concatenate %63, %64 in 0 : vector<256x552xbf16>, vector<144x552xbf16> -> vector<400x552xbf16>
    %c0_7 = arith.constant 0 : index
    %c0_8 = arith.constant 0 : index
    %66 = vector.load %arg4[%c0_7, %c0_8] : memref<32x400xbf16, #tpu.memory_space<vmem>>, vector<32x400xbf16>
    %cst_9 = arith.constant dense<0.000000e+00> : vector<32x552xf32>
    %67 = tpu.matmul %66, %65, %cst_9 {dimension_numbers = #tpu.dot_dimension_numbers<[1], [0], [0], [1], [0, 0, 1, 1], [], []>} : vector<32x400xbf16>, vector<400x552xbf16>, vector<32x552xf32> -> vector<32x552xf32>
    %c0_10 = arith.constant 0 : index
    %c0_11 = arith.constant 0 : index
    %68 = vector.load %arg5[%c0_10, %c0_11] : memref<32x1xf32, #tpu.memory_space<vmem>>, vector<32x1xf32>
    %69 = vector.broadcast %68 : vector<32x1xf32> to vector<32x552xf32>
    %70 = arith.addf %67, %69 : vector<32x552xf32>
    %cst_12 = arith.constant 0.000000e+00 : f32
    %71 = vector.broadcast %cst_12 : f32 to vector<32x552xf32>
    %72 = arith.maximumf %70, %71 : vector<32x552xf32>
    %cst_13 = arith.constant 0.000000e+00 : f32
    %73 = vector.broadcast %cst_13 : f32 to vector<32x552xf32>
    %c0_14 = arith.constant 0 : index
    %c0_15 = arith.constant 0 : index
    %c0_16 = arith.constant 0 : index
    %74 = vector.load %arg6[%c0_14, %c0_15, %c0_16] : memref<32x32x552xbf16, #tpu.memory_space<vmem>>, vector<1x32x552xbf16>
    %75 = vector.shape_cast %74 : vector<1x32x552xbf16> to vector<32x552xbf16>
    %76 = arith.extf %75 : vector<32x552xbf16> to vector<32x552xf32>
    %77 = vector.extract_strided_slice %72 {offsets = [0, 0], sizes = [1, 552], strides = [1, 1]} : vector<32x552xf32> to vector<1x552xf32>
    %78 = vector.broadcast %77 : vector<1x552xf32> to vector<32x552xf32>
    %79 = arith.mulf %76, %78 : vector<32x552xf32>
    %80 = arith.addf %73, %79 : vector<32x552xf32>
    %c1 = arith.constant 1 : index
    %c0_17 = arith.constant 0 : index
    %c0_18 = arith.constant 0 : index
    %81 = vector.load %arg6[%c1, %c0_17, %c0_18] : memref<32x32x552xbf16, #tpu.memory_space<vmem>>, vector<1x32x552xbf16>
    %82 = vector.shape_cast %81 : vector<1x32x552xbf16> to vector<32x552xbf16>
    %83 = arith.extf %82 : vector<32x552xbf16> to vector<32x552xf32>
    %84 = vector.extract_strided_slice %72 {offsets = [1, 0], sizes = [1, 552], strides = [1, 1]} : vector<32x552xf32> to vector<1x552xf32>
    %85 = vector.broadcast %84 : vector<1x552xf32> to vector<32x552xf32>
    %86 = arith.mulf %83, %85 : vector<32x552xf32>
    %87 = arith.addf %80, %86 : vector<32x552xf32>
    %c2 = arith.constant 2 : index
    %c0_19 = arith.constant 0 : index
    %c0_20 = arith.constant 0 : index
    %88 = vector.load %arg6[%c2, %c0_19, %c0_20] : memref<32x32x552xbf16, #tpu.memory_space<vmem>>, vector<1x32x552xbf16>
    %89 = vector.shape_cast %88 : vector<1x32x552xbf16> to vector<32x552xbf16>
    %90 = arith.extf %89 : vector<32x552xbf16> to vector<32x552xf32>
    %91 = vector.extract_strided_slice %72 {offsets = [2, 0], sizes = [1, 552], strides = [1, 1]} : vector<32x552xf32> to vector<1x552xf32>
    %92 = vector.broadcast %91 : vector<1x552xf32> to vector<32x552xf32>
    %93 = arith.mulf %90, %92 : vector<32x552xf32>
    %94 = arith.addf %87, %93 : vector<32x552xf32>
    %c3 = arith.constant 3 : index
    %c0_21 = arith.constant 0 : index
    %c0_22 = arith.constant 0 : index
    %95 = vector.load %arg6[%c3, %c0_21, %c0_22] : memref<32x32x552xbf16, #tpu.memory_space<vmem>>, vector<1x32x552xbf16>
    %96 = vector.shape_cast %95 : vector<1x32x552xbf16> to vector<32x552xbf16>
    %97 = arith.extf %96 : vector<32x552xbf16> to vector<32x552xf32>
    %98 = vector.extract_strided_slice %72 {offsets = [3, 0], sizes = [1, 552], strides = [1, 1]} : vector<32x552xf32> to vector<1x552xf32>
    %99 = vector.broadcast %98 : vector<1x552xf32> to vector<32x552xf32>
    %100 = arith.mulf %97, %99 : vector<32x552xf32>
    %101 = arith.addf %94, %100 : vector<32x552xf32>
    %c4 = arith.constant 4 : index
    %c0_23 = arith.constant 0 : index
    %c0_24 = arith.constant 0 : index
    %102 = vector.load %arg6[%c4, %c0_23, %c0_24] : memref<32x32x552xbf16, #tpu.memory_space<vmem>>, vector<1x32x552xbf16>
    %103 = vector.shape_cast %102 : vector<1x32x552xbf16> to vector<32x552xbf16>
    %104 = arith.extf %103 : vector<32x552xbf16> to vector<32x552xf32>
    %105 = vector.extract_strided_slice %72 {offsets = [4, 0], sizes = [1, 552], strides = [1, 1]} : vector<32x552xf32> to vector<1x552xf32>
    %106 = vector.broadcast %105 : vector<1x552xf32> to vector<32x552xf32>
    %107 = arith.mulf %104, %106 : vector<32x552xf32>
    %108 = arith.addf %101, %107 : vector<32x552xf32>
    %c5 = arith.constant 5 : index
    %c0_25 = arith.constant 0 : index
    %c0_26 = arith.constant 0 : index
    %109 = vector.load %arg6[%c5, %c0_25, %c0_26] : memref<32x32x552xbf16, #tpu.memory_space<vmem>>, vector<1x32x552xbf16>
    %110 = vector.shape_cast %109 : vector<1x32x552xbf16> to vector<32x552xbf16>
    %111 = arith.extf %110 : vector<32x552xbf16> to vector<32x552xf32>
    %112 = vector.extract_strided_slice %72 {offsets = [5, 0], sizes = [1, 552], strides = [1, 1]} : vector<32x552xf32> to vector<1x552xf32>
    %113 = vector.broadcast %112 : vector<1x552xf32> to vector<32x552xf32>
    %114 = arith.mulf %111, %113 : vector<32x552xf32>
    %115 = arith.addf %108, %114 : vector<32x552xf32>
    %c6 = arith.constant 6 : index
    %c0_27 = arith.constant 0 : index
    %c0_28 = arith.constant 0 : index
    %116 = vector.load %arg6[%c6, %c0_27, %c0_28] : memref<32x32x552xbf16, #tpu.memory_space<vmem>>, vector<1x32x552xbf16>
    %117 = vector.shape_cast %116 : vector<1x32x552xbf16> to vector<32x552xbf16>
    %118 = arith.extf %117 : vector<32x552xbf16> to vector<32x552xf32>
    %119 = vector.extract_strided_slice %72 {offsets = [6, 0], sizes = [1, 552], strides = [1, 1]} : vector<32x552xf32> to vector<1x552xf32>
    %120 = vector.broadcast %119 : vector<1x552xf32> to vector<32x552xf32>
    %121 = arith.mulf %118, %120 : vector<32x552xf32>
    %122 = arith.addf %115, %121 : vector<32x552xf32>
    %c7 = arith.constant 7 : index
    %c0_29 = arith.constant 0 : index
    %c0_30 = arith.constant 0 : index
    %123 = vector.load %arg6[%c7, %c0_29, %c0_30] : memref<32x32x552xbf16, #tpu.memory_space<vmem>>, vector<1x32x552xbf16>
    %124 = vector.shape_cast %123 : vector<1x32x552xbf16> to vector<32x552xbf16>
    %125 = arith.extf %124 : vector<32x552xbf16> to vector<32x552xf32>
    %126 = vector.extract_strided_slice %72 {offsets = [7, 0], sizes = [1, 552], strides = [1, 1]} : vector<32x552xf32> to vector<1x552xf32>
    %127 = vector.broadcast %126 : vector<1x552xf32> to vector<32x552xf32>
    %128 = arith.mulf %125, %127 : vector<32x552xf32>
    %129 = arith.addf %122, %128 : vector<32x552xf32>
    %c8 = arith.constant 8 : index
    %c0_31 = arith.constant 0 : index
    %c0_32 = arith.constant 0 : index
    %130 = vector.load %arg6[%c8, %c0_31, %c0_32] : memref<32x32x552xbf16, #tpu.memory_space<vmem>>, vector<1x32x552xbf16>
    %131 = vector.shape_cast %130 : vector<1x32x552xbf16> to vector<32x552xbf16>
    %132 = arith.extf %131 : vector<32x552xbf16> to vector<32x552xf32>
    %133 = vector.extract_strided_slice %72 {offsets = [8, 0], sizes = [1, 552], strides = [1, 1]} : vector<32x552xf32> to vector<1x552xf32>
    %134 = vector.broadcast %133 : vector<1x552xf32> to vector<32x552xf32>
    %135 = arith.mulf %132, %134 : vector<32x552xf32>
    %136 = arith.addf %129, %135 : vector<32x552xf32>
    %c9 = arith.constant 9 : index
    %c0_33 = arith.constant 0 : index
    %c0_34 = arith.constant 0 : index
    %137 = vector.load %arg6[%c9, %c0_33, %c0_34] : memref<32x32x552xbf16, #tpu.memory_space<vmem>>, vector<1x32x552xbf16>
    %138 = vector.shape_cast %137 : vector<1x32x552xbf16> to vector<32x552xbf16>
    %139 = arith.extf %138 : vector<32x552xbf16> to vector<32x552xf32>
    %140 = vector.extract_strided_slice %72 {offsets = [9, 0], sizes = [1, 552], strides = [1, 1]} : vector<32x552xf32> to vector<1x552xf32>
    %141 = vector.broadcast %140 : vector<1x552xf32> to vector<32x552xf32>
    %142 = arith.mulf %139, %141 : vector<32x552xf32>
    %143 = arith.addf %136, %142 : vector<32x552xf32>
    %c10 = arith.constant 10 : index
    %c0_35 = arith.constant 0 : index
    %c0_36 = arith.constant 0 : index
    %144 = vector.load %arg6[%c10, %c0_35, %c0_36] : memref<32x32x552xbf16, #tpu.memory_space<vmem>>, vector<1x32x552xbf16>
    %145 = vector.shape_cast %144 : vector<1x32x552xbf16> to vector<32x552xbf16>
    %146 = arith.extf %145 : vector<32x552xbf16> to vector<32x552xf32>
    %147 = vector.extract_strided_slice %72 {offsets = [10, 0], sizes = [1, 552], strides = [1, 1]} : vector<32x552xf32> to vector<1x552xf32>
    %148 = vector.broadcast %147 : vector<1x552xf32> to vector<32x552xf32>
    %149 = arith.mulf %146, %148 : vector<32x552xf32>
    %150 = arith.addf %143, %149 : vector<32x552xf32>
    %c11 = arith.constant 11 : index
    %c0_37 = arith.constant 0 : index
    %c0_38 = arith.constant 0 : index
    %151 = vector.load %arg6[%c11, %c0_37, %c0_38] : memref<32x32x552xbf16, #tpu.memory_space<vmem>>, vector<1x32x552xbf16>
    %152 = vector.shape_cast %151 : vector<1x32x552xbf16> to vector<32x552xbf16>
    %153 = arith.extf %152 : vector<32x552xbf16> to vector<32x552xf32>
    %154 = vector.extract_strided_slice %72 {offsets = [11, 0], sizes = [1, 552], strides = [1, 1]} : vector<32x552xf32> to vector<1x552xf32>
    %155 = vector.broadcast %154 : vector<1x552xf32> to vector<32x552xf32>
    %156 = arith.mulf %153, %155 : vector<32x552xf32>
    %157 = arith.addf %150, %156 : vector<32x552xf32>
    %c12 = arith.constant 12 : index
    %c0_39 = arith.constant 0 : index
    %c0_40 = arith.constant 0 : index
    %158 = vector.load %arg6[%c12, %c0_39, %c0_40] : memref<32x32x552xbf16, #tpu.memory_space<vmem>>, vector<1x32x552xbf16>
    %159 = vector.shape_cast %158 : vector<1x32x552xbf16> to vector<32x552xbf16>
    %160 = arith.extf %159 : vector<32x552xbf16> to vector<32x552xf32>
    %161 = vector.extract_strided_slice %72 {offsets = [12, 0], sizes = [1, 552], strides = [1, 1]} : vector<32x552xf32> to vector<1x552xf32>
    %162 = vector.broadcast %161 : vector<1x552xf32> to vector<32x552xf32>
    %163 = arith.mulf %160, %162 : vector<32x552xf32>
    %164 = arith.addf %157, %163 : vector<32x552xf32>
    %c13 = arith.constant 13 : index
    %c0_41 = arith.constant 0 : index
    %c0_42 = arith.constant 0 : index
    %165 = vector.load %arg6[%c13, %c0_41, %c0_42] : memref<32x32x552xbf16, #tpu.memory_space<vmem>>, vector<1x32x552xbf16>
    %166 = vector.shape_cast %165 : vector<1x32x552xbf16> to vector<32x552xbf16>
    %167 = arith.extf %166 : vector<32x552xbf16> to vector<32x552xf32>
    %168 = vector.extract_strided_slice %72 {offsets = [13, 0], sizes = [1, 552], strides = [1, 1]} : vector<32x552xf32> to vector<1x552xf32>
    %169 = vector.broadcast %168 : vector<1x552xf32> to vector<32x552xf32>
    %170 = arith.mulf %167, %169 : vector<32x552xf32>
    %171 = arith.addf %164, %170 : vector<32x552xf32>
    %c14 = arith.constant 14 : index
    %c0_43 = arith.constant 0 : index
    %c0_44 = arith.constant 0 : index
    %172 = vector.load %arg6[%c14, %c0_43, %c0_44] : memref<32x32x552xbf16, #tpu.memory_space<vmem>>, vector<1x32x552xbf16>
    %173 = vector.shape_cast %172 : vector<1x32x552xbf16> to vector<32x552xbf16>
    %174 = arith.extf %173 : vector<32x552xbf16> to vector<32x552xf32>
    %175 = vector.extract_strided_slice %72 {offsets = [14, 0], sizes = [1, 552], strides = [1, 1]} : vector<32x552xf32> to vector<1x552xf32>
    %176 = vector.broadcast %175 : vector<1x552xf32> to vector<32x552xf32>
    %177 = arith.mulf %174, %176 : vector<32x552xf32>
    %178 = arith.addf %171, %177 : vector<32x552xf32>
    %c15 = arith.constant 15 : index
    %c0_45 = arith.constant 0 : index
    %c0_46 = arith.constant 0 : index
    %179 = vector.load %arg6[%c15, %c0_45, %c0_46] : memref<32x32x552xbf16, #tpu.memory_space<vmem>>, vector<1x32x552xbf16>
    %180 = vector.shape_cast %179 : vector<1x32x552xbf16> to vector<32x552xbf16>
    %181 = arith.extf %180 : vector<32x552xbf16> to vector<32x552xf32>
    %182 = vector.extract_strided_slice %72 {offsets = [15, 0], sizes = [1, 552], strides = [1, 1]} : vector<32x552xf32> to vector<1x552xf32>
    %183 = vector.broadcast %182 : vector<1x552xf32> to vector<32x552xf32>
    %184 = arith.mulf %181, %183 : vector<32x552xf32>
    %185 = arith.addf %178, %184 : vector<32x552xf32>
    %c16 = arith.constant 16 : index
    %c0_47 = arith.constant 0 : index
    %c0_48 = arith.constant 0 : index
    %186 = vector.load %arg6[%c16, %c0_47, %c0_48] : memref<32x32x552xbf16, #tpu.memory_space<vmem>>, vector<1x32x552xbf16>
    %187 = vector.shape_cast %186 : vector<1x32x552xbf16> to vector<32x552xbf16>
    %188 = arith.extf %187 : vector<32x552xbf16> to vector<32x552xf32>
    %189 = vector.extract_strided_slice %72 {offsets = [16, 0], sizes = [1, 552], strides = [1, 1]} : vector<32x552xf32> to vector<1x552xf32>
    %190 = vector.broadcast %189 : vector<1x552xf32> to vector<32x552xf32>
    %191 = arith.mulf %188, %190 : vector<32x552xf32>
    %192 = arith.addf %185, %191 : vector<32x552xf32>
    %c17 = arith.constant 17 : index
    %c0_49 = arith.constant 0 : index
    %c0_50 = arith.constant 0 : index
    %193 = vector.load %arg6[%c17, %c0_49, %c0_50] : memref<32x32x552xbf16, #tpu.memory_space<vmem>>, vector<1x32x552xbf16>
    %194 = vector.shape_cast %193 : vector<1x32x552xbf16> to vector<32x552xbf16>
    %195 = arith.extf %194 : vector<32x552xbf16> to vector<32x552xf32>
    %196 = vector.extract_strided_slice %72 {offsets = [17, 0], sizes = [1, 552], strides = [1, 1]} : vector<32x552xf32> to vector<1x552xf32>
    %197 = vector.broadcast %196 : vector<1x552xf32> to vector<32x552xf32>
    %198 = arith.mulf %195, %197 : vector<32x552xf32>
    %199 = arith.addf %192, %198 : vector<32x552xf32>
    %c18 = arith.constant 18 : index
    %c0_51 = arith.constant 0 : index
    %c0_52 = arith.constant 0 : index
    %200 = vector.load %arg6[%c18, %c0_51, %c0_52] : memref<32x32x552xbf16, #tpu.memory_space<vmem>>, vector<1x32x552xbf16>
    %201 = vector.shape_cast %200 : vector<1x32x552xbf16> to vector<32x552xbf16>
    %202 = arith.extf %201 : vector<32x552xbf16> to vector<32x552xf32>
    %203 = vector.extract_strided_slice %72 {offsets = [18, 0], sizes = [1, 552], strides = [1, 1]} : vector<32x552xf32> to vector<1x552xf32>
    %204 = vector.broadcast %203 : vector<1x552xf32> to vector<32x552xf32>
    %205 = arith.mulf %202, %204 : vector<32x552xf32>
    %206 = arith.addf %199, %205 : vector<32x552xf32>
    %c19 = arith.constant 19 : index
    %c0_53 = arith.constant 0 : index
    %c0_54 = arith.constant 0 : index
    %207 = vector.load %arg6[%c19, %c0_53, %c0_54] : memref<32x32x552xbf16, #tpu.memory_space<vmem>>, vector<1x32x552xbf16>
    %208 = vector.shape_cast %207 : vector<1x32x552xbf16> to vector<32x552xbf16>
    %209 = arith.extf %208 : vector<32x552xbf16> to vector<32x552xf32>
    %210 = vector.extract_strided_slice %72 {offsets = [19, 0], sizes = [1, 552], strides = [1, 1]} : vector<32x552xf32> to vector<1x552xf32>
    %211 = vector.broadcast %210 : vector<1x552xf32> to vector<32x552xf32>
    %212 = arith.mulf %209, %211 : vector<32x552xf32>
    %213 = arith.addf %206, %212 : vector<32x552xf32>
    %c20 = arith.constant 20 : index
    %c0_55 = arith.constant 0 : index
    %c0_56 = arith.constant 0 : index
    %214 = vector.load %arg6[%c20, %c0_55, %c0_56] : memref<32x32x552xbf16, #tpu.memory_space<vmem>>, vector<1x32x552xbf16>
    %215 = vector.shape_cast %214 : vector<1x32x552xbf16> to vector<32x552xbf16>
    %216 = arith.extf %215 : vector<32x552xbf16> to vector<32x552xf32>
    %217 = vector.extract_strided_slice %72 {offsets = [20, 0], sizes = [1, 552], strides = [1, 1]} : vector<32x552xf32> to vector<1x552xf32>
    %218 = vector.broadcast %217 : vector<1x552xf32> to vector<32x552xf32>
    %219 = arith.mulf %216, %218 : vector<32x552xf32>
    %220 = arith.addf %213, %219 : vector<32x552xf32>
    %c21 = arith.constant 21 : index
    %c0_57 = arith.constant 0 : index
    %c0_58 = arith.constant 0 : index
    %221 = vector.load %arg6[%c21, %c0_57, %c0_58] : memref<32x32x552xbf16, #tpu.memory_space<vmem>>, vector<1x32x552xbf16>
    %222 = vector.shape_cast %221 : vector<1x32x552xbf16> to vector<32x552xbf16>
    %223 = arith.extf %222 : vector<32x552xbf16> to vector<32x552xf32>
    %224 = vector.extract_strided_slice %72 {offsets = [21, 0], sizes = [1, 552], strides = [1, 1]} : vector<32x552xf32> to vector<1x552xf32>
    %225 = vector.broadcast %224 : vector<1x552xf32> to vector<32x552xf32>
    %226 = arith.mulf %223, %225 : vector<32x552xf32>
    %227 = arith.addf %220, %226 : vector<32x552xf32>
    %c22 = arith.constant 22 : index
    %c0_59 = arith.constant 0 : index
    %c0_60 = arith.constant 0 : index
    %228 = vector.load %arg6[%c22, %c0_59, %c0_60] : memref<32x32x552xbf16, #tpu.memory_space<vmem>>, vector<1x32x552xbf16>
    %229 = vector.shape_cast %228 : vector<1x32x552xbf16> to vector<32x552xbf16>
    %230 = arith.extf %229 : vector<32x552xbf16> to vector<32x552xf32>
    %231 = vector.extract_strided_slice %72 {offsets = [22, 0], sizes = [1, 552], strides = [1, 1]} : vector<32x552xf32> to vector<1x552xf32>
    %232 = vector.broadcast %231 : vector<1x552xf32> to vector<32x552xf32>
    %233 = arith.mulf %230, %232 : vector<32x552xf32>
    %234 = arith.addf %227, %233 : vector<32x552xf32>
    %c23 = arith.constant 23 : index
    %c0_61 = arith.constant 0 : index
    %c0_62 = arith.constant 0 : index
    %235 = vector.load %arg6[%c23, %c0_61, %c0_62] : memref<32x32x552xbf16, #tpu.memory_space<vmem>>, vector<1x32x552xbf16>
    %236 = vector.shape_cast %235 : vector<1x32x552xbf16> to vector<32x552xbf16>
    %237 = arith.extf %236 : vector<32x552xbf16> to vector<32x552xf32>
    %238 = vector.extract_strided_slice %72 {offsets = [23, 0], sizes = [1, 552], strides = [1, 1]} : vector<32x552xf32> to vector<1x552xf32>
    %239 = vector.broadcast %238 : vector<1x552xf32> to vector<32x552xf32>
    %240 = arith.mulf %237, %239 : vector<32x552xf32>
    %241 = arith.addf %234, %240 : vector<32x552xf32>
    %c24 = arith.constant 24 : index
    %c0_63 = arith.constant 0 : index
    %c0_64 = arith.constant 0 : index
    %242 = vector.load %arg6[%c24, %c0_63, %c0_64] : memref<32x32x552xbf16, #tpu.memory_space<vmem>>, vector<1x32x552xbf16>
    %243 = vector.shape_cast %242 : vector<1x32x552xbf16> to vector<32x552xbf16>
    %244 = arith.extf %243 : vector<32x552xbf16> to vector<32x552xf32>
    %245 = vector.extract_strided_slice %72 {offsets = [24, 0], sizes = [1, 552], strides = [1, 1]} : vector<32x552xf32> to vector<1x552xf32>
    %246 = vector.broadcast %245 : vector<1x552xf32> to vector<32x552xf32>
    %247 = arith.mulf %244, %246 : vector<32x552xf32>
    %248 = arith.addf %241, %247 : vector<32x552xf32>
    %c25 = arith.constant 25 : index
    %c0_65 = arith.constant 0 : index
    %c0_66 = arith.constant 0 : index
    %249 = vector.load %arg6[%c25, %c0_65, %c0_66] : memref<32x32x552xbf16, #tpu.memory_space<vmem>>, vector<1x32x552xbf16>
    %250 = vector.shape_cast %249 : vector<1x32x552xbf16> to vector<32x552xbf16>
    %251 = arith.extf %250 : vector<32x552xbf16> to vector<32x552xf32>
    %252 = vector.extract_strided_slice %72 {offsets = [25, 0], sizes = [1, 552], strides = [1, 1]} : vector<32x552xf32> to vector<1x552xf32>
    %253 = vector.broadcast %252 : vector<1x552xf32> to vector<32x552xf32>
    %254 = arith.mulf %251, %253 : vector<32x552xf32>
    %255 = arith.addf %248, %254 : vector<32x552xf32>
    %c26 = arith.constant 26 : index
    %c0_67 = arith.constant 0 : index
    %c0_68 = arith.constant 0 : index
    %256 = vector.load %arg6[%c26, %c0_67, %c0_68] : memref<32x32x552xbf16, #tpu.memory_space<vmem>>, vector<1x32x552xbf16>
    %257 = vector.shape_cast %256 : vector<1x32x552xbf16> to vector<32x552xbf16>
    %258 = arith.extf %257 : vector<32x552xbf16> to vector<32x552xf32>
    %259 = vector.extract_strided_slice %72 {offsets = [26, 0], sizes = [1, 552], strides = [1, 1]} : vector<32x552xf32> to vector<1x552xf32>
    %260 = vector.broadcast %259 : vector<1x552xf32> to vector<32x552xf32>
    %261 = arith.mulf %258, %260 : vector<32x552xf32>
    %262 = arith.addf %255, %261 : vector<32x552xf32>
    %c27 = arith.constant 27 : index
    %c0_69 = arith.constant 0 : index
    %c0_70 = arith.constant 0 : index
    %263 = vector.load %arg6[%c27, %c0_69, %c0_70] : memref<32x32x552xbf16, #tpu.memory_space<vmem>>, vector<1x32x552xbf16>
    %264 = vector.shape_cast %263 : vector<1x32x552xbf16> to vector<32x552xbf16>
    %265 = arith.extf %264 : vector<32x552xbf16> to vector<32x552xf32>
    %266 = vector.extract_strided_slice %72 {offsets = [27, 0], sizes = [1, 552], strides = [1, 1]} : vector<32x552xf32> to vector<1x552xf32>
    %267 = vector.broadcast %266 : vector<1x552xf32> to vector<32x552xf32>
    %268 = arith.mulf %265, %267 : vector<32x552xf32>
    %269 = arith.addf %262, %268 : vector<32x552xf32>
    %c28 = arith.constant 28 : index
    %c0_71 = arith.constant 0 : index
    %c0_72 = arith.constant 0 : index
    %270 = vector.load %arg6[%c28, %c0_71, %c0_72] : memref<32x32x552xbf16, #tpu.memory_space<vmem>>, vector<1x32x552xbf16>
    %271 = vector.shape_cast %270 : vector<1x32x552xbf16> to vector<32x552xbf16>
    %272 = arith.extf %271 : vector<32x552xbf16> to vector<32x552xf32>
    %273 = vector.extract_strided_slice %72 {offsets = [28, 0], sizes = [1, 552], strides = [1, 1]} : vector<32x552xf32> to vector<1x552xf32>
    %274 = vector.broadcast %273 : vector<1x552xf32> to vector<32x552xf32>
    %275 = arith.mulf %272, %274 : vector<32x552xf32>
    %276 = arith.addf %269, %275 : vector<32x552xf32>
    %c29 = arith.constant 29 : index
    %c0_73 = arith.constant 0 : index
    %c0_74 = arith.constant 0 : index
    %277 = vector.load %arg6[%c29, %c0_73, %c0_74] : memref<32x32x552xbf16, #tpu.memory_space<vmem>>, vector<1x32x552xbf16>
    %278 = vector.shape_cast %277 : vector<1x32x552xbf16> to vector<32x552xbf16>
    %279 = arith.extf %278 : vector<32x552xbf16> to vector<32x552xf32>
    %280 = vector.extract_strided_slice %72 {offsets = [29, 0], sizes = [1, 552], strides = [1, 1]} : vector<32x552xf32> to vector<1x552xf32>
    %281 = vector.broadcast %280 : vector<1x552xf32> to vector<32x552xf32>
    %282 = arith.mulf %279, %281 : vector<32x552xf32>
    %283 = arith.addf %276, %282 : vector<32x552xf32>
    %c30 = arith.constant 30 : index
    %c0_75 = arith.constant 0 : index
    %c0_76 = arith.constant 0 : index
    %284 = vector.load %arg6[%c30, %c0_75, %c0_76] : memref<32x32x552xbf16, #tpu.memory_space<vmem>>, vector<1x32x552xbf16>
    %285 = vector.shape_cast %284 : vector<1x32x552xbf16> to vector<32x552xbf16>
    %286 = arith.extf %285 : vector<32x552xbf16> to vector<32x552xf32>
    %287 = vector.extract_strided_slice %72 {offsets = [30, 0], sizes = [1, 552], strides = [1, 1]} : vector<32x552xf32> to vector<1x552xf32>
    %288 = vector.broadcast %287 : vector<1x552xf32> to vector<32x552xf32>
    %289 = arith.mulf %286, %288 : vector<32x552xf32>
    %290 = arith.addf %283, %289 : vector<32x552xf32>
    %c31 = arith.constant 31 : index
    %c0_77 = arith.constant 0 : index
    %c0_78 = arith.constant 0 : index
    %291 = vector.load %arg6[%c31, %c0_77, %c0_78] : memref<32x32x552xbf16, #tpu.memory_space<vmem>>, vector<1x32x552xbf16>
    %292 = vector.shape_cast %291 : vector<1x32x552xbf16> to vector<32x552xbf16>
    %293 = arith.extf %292 : vector<32x552xbf16> to vector<32x552xf32>
    %294 = vector.extract_strided_slice %72 {offsets = [31, 0], sizes = [1, 552], strides = [1, 1]} : vector<32x552xf32> to vector<1x552xf32>
    %295 = vector.broadcast %294 : vector<1x552xf32> to vector<32x552xf32>
    %296 = arith.mulf %293, %295 : vector<32x552xf32>
    %297 = arith.addf %290, %296 : vector<32x552xf32>
    %cst_79 = arith.constant dense<0.000000e+00> : vector<32xf32>
    %298 = vector.multi_reduction <add>, %297, %cst_79 [1] : vector<32x552xf32> to vector<32xf32>
    %299 = vector.shape_cast %298 : vector<32xf32> to vector<32x1xf32>
    %c0_80 = arith.constant 0 : index
    %c0_81 = arith.constant 0 : index
    %300 = vector.load %arg7[%c0_80, %c0_81] : memref<32x1xf32, #tpu.memory_space<vmem>>, vector<32x1xf32>
    %301 = arith.addf %299, %300 : vector<32x1xf32>
    %c0_82 = arith.constant 0 : index
    %c0_83 = arith.constant 0 : index
    %c0_84 = arith.constant 0 : index
    %302 = vector.load %arg8[%c0_82, %c0_83, %c0_84] : memref<1x32x1xf32, #tpu.memory_space<vmem>>, vector<1x32x1xf32>
    %303 = vector.shape_cast %302 : vector<1x32x1xf32> to vector<32x1xf32>
    %304 = vector.shape_cast %301 : vector<32x1xf32> to vector<1x32x1xf32>
    tpu.vector_store %arg8[%c0_82, %c0_83, %c0_84], %304 {strides = array<i32>} : memref<1x32x1xf32, #tpu.memory_space<vmem>>, vector<1x32x1xf32>,
    return
  }
  func.func @transform_0(%arg0: i32) -> (i32, i32, i32) {
    %c0_i32 = arith.constant 0 : i32
    %c0_i32_0 = arith.constant 0 : i32
    %c0_i32_1 = arith.constant 0 : i32
    return %arg0, %c0_i32, %c0_i32_0 : i32, i32, i32
  }
  func.func @transform_1(%arg0: i32) -> (i32, i32) {
    %c0_i32 = arith.constant 0 : i32
    %c0_i32_0 = arith.constant 0 : i32
    %c0_i32_1 = arith.constant 0 : i32
    return %c0_i32, %c0_i32_0 : i32, i32
  }
  func.func @transform_2(%arg0: i32) -> (i32, i32) {
    %c0_i32 = arith.constant 0 : i32
    %c0_i32_0 = arith.constant 0 : i32
    %c0_i32_1 = arith.constant 0 : i32
    return %c0_i32, %c0_i32_0 : i32, i32
  }
  func.func @transform_3(%arg0: i32) -> (i32, i32) {
    %c0_i32 = arith.constant 0 : i32
    %c0_i32_0 = arith.constant 0 : i32
    %c0_i32_1 = arith.constant 0 : i32
    return %c0_i32, %c0_i32_0 : i32, i32
  }
  func.func @transform_4(%arg0: i32) -> (i32, i32) {
    %c0_i32 = arith.constant 0 : i32
    %c0_i32_0 = arith.constant 0 : i32
    %c0_i32_1 = arith.constant 0 : i32
    return %c0_i32, %c0_i32_0 : i32, i32
  }
  func.func @transform_5(%arg0: i32) -> (i32, i32, i32) {
    %c0_i32 = arith.constant 0 : i32
    %c0_i32_0 = arith.constant 0 : i32
    %c0_i32_1 = arith.constant 0 : i32
    %c0_i32_2 = arith.constant 0 : i32
    return %c0_i32, %c0_i32_0, %c0_i32_1 : i32, i32, i32
  }
  func.func @transform_6(%arg0: i32) -> (i32, i32) {
    %c0_i32 = arith.constant 0 : i32
    %c0_i32_0 = arith.constant 0 : i32
    %c0_i32_1 = arith.constant 0 : i32
    return %c0_i32, %c0_i32_0 : i32, i32
  }
  func.func @transform_7(%arg0: i32) -> (i32, i32, i32) {
    %c0_i32 = arith.constant 0 : i32
    %c0_i32_0 = arith.constant 0 : i32
    %c0_i32_1 = arith.constant 0 : i32
    return %arg0, %c0_i32, %c0_i32_0 : i32, i32, i32
  }
}

module attributes {stable_mosaic.version = 11 : i64} {
  func.func @_decoder_kernel(%arg0: i32, %arg1: memref<1x32x1xf32, #tpu.memory_space<vmem>>, %arg2: memref<1x16x1xf32, #tpu.memory_space<vmem>>, %arg3: memref<16x32x760xbf16, #tpu.memory_space<vmem>>, %arg4: memref<32x760xf32, #tpu.memory_space<vmem>>, %arg5: memref<16x800xbf16, #tpu.memory_space<vmem>>, %arg6: memref<16x1xf32, #tpu.memory_space<vmem>>, %arg7: memref<1x760xf32, #tpu.memory_space<vmem>>, %arg8: memref<8x400xbf16, #tpu.memory_space<vmem>>, %arg9: memref<8x1xf32, #tpu.memory_space<vmem>>, %arg10: memref<1x1x896xf32, #tpu.memory_space<vmem>>) attributes {dimension_semantics = [#tpu.dimension_semantics<parallel>], iteration_bounds = array<i64: 2>, scalar_prefetch = 0 : i64, scratch_operands = 0 : i64, tpu.core_type = #tpu.core_type<tc>, window_params = [{transform_indices = @transform_0, window_bounds = array<i64: 1, 32, 1>}, {transform_indices = @transform_1, window_bounds = array<i64: 1, 16, 1>}, {pipeline_mode = #tpu.pipeline_mode<synchronous>, transform_indices = @transform_2, window_bounds = array<i64: 16, 32, 760>}, {pipeline_mode = #tpu.pipeline_mode<synchronous>, transform_indices = @transform_3, window_bounds = array<i64: 32, 760>}, {pipeline_mode = #tpu.pipeline_mode<synchronous>, transform_indices = @transform_4, window_bounds = array<i64: 16, 800>}, {pipeline_mode = #tpu.pipeline_mode<synchronous>, transform_indices = @transform_5, window_bounds = array<i64: 16, 1>}, {pipeline_mode = #tpu.pipeline_mode<synchronous>, transform_indices = @transform_6, window_bounds = array<i64: 1, 760>}, {pipeline_mode = #tpu.pipeline_mode<synchronous>, transform_indices = @transform_7, window_bounds = array<i64: 8, 400>}, {pipeline_mode = #tpu.pipeline_mode<synchronous>, transform_indices = @transform_8, window_bounds = array<i64: 8, 1>}, {transform_indices = @transform_9, window_bounds = array<i64: 1, 1, 896>}]} {
    %c0 = arith.constant 0 : index
    %c0_0 = arith.constant 0 : index
    %c0_1 = arith.constant 0 : index
    %0 = vector.load %arg1[%c0, %c0_0, %c0_1] : memref<1x32x1xf32, #tpu.memory_space<vmem>>, vector<1x32x1xf32>
    %1 = vector.shape_cast %0 : vector<1x32x1xf32> to vector<32x1xf32>
    %2 = vector.extract_strided_slice %1 {offsets = [0, 0], sizes = [16, 1], strides = [1, 1]} : vector<32x1xf32> to vector<16x1xf32>
    %3 = vector.extract_strided_slice %1 {offsets = [16, 0], sizes = [16, 1], strides = [1, 1]} : vector<32x1xf32> to vector<16x1xf32>
    %cst = arith.constant 5.000000e-01 : f32
    %4 = vector.broadcast %cst : f32 to vector<16x1xf32>
    %5 = arith.mulf %4, %3 : vector<16x1xf32>
    %6 = math.exp %5 : vector<16x1xf32>
    %c0_2 = arith.constant 0 : index
    %c0_3 = arith.constant 0 : index
    %c0_4 = arith.constant 0 : index
    %7 = vector.load %arg2[%c0_2, %c0_3, %c0_4] : memref<1x16x1xf32, #tpu.memory_space<vmem>>, vector<1x16x1xf32>
    %8 = vector.shape_cast %7 : vector<1x16x1xf32> to vector<16x1xf32>
    %9 = arith.mulf %6, %8 : vector<16x1xf32>
    %10 = arith.addf %2, %9 : vector<16x1xf32>
    %c0_5 = arith.constant 0 : index
    %c0_6 = arith.constant 0 : index
    %11 = vector.load %arg4[%c0_5, %c0_6] : memref<32x760xf32, #tpu.memory_space<vmem>>, vector<32x760xf32>
    %12 = vector.extract_strided_slice %10 {offsets = [0, 0], sizes = [1, 1], strides = [1, 1]} : vector<16x1xf32> to vector<1x1xf32>
    %c0_7 = arith.constant 0 : index
    %c0_8 = arith.constant 0 : index
    %c0_9 = arith.constant 0 : index
    %13 = vector.load %arg3[%c0_7, %c0_8, %c0_9] : memref<16x32x760xbf16, #tpu.memory_space<vmem>>, vector<1x32x760xbf16>
    %14 = vector.shape_cast %13 : vector<1x32x760xbf16> to vector<32x760xbf16>
    %15 = arith.extf %14 : vector<32x760xbf16> to vector<32x760xf32>
    %16 = vector.broadcast %12 : vector<1x1xf32> to vector<32x760xf32>
    %17 = arith.mulf %16, %15 : vector<32x760xf32>
    %18 = arith.addf %11, %17 : vector<32x760xf32>
    %19 = vector.extract_strided_slice %10 {offsets = [1, 0], sizes = [1, 1], strides = [1, 1]} : vector<16x1xf32> to vector<1x1xf32>
    %c1 = arith.constant 1 : index
    %c0_10 = arith.constant 0 : index
    %c0_11 = arith.constant 0 : index
    %20 = vector.load %arg3[%c1, %c0_10, %c0_11] : memref<16x32x760xbf16, #tpu.memory_space<vmem>>, vector<1x32x760xbf16>
    %21 = vector.shape_cast %20 : vector<1x32x760xbf16> to vector<32x760xbf16>
    %22 = arith.extf %21 : vector<32x760xbf16> to vector<32x760xf32>
    %23 = vector.broadcast %19 : vector<1x1xf32> to vector<32x760xf32>
    %24 = arith.mulf %23, %22 : vector<32x760xf32>
    %25 = arith.addf %18, %24 : vector<32x760xf32>
    %26 = vector.extract_strided_slice %10 {offsets = [2, 0], sizes = [1, 1], strides = [1, 1]} : vector<16x1xf32> to vector<1x1xf32>
    %c2 = arith.constant 2 : index
    %c0_12 = arith.constant 0 : index
    %c0_13 = arith.constant 0 : index
    %27 = vector.load %arg3[%c2, %c0_12, %c0_13] : memref<16x32x760xbf16, #tpu.memory_space<vmem>>, vector<1x32x760xbf16>
    %28 = vector.shape_cast %27 : vector<1x32x760xbf16> to vector<32x760xbf16>
    %29 = arith.extf %28 : vector<32x760xbf16> to vector<32x760xf32>
    %30 = vector.broadcast %26 : vector<1x1xf32> to vector<32x760xf32>
    %31 = arith.mulf %30, %29 : vector<32x760xf32>
    %32 = arith.addf %25, %31 : vector<32x760xf32>
    %33 = vector.extract_strided_slice %10 {offsets = [3, 0], sizes = [1, 1], strides = [1, 1]} : vector<16x1xf32> to vector<1x1xf32>
    %c3 = arith.constant 3 : index
    %c0_14 = arith.constant 0 : index
    %c0_15 = arith.constant 0 : index
    %34 = vector.load %arg3[%c3, %c0_14, %c0_15] : memref<16x32x760xbf16, #tpu.memory_space<vmem>>, vector<1x32x760xbf16>
    %35 = vector.shape_cast %34 : vector<1x32x760xbf16> to vector<32x760xbf16>
    %36 = arith.extf %35 : vector<32x760xbf16> to vector<32x760xf32>
    %37 = vector.broadcast %33 : vector<1x1xf32> to vector<32x760xf32>
    %38 = arith.mulf %37, %36 : vector<32x760xf32>
    %39 = arith.addf %32, %38 : vector<32x760xf32>
    %40 = vector.extract_strided_slice %10 {offsets = [4, 0], sizes = [1, 1], strides = [1, 1]} : vector<16x1xf32> to vector<1x1xf32>
    %c4 = arith.constant 4 : index
    %c0_16 = arith.constant 0 : index
    %c0_17 = arith.constant 0 : index
    %41 = vector.load %arg3[%c4, %c0_16, %c0_17] : memref<16x32x760xbf16, #tpu.memory_space<vmem>>, vector<1x32x760xbf16>
    %42 = vector.shape_cast %41 : vector<1x32x760xbf16> to vector<32x760xbf16>
    %43 = arith.extf %42 : vector<32x760xbf16> to vector<32x760xf32>
    %44 = vector.broadcast %40 : vector<1x1xf32> to vector<32x760xf32>
    %45 = arith.mulf %44, %43 : vector<32x760xf32>
    %46 = arith.addf %39, %45 : vector<32x760xf32>
    %47 = vector.extract_strided_slice %10 {offsets = [5, 0], sizes = [1, 1], strides = [1, 1]} : vector<16x1xf32> to vector<1x1xf32>
    %c5 = arith.constant 5 : index
    %c0_18 = arith.constant 0 : index
    %c0_19 = arith.constant 0 : index
    %48 = vector.load %arg3[%c5, %c0_18, %c0_19] : memref<16x32x760xbf16, #tpu.memory_space<vmem>>, vector<1x32x760xbf16>
    %49 = vector.shape_cast %48 : vector<1x32x760xbf16> to vector<32x760xbf16>
    %50 = arith.extf %49 : vector<32x760xbf16> to vector<32x760xf32>
    %51 = vector.broadcast %47 : vector<1x1xf32> to vector<32x760xf32>
    %52 = arith.mulf %51, %50 : vector<32x760xf32>
    %53 = arith.addf %46, %52 : vector<32x760xf32>
    %54 = vector.extract_strided_slice %10 {offsets = [6, 0], sizes = [1, 1], strides = [1, 1]} : vector<16x1xf32> to vector<1x1xf32>
    %c6 = arith.constant 6 : index
    %c0_20 = arith.constant 0 : index
    %c0_21 = arith.constant 0 : index
    %55 = vector.load %arg3[%c6, %c0_20, %c0_21] : memref<16x32x760xbf16, #tpu.memory_space<vmem>>, vector<1x32x760xbf16>
    %56 = vector.shape_cast %55 : vector<1x32x760xbf16> to vector<32x760xbf16>
    %57 = arith.extf %56 : vector<32x760xbf16> to vector<32x760xf32>
    %58 = vector.broadcast %54 : vector<1x1xf32> to vector<32x760xf32>
    %59 = arith.mulf %58, %57 : vector<32x760xf32>
    %60 = arith.addf %53, %59 : vector<32x760xf32>
    %61 = vector.extract_strided_slice %10 {offsets = [7, 0], sizes = [1, 1], strides = [1, 1]} : vector<16x1xf32> to vector<1x1xf32>
    %c7 = arith.constant 7 : index
    %c0_22 = arith.constant 0 : index
    %c0_23 = arith.constant 0 : index
    %62 = vector.load %arg3[%c7, %c0_22, %c0_23] : memref<16x32x760xbf16, #tpu.memory_space<vmem>>, vector<1x32x760xbf16>
    %63 = vector.shape_cast %62 : vector<1x32x760xbf16> to vector<32x760xbf16>
    %64 = arith.extf %63 : vector<32x760xbf16> to vector<32x760xf32>
    %65 = vector.broadcast %61 : vector<1x1xf32> to vector<32x760xf32>
    %66 = arith.mulf %65, %64 : vector<32x760xf32>
    %67 = arith.addf %60, %66 : vector<32x760xf32>
    %68 = vector.extract_strided_slice %10 {offsets = [8, 0], sizes = [1, 1], strides = [1, 1]} : vector<16x1xf32> to vector<1x1xf32>
    %c8 = arith.constant 8 : index
    %c0_24 = arith.constant 0 : index
    %c0_25 = arith.constant 0 : index
    %69 = vector.load %arg3[%c8, %c0_24, %c0_25] : memref<16x32x760xbf16, #tpu.memory_space<vmem>>, vector<1x32x760xbf16>
    %70 = vector.shape_cast %69 : vector<1x32x760xbf16> to vector<32x760xbf16>
    %71 = arith.extf %70 : vector<32x760xbf16> to vector<32x760xf32>
    %72 = vector.broadcast %68 : vector<1x1xf32> to vector<32x760xf32>
    %73 = arith.mulf %72, %71 : vector<32x760xf32>
    %74 = arith.addf %67, %73 : vector<32x760xf32>
    %75 = vector.extract_strided_slice %10 {offsets = [9, 0], sizes = [1, 1], strides = [1, 1]} : vector<16x1xf32> to vector<1x1xf32>
    %c9 = arith.constant 9 : index
    %c0_26 = arith.constant 0 : index
    %c0_27 = arith.constant 0 : index
    %76 = vector.load %arg3[%c9, %c0_26, %c0_27] : memref<16x32x760xbf16, #tpu.memory_space<vmem>>, vector<1x32x760xbf16>
    %77 = vector.shape_cast %76 : vector<1x32x760xbf16> to vector<32x760xbf16>
    %78 = arith.extf %77 : vector<32x760xbf16> to vector<32x760xf32>
    %79 = vector.broadcast %75 : vector<1x1xf32> to vector<32x760xf32>
    %80 = arith.mulf %79, %78 : vector<32x760xf32>
    %81 = arith.addf %74, %80 : vector<32x760xf32>
    %82 = vector.extract_strided_slice %10 {offsets = [10, 0], sizes = [1, 1], strides = [1, 1]} : vector<16x1xf32> to vector<1x1xf32>
    %c10 = arith.constant 10 : index
    %c0_28 = arith.constant 0 : index
    %c0_29 = arith.constant 0 : index
    %83 = vector.load %arg3[%c10, %c0_28, %c0_29] : memref<16x32x760xbf16, #tpu.memory_space<vmem>>, vector<1x32x760xbf16>
    %84 = vector.shape_cast %83 : vector<1x32x760xbf16> to vector<32x760xbf16>
    %85 = arith.extf %84 : vector<32x760xbf16> to vector<32x760xf32>
    %86 = vector.broadcast %82 : vector<1x1xf32> to vector<32x760xf32>
    %87 = arith.mulf %86, %85 : vector<32x760xf32>
    %88 = arith.addf %81, %87 : vector<32x760xf32>
    %89 = vector.extract_strided_slice %10 {offsets = [11, 0], sizes = [1, 1], strides = [1, 1]} : vector<16x1xf32> to vector<1x1xf32>
    %c11 = arith.constant 11 : index
    %c0_30 = arith.constant 0 : index
    %c0_31 = arith.constant 0 : index
    %90 = vector.load %arg3[%c11, %c0_30, %c0_31] : memref<16x32x760xbf16, #tpu.memory_space<vmem>>, vector<1x32x760xbf16>
    %91 = vector.shape_cast %90 : vector<1x32x760xbf16> to vector<32x760xbf16>
    %92 = arith.extf %91 : vector<32x760xbf16> to vector<32x760xf32>
    %93 = vector.broadcast %89 : vector<1x1xf32> to vector<32x760xf32>
    %94 = arith.mulf %93, %92 : vector<32x760xf32>
    %95 = arith.addf %88, %94 : vector<32x760xf32>
    %96 = vector.extract_strided_slice %10 {offsets = [12, 0], sizes = [1, 1], strides = [1, 1]} : vector<16x1xf32> to vector<1x1xf32>
    %c12 = arith.constant 12 : index
    %c0_32 = arith.constant 0 : index
    %c0_33 = arith.constant 0 : index
    %97 = vector.load %arg3[%c12, %c0_32, %c0_33] : memref<16x32x760xbf16, #tpu.memory_space<vmem>>, vector<1x32x760xbf16>
    %98 = vector.shape_cast %97 : vector<1x32x760xbf16> to vector<32x760xbf16>
    %99 = arith.extf %98 : vector<32x760xbf16> to vector<32x760xf32>
    %100 = vector.broadcast %96 : vector<1x1xf32> to vector<32x760xf32>
    %101 = arith.mulf %100, %99 : vector<32x760xf32>
    %102 = arith.addf %95, %101 : vector<32x760xf32>
    %103 = vector.extract_strided_slice %10 {offsets = [13, 0], sizes = [1, 1], strides = [1, 1]} : vector<16x1xf32> to vector<1x1xf32>
    %c13 = arith.constant 13 : index
    %c0_34 = arith.constant 0 : index
    %c0_35 = arith.constant 0 : index
    %104 = vector.load %arg3[%c13, %c0_34, %c0_35] : memref<16x32x760xbf16, #tpu.memory_space<vmem>>, vector<1x32x760xbf16>
    %105 = vector.shape_cast %104 : vector<1x32x760xbf16> to vector<32x760xbf16>
    %106 = arith.extf %105 : vector<32x760xbf16> to vector<32x760xf32>
    %107 = vector.broadcast %103 : vector<1x1xf32> to vector<32x760xf32>
    %108 = arith.mulf %107, %106 : vector<32x760xf32>
    %109 = arith.addf %102, %108 : vector<32x760xf32>
    %110 = vector.extract_strided_slice %10 {offsets = [14, 0], sizes = [1, 1], strides = [1, 1]} : vector<16x1xf32> to vector<1x1xf32>
    %c14 = arith.constant 14 : index
    %c0_36 = arith.constant 0 : index
    %c0_37 = arith.constant 0 : index
    %111 = vector.load %arg3[%c14, %c0_36, %c0_37] : memref<16x32x760xbf16, #tpu.memory_space<vmem>>, vector<1x32x760xbf16>
    %112 = vector.shape_cast %111 : vector<1x32x760xbf16> to vector<32x760xbf16>
    %113 = arith.extf %112 : vector<32x760xbf16> to vector<32x760xf32>
    %114 = vector.broadcast %110 : vector<1x1xf32> to vector<32x760xf32>
    %115 = arith.mulf %114, %113 : vector<32x760xf32>
    %116 = arith.addf %109, %115 : vector<32x760xf32>
    %117 = vector.extract_strided_slice %10 {offsets = [15, 0], sizes = [1, 1], strides = [1, 1]} : vector<16x1xf32> to vector<1x1xf32>
    %c15 = arith.constant 15 : index
    %c0_38 = arith.constant 0 : index
    %c0_39 = arith.constant 0 : index
    %118 = vector.load %arg3[%c15, %c0_38, %c0_39] : memref<16x32x760xbf16, #tpu.memory_space<vmem>>, vector<1x32x760xbf16>
    %119 = vector.shape_cast %118 : vector<1x32x760xbf16> to vector<32x760xbf16>
    %120 = arith.extf %119 : vector<32x760xbf16> to vector<32x760xf32>
    %121 = vector.broadcast %117 : vector<1x1xf32> to vector<32x760xf32>
    %122 = arith.mulf %121, %120 : vector<32x760xf32>
    %123 = arith.addf %116, %122 : vector<32x760xf32>
    %cst_40 = arith.constant 0.000000e+00 : f32
    %124 = vector.broadcast %cst_40 : f32 to vector<32x760xf32>
    %125 = arith.maximumf %123, %124 : vector<32x760xf32>
    %126 = arith.truncf %125 : vector<32x760xf32> to vector<32x760xbf16>
    %cst_41 = arith.constant 0.000000e+00 : bf16
    %127 = vector.broadcast %cst_41 : bf16 to vector<32x132xbf16>
    %128 = tpu.concatenate %127, %126 in 1 : vector<32x132xbf16>, vector<32x760xbf16> -> vector<32x892xbf16>
    %129 = vector.extract_strided_slice %128 {offsets = [0, 0], sizes = [32, 760], strides = [1, 1]} : vector<32x892xbf16> to vector<32x760xbf16>
    %130 = vector.extract_strided_slice %128 {offsets = [0, 1], sizes = [32, 760], strides = [1, 1]} : vector<32x892xbf16> to vector<32x760xbf16>
    %131 = vector.extract_strided_slice %128 {offsets = [0, 2], sizes = [32, 760], strides = [1, 1]} : vector<32x892xbf16> to vector<32x760xbf16>
    %132 = vector.extract_strided_slice %128 {offsets = [0, 3], sizes = [32, 760], strides = [1, 1]} : vector<32x892xbf16> to vector<32x760xbf16>
    %133 = vector.extract_strided_slice %128 {offsets = [0, 4], sizes = [32, 760], strides = [1, 1]} : vector<32x892xbf16> to vector<32x760xbf16>
    %134 = vector.extract_strided_slice %128 {offsets = [0, 32], sizes = [32, 760], strides = [1, 1]} : vector<32x892xbf16> to vector<32x760xbf16>
    %135 = vector.extract_strided_slice %128 {offsets = [0, 33], sizes = [32, 760], strides = [1, 1]} : vector<32x892xbf16> to vector<32x760xbf16>
    %136 = vector.extract_strided_slice %128 {offsets = [0, 34], sizes = [32, 760], strides = [1, 1]} : vector<32x892xbf16> to vector<32x760xbf16>
    %137 = vector.extract_strided_slice %128 {offsets = [0, 35], sizes = [32, 760], strides = [1, 1]} : vector<32x892xbf16> to vector<32x760xbf16>
    %138 = vector.extract_strided_slice %128 {offsets = [0, 36], sizes = [32, 760], strides = [1, 1]} : vector<32x892xbf16> to vector<32x760xbf16>
    %139 = vector.extract_strided_slice %128 {offsets = [0, 64], sizes = [32, 760], strides = [1, 1]} : vector<32x892xbf16> to vector<32x760xbf16>
    %140 = vector.extract_strided_slice %128 {offsets = [0, 65], sizes = [32, 760], strides = [1, 1]} : vector<32x892xbf16> to vector<32x760xbf16>
    %141 = vector.extract_strided_slice %128 {offsets = [0, 66], sizes = [32, 760], strides = [1, 1]} : vector<32x892xbf16> to vector<32x760xbf16>
    %142 = vector.extract_strided_slice %128 {offsets = [0, 67], sizes = [32, 760], strides = [1, 1]} : vector<32x892xbf16> to vector<32x760xbf16>
    %143 = vector.extract_strided_slice %128 {offsets = [0, 68], sizes = [32, 760], strides = [1, 1]} : vector<32x892xbf16> to vector<32x760xbf16>
    %144 = vector.extract_strided_slice %128 {offsets = [0, 96], sizes = [32, 760], strides = [1, 1]} : vector<32x892xbf16> to vector<32x760xbf16>
    %145 = vector.extract_strided_slice %128 {offsets = [0, 97], sizes = [32, 760], strides = [1, 1]} : vector<32x892xbf16> to vector<32x760xbf16>
    %146 = vector.extract_strided_slice %128 {offsets = [0, 98], sizes = [32, 760], strides = [1, 1]} : vector<32x892xbf16> to vector<32x760xbf16>
    %147 = vector.extract_strided_slice %128 {offsets = [0, 99], sizes = [32, 760], strides = [1, 1]} : vector<32x892xbf16> to vector<32x760xbf16>
    %148 = vector.extract_strided_slice %128 {offsets = [0, 100], sizes = [32, 760], strides = [1, 1]} : vector<32x892xbf16> to vector<32x760xbf16>
    %149 = vector.extract_strided_slice %128 {offsets = [0, 128], sizes = [32, 760], strides = [1, 1]} : vector<32x892xbf16> to vector<32x760xbf16>
    %150 = vector.extract_strided_slice %128 {offsets = [0, 129], sizes = [32, 760], strides = [1, 1]} : vector<32x892xbf16> to vector<32x760xbf16>
    %151 = vector.extract_strided_slice %128 {offsets = [0, 130], sizes = [32, 760], strides = [1, 1]} : vector<32x892xbf16> to vector<32x760xbf16>
    %152 = vector.extract_strided_slice %128 {offsets = [0, 131], sizes = [32, 760], strides = [1, 1]} : vector<32x892xbf16> to vector<32x760xbf16>
    %153 = vector.extract_strided_slice %128 {offsets = [0, 132], sizes = [32, 760], strides = [1, 1]} : vector<32x892xbf16> to vector<32x760xbf16>
    %154 = tpu.concatenate %129, %130, %131, %132, %133, %134, %135, %136, %137, %138, %139, %140, %141, %142, %143, %144 in 0 : vector<32x760xbf16>, vector<32x760xbf16>, vector<32x760xbf16>, vector<32x760xbf16>, vector<32x760xbf16>, vector<32x760xbf16>, vector<32x760xbf16>, vector<32x760xbf16>, vector<32x760xbf16>, vector<32x760xbf16>, vector<32x760xbf16>, vector<32x760xbf16>, vector<32x760xbf16>, vector<32x760xbf16>, vector<32x760xbf16>, vector<32x760xbf16> -> vector<512x760xbf16>
    %155 = tpu.concatenate %145, %146, %147, %148, %149, %150, %151, %152, %153 in 0 : vector<32x760xbf16>, vector<32x760xbf16>, vector<32x760xbf16>, vector<32x760xbf16>, vector<32x760xbf16>, vector<32x760xbf16>, vector<32x760xbf16>, vector<32x760xbf16>, vector<32x760xbf16> -> vector<288x760xbf16>
    %156 = tpu.concatenate %154, %155 in 0 : vector<512x760xbf16>, vector<288x760xbf16> -> vector<800x760xbf16>
    %c0_42 = arith.constant 0 : index
    %c0_43 = arith.constant 0 : index
    %157 = vector.load %arg5[%c0_42, %c0_43] : memref<16x800xbf16, #tpu.memory_space<vmem>>, vector<16x800xbf16>
    %cst_44 = arith.constant dense<0.000000e+00> : vector<16x760xf32>
    %158 = tpu.matmul %157, %156, %cst_44 {dimension_numbers = #tpu.dot_dimension_numbers<[1], [0], [0], [1], [0, 0, 1, 1], [], []>} : vector<16x800xbf16>, vector<800x760xbf16>, vector<16x760xf32> -> vector<16x760xf32>
    %c0_45 = arith.constant 0 : index
    %c0_46 = arith.constant 0 : index
    %159 = vector.load %arg6[%c0_45, %c0_46] : memref<16x1xf32, #tpu.memory_space<vmem>>, vector<16x1xf32>
    %160 = vector.broadcast %159 : vector<16x1xf32> to vector<16x760xf32>
    %161 = arith.addf %158, %160 : vector<16x760xf32>
    %cst_47 = arith.constant 0.000000e+00 : f32
    %162 = vector.broadcast %cst_47 : f32 to vector<16x760xf32>
    %163 = arith.maximumf %161, %162 : vector<16x760xf32>
    %c0_48 = arith.constant 0 : index
    %c0_49 = arith.constant 0 : index
    %164 = vector.load %arg7[%c0_48, %c0_49] : memref<1x760xf32, #tpu.memory_space<vmem>>, vector<1x760xf32>
    %165 = vector.broadcast %164 : vector<1x760xf32> to vector<16x760xf32>
    %166 = arith.mulf %163, %165 : vector<16x760xf32>
    %167 = arith.truncf %166 : vector<16x760xf32> to vector<16x760xbf16>
    %cst_50 = arith.constant 0.000000e+00 : bf16
    %168 = vector.broadcast %cst_50 : bf16 to vector<16x132xbf16>
    %cst_51 = arith.constant 0.000000e+00 : bf16
    %169 = vector.broadcast %cst_51 : bf16 to vector<16x136xbf16>
    %170 = tpu.concatenate %168, %167, %169 in 1 : vector<16x132xbf16>, vector<16x760xbf16>, vector<16x136xbf16> -> vector<16x1028xbf16>
    %171 = vector.extract_strided_slice %170 {offsets = [0, 0], sizes = [16, 896], strides = [1, 1]} : vector<16x1028xbf16> to vector<16x896xbf16>
    %172 = vector.extract_strided_slice %170 {offsets = [0, 1], sizes = [16, 896], strides = [1, 1]} : vector<16x1028xbf16> to vector<16x896xbf16>
    %173 = vector.extract_strided_slice %170 {offsets = [0, 2], sizes = [16, 896], strides = [1, 1]} : vector<16x1028xbf16> to vector<16x896xbf16>
    %174 = vector.extract_strided_slice %170 {offsets = [0, 3], sizes = [16, 896], strides = [1, 1]} : vector<16x1028xbf16> to vector<16x896xbf16>
    %175 = vector.extract_strided_slice %170 {offsets = [0, 4], sizes = [16, 896], strides = [1, 1]} : vector<16x1028xbf16> to vector<16x896xbf16>
    %176 = vector.extract_strided_slice %170 {offsets = [0, 32], sizes = [16, 896], strides = [1, 1]} : vector<16x1028xbf16> to vector<16x896xbf16>
    %177 = vector.extract_strided_slice %170 {offsets = [0, 33], sizes = [16, 896], strides = [1, 1]} : vector<16x1028xbf16> to vector<16x896xbf16>
    %178 = vector.extract_strided_slice %170 {offsets = [0, 34], sizes = [16, 896], strides = [1, 1]} : vector<16x1028xbf16> to vector<16x896xbf16>
    %179 = vector.extract_strided_slice %170 {offsets = [0, 35], sizes = [16, 896], strides = [1, 1]} : vector<16x1028xbf16> to vector<16x896xbf16>
    %180 = vector.extract_strided_slice %170 {offsets = [0, 36], sizes = [16, 896], strides = [1, 1]} : vector<16x1028xbf16> to vector<16x896xbf16>
    %181 = vector.extract_strided_slice %170 {offsets = [0, 64], sizes = [16, 896], strides = [1, 1]} : vector<16x1028xbf16> to vector<16x896xbf16>
    %182 = vector.extract_strided_slice %170 {offsets = [0, 65], sizes = [16, 896], strides = [1, 1]} : vector<16x1028xbf16> to vector<16x896xbf16>
    %183 = vector.extract_strided_slice %170 {offsets = [0, 66], sizes = [16, 896], strides = [1, 1]} : vector<16x1028xbf16> to vector<16x896xbf16>
    %184 = vector.extract_strided_slice %170 {offsets = [0, 67], sizes = [16, 896], strides = [1, 1]} : vector<16x1028xbf16> to vector<16x896xbf16>
    %185 = vector.extract_strided_slice %170 {offsets = [0, 68], sizes = [16, 896], strides = [1, 1]} : vector<16x1028xbf16> to vector<16x896xbf16>
    %186 = vector.extract_strided_slice %170 {offsets = [0, 96], sizes = [16, 896], strides = [1, 1]} : vector<16x1028xbf16> to vector<16x896xbf16>
    %187 = vector.extract_strided_slice %170 {offsets = [0, 97], sizes = [16, 896], strides = [1, 1]} : vector<16x1028xbf16> to vector<16x896xbf16>
    %188 = vector.extract_strided_slice %170 {offsets = [0, 98], sizes = [16, 896], strides = [1, 1]} : vector<16x1028xbf16> to vector<16x896xbf16>
    %189 = vector.extract_strided_slice %170 {offsets = [0, 99], sizes = [16, 896], strides = [1, 1]} : vector<16x1028xbf16> to vector<16x896xbf16>
    %190 = vector.extract_strided_slice %170 {offsets = [0, 100], sizes = [16, 896], strides = [1, 1]} : vector<16x1028xbf16> to vector<16x896xbf16>
    %191 = vector.extract_strided_slice %170 {offsets = [0, 128], sizes = [16, 896], strides = [1, 1]} : vector<16x1028xbf16> to vector<16x896xbf16>
    %192 = vector.extract_strided_slice %170 {offsets = [0, 129], sizes = [16, 896], strides = [1, 1]} : vector<16x1028xbf16> to vector<16x896xbf16>
    %193 = vector.extract_strided_slice %170 {offsets = [0, 130], sizes = [16, 896], strides = [1, 1]} : vector<16x1028xbf16> to vector<16x896xbf16>
    %194 = vector.extract_strided_slice %170 {offsets = [0, 131], sizes = [16, 896], strides = [1, 1]} : vector<16x1028xbf16> to vector<16x896xbf16>
    %195 = vector.extract_strided_slice %170 {offsets = [0, 132], sizes = [16, 896], strides = [1, 1]} : vector<16x1028xbf16> to vector<16x896xbf16>
    %196 = tpu.concatenate %171, %172, %173, %174, %175, %176, %177, %178, %179, %180, %181, %182, %183, %184, %185, %186 in 0 : vector<16x896xbf16>, vector<16x896xbf16>, vector<16x896xbf16>, vector<16x896xbf16>, vector<16x896xbf16>, vector<16x896xbf16>, vector<16x896xbf16>, vector<16x896xbf16>, vector<16x896xbf16>, vector<16x896xbf16>, vector<16x896xbf16>, vector<16x896xbf16>, vector<16x896xbf16>, vector<16x896xbf16>, vector<16x896xbf16>, vector<16x896xbf16> -> vector<256x896xbf16>
    %197 = tpu.concatenate %187, %188, %189, %190, %191, %192, %193, %194, %195 in 0 : vector<16x896xbf16>, vector<16x896xbf16>, vector<16x896xbf16>, vector<16x896xbf16>, vector<16x896xbf16>, vector<16x896xbf16>, vector<16x896xbf16>, vector<16x896xbf16>, vector<16x896xbf16> -> vector<144x896xbf16>
    %198 = tpu.concatenate %196, %197 in 0 : vector<256x896xbf16>, vector<144x896xbf16> -> vector<400x896xbf16>
    %c0_52 = arith.constant 0 : index
    %c0_53 = arith.constant 0 : index
    %199 = vector.load %arg8[%c0_52, %c0_53] : memref<8x400xbf16, #tpu.memory_space<vmem>>, vector<8x400xbf16>
    %cst_54 = arith.constant dense<0.000000e+00> : vector<8x896xf32>
    %200 = tpu.matmul %199, %198, %cst_54 {dimension_numbers = #tpu.dot_dimension_numbers<[1], [0], [0], [1], [0, 0, 1, 1], [], []>} : vector<8x400xbf16>, vector<400x896xbf16>, vector<8x896xf32> -> vector<8x896xf32>
    %c0_55 = arith.constant 0 : index
    %c0_56 = arith.constant 0 : index
    %201 = vector.load %arg9[%c0_55, %c0_56] : memref<8x1xf32, #tpu.memory_space<vmem>>, vector<8x1xf32>
    %202 = vector.broadcast %201 : vector<8x1xf32> to vector<8x896xf32>
    %203 = arith.addf %200, %202 : vector<8x896xf32>
    %cst_57 = arith.constant 0.000000e+00 : f32
    %204 = vector.broadcast %cst_57 : f32 to vector<8x896xf32>
    %205 = arith.maximumf %203, %204 : vector<8x896xf32>
    %206 = vector.extract_strided_slice %205 {offsets = [0, 0], sizes = [1, 896], strides = [1, 1]} : vector<8x896xf32> to vector<1x896xf32>
    %c0_58 = arith.constant 0 : index
    %c0_59 = arith.constant 0 : index
    %c0_60 = arith.constant 0 : index
    %207 = vector.load %arg10[%c0_58, %c0_59, %c0_60] : memref<1x1x896xf32, #tpu.memory_space<vmem>>, vector<1x1x896xf32>
    %208 = vector.shape_cast %207 : vector<1x1x896xf32> to vector<1x896xf32>
    %209 = vector.shape_cast %206 : vector<1x896xf32> to vector<1x1x896xf32>
    tpu.vector_store %arg10[%c0_58, %c0_59, %c0_60], %209 {strides = array<i32>} : memref<1x1x896xf32, #tpu.memory_space<vmem>>, vector<1x1x896xf32>,
    return
  }
  func.func @transform_0(%arg0: i32) -> (i32, i32, i32) {
    %c0_i32 = arith.constant 0 : i32
    %c0_i32_0 = arith.constant 0 : i32
    %c0_i32_1 = arith.constant 0 : i32
    return %arg0, %c0_i32, %c0_i32_0 : i32, i32, i32
  }
  func.func @transform_1(%arg0: i32) -> (i32, i32, i32) {
    %c0_i32 = arith.constant 0 : i32
    %c0_i32_0 = arith.constant 0 : i32
    %c0_i32_1 = arith.constant 0 : i32
    return %arg0, %c0_i32, %c0_i32_0 : i32, i32, i32
  }
  func.func @transform_2(%arg0: i32) -> (i32, i32, i32) {
    %c0_i32 = arith.constant 0 : i32
    %c0_i32_0 = arith.constant 0 : i32
    %c0_i32_1 = arith.constant 0 : i32
    %c0_i32_2 = arith.constant 0 : i32
    return %c0_i32, %c0_i32_0, %c0_i32_1 : i32, i32, i32
  }
  func.func @transform_3(%arg0: i32) -> (i32, i32) {
    %c0_i32 = arith.constant 0 : i32
    %c0_i32_0 = arith.constant 0 : i32
    %c0_i32_1 = arith.constant 0 : i32
    return %c0_i32, %c0_i32_0 : i32, i32
  }
  func.func @transform_4(%arg0: i32) -> (i32, i32) {
    %c0_i32 = arith.constant 0 : i32
    %c0_i32_0 = arith.constant 0 : i32
    %c0_i32_1 = arith.constant 0 : i32
    return %c0_i32, %c0_i32_0 : i32, i32
  }
  func.func @transform_5(%arg0: i32) -> (i32, i32) {
    %c0_i32 = arith.constant 0 : i32
    %c0_i32_0 = arith.constant 0 : i32
    %c0_i32_1 = arith.constant 0 : i32
    return %c0_i32, %c0_i32_0 : i32, i32
  }
  func.func @transform_6(%arg0: i32) -> (i32, i32) {
    %c0_i32 = arith.constant 0 : i32
    %c0_i32_0 = arith.constant 0 : i32
    %c0_i32_1 = arith.constant 0 : i32
    return %c0_i32, %c0_i32_0 : i32, i32
  }
  func.func @transform_7(%arg0: i32) -> (i32, i32) {
    %c0_i32 = arith.constant 0 : i32
    %c0_i32_0 = arith.constant 0 : i32
    %c0_i32_1 = arith.constant 0 : i32
    return %c0_i32, %c0_i32_0 : i32, i32
  }
  func.func @transform_8(%arg0: i32) -> (i32, i32) {
    %c0_i32 = arith.constant 0 : i32
    %c0_i32_0 = arith.constant 0 : i32
    %c0_i32_1 = arith.constant 0 : i32
    return %c0_i32, %c0_i32_0 : i32, i32
  }
  func.func @transform_9(%arg0: i32) -> (i32, i32, i32) {
    %c0_i32 = arith.constant 0 : i32
    %c0_i32_0 = arith.constant 0 : i32
    %c0_i32_1 = arith.constant 0 : i32
    return %arg0, %c0_i32, %c0_i32_0 : i32, i32, i32
  }
}

</mosaic_0001>

<llo_original>
// kernel: vae_forward.3
$region0: #{vae_forward.3}
  #allocation0 [shape = 'u32[]', space=smem, size = 0x4, offset = 0x4, fixed_abs, tag = 'smem constant byte address 0x4 - core index']
  #allocation1 [shape = 'u32[144,128]{1,0:T(1,128)}', space=vmem, size = 0x12000, scoped, tag = 'internal scratch']
  %s0 = inlined_call_operand.vmem [shape: f32[2,32,1], index: 0, kind: input, shape index: {}]
  %s1 = inlined_call_operand.vmem [shape: f32[2,16,1], index: 1, kind: input, shape index: {}]
  %s2 = inlined_call_operand.vmem [shape: bf16[16,32,760], index: 2, kind: input, shape index: {}]
  %s3 = inlined_call_operand.vmem [shape: f32[32,760], index: 3, kind: input, shape index: {}]
  %s4 = inlined_call_operand.vmem [shape: bf16[16,800], index: 4, kind: input, shape index: {}]
  %s5 = inlined_call_operand.vmem [shape: f32[16,1], index: 5, kind: input, shape index: {}]
  %s6 = inlined_call_operand.vmem [shape: f32[1,760], index: 6, kind: input, shape index: {}]
  %s7 = inlined_call_operand.vmem [shape: bf16[8,400], index: 7, kind: input, shape index: {}]
  %s8 = inlined_call_operand.vmem [shape: f32[8,1], index: 8, kind: input, shape index: {}]
  %s9 = inlined_call_operand.vmem [shape: f32[2,1,896], index: 9, kind: output, shape index: {}]
  %s10 = sld [smem:[#allocation0]]
  $region69: #{vae_forward.3} parent=0
    _
  %s12 = ssub.s32 1, %s10
  %s13 = scalar_select 0, %s12, %s10
  loop: start=0, step=1, limit=4
  $region2: #{vae_forward.3} parent=0 // loop_pre_header
    _
  $region3: #{vae_forward.3} parent=0 // loop_header
    %s15 = sphi 0, %s19
    %p16 = scmp.ge.s32.totalorder %s15, 4
    %s25 = sphi 0, %s27
    %s28 = sphi 0, %s25
    %s29 = sphi 0, %s28
    %s45 = sphi 0, %s29
    %s51 = sphi 0, %s53
    %s54 = sphi 0, %s51
    %s55 = sphi 0, %s54
    %s71 = sphi 0, %s55
    %s75 = sphi 0, %s75
    %s77 = sphi 0, %s75
    %s78 = sphi 0, %s77
    %s92 = sphi 0, %s78
    %s96 = sphi 0, %s96
    %s98 = sphi 0, %s96
    %s99 = sphi 0, %s98
    %s113 = sphi 0, %s99
    %s117 = sphi 0, %s117
    %s119 = sphi 0, %s117
    %s120 = sphi 0, %s119
    %s134 = sphi 0, %s120
    %s138 = sphi 0, %s138
    %s140 = sphi 0, %s138
    %s141 = sphi 0, %s140
    %s155 = sphi 0, %s141
    %s159 = sphi 0, %s159
    %s161 = sphi 0, %s159
    %s162 = sphi 0, %s161
    %s176 = sphi 0, %s162
    %s180 = sphi 0, %s180
    %s182 = sphi 0, %s180
    %s183 = sphi 0, %s182
    %s197 = sphi 0, %s183
    %s201 = sphi 0, %s201
    %s203 = sphi 0, %s201
    %s204 = sphi 0, %s203
    %s218 = sphi 0, %s204
    %s224 = sphi 0, %s226
    %s227 = sphi 0, %s224
    %s228 = sphi 0, %s227
    %s244 = sphi 0, %s228
  $region4: #{vae_forward.3} parent=0 // loop_header_branch
    %18 = sbr.rel (%p16) target = $region8
  $region5: #{vae_forward.3} parent=0 // loop_body
    %s20 = ssub.s32 %s15, 1
    %s21 = ssub.s32 %s15, 2
    %s22 = sadd.s32 %s15, 1
    %s23 = ssub.s32 %s15, %s22
    %p24 = scmp.eq.s32.totalorder %s23, 0
    %s26 = sadd.s32 %s25, 1
    %s27 = scalar_select %p24, %s25, %s26
    %p30 = pneg %p24
    %p31 = scmp.eq.s32.totalorder %s15, 1
    %p32 = por %p30, %p31
    %p33 = scmp.ne.s32.totalorder %s25, %s28
    %p34 = scmp.eq.s32.totalorder %s15, 0
    %p35 = por %p33, %p34
    %p36 = scmp.ne.s32.totalorder %s25, %s28
    %p37 = scmp.eq.s32.totalorder %s20, 1
    %p38 = por %p36, %p37
    %p39 = scmp.ne.s32.totalorder %s28, %s29
    %p40 = scmp.eq.s32.totalorder %s20, 0
    %p41 = por %p39, %p40
    %p42 = scmp.ne.s32.totalorder %s28, %s29
    %p43 = scmp.eq.s32.totalorder %s21, 1
    %p44 = por %p42, %p43
    %p46 = scmp.ne.s32.totalorder %s29, %s45
    %p47 = scmp.eq.s32.totalorder %s21, 0
    %p48 = por %p46, %p47
    %s49 = ssub.s32 %s15, %s22
    %p50 = scmp.eq.s32.totalorder %s49, 0
    %s52 = sadd.s32 %s51, 1
    %s53 = scalar_select %p50, %s51, %s52
    %p56 = pneg %p50
    %p57 = scmp.eq.s32.totalorder %s15, 1
    %p58 = por %p56, %p57
    %p59 = scmp.ne.s32.totalorder %s51, %s54
    %p60 = scmp.eq.s32.totalorder %s15, 0
    %p61 = por %p59, %p60
    %p62 = scmp.ne.s32.totalorder %s51, %s54
    %p63 = scmp.eq.s32.totalorder %s20, 1
    %p64 = por %p62, %p63
    %p65 = scmp.ne.s32.totalorder %s54, %s55
    %p66 = scmp.eq.s32.totalorder %s20, 0
    %p67 = por %p65, %p66
    %p68 = scmp.ne.s32.totalorder %s54, %s55
    %p69 = scmp.eq.s32.totalorder %s21, 1
    %p70 = por %p68, %p69
    %p72 = scmp.ne.s32.totalorder %s55, %s71
    %p73 = scmp.eq.s32.totalorder %s21, 0
    %p74 = por %p72, %p73
    %s76 = sadd.s32 %s75, 1
    %p79 = scmp.eq.s32.totalorder %s15, 1
    %p80 = scmp.ne.s32.totalorder %s75, %s77
    %p81 = scmp.eq.s32.totalorder %s15, 0
    %p82 = por %p80, %p81
    %p83 = scmp.ne.s32.totalorder %s75, %s77
    %p84 = scmp.eq.s32.totalorder %s20, 1
    %p85 = por %p83, %p84
    %p86 = scmp.ne.s32.totalorder %s77, %s78
    %p87 = scmp.eq.s32.totalorder %s20, 0
    %p88 = por %p86, %p87
    %p89 = scmp.ne.s32.totalorder %s77, %s78
    %p90 = scmp.eq.s32.totalorder %s21, 1
    %p91 = por %p89, %p90
    %p93 = scmp.ne.s32.totalorder %s78, %s92
    %p94 = scmp.eq.s32.totalorder %s21, 0
    %p95 = por %p93, %p94
    %s97 = sadd.s32 %s96, 1
    %p100 = scmp.eq.s32.totalorder %s15, 1
    %p101 = scmp.ne.s32.totalorder %s96, %s98
    %p102 = scmp.eq.s32.totalorder %s15, 0
    %p103 = por %p101, %p102
    %p104 = scmp.ne.s32.totalorder %s96, %s98
    %p105 = scmp.eq.s32.totalorder %s20, 1
    %p106 = por %p104, %p105
    %p107 = scmp.ne.s32.totalorder %s98, %s99
    %p108 = scmp.eq.s32.totalorder %s20, 0
    %p109 = por %p107, %p108
    %p110 = scmp.ne.s32.totalorder %s98, %s99
    %p111 = scmp.eq.s32.totalorder %s21, 1
    %p112 = por %p110, %p111
    %p114 = scmp.ne.s32.totalorder %s99, %s113
    %p115 = scmp.eq.s32.totalorder %s21, 0
    %p116 = por %p114, %p115
    %s118 = sadd.s32 %s117, 1
    %p121 = scmp.eq.s32.totalorder %s15, 1
    %p122 = scmp.ne.s32.totalorder %s117, %s119
    %p123 = scmp.eq.s32.totalorder %s15, 0
    %p124 = por %p122, %p123
    %p125 = scmp.ne.s32.totalorder %s117, %s119
    %p126 = scmp.eq.s32.totalorder %s20, 1
    %p127 = por %p125, %p126
    %p128 = scmp.ne.s32.totalorder %s119, %s120
    %p129 = scmp.eq.s32.totalorder %s20, 0
    %p130 = por %p128, %p129
    %p131 = scmp.ne.s32.totalorder %s119, %s120
    %p132 = scmp.eq.s32.totalorder %s21, 1
    %p133 = por %p131, %p132
    %p135 = scmp.ne.s32.totalorder %s120, %s134
    %p136 = scmp.eq.s32.totalorder %s21, 0
    %p137 = por %p135, %p136
    %s139 = sadd.s32 %s138, 1
    %p142 = scmp.eq.s32.totalorder %s15, 1
    %p143 = scmp.ne.s32.totalorder %s138, %s140
    %p144 = scmp.eq.s32.totalorder %s15, 0
    %p145 = por %p143, %p144
    %p146 = scmp.ne.s32.totalorder %s138, %s140
    %p147 = scmp.eq.s32.totalorder %s20, 1
    %p148 = por %p146, %p147
    %p149 = scmp.ne.s32.totalorder %s140, %s141
    %p150 = scmp.eq.s32.totalorder %s20, 0
    %p151 = por %p149, %p150
    %p152 = scmp.ne.s32.totalorder %s140, %s141
    %p153 = scmp.eq.s32.totalorder %s21, 1
    %p154 = por %p152, %p153
    %p156 = scmp.ne.s32.totalorder %s141, %s155
    %p157 = scmp.eq.s32.totalorder %s21, 0
    %p158 = por %p156, %p157
    %s160 = sadd.s32 %s159, 1
    %p163 = scmp.eq.s32.totalorder %s15, 1
    %p164 = scmp.ne.s32.totalorder %s159, %s161
    %p165 = scmp.eq.s32.totalorder %s15, 0
    %p166 = por %p164, %p165
    %p167 = scmp.ne.s32.totalorder %s159, %s161
    %p168 = scmp.eq.s32.totalorder %s20, 1
    %p169 = por %p167, %p168
    %p170 = scmp.ne.s32.totalorder %s161, %s162
    %p171 = scmp.eq.s32.totalorder %s20, 0
    %p172 = por %p170, %p171
    %p173 = scmp.ne.s32.totalorder %s161, %s162
    %p174 = scmp.eq.s32.totalorder %s21, 1
    %p175 = por %p173, %p174
    %p177 = scmp.ne.s32.totalorder %s162, %s176
    %p178 = scmp.eq.s32.totalorder %s21, 0
    %p179 = por %p177, %p178
    %s181 = sadd.s32 %s180, 1
    %p184 = scmp.eq.s32.totalorder %s15, 1
    %p185 = scmp.ne.s32.totalorder %s180, %s182
    %p186 = scmp.eq.s32.totalorder %s15, 0
    %p187 = por %p185, %p186
    %p188 = scmp.ne.s32.totalorder %s180, %s182
    %p189 = scmp.eq.s32.totalorder %s20, 1
    %p190 = por %p188, %p189
    %p191 = scmp.ne.s32.totalorder %s182, %s183
    %p192 = scmp.eq.s32.totalorder %s20, 0
    %p193 = por %p191, %p192
    %p194 = scmp.ne.s32.totalorder %s182, %s183
    %p195 = scmp.eq.s32.totalorder %s21, 1
    %p196 = por %p194, %p195
    %p198 = scmp.ne.s32.totalorder %s183, %s197
    %p199 = scmp.eq.s32.totalorder %s21, 0
    %p200 = por %p198, %p199
    %s202 = sadd.s32 %s201, 1
    %p205 = scmp.eq.s32.totalorder %s15, 1
    %p206 = scmp.ne.s32.totalorder %s201, %s203
    %p207 = scmp.eq.s32.totalorder %s15, 0
    %p208 = por %p206, %p207
    %p209 = scmp.ne.s32.totalorder %s201, %s203
    %p210 = scmp.eq.s32.totalorder %s20, 1
    %p211 = por %p209, %p210
    %p212 = scmp.ne.s32.totalorder %s203, %s204
    %p213 = scmp.eq.s32.totalorder %s20, 0
    %p214 = por %p212, %p213
    %p215 = scmp.ne.s32.totalorder %s203, %s204
    %p216 = scmp.eq.s32.totalorder %s21, 1
    %p217 = por %p215, %p216
    %p219 = scmp.ne.s32.totalorder %s204, %s218
    %p220 = scmp.eq.s32.totalorder %s21, 0
    %p221 = por %p219, %p220
    %s222 = ssub.s32 %s15, %s22
    %p223 = scmp.eq.s32.totalorder %s222, 0
    %s225 = sadd.s32 %s224, 1
    %s226 = scalar_select %p223, %s224, %s225
    %p229 = pneg %p223
    %p230 = scmp.eq.s32.totalorder %s15, 1
    %p231 = por %p229, %p230
    %p232 = scmp.ne.s32.totalorder %s224, %s227
    %p233 = scmp.eq.s32.totalorder %s15, 0
    %p234 = por %p232, %p233
    %p235 = scmp.ne.s32.totalorder %s224, %s227
    %p236 = scmp.eq.s32.totalorder %s20, 1
    %p237 = por %p235, %p236
    %p238 = scmp.ne.s32.totalorder %s227, %s228
    %p239 = scmp.eq.s32.totalorder %s20, 0
    %p240 = por %p238, %p239
    %p241 = scmp.ne.s32.totalorder %s227, %s228
    %p242 = scmp.eq.s32.totalorder %s21, 1
    %p243 = por %p241, %p242
    %p245 = scmp.ne.s32.totalorder %s228, %s244
    %p246 = scmp.eq.s32.totalorder %s21, 0
    %p247 = por %p245, %p246
    %p248 = scmp.le.s32.totalorder 1, %s15
    %p249 = scmp.lt.s32.totalorder %s15, 3
    %p250 = pnand %p248, %p249
    %p251 = pneg %p250
    // Predicated region
    $region9: #{vae_forward.3} parent=5 // pred_check
      _
    $region10: #{vae_forward.3} parent=5 // pred_check_branch
      %253 = sbr.rel (%p250) target = $region12
    $region11: #{vae_forward.3} parent=5 // pred_region
      %s254 = ssub.s32 %s15, 1
      // Predicated region
      $region13: #{vae_forward.3} parent=11 // pred_check
        %p255 = pneg %p88
      $region14: #{vae_forward.3} parent=11 // pred_check_branch
        %257 = sbr.rel (%p255) target = $region16
      $region15: #{vae_forward.3} parent=11 // pred_region
        _
      $region16: #{vae_forward.3} parent=11 // pred_fallthru
        _
      // Predicated region
      $region17: #{vae_forward.3} parent=11 // pred_check
        %p258 = pneg %p109
      $region18: #{vae_forward.3} parent=11 // pred_check_branch
        %260 = sbr.rel (%p258) target = $region20
      $region19: #{vae_forward.3} parent=11 // pred_region
        _
      $region20: #{vae_forward.3} parent=11 // pred_fallthru
        _
      // Predicated region
      $region21: #{vae_forward.3} parent=11 // pred_check
        %p261 = pneg %p130
      $region22: #{vae_forward.3} parent=11 // pred_check_branch
        %263 = sbr.rel (%p261) target = $region24
      $region23: #{vae_forward.3} parent=11 // pred_region
        _
      $region24: #{vae_forward.3} parent=11 // pred_fallthru
        _
      // Predicated region
      $region25: #{vae_forward.3} parent=11 // pred_check
        %p264 = pneg %p151
      $region26: #{vae_forward.3} parent=11 // pred_check_branch
        %266 = sbr.rel (%p264) target = $region28
      $region27: #{vae_forward.3} parent=11 // pred_region
        _
      $region28: #{vae_forward.3} parent=11 // pred_fallthru
        _
      // Predicated region
      $region29: #{vae_forward.3} parent=11 // pred_check
        %p267 = pneg %p172
      $region30: #{vae_forward.3} parent=11 // pred_check_branch
        %269 = sbr.rel (%p267) target = $region32
      $region31: #{vae_forward.3} parent=11 // pred_region
        _
      $region32: #{vae_forward.3} parent=11 // pred_fallthru
        _
      // Predicated region
      $region33: #{vae_forward.3} parent=11 // pred_check
        %p270 = pneg %p193
      $region34: #{vae_forward.3} parent=11 // pred_check_branch
        %272 = sbr.rel (%p270) target = $region36
      $region35: #{vae_forward.3} parent=11 // pred_region
        _
      $region36: #{vae_forward.3} parent=11 // pred_fallthru
        _
      // Predicated region
      $region37: #{vae_forward.3} parent=11 // pred_check
        %p273 = pneg %p214
      $region38: #{vae_forward.3} parent=11 // pred_check_branch
        %275 = sbr.rel (%p273) target = $region40
      $region39: #{vae_forward.3} parent=11 // pred_region
        _
      $region40: #{vae_forward.3} parent=11 // pred_fallthru
        _
    $region12: #{vae_forward.3} parent=5 // pred_fallthru
      _
    %p276 = scmp.lt.s32.totalorder %s15, 2
    // Predicated region
    $region41: #{vae_forward.3} parent=5 // pred_check
      %p277 = pneg %p276
    $region42: #{vae_forward.3} parent=5 // pred_check_branch
      %279 = sbr.rel (%p277) target = $region44
    $region43: #{vae_forward.3} parent=5 // pred_region
      // Predicated region
      $region45: #{vae_forward.3} parent=43 // pred_check
        %p280 = pneg %p35
      $region46: #{vae_forward.3} parent=43 // pred_check_branch
        %282 = sbr.rel (%p280) target = $region48
      $region47: #{vae_forward.3} parent=43 // pred_region
        %p283 = scmp.lt.s32.totalorder %s15, 1
        %s284 = scalar_select %p283, %s15, 1
        %s285 = smul.addr %s284, 4
        %s286 = smul.addr %s285, 8
        %s287 = scalar_lea.vmem %s0, %s286
      $region48: #{vae_forward.3} parent=43 // pred_fallthru
        _
      // Predicated region
      $region49: #{vae_forward.3} parent=43 // pred_check
        %p288 = pneg %p61
      $region50: #{vae_forward.3} parent=43 // pred_check_branch
        %290 = sbr.rel (%p288) target = $region52
      $region51: #{vae_forward.3} parent=43 // pred_region
        %p291 = scmp.lt.s32.totalorder %s15, 1
        %s292 = scalar_select %p291, %s15, 1
        %s293 = smul.addr %s292, 2
        %s294 = smul.addr %s293, 8
        %s295 = scalar_lea.vmem %s1, %s294
      $region52: #{vae_forward.3} parent=43 // pred_fallthru
        _
    $region44: #{vae_forward.3} parent=5 // pred_fallthru
      _
    %p296 = scmp.le.s32.totalorder 1, %s15
    %p297 = scmp.lt.s32.totalorder %s15, 3
    %p298 = pnand %p296, %p297
    %p299 = pneg %p298
    // Predicated region
    $region53: #{vae_forward.3} parent=5 // pred_check
      _
    $region54: #{vae_forward.3} parent=5 // pred_check_branch
      %301 = sbr.rel (%p298) target = $region56
    $region55: #{vae_forward.3} parent=5 // pred_region
      %s302 = ssub.s32 %s15, 1
      %p303 = scmp.lt.s32.totalorder %s20, 1
      %s304 = scalar_select %p303, %s20, 1
      %s305 = smul.addr %s304, 4
      %s306 = smul.addr %s305, 8
      %s307 = scalar_lea.vmem %s0, %s306
      %p308 = pneg %p41
      %p309 = pneg %p38
      %p310 = scmp.lt.s32.totalorder %s20, 1
      %s311 = scalar_select %p310, %s20, 1
      %s312 = smul.addr %s311, 2
      %s313 = smul.addr %s312, 8
      %s314 = scalar_lea.vmem %s1, %s313
      %p315 = pneg %p67
      %p316 = pneg %p64
      %p317 = pneg %p88
      %p318 = pneg %p85
      %p319 = pneg %p109
      %p320 = pneg %p106
      %p321 = pneg %p130
      %p322 = pneg %p127
      %p323 = pneg %p151
      %p324 = pneg %p148
      %p325 = pneg %p172
      %p326 = pneg %p169
      %p327 = pneg %p193
      %p328 = pneg %p190
      %p329 = pneg %p214
      %p330 = pneg %p211
      %p331 = pneg %p240
      %p332 = pneg %p237
      %p333 = scmp.lt.s32.totalorder %s20, 1
      %s334 = scalar_select %p333, %s20, 1
      %s335 = smul.addr %s334, 7
      %s336 = scalar_lea.vmem %s9, %s335
      %p337 = scmp.lt.s32.totalorder %s20, 1
      %s338 = scalar_select %p337, %s20, 1
      %s339 = smul.addr %s338, 4
      %s340 = smul.addr %s339, 8
      %s341 = scalar_lea.vmem %s0, %s340
      %p342 = scmp.lt.s32.totalorder %s20, 1
      %s343 = scalar_select %p342, %s20, 1
      %s344 = smul.addr %s343, 2
      %s345 = smul.addr %s344, 8
      %s346 = scalar_lea.vmem %s1, %s345
      %p347 = scmp.lt.s32.totalorder %s20, 1
      %s348 = scalar_select %p347, %s20, 1
      %s349 = smul.addr %s348, 7
      %s350 = scalar_lea.vmem %s9, %s349
      %v352 = vld [vmem:[%s341] sm:$0xff]
      %v353 = vld [vmem:[%s341 + $0x8] sm:$0xff]
      %v354 = vld [vmem:[%s341 + $0x10] sm:$0xff]
      %v355 = vld [vmem:[%s341 + $0x18] sm:$0xff]
      %v356 = vmul.f32 %v354, 0.5
      %v357 = vmul.f32 %v355, 0.5
      %v358 = vmul.f32 %v356, 1.442695
      %v359 = vpow.pop %v358
      %v360 = vmul.f32 %v357, 1.442695
      %v361 = vpow.pop %v360
      %v362 = vld [vmem:[%s346] sm:$0xff]
      %v363 = vld [vmem:[%s346 + $0x8] sm:$0xff]
      %v364 = vmul.f32 %v359, %v362
      %v365 = vmul.f32 %v361, %v363
      %v366 = vadd.f32 %v352, %v364
      %v367 = vadd.f32 %v353, %v365
      %v368 = vld [vmem:[%s3] sm:$0xff]
      %v369 = vld [vmem:[%s3 + $0x8] sm:$0xff]
      %v370 = vld [vmem:[%s3 + $0x10] sm:$0xff]
      %v371 = vld [vmem:[%s3 + $0x18] sm:$0xff]
      %v372 = vld [vmem:[%s3 + $0x20] sm:$0xff]
      %v373 = vld [vmem:[%s3 + $0x28] sm:$0xff]
      %v374 = vld [vmem:[%s3 + $0x30] sm:$0xff]
      %v375 = vld [vmem:[%s3 + $0x38] sm:$0xff]
      %v376 = vld [vmem:[%s3 + $0x40] sm:$0xff]
      %v377 = vld [vmem:[%s3 + $0x48] sm:$0xff]
      %v378 = vld [vmem:[%s3 + $0x50] sm:$0xff]
      %v379 = vld [vmem:[%s3 + $0x58] sm:$0xff]
      %v380 = vld [vmem:[%s3 + $0x60] sm:$0xff]
      %v381 = vld [vmem:[%s3 + $0x68] sm:$0xff]
      %v382 = vld [vmem:[%s3 + $0x70] sm:$0xff]
      %v383 = vld [vmem:[%s3 + $0x78] sm:$0xff]
      %v384 = vld [vmem:[%s3 + $0x80] sm:$0xff]
      %v385 = vld [vmem:[%s3 + $0x88] sm:$0xff]
      %v386 = vld [vmem:[%s3 + $0x90] sm:$0xff]
      %v387 = vld [vmem:[%s3 + $0x98] sm:$0xff]
      %v388 = vld [vmem:[%s3 + $0xa0] sm:$0xff]
      %v389 = vld [vmem:[%s3 + $0xa8] sm:$0xff]
      %v390 = vld [vmem:[%s3 + $0xb0] sm:$0xff]
      %v391 = vld [vmem:[%s3 + $0xb8] sm:$0xff]
      %v392 = vld [vmem:[%s2] sm:$0xff]
      %v393 = vld [vmem:[%s2 + $0x8] sm:$0xff]
      %v394 = vld [vmem:[%s2 + $0x10] sm:$0xff]
      %v395 = vld [vmem:[%s2 + $0x18] sm:$0xff]
      %v396 = vld [vmem:[%s2 + $0x20] sm:$0xff]
      %v397 = vld [vmem:[%s2 + $0x28] sm:$0xff]
      %v398 = vld [vmem:[%s2 + $0x30] sm:$0xff]
      %v399 = vld [vmem:[%s2 + $0x38] sm:$0xff]
      %v400 = vld [vmem:[%s2 + $0x40] sm:$0xff]
      %v401 = vld [vmem:[%s2 + $0x48] sm:$0xff]
      %v402 = vld [vmem:[%s2 + $0x50] sm:$0xff]
      %v403 = vld [vmem:[%s2 + $0x58] sm:$0xff]
      %v404 = vunpack.c.l.bf16 %v392
      %v405 = vunpack.c.h.bf16 %v392
      %v406 = vunpack.c.l.bf16 %v393
      %v407 = vunpack.c.h.bf16 %v393
      %v408 = vunpack.c.l.bf16 %v394
      %v409 = vunpack.c.h.bf16 %v394
      %v410 = vunpack.c.l.bf16 %v395
      %v411 = vunpack.c.h.bf16 %v395
      %v412 = vunpack.c.l.bf16 %v396
      %v413 = vunpack.c.h.bf16 %v396
      %v414 = vunpack.c.l.bf16 %v397
      %v415 = vunpack.c.h.bf16 %v397
      %v416 = vunpack.c.l.bf16 %v398
      %v417 = vunpack.c.h.bf16 %v398
      %v418 = vunpack.c.l.bf16 %v399
      %v419 = vunpack.c.h.bf16 %v399
      %v420 = vunpack.c.l.bf16 %v400
      %v421 = vunpack.c.h.bf16 %v400
      %v422 = vunpack.c.l.bf16 %v401
      %v423 = vunpack.c.h.bf16 %v401
      %v424 = vunpack.c.l.bf16 %v402
      %v425 = vunpack.c.h.bf16 %v402
      %v426 = vunpack.c.l.bf16 %v403
      %v427 = vunpack.c.h.bf16 %v403
      %s429 = vtos %v366
      %v430 = vstv %s429
      %v432 = vmul.f32 %v430, %v404
      %v433 = vmul.f32 %v430, %v405
      %v434 = vmul.f32 %v430, %v406
      %v435 = vmul.f32 %v430, %v407
      %v436 = vmul.f32 %v430, %v408
      %v437 = vmul.f32 %v430, %v409
      %v438 = vmul.f32 %v430, %v410
      %v439 = vmul.f32 %v430, %v411
      %v440 = vmul.f32 %v430, %v412
      %v441 = vmul.f32 %v430, %v413
      %v442 = vmul.f32 %v430, %v414
      %v443 = vmul.f32 %v430, %v415
      %v444 = vmul.f32 %v430, %v416
      %v445 = vmul.f32 %v430, %v417
      %v446 = vmul.f32 %v430, %v418
      %v447 = vmul.f32 %v430, %v419
      %v448 = vmul.f32 %v430, %v420
      %v449 = vmul.f32 %v430, %v421
      %v450 = vmul.f32 %v430, %v422
      %v451 = vmul.f32 %v430, %v423
      %v452 = vmul.f32 %v430, %v424
      %v453 = vmul.f32 %v430, %v425
      %v454 = vmul.f32 %v430, %v426
      %v455 = vmul.f32 %v430, %v427
      %v456 = vadd.f32 %v368, %v432
      %v457 = vadd.f32 %v369, %v433
      %v458 = vadd.f32 %v370, %v434
      %v459 = vadd.f32 %v371, %v435
      %v460 = vadd.f32 %v372, %v436
      %v461 = vadd.f32 %v373, %v437
      %v462 = vadd.f32 %v374, %v438
      %v463 = vadd.f32 %v375, %v439
      %v464 = vadd.f32 %v376, %v440
      %v465 = vadd.f32 %v377, %v441
      %v466 = vadd.f32 %v378, %v442
      %v467 = vadd.f32 %v379, %v443
      %v468 = vadd.f32 %v380, %v444
      %v469 = vadd.f32 %v381, %v445
      %v470 = vadd.f32 %v382, %v446
      %v471 = vadd.f32 %v383, %v447
      %v472 = vadd.f32 %v384, %v448
      %v473 = vadd.f32 %v385, %v449
      %v474 = vadd.f32 %v386, %v450
      %v475 = vadd.f32 %v387, %v451
      %v476 = vadd.f32 %v388, %v452
      %v477 = vadd.f32 %v389, %v453
      %v478 = vadd.f32 %v390, %v454
      %v479 = vadd.f32 %v391, %v455
      %s480 = scalar_lea.vmem %s2, 96
      %v481 = vld [vmem:[%s480] sm:$0xff]
      %v482 = vld [vmem:[%s480 + $0x8] sm:$0xff]
      %v483 = vld [vmem:[%s480 + $0x10] sm:$0xff]
      %v484 = vld [vmem:[%s480 + $0x18] sm:$0xff]
      %v485 = vld [vmem:[%s480 + $0x20] sm:$0xff]
      %v486 = vld [vmem:[%s480 + $0x28] sm:$0xff]
      %v487 = vld [vmem:[%s480 + $0x30] sm:$0xff]
      %v488 = vld [vmem:[%s480 + $0x38] sm:$0xff]
      %v489 = vld [vmem:[%s480 + $0x40] sm:$0xff]
      %v490 = vld [vmem:[%s480 + $0x48] sm:$0xff]
      %v491 = vld [vmem:[%s480 + $0x50] sm:$0xff]
      %v492 = vld [vmem:[%s480 + $0x58] sm:$0xff]
      %v493 = vunpack.c.l.bf16 %v481
      %v494 = vunpack.c.h.bf16 %v481
      %v495 = vunpack.c.l.bf16 %v482
      %v496 = vunpack.c.h.bf16 %v482
      %v497 = vunpack.c.l.bf16 %v483
      %v498 = vunpack.c.h.bf16 %v483
      %v499 = vunpack.c.l.bf16 %v484
      %v500 = vunpack.c.h.bf16 %v484
      %v501 = vunpack.c.l.bf16 %v485
      %v502 = vunpack.c.h.bf16 %v485
      %v503 = vunpack.c.l.bf16 %v486
      %v504 = vunpack.c.h.bf16 %v486
      %v505 = vunpack.c.l.bf16 %v487
      %v506 = vunpack.c.h.bf16 %v487
      %v507 = vunpack.c.l.bf16 %v488
      %v508 = vunpack.c.h.bf16 %v488
      %v509 = vunpack.c.l.bf16 %v489
      %v510 = vunpack.c.h.bf16 %v489
      %v511 = vunpack.c.l.bf16 %v490
      %v512 = vunpack.c.h.bf16 %v490
      %v513 = vunpack.c.l.bf16 %v491
      %v514 = vunpack.c.h.bf16 %v491
      %v515 = vunpack.c.l.bf16 %v492
      %v516 = vunpack.c.h.bf16 %v492
      %v517 = vrot.slane %v366, 1
      %s518 = vtos %v517
      %v519 = vstv %s518
      %v521 = vmul.f32 %v519, %v493
      %v522 = vmul.f32 %v519, %v494
      %v523 = vmul.f32 %v519, %v495
      %v524 = vmul.f32 %v519, %v496
      %v525 = vmul.f32 %v519, %v497
      %v526 = vmul.f32 %v519, %v498
      %v527 = vmul.f32 %v519, %v499
      %v528 = vmul.f32 %v519, %v500
      %v529 = vmul.f32 %v519, %v501
      %v530 = vmul.f32 %v519, %v502
      %v531 = vmul.f32 %v519, %v503
      %v532 = vmul.f32 %v519, %v504
      %v533 = vmul.f32 %v519, %v505
      %v534 = vmul.f32 %v519, %v506
      %v535 = vmul.f32 %v519, %v507
      %v536 = vmul.f32 %v519, %v508
      %v537 = vmul.f32 %v519, %v509
      %v538 = vmul.f32 %v519, %v510
      %v539 = vmul.f32 %v519, %v511
      %v540 = vmul.f32 %v519, %v512
      %v541 = vmul.f32 %v519, %v513
      %v542 = vmul.f32 %v519, %v514
      %v543 = vmul.f32 %v519, %v515
      %v544 = vmul.f32 %v519, %v516
      %v545 = vadd.f32 %v456, %v521
      %v546 = vadd.f32 %v457, %v522
      %v547 = vadd.f32 %v458, %v523
      %v548 = vadd.f32 %v459, %v524
      %v549 = vadd.f32 %v460, %v525
      %v550 = vadd.f32 %v461, %v526
      %v551 = vadd.f32 %v462, %v527
      %v552 = vadd.f32 %v463, %v528
      %v553 = vadd.f32 %v464, %v529
      %v554 = vadd.f32 %v465, %v530
      %v555 = vadd.f32 %v466, %v531
      %v556 = vadd.f32 %v467, %v532
      %v557 = vadd.f32 %v468, %v533
      %v558 = vadd.f32 %v469, %v534
      %v559 = vadd.f32 %v470, %v535
      %v560 = vadd.f32 %v471, %v536
      %v561 = vadd.f32 %v472, %v537
      %v562 = vadd.f32 %v473, %v538
      %v563 = vadd.f32 %v474, %v539
      %v564 = vadd.f32 %v475, %v540
      %v565 = vadd.f32 %v476, %v541
      %v566 = vadd.f32 %v477, %v542
      %v567 = vadd.f32 %v478, %v543
      %v568 = vadd.f32 %v479, %v544
      %s569 = scalar_lea.vmem %s2, 192
      %v570 = vld [vmem:[%s569] sm:$0xff]
      %v571 = vld [vmem:[%s569 + $0x8] sm:$0xff]
      %v572 = vld [vmem:[%s569 + $0x10] sm:$0xff]
      %v573 = vld [vmem:[%s569 + $0x18] sm:$0xff]
      %v574 = vld [vmem:[%s569 + $0x20] sm:$0xff]
      %v575 = vld [vmem:[%s569 + $0x28] sm:$0xff]
      %v576 = vld [vmem:[%s569 + $0x30] sm:$0xff]
      %v577 = vld [vmem:[%s569 + $0x38] sm:$0xff]
      %v578 = vld [vmem:[%s569 + $0x40] sm:$0xff]
      %v579 = vld [vmem:[%s569 + $0x48] sm:$0xff]
      %v580 = vld [vmem:[%s569 + $0x50] sm:$0xff]
      %v581 = vld [vmem:[%s569 + $0x58] sm:$0xff]
      %v582 = vunpack.c.l.bf16 %v570
      %v583 = vunpack.c.h.bf16 %v570
      %v584 = vunpack.c.l.bf16 %v571
      %v585 = vunpack.c.h.bf16 %v571
      %v586 = vunpack.c.l.bf16 %v572
      %v587 = vunpack.c.h.bf16 %v572
      %v588 = vunpack.c.l.bf16 %v573
      %v589 = vunpack.c.h.bf16 %v573
      %v590 = vunpack.c.l.bf16 %v574
      %v591 = vunpack.c.h.bf16 %v574
      %v592 = vunpack.c.l.bf16 %v575
      %v593 = vunpack.c.h.bf16 %v575
      %v594 = vunpack.c.l.bf16 %v576
      %v595 = vunpack.c.h.bf16 %v576
      %v596 = vunpack.c.l.bf16 %v577
      %v597 = vunpack.c.h.bf16 %v577
      %v598 = vunpack.c.l.bf16 %v578
      %v599 = vunpack.c.h.bf16 %v578
      %v600 = vunpack.c.l.bf16 %v579
      %v601 = vunpack.c.h.bf16 %v579
      %v602 = vunpack.c.l.bf16 %v580
      %v603 = vunpack.c.h.bf16 %v580
      %v604 = vunpack.c.l.bf16 %v581
      %v605 = vunpack.c.h.bf16 %v581
      %v606 = vrot.slane %v366, 2
      %s607 = vtos %v606
      %v608 = vstv %s607
      %v610 = vmul.f32 %v608, %v582
      %v611 = vmul.f32 %v608, %v583
      %v612 = vmul.f32 %v608, %v584
      %v613 = vmul.f32 %v608, %v585
      %v614 = vmul.f32 %v608, %v586
      %v615 = vmul.f32 %v608, %v587
      %v616 = vmul.f32 %v608, %v588
      %v617 = vmul.f32 %v608, %v589
      %v618 = vmul.f32 %v608, %v590
      %v619 = vmul.f32 %v608, %v591
      %v620 = vmul.f32 %v608, %v592
      %v621 = vmul.f32 %v608, %v593
      %v622 = vmul.f32 %v608, %v594
      %v623 = vmul.f32 %v608, %v595
      %v624 = vmul.f32 %v608, %v596
      %v625 = vmul.f32 %v608, %v597
      %v626 = vmul.f32 %v608, %v598
      %v627 = vmul.f32 %v608, %v599
      %v628 = vmul.f32 %v608, %v600
      %v629 = vmul.f32 %v608, %v601
      %v630 = vmul.f32 %v608, %v602
      %v631 = vmul.f32 %v608, %v603
      %v632 = vmul.f32 %v608, %v604
      %v633 = vmul.f32 %v608, %v605
      %v634 = vadd.f32 %v545, %v610
      %v635 = vadd.f32 %v546, %v611
      %v636 = vadd.f32 %v547, %v612
      %v637 = vadd.f32 %v548, %v613
      %v638 = vadd.f32 %v549, %v614
      %v639 = vadd.f32 %v550, %v615
      %v640 = vadd.f32 %v551, %v616
      %v641 = vadd.f32 %v552, %v617
      %v642 = vadd.f32 %v553, %v618
      %v643 = vadd.f32 %v554, %v619
      %v644 = vadd.f32 %v555, %v620
      %v645 = vadd.f32 %v556, %v621
      %v646 = vadd.f32 %v557, %v622
      %v647 = vadd.f32 %v558, %v623
      %v648 = vadd.f32 %v559, %v624
      %v649 = vadd.f32 %v560, %v625
      %v650 = vadd.f32 %v561, %v626
      %v651 = vadd.f32 %v562, %v627
      %v652 = vadd.f32 %v563, %v628
      %v653 = vadd.f32 %v564, %v629
      %v654 = vadd.f32 %v565, %v630
      %v655 = vadd.f32 %v566, %v631
      %v656 = vadd.f32 %v567, %v632
      %v657 = vadd.f32 %v568, %v633
      %s658 = scalar_lea.vmem %s2, 288
      %v659 = vld [vmem:[%s658] sm:$0xff]
      %v660 = vld [vmem:[%s658 + $0x8] sm:$0xff]
      %v661 = vld [vmem:[%s658 + $0x10] sm:$0xff]
      %v662 = vld [vmem:[%s658 + $0x18] sm:$0xff]
      %v663 = vld [vmem:[%s658 + $0x20] sm:$0xff]
      %v664 = vld [vmem:[%s658 + $0x28] sm:$0xff]
      %v665 = vld [vmem:[%s658 + $0x30] sm:$0xff]
      %v666 = vld [vmem:[%s658 + $0x38] sm:$0xff]
      %v667 = vld [vmem:[%s658 + $0x40] sm:$0xff]
      %v668 = vld [vmem:[%s658 + $0x48] sm:$0xff]
      %v669 = vld [vmem:[%s658 + $0x50] sm:$0xff]
      %v670 = vld [vmem:[%s658 + $0x58] sm:$0xff]
      %v671 = vunpack.c.l.bf16 %v659
      %v672 = vunpack.c.h.bf16 %v659
      %v673 = vunpack.c.l.bf16 %v660
      %v674 = vunpack.c.h.bf16 %v660
      %v675 = vunpack.c.l.bf16 %v661
      %v676 = vunpack.c.h.bf16 %v661
      %v677 = vunpack.c.l.bf16 %v662
      %v678 = vunpack.c.h.bf16 %v662
      %v679 = vunpack.c.l.bf16 %v663
      %v680 = vunpack.c.h.bf16 %v663
      %v681 = vunpack.c.l.bf16 %v664
      %v682 = vunpack.c.h.bf16 %v664
      %v683 = vunpack.c.l.bf16 %v665
      %v684 = vunpack.c.h.bf16 %v665
      %v685 = vunpack.c.l.bf16 %v666
      %v686 = vunpack.c.h.bf16 %v666
      %v687 = vunpack.c.l.bf16 %v667
      %v688 = vunpack.c.h.bf16 %v667
      %v689 = vunpack.c.l.bf16 %v668
      %v690 = vunpack.c.h.bf16 %v668
      %v691 = vunpack.c.l.bf16 %v669
      %v692 = vunpack.c.h.bf16 %v669
      %v693 = vunpack.c.l.bf16 %v670
      %v694 = vunpack.c.h.bf16 %v670
      %v695 = vrot.slane %v366, 3
      %s696 = vtos %v695
      %v697 = vstv %s696
      %v699 = vmul.f32 %v697, %v671
      %v700 = vmul.f32 %v697, %v672
      %v701 = vmul.f32 %v697, %v673
      %v702 = vmul.f32 %v697, %v674
      %v703 = vmul.f32 %v697, %v675
      %v704 = vmul.f32 %v697, %v676
      %v705 = vmul.f32 %v697, %v677
      %v706 = vmul.f32 %v697, %v678
      %v707 = vmul.f32 %v697, %v679
      %v708 = vmul.f32 %v697, %v680
      %v709 = vmul.f32 %v697, %v681
      %v710 = vmul.f32 %v697, %v682
      %v711 = vmul.f32 %v697, %v683
      %v712 = vmul.f32 %v697, %v684
      %v713 = vmul.f32 %v697, %v685
      %v714 = vmul.f32 %v697, %v686
      %v715 = vmul.f32 %v697, %v687
      %v716 = vmul.f32 %v697, %v688
      %v717 = vmul.f32 %v697, %v689
      %v718 = vmul.f32 %v697, %v690
      %v719 = vmul.f32 %v697, %v691
      %v720 = vmul.f32 %v697, %v692
      %v721 = vmul.f32 %v697, %v693
      %v722 = vmul.f32 %v697, %v694
      %v723 = vadd.f32 %v634, %v699
      %v724 = vadd.f32 %v635, %v700
      %v725 = vadd.f32 %v636, %v701
      %v726 = vadd.f32 %v637, %v702
      %v727 = vadd.f32 %v638, %v703
      %v728 = vadd.f32 %v639, %v704
      %v729 = vadd.f32 %v640, %v705
      %v730 = vadd.f32 %v641, %v706
      %v731 = vadd.f32 %v642, %v707
      %v732 = vadd.f32 %v643, %v708
      %v733 = vadd.f32 %v644, %v709
      %v734 = vadd.f32 %v645, %v710
      %v735 = vadd.f32 %v646, %v711
      %v736 = vadd.f32 %v647, %v712
      %v737 = vadd.f32 %v648, %v713
      %v738 = vadd.f32 %v649, %v714
      %v739 = vadd.f32 %v650, %v715
      %v740 = vadd.f32 %v651, %v716
      %v741 = vadd.f32 %v652, %v717
      %v742 = vadd.f32 %v653, %v718
      %v743 = vadd.f32 %v654, %v719
      %v744 = vadd.f32 %v655, %v720
      %v745 = vadd.f32 %v656, %v721
      %v746 = vadd.f32 %v657, %v722
      %s747 = scalar_lea.vmem %s2, 384
      %v748 = vld [vmem:[%s747] sm:$0xff]
      %v749 = vld [vmem:[%s747 + $0x8] sm:$0xff]
      %v750 = vld [vmem:[%s747 + $0x10] sm:$0xff]
      %v751 = vld [vmem:[%s747 + $0x18] sm:$0xff]
      %v752 = vld [vmem:[%s747 + $0x20] sm:$0xff]
      %v753 = vld [vmem:[%s747 + $0x28] sm:$0xff]
      %v754 = vld [vmem:[%s747 + $0x30] sm:$0xff]
      %v755 = vld [vmem:[%s747 + $0x38] sm:$0xff]
      %v756 = vld [vmem:[%s747 + $0x40] sm:$0xff]
      %v757 = vld [vmem:[%s747 + $0x48] sm:$0xff]
      %v758 = vld [vmem:[%s747 + $0x50] sm:$0xff]
      %v759 = vld [vmem:[%s747 + $0x58] sm:$0xff]
      %v760 = vunpack.c.l.bf16 %v748
      %v761 = vunpack.c.h.bf16 %v748
      %v762 = vunpack.c.l.bf16 %v749
      %v763 = vunpack.c.h.bf16 %v749
      %v764 = vunpack.c.l.bf16 %v750
      %v765 = vunpack.c.h.bf16 %v750
      %v766 = vunpack.c.l.bf16 %v751
      %v767 = vunpack.c.h.bf16 %v751
      %v768 = vunpack.c.l.bf16 %v752
      %v769 = vunpack.c.h.bf16 %v752
      %v770 = vunpack.c.l.bf16 %v753
      %v771 = vunpack.c.h.bf16 %v753
      %v772 = vunpack.c.l.bf16 %v754
      %v773 = vunpack.c.h.bf16 %v754
      %v774 = vunpack.c.l.bf16 %v755
      %v775 = vunpack.c.h.bf16 %v755
      %v776 = vunpack.c.l.bf16 %v756
      %v777 = vunpack.c.h.bf16 %v756
      %v778 = vunpack.c.l.bf16 %v757
      %v779 = vunpack.c.h.bf16 %v757
      %v780 = vunpack.c.l.bf16 %v758
      %v781 = vunpack.c.h.bf16 %v758
      %v782 = vunpack.c.l.bf16 %v759
      %v783 = vunpack.c.h.bf16 %v759
      %v784 = vrot.slane %v366, 4
      %s785 = vtos %v784
      %v786 = vstv %s785
      %v788 = vmul.f32 %v786, %v760
      %v789 = vmul.f32 %v786, %v761
      %v790 = vmul.f32 %v786, %v762
      %v791 = vmul.f32 %v786, %v763
      %v792 = vmul.f32 %v786, %v764
      %v793 = vmul.f32 %v786, %v765
      %v794 = vmul.f32 %v786, %v766
      %v795 = vmul.f32 %v786, %v767
      %v796 = vmul.f32 %v786, %v768
      %v797 = vmul.f32 %v786, %v769
      %v798 = vmul.f32 %v786, %v770
      %v799 = vmul.f32 %v786, %v771
      %v800 = vmul.f32 %v786, %v772
      %v801 = vmul.f32 %v786, %v773
      %v802 = vmul.f32 %v786, %v774
      %v803 = vmul.f32 %v786, %v775
      %v804 = vmul.f32 %v786, %v776
      %v805 = vmul.f32 %v786, %v777
      %v806 = vmul.f32 %v786, %v778
      %v807 = vmul.f32 %v786, %v779
      %v808 = vmul.f32 %v786, %v780
      %v809 = vmul.f32 %v786, %v781
      %v810 = vmul.f32 %v786, %v782
      %v811 = vmul.f32 %v786, %v783
      %v812 = vadd.f32 %v723, %v788
      %v813 = vadd.f32 %v724, %v789
      %v814 = vadd.f32 %v725, %v790
      %v815 = vadd.f32 %v726, %v791
      %v816 = vadd.f32 %v727, %v792
      %v817 = vadd.f32 %v728, %v793
      %v818 = vadd.f32 %v729, %v794
      %v819 = vadd.f32 %v730, %v795
      %v820 = vadd.f32 %v731, %v796
      %v821 = vadd.f32 %v732, %v797
      %v822 = vadd.f32 %v733, %v798
      %v823 = vadd.f32 %v734, %v799
      %v824 = vadd.f32 %v735, %v800
      %v825 = vadd.f32 %v736, %v801
      %v826 = vadd.f32 %v737, %v802
      %v827 = vadd.f32 %v738, %v803
      %v828 = vadd.f32 %v739, %v804
      %v829 = vadd.f32 %v740, %v805
      %v830 = vadd.f32 %v741, %v806
      %v831 = vadd.f32 %v742, %v807
      %v832 = vadd.f32 %v743, %v808
      %v833 = vadd.f32 %v744, %v809
      %v834 = vadd.f32 %v745, %v810
      %v835 = vadd.f32 %v746, %v811
      %s836 = scalar_lea.vmem %s2, 480
      %v837 = vld [vmem:[%s836] sm:$0xff]
      %v838 = vld [vmem:[%s836 + $0x8] sm:$0xff]
      %v839 = vld [vmem:[%s836 + $0x10] sm:$0xff]
      %v840 = vld [vmem:[%s836 + $0x18] sm:$0xff]
      %v841 = vld [vmem:[%s836 + $0x20] sm:$0xff]
      %v842 = vld [vmem:[%s836 + $0x28] sm:$0xff]
      %v843 = vld [vmem:[%s836 + $0x30] sm:$0xff]
      %v844 = vld [vmem:[%s836 + $0x38] sm:$0xff]
      %v845 = vld [vmem:[%s836 + $0x40] sm:$0xff]
      %v846 = vld [vmem:[%s836 + $0x48] sm:$0xff]
      %v847 = vld [vmem:[%s836 + $0x50] sm:$0xff]
      %v848 = vld [vmem:[%s836 + $0x58] sm:$0xff]
      %v849 = vunpack.c.l.bf16 %v837
      %v850 = vunpack.c.h.bf16 %v837
      %v851 = vunpack.c.l.bf16 %v838
      %v852 = vunpack.c.h.bf16 %v838
      %v853 = vunpack.c.l.bf16 %v839
      %v854 = vunpack.c.h.bf16 %v839
      %v855 = vunpack.c.l.bf16 %v840
      %v856 = vunpack.c.h.bf16 %v840
      %v857 = vunpack.c.l.bf16 %v841
      %v858 = vunpack.c.h.bf16 %v841
      %v859 = vunpack.c.l.bf16 %v842
      %v860 = vunpack.c.h.bf16 %v842
      %v861 = vunpack.c.l.bf16 %v843
      %v862 = vunpack.c.h.bf16 %v843
      %v863 = vunpack.c.l.bf16 %v844
      %v864 = vunpack.c.h.bf16 %v844
      %v865 = vunpack.c.l.bf16 %v845
      %v866 = vunpack.c.h.bf16 %v845
      %v867 = vunpack.c.l.bf16 %v846
      %v868 = vunpack.c.h.bf16 %v846
      %v869 = vunpack.c.l.bf16 %v847
      %v870 = vunpack.c.h.bf16 %v847
      %v871 = vunpack.c.l.bf16 %v848
      %v872 = vunpack.c.h.bf16 %v848
      %v873 = vrot.slane %v366, 5
      %s874 = vtos %v873
      %v875 = vstv %s874
      %v877 = vmul.f32 %v875, %v849
      %v878 = vmul.f32 %v875, %v850
      %v879 = vmul.f32 %v875, %v851
      %v880 = vmul.f32 %v875, %v852
      %v881 = vmul.f32 %v875, %v853
      %v882 = vmul.f32 %v875, %v854
      %v883 = vmul.f32 %v875, %v855
      %v884 = vmul.f32 %v875, %v856
      %v885 = vmul.f32 %v875, %v857
      %v886 = vmul.f32 %v875, %v858
      %v887 = vmul.f32 %v875, %v859
      %v888 = vmul.f32 %v875, %v860
      %v889 = vmul.f32 %v875, %v861
      %v890 = vmul.f32 %v875, %v862
      %v891 = vmul.f32 %v875, %v863
      %v892 = vmul.f32 %v875, %v864
      %v893 = vmul.f32 %v875, %v865
      %v894 = vmul.f32 %v875, %v866
      %v895 = vmul.f32 %v875, %v867
      %v896 = vmul.f32 %v875, %v868
      %v897 = vmul.f32 %v875, %v869
      %v898 = vmul.f32 %v875, %v870
      %v899 = vmul.f32 %v875, %v871
      %v900 = vmul.f32 %v875, %v872
      %v901 = vadd.f32 %v812, %v877
      %v902 = vadd.f32 %v813, %v878
      %v903 = vadd.f32 %v814, %v879
      %v904 = vadd.f32 %v815, %v880
      %v905 = vadd.f32 %v816, %v881
      %v906 = vadd.f32 %v817, %v882
      %v907 = vadd.f32 %v818, %v883
      %v908 = vadd.f32 %v819, %v884
      %v909 = vadd.f32 %v820, %v885
      %v910 = vadd.f32 %v821, %v886
      %v911 = vadd.f32 %v822, %v887
      %v912 = vadd.f32 %v823, %v888
      %v913 = vadd.f32 %v824, %v889
      %v914 = vadd.f32 %v825, %v890
      %v915 = vadd.f32 %v826, %v891
      %v916 = vadd.f32 %v827, %v892
      %v917 = vadd.f32 %v828, %v893
      %v918 = vadd.f32 %v829, %v894
      %v919 = vadd.f32 %v830, %v895
      %v920 = vadd.f32 %v831, %v896
      %v921 = vadd.f32 %v832, %v897
      %v922 = vadd.f32 %v833, %v898
      %v923 = vadd.f32 %v834, %v899
      %v924 = vadd.f32 %v835, %v900
      %s925 = scalar_lea.vmem %s2, 576
      %v926 = vld [vmem:[%s925] sm:$0xff]
      %v927 = vld [vmem:[%s925 + $0x8] sm:$0xff]
      %v928 = vld [vmem:[%s925 + $0x10] sm:$0xff]
      %v929 = vld [vmem:[%s925 + $0x18] sm:$0xff]
      %v930 = vld [vmem:[%s925 + $0x20] sm:$0xff]
      %v931 = vld [vmem:[%s925 + $0x28] sm:$0xff]
      %v932 = vld [vmem:[%s925 + $0x30] sm:$0xff]
      %v933 = vld [vmem:[%s925 + $0x38] sm:$0xff]
      %v934 = vld [vmem:[%s925 + $0x40] sm:$0xff]
      %v935 = vld [vmem:[%s925 + $0x48] sm:$0xff]
      %v936 = vld [vmem:[%s925 + $0x50] sm:$0xff]
      %v937 = vld [vmem:[%s925 + $0x58] sm:$0xff]
      %v938 = vunpack.c.l.bf16 %v926
      %v939 = vunpack.c.h.bf16 %v926
      %v940 = vunpack.c.l.bf16 %v927
      %v941 = vunpack.c.h.bf16 %v927
      %v942 = vunpack.c.l.bf16 %v928
      %v943 = vunpack.c.h.bf16 %v928
      %v944 = vunpack.c.l.bf16 %v929
      %v945 = vunpack.c.h.bf16 %v929
      %v946 = vunpack.c.l.bf16 %v930
      %v947 = vunpack.c.h.bf16 %v930
      %v948 = vunpack.c.l.bf16 %v931
      %v949 = vunpack.c.h.bf16 %v931
      %v950 = vunpack.c.l.bf16 %v932
      %v951 = vunpack.c.h.bf16 %v932
      %v952 = vunpack.c.l.bf16 %v933
      %v953 = vunpack.c.h.bf16 %v933
      %v954 = vunpack.c.l.bf16 %v934
      %v955 = vunpack.c.h.bf16 %v934
      %v956 = vunpack.c.l.bf16 %v935
      %v957 = vunpack.c.h.bf16 %v935
      %v958 = vunpack.c.l.bf16 %v936
      %v959 = vunpack.c.h.bf16 %v936
      %v960 = vunpack.c.l.bf16 %v937
      %v961 = vunpack.c.h.bf16 %v937
      %v962 = vrot.slane %v366, 6
      %s963 = vtos %v962
      %v964 = vstv %s963
      %v966 = vmul.f32 %v964, %v938
      %v967 = vmul.f32 %v964, %v939
      %v968 = vmul.f32 %v964, %v940
      %v969 = vmul.f32 %v964, %v941
      %v970 = vmul.f32 %v964, %v942
      %v971 = vmul.f32 %v964, %v943
      %v972 = vmul.f32 %v964, %v944
      %v973 = vmul.f32 %v964, %v945
      %v974 = vmul.f32 %v964, %v946
      %v975 = vmul.f32 %v964, %v947
      %v976 = vmul.f32 %v964, %v948
      %v977 = vmul.f32 %v964, %v949
      %v978 = vmul.f32 %v964, %v950
      %v979 = vmul.f32 %v964, %v951
      %v980 = vmul.f32 %v964, %v952
      %v981 = vmul.f32 %v964, %v953
      %v982 = vmul.f32 %v964, %v954
      %v983 = vmul.f32 %v964, %v955
      %v984 = vmul.f32 %v964, %v956
      %v985 = vmul.f32 %v964, %v957
      %v986 = vmul.f32 %v964, %v958
      %v987 = vmul.f32 %v964, %v959
      %v988 = vmul.f32 %v964, %v960
      %v989 = vmul.f32 %v964, %v961
      %v990 = vadd.f32 %v901, %v966
      %v991 = vadd.f32 %v902, %v967
      %v992 = vadd.f32 %v903, %v968
      %v993 = vadd.f32 %v904, %v969
      %v994 = vadd.f32 %v905, %v970
      %v995 = vadd.f32 %v906, %v971
      %v996 = vadd.f32 %v907, %v972
      %v997 = vadd.f32 %v908, %v973
      %v998 = vadd.f32 %v909, %v974
      %v999 = vadd.f32 %v910, %v975
      %v1000 = vadd.f32 %v911, %v976
      %v1001 = vadd.f32 %v912, %v977
      %v1002 = vadd.f32 %v913, %v978
      %v1003 = vadd.f32 %v914, %v979
      %v1004 = vadd.f32 %v915, %v980
      %v1005 = vadd.f32 %v916, %v981
      %v1006 = vadd.f32 %v917, %v982
      %v1007 = vadd.f32 %v918, %v983
      %v1008 = vadd.f32 %v919, %v984
      %v1009 = vadd.f32 %v920, %v985
      %v1010 = vadd.f32 %v921, %v986
      %v1011 = vadd.f32 %v922, %v987
      %v1012 = vadd.f32 %v923, %v988
      %v1013 = vadd.f32 %v924, %v989
      %s1014 = scalar_lea.vmem %s2, 672
      %v1015 = vld [vmem:[%s1014] sm:$0xff]
      %v1016 = vld [vmem:[%s1014 + $0x8] sm:$0xff]
      %v1017 = vld [vmem:[%s1014 + $0x10] sm:$0xff]
      %v1018 = vld [vmem:[%s1014 + $0x18] sm:$0xff]
      %v1019 = vld [vmem:[%s1014 + $0x20] sm:$0xff]
      %v1020 = vld [vmem:[%s1014 + $0x28] sm:$0xff]
      %v1021 = vld [vmem:[%s1014 + $0x30] sm:$0xff]
      %v1022 = vld [vmem:[%s1014 + $0x38] sm:$0xff]
      %v1023 = vld [vmem:[%s1014 + $0x40] sm:$0xff]
      %v1024 = vld [vmem:[%s1014 + $0x48] sm:$0xff]
      %v1025 = vld [vmem:[%s1014 + $0x50] sm:$0xff]
      %v1026 = vld [vmem:[%s1014 + $0x58] sm:$0xff]
      %v1027 = vunpack.c.l.bf16 %v1015
      %v1028 = vunpack.c.h.bf16 %v1015
      %v1029 = vunpack.c.l.bf16 %v1016
      %v1030 = vunpack.c.h.bf16 %v1016
      %v1031 = vunpack.c.l.bf16 %v1017
      %v1032 = vunpack.c.h.bf16 %v1017
      %v1033 = vunpack.c.l.bf16 %v1018
      %v1034 = vunpack.c.h.bf16 %v1018
      %v1035 = vunpack.c.l.bf16 %v1019
      %v1036 = vunpack.c.h.bf16 %v1019
      %v1037 = vunpack.c.l.bf16 %v1020
      %v1038 = vunpack.c.h.bf16 %v1020
      %v1039 = vunpack.c.l.bf16 %v1021
      %v1040 = vunpack.c.h.bf16 %v1021
      %v1041 = vunpack.c.l.bf16 %v1022
      %v1042 = vunpack.c.h.bf16 %v1022
      %v1043 = vunpack.c.l.bf16 %v1023
      %v1044 = vunpack.c.h.bf16 %v1023
      %v1045 = vunpack.c.l.bf16 %v1024
      %v1046 = vunpack.c.h.bf16 %v1024
      %v1047 = vunpack.c.l.bf16 %v1025
      %v1048 = vunpack.c.h.bf16 %v1025
      %v1049 = vunpack.c.l.bf16 %v1026
      %v1050 = vunpack.c.h.bf16 %v1026
      %v1051 = vrot.slane %v366, 7
      %s1052 = vtos %v1051
      %v1053 = vstv %s1052
      %v1055 = vmul.f32 %v1053, %v1027
      %v1056 = vmul.f32 %v1053, %v1028
      %v1057 = vmul.f32 %v1053, %v1029
      %v1058 = vmul.f32 %v1053, %v1030
      %v1059 = vmul.f32 %v1053, %v1031
      %v1060 = vmul.f32 %v1053, %v1032
      %v1061 = vmul.f32 %v1053, %v1033
      %v1062 = vmul.f32 %v1053, %v1034
      %v1063 = vmul.f32 %v1053, %v1035
      %v1064 = vmul.f32 %v1053, %v1036
      %v1065 = vmul.f32 %v1053, %v1037
      %v1066 = vmul.f32 %v1053, %v1038
      %v1067 = vmul.f32 %v1053, %v1039
      %v1068 = vmul.f32 %v1053, %v1040
      %v1069 = vmul.f32 %v1053, %v1041
      %v1070 = vmul.f32 %v1053, %v1042
      %v1071 = vmul.f32 %v1053, %v1043
      %v1072 = vmul.f32 %v1053, %v1044
      %v1073 = vmul.f32 %v1053, %v1045
      %v1074 = vmul.f32 %v1053, %v1046
      %v1075 = vmul.f32 %v1053, %v1047
      %v1076 = vmul.f32 %v1053, %v1048
      %v1077 = vmul.f32 %v1053, %v1049
      %v1078 = vmul.f32 %v1053, %v1050
      %v1079 = vadd.f32 %v990, %v1055
      %v1080 = vadd.f32 %v991, %v1056
      %v1081 = vadd.f32 %v992, %v1057
      %v1082 = vadd.f32 %v993, %v1058
      %v1083 = vadd.f32 %v994, %v1059
      %v1084 = vadd.f32 %v995, %v1060
      %v1085 = vadd.f32 %v996, %v1061
      %v1086 = vadd.f32 %v997, %v1062
      %v1087 = vadd.f32 %v998, %v1063
      %v1088 = vadd.f32 %v999, %v1064
      %v1089 = vadd.f32 %v1000, %v1065
      %v1090 = vadd.f32 %v1001, %v1066
      %v1091 = vadd.f32 %v1002, %v1067
      %v1092 = vadd.f32 %v1003, %v1068
      %v1093 = vadd.f32 %v1004, %v1069
      %v1094 = vadd.f32 %v1005, %v1070
      %v1095 = vadd.f32 %v1006, %v1071
      %v1096 = vadd.f32 %v1007, %v1072
      %v1097 = vadd.f32 %v1008, %v1073
      %v1098 = vadd.f32 %v1009, %v1074
      %v1099 = vadd.f32 %v1010, %v1075
      %v1100 = vadd.f32 %v1011, %v1076
      %v1101 = vadd.f32 %v1012, %v1077
      %v1102 = vadd.f32 %v1013, %v1078
      %s1103 = scalar_lea.vmem %s2, 768
      %v1104 = vld [vmem:[%s1103] sm:$0xff]
      %v1105 = vld [vmem:[%s1103 + $0x8] sm:$0xff]
      %v1106 = vld [vmem:[%s1103 + $0x10] sm:$0xff]
      %v1107 = vld [vmem:[%s1103 + $0x18] sm:$0xff]
      %v1108 = vld [vmem:[%s1103 + $0x20] sm:$0xff]
      %v1109 = vld [vmem:[%s1103 + $0x28] sm:$0xff]
      %v1110 = vld [vmem:[%s1103 + $0x30] sm:$0xff]
      %v1111 = vld [vmem:[%s1103 + $0x38] sm:$0xff]
      %v1112 = vld [vmem:[%s1103 + $0x40] sm:$0xff]
      %v1113 = vld [vmem:[%s1103 + $0x48] sm:$0xff]
      %v1114 = vld [vmem:[%s1103 + $0x50] sm:$0xff]
      %v1115 = vld [vmem:[%s1103 + $0x58] sm:$0xff]
      %v1116 = vunpack.c.l.bf16 %v1104
      %v1117 = vunpack.c.h.bf16 %v1104
      %v1118 = vunpack.c.l.bf16 %v1105
      %v1119 = vunpack.c.h.bf16 %v1105
      %v1120 = vunpack.c.l.bf16 %v1106
      %v1121 = vunpack.c.h.bf16 %v1106
      %v1122 = vunpack.c.l.bf16 %v1107
      %v1123 = vunpack.c.h.bf16 %v1107
      %v1124 = vunpack.c.l.bf16 %v1108
      %v1125 = vunpack.c.h.bf16 %v1108
      %v1126 = vunpack.c.l.bf16 %v1109
      %v1127 = vunpack.c.h.bf16 %v1109
      %v1128 = vunpack.c.l.bf16 %v1110
      %v1129 = vunpack.c.h.bf16 %v1110
      %v1130 = vunpack.c.l.bf16 %v1111
      %v1131 = vunpack.c.h.bf16 %v1111
      %v1132 = vunpack.c.l.bf16 %v1112
      %v1133 = vunpack.c.h.bf16 %v1112
      %v1134 = vunpack.c.l.bf16 %v1113
      %v1135 = vunpack.c.h.bf16 %v1113
      %v1136 = vunpack.c.l.bf16 %v1114
      %v1137 = vunpack.c.h.bf16 %v1114
      %v1138 = vunpack.c.l.bf16 %v1115
      %v1139 = vunpack.c.h.bf16 %v1115
      %s1141 = vtos %v367
      %v1142 = vstv %s1141
      %v1144 = vmul.f32 %v1142, %v1116
      %v1145 = vmul.f32 %v1142, %v1117
      %v1146 = vmul.f32 %v1142, %v1118
      %v1147 = vmul.f32 %v1142, %v1119
      %v1148 = vmul.f32 %v1142, %v1120
      %v1149 = vmul.f32 %v1142, %v1121
      %v1150 = vmul.f32 %v1142, %v1122
      %v1151 = vmul.f32 %v1142, %v1123
      %v1152 = vmul.f32 %v1142, %v1124
      %v1153 = vmul.f32 %v1142, %v1125
      %v1154 = vmul.f32 %v1142, %v1126
      %v1155 = vmul.f32 %v1142, %v1127
      %v1156 = vmul.f32 %v1142, %v1128
      %v1157 = vmul.f32 %v1142, %v1129
      %v1158 = vmul.f32 %v1142, %v1130
      %v1159 = vmul.f32 %v1142, %v1131
      %v1160 = vmul.f32 %v1142, %v1132
      %v1161 = vmul.f32 %v1142, %v1133
      %v1162 = vmul.f32 %v1142, %v1134
      %v1163 = vmul.f32 %v1142, %v1135
      %v1164 = vmul.f32 %v1142, %v1136
      %v1165 = vmul.f32 %v1142, %v1137
      %v1166 = vmul.f32 %v1142, %v1138
      %v1167 = vmul.f32 %v1142, %v1139
      %v1168 = vadd.f32 %v1079, %v1144
      %v1169 = vadd.f32 %v1080, %v1145
      %v1170 = vadd.f32 %v1081, %v1146
      %v1171 = vadd.f32 %v1082, %v1147
      %v1172 = vadd.f32 %v1083, %v1148
      %v1173 = vadd.f32 %v1084, %v1149
      %v1174 = vadd.f32 %v1085, %v1150
      %v1175 = vadd.f32 %v1086, %v1151
      %v1176 = vadd.f32 %v1087, %v1152
      %v1177 = vadd.f32 %v1088, %v1153
      %v1178 = vadd.f32 %v1089, %v1154
      %v1179 = vadd.f32 %v1090, %v1155
      %v1180 = vadd.f32 %v1091, %v1156
      %v1181 = vadd.f32 %v1092, %v1157
      %v1182 = vadd.f32 %v1093, %v1158
      %v1183 = vadd.f32 %v1094, %v1159
      %v1184 = vadd.f32 %v1095, %v1160
      %v1185 = vadd.f32 %v1096, %v1161
      %v1186 = vadd.f32 %v1097, %v1162
      %v1187 = vadd.f32 %v1098, %v1163
      %v1188 = vadd.f32 %v1099, %v1164
      %v1189 = vadd.f32 %v1100, %v1165
      %v1190 = vadd.f32 %v1101, %v1166
      %v1191 = vadd.f32 %v1102, %v1167
      %s1192 = scalar_lea.vmem %s2, 864
      %v1193 = vld [vmem:[%s1192] sm:$0xff]
      %v1194 = vld [vmem:[%s1192 + $0x8] sm:$0xff]
      %v1195 = vld [vmem:[%s1192 + $0x10] sm:$0xff]
      %v1196 = vld [vmem:[%s1192 + $0x18] sm:$0xff]
      %v1197 = vld [vmem:[%s1192 + $0x20] sm:$0xff]
      %v1198 = vld [vmem:[%s1192 + $0x28] sm:$0xff]
      %v1199 = vld [vmem:[%s1192 + $0x30] sm:$0xff]
      %v1200 = vld [vmem:[%s1192 + $0x38] sm:$0xff]
      %v1201 = vld [vmem:[%s1192 + $0x40] sm:$0xff]
      %v1202 = vld [vmem:[%s1192 + $0x48] sm:$0xff]
      %v1203 = vld [vmem:[%s1192 + $0x50] sm:$0xff]
      %v1204 = vld [vmem:[%s1192 + $0x58] sm:$0xff]
      %v1205 = vunpack.c.l.bf16 %v1193
      %v1206 = vunpack.c.h.bf16 %v1193
      %v1207 = vunpack.c.l.bf16 %v1194
      %v1208 = vunpack.c.h.bf16 %v1194
      %v1209 = vunpack.c.l.bf16 %v1195
      %v1210 = vunpack.c.h.bf16 %v1195
      %v1211 = vunpack.c.l.bf16 %v1196
      %v1212 = vunpack.c.h.bf16 %v1196
      %v1213 = vunpack.c.l.bf16 %v1197
      %v1214 = vunpack.c.h.bf16 %v1197
      %v1215 = vunpack.c.l.bf16 %v1198
      %v1216 = vunpack.c.h.bf16 %v1198
      %v1217 = vunpack.c.l.bf16 %v1199
      %v1218 = vunpack.c.h.bf16 %v1199
      %v1219 = vunpack.c.l.bf16 %v1200
      %v1220 = vunpack.c.h.bf16 %v1200
      %v1221 = vunpack.c.l.bf16 %v1201
      %v1222 = vunpack.c.h.bf16 %v1201
      %v1223 = vunpack.c.l.bf16 %v1202
      %v1224 = vunpack.c.h.bf16 %v1202
      %v1225 = vunpack.c.l.bf16 %v1203
      %v1226 = vunpack.c.h.bf16 %v1203
      %v1227 = vunpack.c.l.bf16 %v1204
      %v1228 = vunpack.c.h.bf16 %v1204
      %v1229 = vrot.slane %v367, 1
      %s1230 = vtos %v1229
      %v1231 = vstv %s1230
      %v1233 = vmul.f32 %v1231, %v1205
      %v1234 = vmul.f32 %v1231, %v1206
      %v1235 = vmul.f32 %v1231, %v1207
      %v1236 = vmul.f32 %v1231, %v1208
      %v1237 = vmul.f32 %v1231, %v1209
      %v1238 = vmul.f32 %v1231, %v1210
      %v1239 = vmul.f32 %v1231, %v1211
      %v1240 = vmul.f32 %v1231, %v1212
      %v1241 = vmul.f32 %v1231, %v1213
      %v1242 = vmul.f32 %v1231, %v1214
      %v1243 = vmul.f32 %v1231, %v1215
      %v1244 = vmul.f32 %v1231, %v1216
      %v1245 = vmul.f32 %v1231, %v1217
      %v1246 = vmul.f32 %v1231, %v1218
      %v1247 = vmul.f32 %v1231, %v1219
      %v1248 = vmul.f32 %v1231, %v1220
      %v1249 = vmul.f32 %v1231, %v1221
      %v1250 = vmul.f32 %v1231, %v1222
      %v1251 = vmul.f32 %v1231, %v1223
      %v1252 = vmul.f32 %v1231, %v1224
      %v1253 = vmul.f32 %v1231, %v1225
      %v1254 = vmul.f32 %v1231, %v1226
      %v1255 = vmul.f32 %v1231, %v1227
      %v1256 = vmul.f32 %v1231, %v1228
      %v1257 = vadd.f32 %v1168, %v1233
      %v1258 = vadd.f32 %v1169, %v1234
      %v1259 = vadd.f32 %v1170, %v1235
      %v1260 = vadd.f32 %v1171, %v1236
      %v1261 = vadd.f32 %v1172, %v1237
      %v1262 = vadd.f32 %v1173, %v1238
      %v1263 = vadd.f32 %v1174, %v1239
      %v1264 = vadd.f32 %v1175, %v1240
      %v1265 = vadd.f32 %v1176, %v1241
      %v1266 = vadd.f32 %v1177, %v1242
      %v1267 = vadd.f32 %v1178, %v1243
      %v1268 = vadd.f32 %v1179, %v1244
      %v1269 = vadd.f32 %v1180, %v1245
      %v1270 = vadd.f32 %v1181, %v1246
      %v1271 = vadd.f32 %v1182, %v1247
      %v1272 = vadd.f32 %v1183, %v1248
      %v1273 = vadd.f32 %v1184, %v1249
      %v1274 = vadd.f32 %v1185, %v1250
      %v1275 = vadd.f32 %v1186, %v1251
      %v1276 = vadd.f32 %v1187, %v1252
      %v1277 = vadd.f32 %v1188, %v1253
      %v1278 = vadd.f32 %v1189, %v1254
      %v1279 = vadd.f32 %v1190, %v1255
      %v1280 = vadd.f32 %v1191, %v1256
      %s1281 = scalar_lea.vmem %s2, 960
      %v1282 = vld [vmem:[%s1281] sm:$0xff]
      %v1283 = vld [vmem:[%s1281 + $0x8] sm:$0xff]
      %v1284 = vld [vmem:[%s1281 + $0x10] sm:$0xff]
      %v1285 = vld [vmem:[%s1281 + $0x18] sm:$0xff]
      %v1286 = vld [vmem:[%s1281 + $0x20] sm:$0xff]
      %v1287 = vld [vmem:[%s1281 + $0x28] sm:$0xff]
      %v1288 = vld [vmem:[%s1281 + $0x30] sm:$0xff]
      %v1289 = vld [vmem:[%s1281 + $0x38] sm:$0xff]
      %v1290 = vld [vmem:[%s1281 + $0x40] sm:$0xff]
      %v1291 = vld [vmem:[%s1281 + $0x48] sm:$0xff]
      %v1292 = vld [vmem:[%s1281 + $0x50] sm:$0xff]
      %v1293 = vld [vmem:[%s1281 + $0x58] sm:$0xff]
      %v1294 = vunpack.c.l.bf16 %v1282
      %v1295 = vunpack.c.h.bf16 %v1282
      %v1296 = vunpack.c.l.bf16 %v1283
      %v1297 = vunpack.c.h.bf16 %v1283
      %v1298 = vunpack.c.l.bf16 %v1284
      %v1299 = vunpack.c.h.bf16 %v1284
      %v1300 = vunpack.c.l.bf16 %v1285
      %v1301 = vunpack.c.h.bf16 %v1285
      %v1302 = vunpack.c.l.bf16 %v1286
      %v1303 = vunpack.c.h.bf16 %v1286
      %v1304 = vunpack.c.l.bf16 %v1287
      %v1305 = vunpack.c.h.bf16 %v1287
      %v1306 = vunpack.c.l.bf16 %v1288
      %v1307 = vunpack.c.h.bf16 %v1288
      %v1308 = vunpack.c.l.bf16 %v1289
      %v1309 = vunpack.c.h.bf16 %v1289
      %v1310 = vunpack.c.l.bf16 %v1290
      %v1311 = vunpack.c.h.bf16 %v1290
      %v1312 = vunpack.c.l.bf16 %v1291
      %v1313 = vunpack.c.h.bf16 %v1291
      %v1314 = vunpack.c.l.bf16 %v1292
      %v1315 = vunpack.c.h.bf16 %v1292
      %v1316 = vunpack.c.l.bf16 %v1293
      %v1317 = vunpack.c.h.bf16 %v1293
      %v1318 = vrot.slane %v367, 2
      %s1319 = vtos %v1318
      %v1320 = vstv %s1319
      %v1322 = vmul.f32 %v1320, %v1294
      %v1323 = vmul.f32 %v1320, %v1295
      %v1324 = vmul.f32 %v1320, %v1296
      %v1325 = vmul.f32 %v1320, %v1297
      %v1326 = vmul.f32 %v1320, %v1298
      %v1327 = vmul.f32 %v1320, %v1299
      %v1328 = vmul.f32 %v1320, %v1300
      %v1329 = vmul.f32 %v1320, %v1301
      %v1330 = vmul.f32 %v1320, %v1302
      %v1331 = vmul.f32 %v1320, %v1303
      %v1332 = vmul.f32 %v1320, %v1304
      %v1333 = vmul.f32 %v1320, %v1305
      %v1334 = vmul.f32 %v1320, %v1306
      %v1335 = vmul.f32 %v1320, %v1307
      %v1336 = vmul.f32 %v1320, %v1308
      %v1337 = vmul.f32 %v1320, %v1309
      %v1338 = vmul.f32 %v1320, %v1310
      %v1339 = vmul.f32 %v1320, %v1311
      %v1340 = vmul.f32 %v1320, %v1312
      %v1341 = vmul.f32 %v1320, %v1313
      %v1342 = vmul.f32 %v1320, %v1314
      %v1343 = vmul.f32 %v1320, %v1315
      %v1344 = vmul.f32 %v1320, %v1316
      %v1345 = vmul.f32 %v1320, %v1317
      %v1346 = vadd.f32 %v1257, %v1322
      %v1347 = vadd.f32 %v1258, %v1323
      %v1348 = vadd.f32 %v1259, %v1324
      %v1349 = vadd.f32 %v1260, %v1325
      %v1350 = vadd.f32 %v1261, %v1326
      %v1351 = vadd.f32 %v1262, %v1327
      %v1352 = vadd.f32 %v1263, %v1328
      %v1353 = vadd.f32 %v1264, %v1329
      %v1354 = vadd.f32 %v1265, %v1330
      %v1355 = vadd.f32 %v1266, %v1331
      %v1356 = vadd.f32 %v1267, %v1332
      %v1357 = vadd.f32 %v1268, %v1333
      %v1358 = vadd.f32 %v1269, %v1334
      %v1359 = vadd.f32 %v1270, %v1335
      %v1360 = vadd.f32 %v1271, %v1336
      %v1361 = vadd.f32 %v1272, %v1337
      %v1362 = vadd.f32 %v1273, %v1338
      %v1363 = vadd.f32 %v1274, %v1339
      %v1364 = vadd.f32 %v1275, %v1340
      %v1365 = vadd.f32 %v1276, %v1341
      %v1366 = vadd.f32 %v1277, %v1342
      %v1367 = vadd.f32 %v1278, %v1343
      %v1368 = vadd.f32 %v1279, %v1344
      %v1369 = vadd.f32 %v1280, %v1345
      %s1370 = scalar_lea.vmem %s2, 1056
      %v1371 = vld [vmem:[%s1370] sm:$0xff]
      %v1372 = vld [vmem:[%s1370 + $0x8] sm:$0xff]
      %v1373 = vld [vmem:[%s1370 + $0x10] sm:$0xff]
      %v1374 = vld [vmem:[%s1370 + $0x18] sm:$0xff]
      %v1375 = vld [vmem:[%s1370 + $0x20] sm:$0xff]
      %v1376 = vld [vmem:[%s1370 + $0x28] sm:$0xff]
      %v1377 = vld [vmem:[%s1370 + $0x30] sm:$0xff]
      %v1378 = vld [vmem:[%s1370 + $0x38] sm:$0xff]
      %v1379 = vld [vmem:[%s1370 + $0x40] sm:$0xff]
      %v1380 = vld [vmem:[%s1370 + $0x48] sm:$0xff]
      %v1381 = vld [vmem:[%s1370 + $0x50] sm:$0xff]
      %v1382 = vld [vmem:[%s1370 + $0x58] sm:$0xff]
      %v1383 = vunpack.c.l.bf16 %v1371
      %v1384 = vunpack.c.h.bf16 %v1371
      %v1385 = vunpack.c.l.bf16 %v1372
      %v1386 = vunpack.c.h.bf16 %v1372
      %v1387 = vunpack.c.l.bf16 %v1373
      %v1388 = vunpack.c.h.bf16 %v1373
      %v1389 = vunpack.c.l.bf16 %v1374
      %v1390 = vunpack.c.h.bf16 %v1374
      %v1391 = vunpack.c.l.bf16 %v1375
      %v1392 = vunpack.c.h.bf16 %v1375
      %v1393 = vunpack.c.l.bf16 %v1376
      %v1394 = vunpack.c.h.bf16 %v1376
      %v1395 = vunpack.c.l.bf16 %v1377
      %v1396 = vunpack.c.h.bf16 %v1377
      %v1397 = vunpack.c.l.bf16 %v1378
      %v1398 = vunpack.c.h.bf16 %v1378
      %v1399 = vunpack.c.l.bf16 %v1379
      %v1400 = vunpack.c.h.bf16 %v1379
      %v1401 = vunpack.c.l.bf16 %v1380
      %v1402 = vunpack.c.h.bf16 %v1380
      %v1403 = vunpack.c.l.bf16 %v1381
      %v1404 = vunpack.c.h.bf16 %v1381
      %v1405 = vunpack.c.l.bf16 %v1382
      %v1406 = vunpack.c.h.bf16 %v1382
      %v1407 = vrot.slane %v367, 3
      %s1408 = vtos %v1407
      %v1409 = vstv %s1408
      %v1411 = vmul.f32 %v1409, %v1383
      %v1412 = vmul.f32 %v1409, %v1384
      %v1413 = vmul.f32 %v1409, %v1385
      %v1414 = vmul.f32 %v1409, %v1386
      %v1415 = vmul.f32 %v1409, %v1387
      %v1416 = vmul.f32 %v1409, %v1388
      %v1417 = vmul.f32 %v1409, %v1389
      %v1418 = vmul.f32 %v1409, %v1390
      %v1419 = vmul.f32 %v1409, %v1391
      %v1420 = vmul.f32 %v1409, %v1392
      %v1421 = vmul.f32 %v1409, %v1393
      %v1422 = vmul.f32 %v1409, %v1394
      %v1423 = vmul.f32 %v1409, %v1395
      %v1424 = vmul.f32 %v1409, %v1396
      %v1425 = vmul.f32 %v1409, %v1397
      %v1426 = vmul.f32 %v1409, %v1398
      %v1427 = vmul.f32 %v1409, %v1399
      %v1428 = vmul.f32 %v1409, %v1400
      %v1429 = vmul.f32 %v1409, %v1401
      %v1430 = vmul.f32 %v1409, %v1402
      %v1431 = vmul.f32 %v1409, %v1403
      %v1432 = vmul.f32 %v1409, %v1404
      %v1433 = vmul.f32 %v1409, %v1405
      %v1434 = vmul.f32 %v1409, %v1406
      %v1435 = vadd.f32 %v1346, %v1411
      %v1436 = vadd.f32 %v1347, %v1412
      %v1437 = vadd.f32 %v1348, %v1413
      %v1438 = vadd.f32 %v1349, %v1414
      %v1439 = vadd.f32 %v1350, %v1415
      %v1440 = vadd.f32 %v1351, %v1416
      %v1441 = vadd.f32 %v1352, %v1417
      %v1442 = vadd.f32 %v1353, %v1418
      %v1443 = vadd.f32 %v1354, %v1419
      %v1444 = vadd.f32 %v1355, %v1420
      %v1445 = vadd.f32 %v1356, %v1421
      %v1446 = vadd.f32 %v1357, %v1422
      %v1447 = vadd.f32 %v1358, %v1423
      %v1448 = vadd.f32 %v1359, %v1424
      %v1449 = vadd.f32 %v1360, %v1425
      %v1450 = vadd.f32 %v1361, %v1426
      %v1451 = vadd.f32 %v1362, %v1427
      %v1452 = vadd.f32 %v1363, %v1428
      %v1453 = vadd.f32 %v1364, %v1429
      %v1454 = vadd.f32 %v1365, %v1430
      %v1455 = vadd.f32 %v1366, %v1431
      %v1456 = vadd.f32 %v1367, %v1432
      %v1457 = vadd.f32 %v1368, %v1433
      %v1458 = vadd.f32 %v1369, %v1434
      %s1459 = scalar_lea.vmem %s2, 1152
      %v1460 = vld [vmem:[%s1459] sm:$0xff]
      %v1461 = vld [vmem:[%s1459 + $0x8] sm:$0xff]
      %v1462 = vld [vmem:[%s1459 + $0x10] sm:$0xff]
      %v1463 = vld [vmem:[%s1459 + $0x18] sm:$0xff]
      %v1464 = vld [vmem:[%s1459 + $0x20] sm:$0xff]
      %v1465 = vld [vmem:[%s1459 + $0x28] sm:$0xff]
      %v1466 = vld [vmem:[%s1459 + $0x30] sm:$0xff]
      %v1467 = vld [vmem:[%s1459 + $0x38] sm:$0xff]
      %v1468 = vld [vmem:[%s1459 + $0x40] sm:$0xff]
      %v1469 = vld [vmem:[%s1459 + $0x48] sm:$0xff]
      %v1470 = vld [vmem:[%s1459 + $0x50] sm:$0xff]
      %v1471 = vld [vmem:[%s1459 + $0x58] sm:$0xff]
      %v1472 = vunpack.c.l.bf16 %v1460
      %v1473 = vunpack.c.h.bf16 %v1460
      %v1474 = vunpack.c.l.bf16 %v1461
      %v1475 = vunpack.c.h.bf16 %v1461
      %v1476 = vunpack.c.l.bf16 %v1462
      %v1477 = vunpack.c.h.bf16 %v1462
      %v1478 = vunpack.c.l.bf16 %v1463
      %v1479 = vunpack.c.h.bf16 %v1463
      %v1480 = vunpack.c.l.bf16 %v1464
      %v1481 = vunpack.c.h.bf16 %v1464
      %v1482 = vunpack.c.l.bf16 %v1465
      %v1483 = vunpack.c.h.bf16 %v1465
      %v1484 = vunpack.c.l.bf16 %v1466
      %v1485 = vunpack.c.h.bf16 %v1466
      %v1486 = vunpack.c.l.bf16 %v1467
      %v1487 = vunpack.c.h.bf16 %v1467
      %v1488 = vunpack.c.l.bf16 %v1468
      %v1489 = vunpack.c.h.bf16 %v1468
      %v1490 = vunpack.c.l.bf16 %v1469
      %v1491 = vunpack.c.h.bf16 %v1469
      %v1492 = vunpack.c.l.bf16 %v1470
      %v1493 = vunpack.c.h.bf16 %v1470
      %v1494 = vunpack.c.l.bf16 %v1471
      %v1495 = vunpack.c.h.bf16 %v1471
      %v1496 = vrot.slane %v367, 4
      %s1497 = vtos %v1496
      %v1498 = vstv %s1497
      %v1500 = vmul.f32 %v1498, %v1472
      %v1501 = vmul.f32 %v1498, %v1473
      %v1502 = vmul.f32 %v1498, %v1474
      %v1503 = vmul.f32 %v1498, %v1475
      %v1504 = vmul.f32 %v1498, %v1476
      %v1505 = vmul.f32 %v1498, %v1477
      %v1506 = vmul.f32 %v1498, %v1478
      %v1507 = vmul.f32 %v1498, %v1479
      %v1508 = vmul.f32 %v1498, %v1480
      %v1509 = vmul.f32 %v1498, %v1481
      %v1510 = vmul.f32 %v1498, %v1482
      %v1511 = vmul.f32 %v1498, %v1483
      %v1512 = vmul.f32 %v1498, %v1484
      %v1513 = vmul.f32 %v1498, %v1485
      %v1514 = vmul.f32 %v1498, %v1486
      %v1515 = vmul.f32 %v1498, %v1487
      %v1516 = vmul.f32 %v1498, %v1488
      %v1517 = vmul.f32 %v1498, %v1489
      %v1518 = vmul.f32 %v1498, %v1490
      %v1519 = vmul.f32 %v1498, %v1491
      %v1520 = vmul.f32 %v1498, %v1492
      %v1521 = vmul.f32 %v1498, %v1493
      %v1522 = vmul.f32 %v1498, %v1494
      %v1523 = vmul.f32 %v1498, %v1495
      %v1524 = vadd.f32 %v1435, %v1500
      %v1525 = vadd.f32 %v1436, %v1501
      %v1526 = vadd.f32 %v1437, %v1502
      %v1527 = vadd.f32 %v1438, %v1503
      %v1528 = vadd.f32 %v1439, %v1504
      %v1529 = vadd.f32 %v1440, %v1505
      %v1530 = vadd.f32 %v1441, %v1506
      %v1531 = vadd.f32 %v1442, %v1507
      %v1532 = vadd.f32 %v1443, %v1508
      %v1533 = vadd.f32 %v1444, %v1509
      %v1534 = vadd.f32 %v1445, %v1510
      %v1535 = vadd.f32 %v1446, %v1511
      %v1536 = vadd.f32 %v1447, %v1512
      %v1537 = vadd.f32 %v1448, %v1513
      %v1538 = vadd.f32 %v1449, %v1514
      %v1539 = vadd.f32 %v1450, %v1515
      %v1540 = vadd.f32 %v1451, %v1516
      %v1541 = vadd.f32 %v1452, %v1517
      %v1542 = vadd.f32 %v1453, %v1518
      %v1543 = vadd.f32 %v1454, %v1519
      %v1544 = vadd.f32 %v1455, %v1520
      %v1545 = vadd.f32 %v1456, %v1521
      %v1546 = vadd.f32 %v1457, %v1522
      %v1547 = vadd.f32 %v1458, %v1523
      %s1548 = scalar_lea.vmem %s2, 1248
      %v1549 = vld [vmem:[%s1548] sm:$0xff]
      %v1550 = vld [vmem:[%s1548 + $0x8] sm:$0xff]
      %v1551 = vld [vmem:[%s1548 + $0x10] sm:$0xff]
      %v1552 = vld [vmem:[%s1548 + $0x18] sm:$0xff]
      %v1553 = vld [vmem:[%s1548 + $0x20] sm:$0xff]
      %v1554 = vld [vmem:[%s1548 + $0x28] sm:$0xff]
      %v1555 = vld [vmem:[%s1548 + $0x30] sm:$0xff]
      %v1556 = vld [vmem:[%s1548 + $0x38] sm:$0xff]
      %v1557 = vld [vmem:[%s1548 + $0x40] sm:$0xff]
      %v1558 = vld [vmem:[%s1548 + $0x48] sm:$0xff]
      %v1559 = vld [vmem:[%s1548 + $0x50] sm:$0xff]
      %v1560 = vld [vmem:[%s1548 + $0x58] sm:$0xff]
      %v1561 = vunpack.c.l.bf16 %v1549
      %v1562 = vunpack.c.h.bf16 %v1549
      %v1563 = vunpack.c.l.bf16 %v1550
      %v1564 = vunpack.c.h.bf16 %v1550
      %v1565 = vunpack.c.l.bf16 %v1551
      %v1566 = vunpack.c.h.bf16 %v1551
      %v1567 = vunpack.c.l.bf16 %v1552
      %v1568 = vunpack.c.h.bf16 %v1552
      %v1569 = vunpack.c.l.bf16 %v1553
      %v1570 = vunpack.c.h.bf16 %v1553
      %v1571 = vunpack.c.l.bf16 %v1554
      %v1572 = vunpack.c.h.bf16 %v1554
      %v1573 = vunpack.c.l.bf16 %v1555
      %v1574 = vunpack.c.h.bf16 %v1555
      %v1575 = vunpack.c.l.bf16 %v1556
      %v1576 = vunpack.c.h.bf16 %v1556
      %v1577 = vunpack.c.l.bf16 %v1557
      %v1578 = vunpack.c.h.bf16 %v1557
      %v1579 = vunpack.c.l.bf16 %v1558
      %v1580 = vunpack.c.h.bf16 %v1558
      %v1581 = vunpack.c.l.bf16 %v1559
      %v1582 = vunpack.c.h.bf16 %v1559
      %v1583 = vunpack.c.l.bf16 %v1560
      %v1584 = vunpack.c.h.bf16 %v1560
      %v1585 = vrot.slane %v367, 5
      %s1586 = vtos %v1585
      %v1587 = vstv %s1586
      %v1589 = vmul.f32 %v1587, %v1561
      %v1590 = vmul.f32 %v1587, %v1562
      %v1591 = vmul.f32 %v1587, %v1563
      %v1592 = vmul.f32 %v1587, %v1564
      %v1593 = vmul.f32 %v1587, %v1565
      %v1594 = vmul.f32 %v1587, %v1566
      %v1595 = vmul.f32 %v1587, %v1567
      %v1596 = vmul.f32 %v1587, %v1568
      %v1597 = vmul.f32 %v1587, %v1569
      %v1598 = vmul.f32 %v1587, %v1570
      %v1599 = vmul.f32 %v1587, %v1571
      %v1600 = vmul.f32 %v1587, %v1572
      %v1601 = vmul.f32 %v1587, %v1573
      %v1602 = vmul.f32 %v1587, %v1574
      %v1603 = vmul.f32 %v1587, %v1575
      %v1604 = vmul.f32 %v1587, %v1576
      %v1605 = vmul.f32 %v1587, %v1577
      %v1606 = vmul.f32 %v1587, %v1578
      %v1607 = vmul.f32 %v1587, %v1579
      %v1608 = vmul.f32 %v1587, %v1580
      %v1609 = vmul.f32 %v1587, %v1581
      %v1610 = vmul.f32 %v1587, %v1582
      %v1611 = vmul.f32 %v1587, %v1583
      %v1612 = vmul.f32 %v1587, %v1584
      %v1613 = vadd.f32 %v1524, %v1589
      %v1614 = vadd.f32 %v1525, %v1590
      %v1615 = vadd.f32 %v1526, %v1591
      %v1616 = vadd.f32 %v1527, %v1592
      %v1617 = vadd.f32 %v1528, %v1593
      %v1618 = vadd.f32 %v1529, %v1594
      %v1619 = vadd.f32 %v1530, %v1595
      %v1620 = vadd.f32 %v1531, %v1596
      %v1621 = vadd.f32 %v1532, %v1597
      %v1622 = vadd.f32 %v1533, %v1598
      %v1623 = vadd.f32 %v1534, %v1599
      %v1624 = vadd.f32 %v1535, %v1600
      %v1625 = vadd.f32 %v1536, %v1601
      %v1626 = vadd.f32 %v1537, %v1602
      %v1627 = vadd.f32 %v1538, %v1603
      %v1628 = vadd.f32 %v1539, %v1604
      %v1629 = vadd.f32 %v1540, %v1605
      %v1630 = vadd.f32 %v1541, %v1606
      %v1631 = vadd.f32 %v1542, %v1607
      %v1632 = vadd.f32 %v1543, %v1608
      %v1633 = vadd.f32 %v1544, %v1609
      %v1634 = vadd.f32 %v1545, %v1610
      %v1635 = vadd.f32 %v1546, %v1611
      %v1636 = vadd.f32 %v1547, %v1612
      %s1637 = scalar_lea.vmem %s2, 1344
      %v1638 = vld [vmem:[%s1637] sm:$0xff]
      %v1639 = vld [vmem:[%s1637 + $0x8] sm:$0xff]
      %v1640 = vld [vmem:[%s1637 + $0x10] sm:$0xff]
      %v1641 = vld [vmem:[%s1637 + $0x18] sm:$0xff]
      %v1642 = vld [vmem:[%s1637 + $0x20] sm:$0xff]
      %v1643 = vld [vmem:[%s1637 + $0x28] sm:$0xff]
      %v1644 = vld [vmem:[%s1637 + $0x30] sm:$0xff]
      %v1645 = vld [vmem:[%s1637 + $0x38] sm:$0xff]
      %v1646 = vld [vmem:[%s1637 + $0x40] sm:$0xff]
      %v1647 = vld [vmem:[%s1637 + $0x48] sm:$0xff]
      %v1648 = vld [vmem:[%s1637 + $0x50] sm:$0xff]
      %v1649 = vld [vmem:[%s1637 + $0x58] sm:$0xff]
      %v1650 = vunpack.c.l.bf16 %v1638
      %v1651 = vunpack.c.h.bf16 %v1638
      %v1652 = vunpack.c.l.bf16 %v1639
      %v1653 = vunpack.c.h.bf16 %v1639
      %v1654 = vunpack.c.l.bf16 %v1640
      %v1655 = vunpack.c.h.bf16 %v1640
      %v1656 = vunpack.c.l.bf16 %v1641
      %v1657 = vunpack.c.h.bf16 %v1641
      %v1658 = vunpack.c.l.bf16 %v1642
      %v1659 = vunpack.c.h.bf16 %v1642
      %v1660 = vunpack.c.l.bf16 %v1643
      %v1661 = vunpack.c.h.bf16 %v1643
      %v1662 = vunpack.c.l.bf16 %v1644
      %v1663 = vunpack.c.h.bf16 %v1644
      %v1664 = vunpack.c.l.bf16 %v1645
      %v1665 = vunpack.c.h.bf16 %v1645
      %v1666 = vunpack.c.l.bf16 %v1646
      %v1667 = vunpack.c.h.bf16 %v1646
      %v1668 = vunpack.c.l.bf16 %v1647
      %v1669 = vunpack.c.h.bf16 %v1647
      %v1670 = vunpack.c.l.bf16 %v1648
      %v1671 = vunpack.c.h.bf16 %v1648
      %v1672 = vunpack.c.l.bf16 %v1649
      %v1673 = vunpack.c.h.bf16 %v1649
      %v1674 = vrot.slane %v367, 6
      %s1675 = vtos %v1674
      %v1676 = vstv %s1675
      %v1678 = vmul.f32 %v1676, %v1650
      %v1679 = vmul.f32 %v1676, %v1651
      %v1680 = vmul.f32 %v1676, %v1652
      %v1681 = vmul.f32 %v1676, %v1653
      %v1682 = vmul.f32 %v1676, %v1654
      %v1683 = vmul.f32 %v1676, %v1655
      %v1684 = vmul.f32 %v1676, %v1656
      %v1685 = vmul.f32 %v1676, %v1657
      %v1686 = vmul.f32 %v1676, %v1658
      %v1687 = vmul.f32 %v1676, %v1659
      %v1688 = vmul.f32 %v1676, %v1660
      %v1689 = vmul.f32 %v1676, %v1661
      %v1690 = vmul.f32 %v1676, %v1662
      %v1691 = vmul.f32 %v1676, %v1663
      %v1692 = vmul.f32 %v1676, %v1664
      %v1693 = vmul.f32 %v1676, %v1665
      %v1694 = vmul.f32 %v1676, %v1666
      %v1695 = vmul.f32 %v1676, %v1667
      %v1696 = vmul.f32 %v1676, %v1668
      %v1697 = vmul.f32 %v1676, %v1669
      %v1698 = vmul.f32 %v1676, %v1670
      %v1699 = vmul.f32 %v1676, %v1671
      %v1700 = vmul.f32 %v1676, %v1672
      %v1701 = vmul.f32 %v1676, %v1673
      %v1702 = vadd.f32 %v1613, %v1678
      %v1703 = vadd.f32 %v1614, %v1679
      %v1704 = vadd.f32 %v1615, %v1680
      %v1705 = vadd.f32 %v1616, %v1681
      %v1706 = vadd.f32 %v1617, %v1682
      %v1707 = vadd.f32 %v1618, %v1683
      %v1708 = vadd.f32 %v1619, %v1684
      %v1709 = vadd.f32 %v1620, %v1685
      %v1710 = vadd.f32 %v1621, %v1686
      %v1711 = vadd.f32 %v1622, %v1687
      %v1712 = vadd.f32 %v1623, %v1688
      %v1713 = vadd.f32 %v1624, %v1689
      %v1714 = vadd.f32 %v1625, %v1690
      %v1715 = vadd.f32 %v1626, %v1691
      %v1716 = vadd.f32 %v1627, %v1692
      %v1717 = vadd.f32 %v1628, %v1693
      %v1718 = vadd.f32 %v1629, %v1694
      %v1719 = vadd.f32 %v1630, %v1695
      %v1720 = vadd.f32 %v1631, %v1696
      %v1721 = vadd.f32 %v1632, %v1697
      %v1722 = vadd.f32 %v1633, %v1698
      %v1723 = vadd.f32 %v1634, %v1699
      %v1724 = vadd.f32 %v1635, %v1700
      %v1725 = vadd.f32 %v1636, %v1701
      %s1726 = scalar_lea.vmem %s2, 1440
      %v1727 = vld [vmem:[%s1726] sm:$0xff]
      %v1728 = vld [vmem:[%s1726 + $0x8] sm:$0xff]
      %v1729 = vld [vmem:[%s1726 + $0x10] sm:$0xff]
      %v1730 = vld [vmem:[%s1726 + $0x18] sm:$0xff]
      %v1731 = vld [vmem:[%s1726 + $0x20] sm:$0xff]
      %v1732 = vld [vmem:[%s1726 + $0x28] sm:$0xff]
      %v1733 = vld [vmem:[%s1726 + $0x30] sm:$0xff]
      %v1734 = vld [vmem:[%s1726 + $0x38] sm:$0xff]
      %v1735 = vld [vmem:[%s1726 + $0x40] sm:$0xff]
      %v1736 = vld [vmem:[%s1726 + $0x48] sm:$0xff]
      %v1737 = vld [vmem:[%s1726 + $0x50] sm:$0xff]
      %v1738 = vld [vmem:[%s1726 + $0x58] sm:$0xff]
      %v1739 = vunpack.c.l.bf16 %v1727
      %v1740 = vunpack.c.h.bf16 %v1727
      %v1741 = vunpack.c.l.bf16 %v1728
      %v1742 = vunpack.c.h.bf16 %v1728
      %v1743 = vunpack.c.l.bf16 %v1729
      %v1744 = vunpack.c.h.bf16 %v1729
      %v1745 = vunpack.c.l.bf16 %v1730
      %v1746 = vunpack.c.h.bf16 %v1730
      %v1747 = vunpack.c.l.bf16 %v1731
      %v1748 = vunpack.c.h.bf16 %v1731
      %v1749 = vunpack.c.l.bf16 %v1732
      %v1750 = vunpack.c.h.bf16 %v1732
      %v1751 = vunpack.c.l.bf16 %v1733
      %v1752 = vunpack.c.h.bf16 %v1733
      %v1753 = vunpack.c.l.bf16 %v1734
      %v1754 = vunpack.c.h.bf16 %v1734
      %v1755 = vunpack.c.l.bf16 %v1735
      %v1756 = vunpack.c.h.bf16 %v1735
      %v1757 = vunpack.c.l.bf16 %v1736
      %v1758 = vunpack.c.h.bf16 %v1736
      %v1759 = vunpack.c.l.bf16 %v1737
      %v1760 = vunpack.c.h.bf16 %v1737
      %v1761 = vunpack.c.l.bf16 %v1738
      %v1762 = vunpack.c.h.bf16 %v1738
      %v1763 = vrot.slane %v367, 7
      %s1764 = vtos %v1763
      %v1765 = vstv %s1764
      %v1767 = vmul.f32 %v1765, %v1739
      %v1768 = vmul.f32 %v1765, %v1740
      %v1769 = vmul.f32 %v1765, %v1741
      %v1770 = vmul.f32 %v1765, %v1742
      %v1771 = vmul.f32 %v1765, %v1743
      %v1772 = vmul.f32 %v1765, %v1744
      %v1773 = vmul.f32 %v1765, %v1745
      %v1774 = vmul.f32 %v1765, %v1746
      %v1775 = vmul.f32 %v1765, %v1747
      %v1776 = vmul.f32 %v1765, %v1748
      %v1777 = vmul.f32 %v1765, %v1749
      %v1778 = vmul.f32 %v1765, %v1750
      %v1779 = vmul.f32 %v1765, %v1751
      %v1780 = vmul.f32 %v1765, %v1752
      %v1781 = vmul.f32 %v1765, %v1753
      %v1782 = vmul.f32 %v1765, %v1754
      %v1783 = vmul.f32 %v1765, %v1755
      %v1784 = vmul.f32 %v1765, %v1756
      %v1785 = vmul.f32 %v1765, %v1757
      %v1786 = vmul.f32 %v1765, %v1758
      %v1787 = vmul.f32 %v1765, %v1759
      %v1788 = vmul.f32 %v1765, %v1760
      %v1789 = vmul.f32 %v1765, %v1761
      %v1790 = vmul.f32 %v1765, %v1762
      %v1791 = vadd.f32 %v1702, %v1767
      %v1792 = vadd.f32 %v1703, %v1768
      %v1793 = vadd.f32 %v1704, %v1769
      %v1794 = vadd.f32 %v1705, %v1770
      %v1795 = vadd.f32 %v1706, %v1771
      %v1796 = vadd.f32 %v1707, %v1772
      %v1797 = vadd.f32 %v1708, %v1773
      %v1798 = vadd.f32 %v1709, %v1774
      %v1799 = vadd.f32 %v1710, %v1775
      %v1800 = vadd.f32 %v1711, %v1776
      %v1801 = vadd.f32 %v1712, %v1777
      %v1802 = vadd.f32 %v1713, %v1778
      %v1803 = vadd.f32 %v1714, %v1779
      %v1804 = vadd.f32 %v1715, %v1780
      %v1805 = vadd.f32 %v1716, %v1781
      %v1806 = vadd.f32 %v1717, %v1782
      %v1807 = vadd.f32 %v1718, %v1783
      %v1808 = vadd.f32 %v1719, %v1784
      %v1809 = vadd.f32 %v1720, %v1785
      %v1810 = vadd.f32 %v1721, %v1786
      %v1811 = vadd.f32 %v1722, %v1787
      %v1812 = vadd.f32 %v1723, %v1788
      %v1813 = vadd.f32 %v1724, %v1789
      %v1814 = vadd.f32 %v1725, %v1790
      %v1815 = vmax.f32 %v1791, 0.0
      %v1816 = vmax.f32 %v1792, 0.0
      %v1817 = vmax.f32 %v1793, 0.0
      %v1818 = vmax.f32 %v1794, 0.0
      %v1819 = vmax.f32 %v1795, 0.0
      %v1820 = vmax.f32 %v1796, 0.0
      %v1821 = vmax.f32 %v1797, 0.0
      %v1822 = vmax.f32 %v1798, 0.0
      %v1823 = vmax.f32 %v1799, 0.0
      %v1824 = vmax.f32 %v1800, 0.0
      %v1825 = vmax.f32 %v1801, 0.0
      %v1826 = vmax.f32 %v1802, 0.0
      %v1827 = vmax.f32 %v1803, 0.0
      %v1828 = vmax.f32 %v1804, 0.0
      %v1829 = vmax.f32 %v1805, 0.0
      %v1830 = vmax.f32 %v1806, 0.0
      %v1831 = vmax.f32 %v1807, 0.0
      %v1832 = vmax.f32 %v1808, 0.0
      %v1833 = vmax.f32 %v1809, 0.0
      %v1834 = vmax.f32 %v1810, 0.0
      %v1835 = vmax.f32 %v1811, 0.0
      %v1836 = vmax.f32 %v1812, 0.0
      %v1837 = vmax.f32 %v1813, 0.0
      %v1838 = vmax.f32 %v1814, 0.0
      %v1839 = vpack.c.bf16 %v1821, %v1815
      %v1840 = vpack.c.bf16 %v1822, %v1816
      %v1841 = vpack.c.bf16 %v1823, %v1817
      %v1842 = vpack.c.bf16 %v1824, %v1818
      %v1843 = vpack.c.bf16 %v1825, %v1819
      %v1844 = vpack.c.bf16 %v1826, %v1820
      %v1845 = vpack.c.bf16 %v1833, %v1827
      %v1846 = vpack.c.bf16 %v1834, %v1828
      %v1847 = vpack.c.bf16 %v1835, %v1829
      %v1848 = vpack.c.bf16 %v1836, %v1830
      %v1849 = vpack.c.bf16 %v1837, %v1831
      %v1850 = vpack.c.bf16 %v1838, %v1832
      %1863 = vrot.lane.b32.xlu0 %v1839, 4
      %v1864 = vpop.permute.xlu0 %1863
      %1865 = vrot.lane.b32.xlu0 %v1840, 4
      %v1866 = vpop.permute.xlu0 %1865
      %1867 = vrot.lane.b32.xlu0 %v1841, 4
      %v1868 = vpop.permute.xlu0 %1867
      %1869 = vrot.lane.b32.xlu0 %v1842, 4
      %v1870 = vpop.permute.xlu0 %1869
      %1871 = vrot.lane.b32.xlu0 %v1843, 4
      %v1872 = vpop.permute.xlu0 %1871
      %1873 = vrot.lane.b32.xlu0 %v1844, 4
      %v1874 = vpop.permute.xlu0 %1873
      %1875 = vrot.lane.b32.xlu0 %v1845, 4
      %v1876 = vpop.permute.xlu0 %1875
      %1877 = vrot.lane.b32.xlu0 %v1846, 4
      %v1878 = vpop.permute.xlu0 %1877
      %1879 = vrot.lane.b32.xlu0 %v1847, 4
      %v1880 = vpop.permute.xlu0 %1879
      %1881 = vrot.lane.b32.xlu0 %v1848, 4
      %v1882 = vpop.permute.xlu0 %1881
      %1883 = vrot.lane.b32.xlu0 %v1849, 4
      %v1884 = vpop.permute.xlu0 %1883
      %1885 = vrot.lane.b32.xlu0 %v1850, 4
      %v1886 = vpop.permute.xlu0 %1885
      %vm1887 = vcmask 31744
      %v1888 = vsel %vm1887, %v1864, %v1866
      %v1889 = vsel %vm1887, %v1866, %v1868
      %v1890 = vsel %vm1887, %v1868, %v1870
      %v1891 = vsel %vm1887, %v1870, %v1872
      %v1892 = vsel %vm1887, %v1872, %v1874
      %v1893 = vsel %vm1887, %v1876, %v1878
      %v1894 = vsel %vm1887, %v1878, %v1880
      %v1895 = vsel %vm1887, %v1880, %v1882
      %v1896 = vsel %vm1887, %v1882, %v1884
      %v1897 = vsel %vm1887, %v1884, %v1886
      %vm1906 = vcmask 31744
      %v1909 = vsel %vm1906, 0, %v1864
      %v1912 = vsel %vm1906, 0, %v1876
      %1917 = vrot.lane.b32.xlu0 0, 127
      %v1918 = vpop.permute.xlu0 %1917
      %1919 = vrot.lane.b32.xlu0 %v1909, 127
      %v1920 = vpop.permute.xlu0 %1919
      %1921 = vrot.lane.b32.xlu0 %v1888, 127
      %v1922 = vpop.permute.xlu0 %1921
      %1923 = vrot.lane.b32.xlu0 %v1889, 127
      %v1924 = vpop.permute.xlu0 %1923
      %1925 = vrot.lane.b32.xlu0 %v1890, 127
      %v1926 = vpop.permute.xlu0 %1925
      %1927 = vrot.lane.b32.xlu0 %v1891, 127
      %v1928 = vpop.permute.xlu0 %1927
      %1929 = vrot.lane.b32.xlu0 %v1912, 127
      %v1930 = vpop.permute.xlu0 %1929
      %1931 = vrot.lane.b32.xlu0 %v1893, 127
      %v1932 = vpop.permute.xlu0 %1931
      %1933 = vrot.lane.b32.xlu0 %v1894, 127
      %v1934 = vpop.permute.xlu0 %1933
      %1935 = vrot.lane.b32.xlu0 %v1895, 127
      %v1936 = vpop.permute.xlu0 %1935
      %1937 = vrot.lane.b32.xlu0 %v1896, 127
      %v1938 = vpop.permute.xlu0 %1937
      %vm1939 = vcmask 1039360
      %v1940 = vsel %vm1939, %v1918, %v1920
      %v1941 = vsel %vm1939, %v1920, %v1922
      %v1942 = vsel %vm1939, %v1922, %v1924
      %v1943 = vsel %vm1939, %v1924, %v1926
      %v1944 = vsel %vm1939, %v1926, %v1928
      %v1945 = vsel %vm1939, %v1918, %v1930
      %v1946 = vsel %vm1939, %v1930, %v1932
      %v1947 = vsel %vm1939, %v1932, %v1934
      %v1948 = vsel %vm1939, %v1934, %v1936
      %v1949 = vsel %vm1939, %v1936, %v1938
      %1962 = vrot.lane.b32.xlu0 0, 126
      %v1963 = vpop.permute.xlu0 %1962
      %1964 = vrot.lane.b32.xlu0 %v1909, 126
      %v1965 = vpop.permute.xlu0 %1964
      %1966 = vrot.lane.b32.xlu0 %v1888, 126
      %v1967 = vpop.permute.xlu0 %1966
      %1968 = vrot.lane.b32.xlu0 %v1889, 126
      %v1969 = vpop.permute.xlu0 %1968
      %1970 = vrot.lane.b32.xlu0 %v1890, 126
      %v1971 = vpop.permute.xlu0 %1970
      %1972 = vrot.lane.b32.xlu0 %v1891, 126
      %v1973 = vpop.permute.xlu0 %1972
      %1974 = vrot.lane.b32.xlu0 %v1912, 126
      %v1975 = vpop.permute.xlu0 %1974
      %1976 = vrot.lane.b32.xlu0 %v1893, 126
      %v1977 = vpop.permute.xlu0 %1976
      %1978 = vrot.lane.b32.xlu0 %v1894, 126
      %v1979 = vpop.permute.xlu0 %1978
      %1980 = vrot.lane.b32.xlu0 %v1895, 126
      %v1981 = vpop.permute.xlu0 %1980
      %1982 = vrot.lane.b32.xlu0 %v1896, 126
      %v1983 = vpop.permute.xlu0 %1982
      %vm1984 = vcmask 1031168
      %v1985 = vsel %vm1984, %v1963, %v1965
      %v1986 = vsel %vm1984, %v1965, %v1967
      %v1987 = vsel %vm1984, %v1967, %v1969
      %v1988 = vsel %vm1984, %v1969, %v1971
      %v1989 = vsel %vm1984, %v1971, %v1973
      %v1990 = vsel %vm1984, %v1963, %v1975
      %v1991 = vsel %vm1984, %v1975, %v1977
      %v1992 = vsel %vm1984, %v1977, %v1979
      %v1993 = vsel %vm1984, %v1979, %v1981
      %v1994 = vsel %vm1984, %v1981, %v1983
      %2007 = vrot.lane.b32.xlu0 0, 125
      %v2008 = vpop.permute.xlu0 %2007
      %2009 = vrot.lane.b32.xlu0 %v1909, 125
      %v2010 = vpop.permute.xlu0 %2009
      %2011 = vrot.lane.b32.xlu0 %v1888, 125
      %v2012 = vpop.permute.xlu0 %2011
      %2013 = vrot.lane.b32.xlu0 %v1889, 125
      %v2014 = vpop.permute.xlu0 %2013
      %2015 = vrot.lane.b32.xlu0 %v1890, 125
      %v2016 = vpop.permute.xlu0 %2015
      %2017 = vrot.lane.b32.xlu0 %v1891, 125
      %v2018 = vpop.permute.xlu0 %2017
      %2019 = vrot.lane.b32.xlu0 %v1912, 125
      %v2020 = vpop.permute.xlu0 %2019
      %2021 = vrot.lane.b32.xlu0 %v1893, 125
      %v2022 = vpop.permute.xlu0 %2021
      %2023 = vrot.lane.b32.xlu0 %v1894, 125
      %v2024 = vpop.permute.xlu0 %2023
      %2025 = vrot.lane.b32.xlu0 %v1895, 125
      %v2026 = vpop.permute.xlu0 %2025
      %2027 = vrot.lane.b32.xlu0 %v1896, 125
      %v2028 = vpop.permute.xlu0 %2027
      %vm2029 = vcmask 1022976
      %v2030 = vsel %vm2029, %v2008, %v2010
      %v2031 = vsel %vm2029, %v2010, %v2012
      %v2032 = vsel %vm2029, %v2012, %v2014
      %v2033 = vsel %vm2029, %v2014, %v2016
      %v2034 = vsel %vm2029, %v2016, %v2018
      %v2035 = vsel %vm2029, %v2008, %v2020
      %v2036 = vsel %vm2029, %v2020, %v2022
      %v2037 = vsel %vm2029, %v2022, %v2024
      %v2038 = vsel %vm2029, %v2024, %v2026
      %v2039 = vsel %vm2029, %v2026, %v2028
      %2052 = vrot.lane.b32.xlu0 0, 124
      %v2053 = vpop.permute.xlu0 %2052
      %2054 = vrot.lane.b32.xlu0 %v1909, 124
      %v2055 = vpop.permute.xlu0 %2054
      %2056 = vrot.lane.b32.xlu0 %v1888, 124
      %v2057 = vpop.permute.xlu0 %2056
      %2058 = vrot.lane.b32.xlu0 %v1889, 124
      %v2059 = vpop.permute.xlu0 %2058
      %2060 = vrot.lane.b32.xlu0 %v1890, 124
      %v2061 = vpop.permute.xlu0 %2060
      %2062 = vrot.lane.b32.xlu0 %v1891, 124
      %v2063 = vpop.permute.xlu0 %2062
      %2064 = vrot.lane.b32.xlu0 %v1912, 124
      %v2065 = vpop.permute.xlu0 %2064
      %2066 = vrot.lane.b32.xlu0 %v1893, 124
      %v2067 = vpop.permute.xlu0 %2066
      %2068 = vrot.lane.b32.xlu0 %v1894, 124
      %v2069 = vpop.permute.xlu0 %2068
      %2070 = vrot.lane.b32.xlu0 %v1895, 124
      %v2071 = vpop.permute.xlu0 %2070
      %2072 = vrot.lane.b32.xlu0 %v1896, 124
      %v2073 = vpop.permute.xlu0 %2072
      %vm2074 = vcmask 1014784
      %v2075 = vsel %vm2074, %v2053, %v2055
      %v2076 = vsel %vm2074, %v2055, %v2057
      %v2077 = vsel %vm2074, %v2057, %v2059
      %v2078 = vsel %vm2074, %v2059, %v2061
      %v2079 = vsel %vm2074, %v2061, %v2063
      %v2080 = vsel %vm2074, %v2053, %v2065
      %v2081 = vsel %vm2074, %v2065, %v2067
      %v2082 = vsel %vm2074, %v2067, %v2069
      %v2083 = vsel %vm2074, %v2069, %v2071
      %v2084 = vsel %vm2074, %v2071, %v2073
      %2097 = vrot.lane.b32.xlu0 0, 96
      %v2098 = vpop.permute.xlu0 %2097
      %2099 = vrot.lane.b32.xlu0 %v1909, 96
      %v2100 = vpop.permute.xlu0 %2099
      %2101 = vrot.lane.b32.xlu0 %v1888, 96
      %v2102 = vpop.permute.xlu0 %2101
      %2103 = vrot.lane.b32.xlu0 %v1889, 96
      %v2104 = vpop.permute.xlu0 %2103
      %2105 = vrot.lane.b32.xlu0 %v1890, 96
      %v2106 = vpop.permute.xlu0 %2105
      %2107 = vrot.lane.b32.xlu0 %v1891, 96
      %v2108 = vpop.permute.xlu0 %2107
      %2109 = vrot.lane.b32.xlu0 %v1892, 96
      %v2110 = vpop.permute.xlu0 %2109
      %2111 = vrot.lane.b32.xlu0 %v1912, 96
      %v2112 = vpop.permute.xlu0 %2111
      %2113 = vrot.lane.b32.xlu0 %v1893, 96
      %v2114 = vpop.permute.xlu0 %2113
      %2115 = vrot.lane.b32.xlu0 %v1894, 96
      %v2116 = vpop.permute.xlu0 %2115
      %2117 = vrot.lane.b32.xlu0 %v1895, 96
      %v2118 = vpop.permute.xlu0 %2117
      %2119 = vrot.lane.b32.xlu0 %v1896, 96
      %v2120 = vpop.permute.xlu0 %2119
      %2121 = vrot.lane.b32.xlu0 %v1897, 96
      %v2122 = vpop.permute.xlu0 %2121
      %vm2123 = vcmask 785408
      %v2124 = vsel %vm2123, %v2098, %v2100
      %v2125 = vsel %vm2123, %v2100, %v2102
      %v2126 = vsel %vm2123, %v2102, %v2104
      %v2127 = vsel %vm2123, %v2104, %v2106
      %v2128 = vsel %vm2123, %v2106, %v2108
      %v2129 = vsel %vm2123, %v2108, %v2110
      %v2130 = vsel %vm2123, %v2098, %v2112
      %v2131 = vsel %vm2123, %v2112, %v2114
      %v2132 = vsel %vm2123, %v2114, %v2116
      %v2133 = vsel %vm2123, %v2116, %v2118
      %v2134 = vsel %vm2123, %v2118, %v2120
      %v2135 = vsel %vm2123, %v2120, %v2122
      %2148 = vrot.lane.b32.xlu0 0, 95
      %v2149 = vpop.permute.xlu0 %2148
      %2150 = vrot.lane.b32.xlu0 %v1909, 95
      %v2151 = vpop.permute.xlu0 %2150
      %2152 = vrot.lane.b32.xlu0 %v1888, 95
      %v2153 = vpop.permute.xlu0 %2152
      %2154 = vrot.lane.b32.xlu0 %v1889, 95
      %v2155 = vpop.permute.xlu0 %2154
      %2156 = vrot.lane.b32.xlu0 %v1890, 95
      %v2157 = vpop.permute.xlu0 %2156
      %2158 = vrot.lane.b32.xlu0 %v1891, 95
      %v2159 = vpop.permute.xlu0 %2158
      %2160 = vrot.lane.b32.xlu0 %v1892, 95
      %v2161 = vpop.permute.xlu0 %2160
      %2162 = vrot.lane.b32.xlu0 %v1912, 95
      %v2163 = vpop.permute.xlu0 %2162
      %2164 = vrot.lane.b32.xlu0 %v1893, 95
      %v2165 = vpop.permute.xlu0 %2164
      %2166 = vrot.lane.b32.xlu0 %v1894, 95
      %v2167 = vpop.permute.xlu0 %2166
      %2168 = vrot.lane.b32.xlu0 %v1895, 95
      %v2169 = vpop.permute.xlu0 %2168
      %2170 = vrot.lane.b32.xlu0 %v1896, 95
      %v2171 = vpop.permute.xlu0 %2170
      %2172 = vrot.lane.b32.xlu0 %v1897, 95
      %v2173 = vpop.permute.xlu0 %2172
      %vm2174 = vcmask 777216
      %v2175 = vsel %vm2174, %v2149, %v2151
      %v2176 = vsel %vm2174, %v2151, %v2153
      %v2177 = vsel %vm2174, %v2153, %v2155
      %v2178 = vsel %vm2174, %v2155, %v2157
      %v2179 = vsel %vm2174, %v2157, %v2159
      %v2180 = vsel %vm2174, %v2159, %v2161
      %v2181 = vsel %vm2174, %v2149, %v2163
      %v2182 = vsel %vm2174, %v2163, %v2165
      %v2183 = vsel %vm2174, %v2165, %v2167
      %v2184 = vsel %vm2174, %v2167, %v2169
      %v2185 = vsel %vm2174, %v2169, %v2171
      %v2186 = vsel %vm2174, %v2171, %v2173
      %2199 = vrot.lane.b32.xlu0 0, 94
      %v2200 = vpop.permute.xlu0 %2199
      %2201 = vrot.lane.b32.xlu0 %v1909, 94
      %v2202 = vpop.permute.xlu0 %2201
      %2203 = vrot.lane.b32.xlu0 %v1888, 94
      %v2204 = vpop.permute.xlu0 %2203
      %2205 = vrot.lane.b32.xlu0 %v1889, 94
      %v2206 = vpop.permute.xlu0 %2205
      %2207 = vrot.lane.b32.xlu0 %v1890, 94
      %v2208 = vpop.permute.xlu0 %2207
      %2209 = vrot.lane.b32.xlu0 %v1891, 94
      %v2210 = vpop.permute.xlu0 %2209
      %2211 = vrot.lane.b32.xlu0 %v1892, 94
      %v2212 = vpop.permute.xlu0 %2211
      %2213 = vrot.lane.b32.xlu0 %v1912, 94
      %v2214 = vpop.permute.xlu0 %2213
      %2215 = vrot.lane.b32.xlu0 %v1893, 94
      %v2216 = vpop.permute.xlu0 %2215
      %2217 = vrot.lane.b32.xlu0 %v1894, 94
      %v2218 = vpop.permute.xlu0 %2217
      %2219 = vrot.lane.b32.xlu0 %v1895, 94
      %v2220 = vpop.permute.xlu0 %2219
      %2221 = vrot.lane.b32.xlu0 %v1896, 94
      %v2222 = vpop.permute.xlu0 %2221
      %2223 = vrot.lane.b32.xlu0 %v1897, 94
      %v2224 = vpop.permute.xlu0 %2223
      %vm2225 = vcmask 769024
      %v2226 = vsel %vm2225, %v2200, %v2202
      %v2227 = vsel %vm2225, %v2202, %v2204
      %v2228 = vsel %vm2225, %v2204, %v2206
      %v2229 = vsel %vm2225, %v2206, %v2208
      %v2230 = vsel %vm2225, %v2208, %v2210
      %v2231 = vsel %vm2225, %v2210, %v2212
      %v2232 = vsel %vm2225, %v2200, %v2214
      %v2233 = vsel %vm2225, %v2214, %v2216
      %v2234 = vsel %vm2225, %v2216, %v2218
      %v2235 = vsel %vm2225, %v2218, %v2220
      %v2236 = vsel %vm2225, %v2220, %v2222
      %v2237 = vsel %vm2225, %v2222, %v2224
      %2250 = vrot.lane.b32.xlu0 0, 93
      %v2251 = vpop.permute.xlu0 %2250
      %2252 = vrot.lane.b32.xlu0 %v1909, 93
      %v2253 = vpop.permute.xlu0 %2252
      %2254 = vrot.lane.b32.xlu0 %v1888, 93
      %v2255 = vpop.permute.xlu0 %2254
      %2256 = vrot.lane.b32.xlu0 %v1889, 93
      %v2257 = vpop.permute.xlu0 %2256
      %2258 = vrot.lane.b32.xlu0 %v1890, 93
      %v2259 = vpop.permute.xlu0 %2258
      %2260 = vrot.lane.b32.xlu0 %v1891, 93
      %v2261 = vpop.permute.xlu0 %2260
      %2262 = vrot.lane.b32.xlu0 %v1892, 93
      %v2263 = vpop.permute.xlu0 %2262
      %2264 = vrot.lane.b32.xlu0 %v1912, 93
      %v2265 = vpop.permute.xlu0 %2264
      %2266 = vrot.lane.b32.xlu0 %v1893, 93
      %v2267 = vpop.permute.xlu0 %2266
      %2268 = vrot.lane.b32.xlu0 %v1894, 93
      %v2269 = vpop.permute.xlu0 %2268
      %2270 = vrot.lane.b32.xlu0 %v1895, 93
      %v2271 = vpop.permute.xlu0 %2270
      %2272 = vrot.lane.b32.xlu0 %v1896, 93
      %v2273 = vpop.permute.xlu0 %2272
      %2274 = vrot.lane.b32.xlu0 %v1897, 93
      %v2275 = vpop.permute.xlu0 %2274
      %vm2276 = vcmask 760832
      %v2277 = vsel %vm2276, %v2251, %v2253
      %v2278 = vsel %vm2276, %v2253, %v2255
      %v2279 = vsel %vm2276, %v2255, %v2257
      %v2280 = vsel %vm2276, %v2257, %v2259
      %v2281 = vsel %vm2276, %v2259, %v2261
      %v2282 = vsel %vm2276, %v2261, %v2263
      %v2283 = vsel %vm2276, %v2251, %v2265
      %v2284 = vsel %vm2276, %v2265, %v2267
      %v2285 = vsel %vm2276, %v2267, %v2269
      %v2286 = vsel %vm2276, %v2269, %v2271
      %v2287 = vsel %vm2276, %v2271, %v2273
      %v2288 = vsel %vm2276, %v2273, %v2275
      %2301 = vrot.lane.b32.xlu0 0, 92
      %v2302 = vpop.permute.xlu0 %2301
      %2303 = vrot.lane.b32.xlu0 %v1909, 92
      %v2304 = vpop.permute.xlu0 %2303
      %2305 = vrot.lane.b32.xlu0 %v1888, 92
      %v2306 = vpop.permute.xlu0 %2305
      %2307 = vrot.lane.b32.xlu0 %v1889, 92
      %v2308 = vpop.permute.xlu0 %2307
      %2309 = vrot.lane.b32.xlu0 %v1890, 92
      %v2310 = vpop.permute.xlu0 %2309
      %2311 = vrot.lane.b32.xlu0 %v1891, 92
      %v2312 = vpop.permute.xlu0 %2311
      %2313 = vrot.lane.b32.xlu0 %v1892, 92
      %v2314 = vpop.permute.xlu0 %2313
      %2315 = vrot.lane.b32.xlu0 %v1912, 92
      %v2316 = vpop.permute.xlu0 %2315
      %2317 = vrot.lane.b32.xlu0 %v1893, 92
      %v2318 = vpop.permute.xlu0 %2317
      %2319 = vrot.lane.b32.xlu0 %v1894, 92
      %v2320 = vpop.permute.xlu0 %2319
      %2321 = vrot.lane.b32.xlu0 %v1895, 92
      %v2322 = vpop.permute.xlu0 %2321
      %2323 = vrot.lane.b32.xlu0 %v1896, 92
      %v2324 = vpop.permute.xlu0 %2323
      %2325 = vrot.lane.b32.xlu0 %v1897, 92
      %v2326 = vpop.permute.xlu0 %2325
      %vm2327 = vcmask 752640
      %v2328 = vsel %vm2327, %v2302, %v2304
      %v2329 = vsel %vm2327, %v2304, %v2306
      %v2330 = vsel %vm2327, %v2306, %v2308
      %v2331 = vsel %vm2327, %v2308, %v2310
      %v2332 = vsel %vm2327, %v2310, %v2312
      %v2333 = vsel %vm2327, %v2312, %v2314
      %v2334 = vsel %vm2327, %v2302, %v2316
      %v2335 = vsel %vm2327, %v2316, %v2318
      %v2336 = vsel %vm2327, %v2318, %v2320
      %v2337 = vsel %vm2327, %v2320, %v2322
      %v2338 = vsel %vm2327, %v2322, %v2324
      %v2339 = vsel %vm2327, %v2324, %v2326
      %2352 = vrot.lane.b32.xlu0 0, 64
      %v2353 = vpop.permute.xlu0 %2352
      %2354 = vrot.lane.b32.xlu0 %v1909, 64
      %v2355 = vpop.permute.xlu0 %2354
      %2356 = vrot.lane.b32.xlu0 %v1888, 64
      %v2357 = vpop.permute.xlu0 %2356
      %2358 = vrot.lane.b32.xlu0 %v1889, 64
      %v2359 = vpop.permute.xlu0 %2358
      %2360 = vrot.lane.b32.xlu0 %v1890, 64
      %v2361 = vpop.permute.xlu0 %2360
      %2362 = vrot.lane.b32.xlu0 %v1891, 64
      %v2363 = vpop.permute.xlu0 %2362
      %2364 = vrot.lane.b32.xlu0 %v1892, 64
      %v2365 = vpop.permute.xlu0 %2364
      %2366 = vrot.lane.b32.xlu0 %v1912, 64
      %v2367 = vpop.permute.xlu0 %2366
      %2368 = vrot.lane.b32.xlu0 %v1893, 64
      %v2369 = vpop.permute.xlu0 %2368
      %2370 = vrot.lane.b32.xlu0 %v1894, 64
      %v2371 = vpop.permute.xlu0 %2370
      %2372 = vrot.lane.b32.xlu0 %v1895, 64
      %v2373 = vpop.permute.xlu0 %2372
      %2374 = vrot.lane.b32.xlu0 %v1896, 64
      %v2375 = vpop.permute.xlu0 %2374
      %2376 = vrot.lane.b32.xlu0 %v1897, 64
      %v2377 = vpop.permute.xlu0 %2376
      %vm2378 = vcmask 523264
      %v2379 = vsel %vm2378, %v2353, %v2355
      %v2380 = vsel %vm2378, %v2355, %v2357
      %v2381 = vsel %vm2378, %v2357, %v2359
      %v2382 = vsel %vm2378, %v2359, %v2361
      %v2383 = vsel %vm2378, %v2361, %v2363
      %v2384 = vsel %vm2378, %v2363, %v2365
      %v2385 = vsel %vm2378, %v2353, %v2367
      %v2386 = vsel %vm2378, %v2367, %v2369
      %v2387 = vsel %vm2378, %v2369, %v2371
      %v2388 = vsel %vm2378, %v2371, %v2373
      %v2389 = vsel %vm2378, %v2373, %v2375
      %v2390 = vsel %vm2378, %v2375, %v2377
      %2403 = vrot.lane.b32.xlu0 0, 63
      %v2404 = vpop.permute.xlu0 %2403
      %2405 = vrot.lane.b32.xlu0 %v1909, 63
      %v2406 = vpop.permute.xlu0 %2405
      %2407 = vrot.lane.b32.xlu0 %v1888, 63
      %v2408 = vpop.permute.xlu0 %2407
      %2409 = vrot.lane.b32.xlu0 %v1889, 63
      %v2410 = vpop.permute.xlu0 %2409
      %2411 = vrot.lane.b32.xlu0 %v1890, 63
      %v2412 = vpop.permute.xlu0 %2411
      %2413 = vrot.lane.b32.xlu0 %v1891, 63
      %v2414 = vpop.permute.xlu0 %2413
      %2415 = vrot.lane.b32.xlu0 %v1892, 63
      %v2416 = vpop.permute.xlu0 %2415
      %2417 = vrot.lane.b32.xlu0 %v1912, 63
      %v2418 = vpop.permute.xlu0 %2417
      %2419 = vrot.lane.b32.xlu0 %v1893, 63
      %v2420 = vpop.permute.xlu0 %2419
      %2421 = vrot.lane.b32.xlu0 %v1894, 63
      %v2422 = vpop.permute.xlu0 %2421
      %2423 = vrot.lane.b32.xlu0 %v1895, 63
      %v2424 = vpop.permute.xlu0 %2423
      %2425 = vrot.lane.b32.xlu0 %v1896, 63
      %v2426 = vpop.permute.xlu0 %2425
      %2427 = vrot.lane.b32.xlu0 %v1897, 63
      %v2428 = vpop.permute.xlu0 %2427
      %vm2429 = vcmask 515072
      %v2430 = vsel %vm2429, %v2404, %v2406
      %v2431 = vsel %vm2429, %v2406, %v2408
      %v2432 = vsel %vm2429, %v2408, %v2410
      %v2433 = vsel %vm2429, %v2410, %v2412
      %v2434 = vsel %vm2429, %v2412, %v2414
      %v2435 = vsel %vm2429, %v2414, %v2416
      %v2436 = vsel %vm2429, %v2404, %v2418
      %v2437 = vsel %vm2429, %v2418, %v2420
      %v2438 = vsel %vm2429, %v2420, %v2422
      %v2439 = vsel %vm2429, %v2422, %v2424
      %v2440 = vsel %vm2429, %v2424, %v2426
      %v2441 = vsel %vm2429, %v2426, %v2428
      %2454 = vrot.lane.b32.xlu0 0, 62
      %v2455 = vpop.permute.xlu0 %2454
      %2456 = vrot.lane.b32.xlu0 %v1909, 62
      %v2457 = vpop.permute.xlu0 %2456
      %2458 = vrot.lane.b32.xlu0 %v1888, 62
      %v2459 = vpop.permute.xlu0 %2458
      %2460 = vrot.lane.b32.xlu0 %v1889, 62
      %v2461 = vpop.permute.xlu0 %2460
      %2462 = vrot.lane.b32.xlu0 %v1890, 62
      %v2463 = vpop.permute.xlu0 %2462
      %2464 = vrot.lane.b32.xlu0 %v1891, 62
      %v2465 = vpop.permute.xlu0 %2464
      %2466 = vrot.lane.b32.xlu0 %v1892, 62
      %v2467 = vpop.permute.xlu0 %2466
      %2468 = vrot.lane.b32.xlu0 %v1912, 62
      %v2469 = vpop.permute.xlu0 %2468
      %2470 = vrot.lane.b32.xlu0 %v1893, 62
      %v2471 = vpop.permute.xlu0 %2470
      %2472 = vrot.lane.b32.xlu0 %v1894, 62
      %v2473 = vpop.permute.xlu0 %2472
      %2474 = vrot.lane.b32.xlu0 %v1895, 62
      %v2475 = vpop.permute.xlu0 %2474
      %2476 = vrot.lane.b32.xlu0 %v1896, 62
      %v2477 = vpop.permute.xlu0 %2476
      %2478 = vrot.lane.b32.xlu0 %v1897, 62
      %v2479 = vpop.permute.xlu0 %2478
      %vm2480 = vcmask 506880
      %v2481 = vsel %vm2480, %v2455, %v2457
      %v2482 = vsel %vm2480, %v2457, %v2459
      %v2483 = vsel %vm2480, %v2459, %v2461
      %v2484 = vsel %vm2480, %v2461, %v2463
      %v2485 = vsel %vm2480, %v2463, %v2465
      %v2486 = vsel %vm2480, %v2465, %v2467
      %v2487 = vsel %vm2480, %v2455, %v2469
      %v2488 = vsel %vm2480, %v2469, %v2471
      %v2489 = vsel %vm2480, %v2471, %v2473
      %v2490 = vsel %vm2480, %v2473, %v2475
      %v2491 = vsel %vm2480, %v2475, %v2477
      %v2492 = vsel %vm2480, %v2477, %v2479
      %2505 = vrot.lane.b32.xlu0 0, 61
      %v2506 = vpop.permute.xlu0 %2505
      %2507 = vrot.lane.b32.xlu0 %v1909, 61
      %v2508 = vpop.permute.xlu0 %2507
      %2509 = vrot.lane.b32.xlu0 %v1888, 61
      %v2510 = vpop.permute.xlu0 %2509
      %2511 = vrot.lane.b32.xlu0 %v1889, 61
      %v2512 = vpop.permute.xlu0 %2511
      %2513 = vrot.lane.b32.xlu0 %v1890, 61
      %v2514 = vpop.permute.xlu0 %2513
      %2515 = vrot.lane.b32.xlu0 %v1891, 61
      %v2516 = vpop.permute.xlu0 %2515
      %2517 = vrot.lane.b32.xlu0 %v1892, 61
      %v2518 = vpop.permute.xlu0 %2517
      %2519 = vrot.lane.b32.xlu0 %v1912, 61
      %v2520 = vpop.permute.xlu0 %2519
      %2521 = vrot.lane.b32.xlu0 %v1893, 61
      %v2522 = vpop.permute.xlu0 %2521
      %2523 = vrot.lane.b32.xlu0 %v1894, 61
      %v2524 = vpop.permute.xlu0 %2523
      %2525 = vrot.lane.b32.xlu0 %v1895, 61
      %v2526 = vpop.permute.xlu0 %2525
      %2527 = vrot.lane.b32.xlu0 %v1896, 61
      %v2528 = vpop.permute.xlu0 %2527
      %2529 = vrot.lane.b32.xlu0 %v1897, 61
      %v2530 = vpop.permute.xlu0 %2529
      %vm2531 = vcmask 498688
      %v2532 = vsel %vm2531, %v2506, %v2508
      %v2533 = vsel %vm2531, %v2508, %v2510
      %v2534 = vsel %vm2531, %v2510, %v2512
      %v2535 = vsel %vm2531, %v2512, %v2514
      %v2536 = vsel %vm2531, %v2514, %v2516
      %v2537 = vsel %vm2531, %v2516, %v2518
      %v2538 = vsel %vm2531, %v2506, %v2520
      %v2539 = vsel %vm2531, %v2520, %v2522
      %v2540 = vsel %vm2531, %v2522, %v2524
      %v2541 = vsel %vm2531, %v2524, %v2526
      %v2542 = vsel %vm2531, %v2526, %v2528
      %v2543 = vsel %vm2531, %v2528, %v2530
      %2556 = vrot.lane.b32.xlu0 0, 60
      %v2557 = vpop.permute.xlu0 %2556
      %2558 = vrot.lane.b32.xlu0 %v1909, 60
      %v2559 = vpop.permute.xlu0 %2558
      %2560 = vrot.lane.b32.xlu0 %v1888, 60
      %v2561 = vpop.permute.xlu0 %2560
      %2562 = vrot.lane.b32.xlu0 %v1889, 60
      %v2563 = vpop.permute.xlu0 %2562
      %2564 = vrot.lane.b32.xlu0 %v1890, 60
      %v2565 = vpop.permute.xlu0 %2564
      %2566 = vrot.lane.b32.xlu0 %v1891, 60
      %v2567 = vpop.permute.xlu0 %2566
      %2568 = vrot.lane.b32.xlu0 %v1892, 60
      %v2569 = vpop.permute.xlu0 %2568
      %2570 = vrot.lane.b32.xlu0 %v1912, 60
      %v2571 = vpop.permute.xlu0 %2570
      %2572 = vrot.lane.b32.xlu0 %v1893, 60
      %v2573 = vpop.permute.xlu0 %2572
      %2574 = vrot.lane.b32.xlu0 %v1894, 60
      %v2575 = vpop.permute.xlu0 %2574
      %2576 = vrot.lane.b32.xlu0 %v1895, 60
      %v2577 = vpop.permute.xlu0 %2576
      %2578 = vrot.lane.b32.xlu0 %v1896, 60
      %v2579 = vpop.permute.xlu0 %2578
      %2580 = vrot.lane.b32.xlu0 %v1897, 60
      %v2581 = vpop.permute.xlu0 %2580
      %vm2582 = vcmask 490496
      %v2583 = vsel %vm2582, %v2557, %v2559
      %v2584 = vsel %vm2582, %v2559, %v2561
      %v2585 = vsel %vm2582, %v2561, %v2563
      %v2586 = vsel %vm2582, %v2563, %v2565
      %v2587 = vsel %vm2582, %v2565, %v2567
      %v2588 = vsel %vm2582, %v2567, %v2569
      %v2589 = vsel %vm2582, %v2557, %v2571
      %v2590 = vsel %vm2582, %v2571, %v2573
      %v2591 = vsel %vm2582, %v2573, %v2575
      %v2592 = vsel %vm2582, %v2575, %v2577
      %v2593 = vsel %vm2582, %v2577, %v2579
      %v2594 = vsel %vm2582, %v2579, %v2581
      %2607 = vrot.lane.b32.xlu0 0, 32
      %v2608 = vpop.permute.xlu0 %2607
      %2609 = vrot.lane.b32.xlu0 %v1909, 32
      %v2610 = vpop.permute.xlu0 %2609
      %2611 = vrot.lane.b32.xlu0 %v1888, 32
      %v2612 = vpop.permute.xlu0 %2611
      %2613 = vrot.lane.b32.xlu0 %v1889, 32
      %v2614 = vpop.permute.xlu0 %2613
      %2615 = vrot.lane.b32.xlu0 %v1890, 32
      %v2616 = vpop.permute.xlu0 %2615
      %2617 = vrot.lane.b32.xlu0 %v1891, 32
      %v2618 = vpop.permute.xlu0 %2617
      %2619 = vrot.lane.b32.xlu0 %v1892, 32
      %v2620 = vpop.permute.xlu0 %2619
      %2621 = vrot.lane.b32.xlu0 %v1912, 32
      %v2622 = vpop.permute.xlu0 %2621
      %2623 = vrot.lane.b32.xlu0 %v1893, 32
      %v2624 = vpop.permute.xlu0 %2623
      %2625 = vrot.lane.b32.xlu0 %v1894, 32
      %v2626 = vpop.permute.xlu0 %2625
      %2627 = vrot.lane.b32.xlu0 %v1895, 32
      %v2628 = vpop.permute.xlu0 %2627
      %2629 = vrot.lane.b32.xlu0 %v1896, 32
      %v2630 = vpop.permute.xlu0 %2629
      %2631 = vrot.lane.b32.xlu0 %v1897, 32
      %v2632 = vpop.permute.xlu0 %2631
      %vm2633 = vcmask 261120
      %v2634 = vsel %vm2633, %v2608, %v2610
      %v2635 = vsel %vm2633, %v2610, %v2612
      %v2636 = vsel %vm2633, %v2612, %v2614
      %v2637 = vsel %vm2633, %v2614, %v2616
      %v2638 = vsel %vm2633, %v2616, %v2618
      %v2639 = vsel %vm2633, %v2618, %v2620
      %v2640 = vsel %vm2633, %v2608, %v2622
      %v2641 = vsel %vm2633, %v2622, %v2624
      %v2642 = vsel %vm2633, %v2624, %v2626
      %v2643 = vsel %vm2633, %v2626, %v2628
      %v2644 = vsel %vm2633, %v2628, %v2630
      %v2645 = vsel %vm2633, %v2630, %v2632
      %2658 = vrot.lane.b32.xlu0 %v1892, 127
      %v2659 = vpop.permute.xlu0 %2658
      %2660 = vrot.lane.b32.xlu0 %v1897, 127
      %v2661 = vpop.permute.xlu0 %2660
      %v2662 = vsel %vm1939, %v1928, %v2659
      %v2663 = vsel %vm1939, %v1938, %v2661
      %2664 = vrot.lane.b32.xlu0 %v1892, 126
      %v2665 = vpop.permute.xlu0 %2664
      %2666 = vrot.lane.b32.xlu0 %v1897, 126
      %v2667 = vpop.permute.xlu0 %2666
      %v2668 = vsel %vm1984, %v1973, %v2665
      %v2669 = vsel %vm1984, %v1983, %v2667
      %2670 = vrot.lane.b32.xlu0 %v1892, 125
      %v2671 = vpop.permute.xlu0 %2670
      %2672 = vrot.lane.b32.xlu0 %v1897, 125
      %v2673 = vpop.permute.xlu0 %2672
      %v2674 = vsel %vm2029, %v2018, %v2671
      %v2675 = vsel %vm2029, %v2028, %v2673
      %2676 = vrot.lane.b32.xlu0 %v1909, 97
      %v2677 = vpop.permute.xlu0 %2676
      %2678 = vrot.lane.b32.xlu0 %v1888, 97
      %v2679 = vpop.permute.xlu0 %2678
      %2680 = vrot.lane.b32.xlu0 %v1889, 97
      %v2681 = vpop.permute.xlu0 %2680
      %2682 = vrot.lane.b32.xlu0 %v1890, 97
      %v2683 = vpop.permute.xlu0 %2682
      %2684 = vrot.lane.b32.xlu0 %v1891, 97
      %v2685 = vpop.permute.xlu0 %2684
      %2686 = vrot.lane.b32.xlu0 %v1892, 97
      %v2687 = vpop.permute.xlu0 %2686
      %2688 = vrot.lane.b32.xlu0 %v1912, 97
      %v2689 = vpop.permute.xlu0 %2688
      %2690 = vrot.lane.b32.xlu0 %v1893, 97
      %v2691 = vpop.permute.xlu0 %2690
      %2692 = vrot.lane.b32.xlu0 %v1894, 97
      %v2693 = vpop.permute.xlu0 %2692
      %2694 = vrot.lane.b32.xlu0 %v1895, 97
      %v2695 = vpop.permute.xlu0 %2694
      %2696 = vrot.lane.b32.xlu0 %v1896, 97
      %v2697 = vpop.permute.xlu0 %2696
      %2698 = vrot.lane.b32.xlu0 %v1897, 97
      %v2699 = vpop.permute.xlu0 %2698
      %vm2700 = vcmask 793600
      %v2701 = vsel %vm2700, %v2677, %v2679
      %v2702 = vsel %vm2700, %v2679, %v2681
      %v2703 = vsel %vm2700, %v2681, %v2683
      %v2704 = vsel %vm2700, %v2683, %v2685
      %v2705 = vsel %vm2700, %v2685, %v2687
      %v2706 = vsel %vm2700, %v2689, %v2691
      %v2707 = vsel %vm2700, %v2691, %v2693
      %v2708 = vsel %vm2700, %v2693, %v2695
      %v2709 = vsel %vm2700, %v2695, %v2697
      %v2710 = vsel %vm2700, %v2697, %v2699
      %2711 = vrot.lane.b32.xlu0 0, 31
      %v2712 = vpop.permute.xlu0 %2711
      %2713 = vrot.lane.b32.xlu0 %v1909, 31
      %v2714 = vpop.permute.xlu0 %2713
      %2715 = vrot.lane.b32.xlu0 %v1888, 31
      %v2716 = vpop.permute.xlu0 %2715
      %2717 = vrot.lane.b32.xlu0 %v1889, 31
      %v2718 = vpop.permute.xlu0 %2717
      %2719 = vrot.lane.b32.xlu0 %v1890, 31
      %v2720 = vpop.permute.xlu0 %2719
      %2721 = vrot.lane.b32.xlu0 %v1891, 31
      %v2722 = vpop.permute.xlu0 %2721
      %2723 = vrot.lane.b32.xlu0 %v1892, 31
      %v2724 = vpop.permute.xlu0 %2723
      %2725 = vrot.lane.b32.xlu0 %v1912, 31
      %v2726 = vpop.permute.xlu0 %2725
      %2727 = vrot.lane.b32.xlu0 %v1893, 31
      %v2728 = vpop.permute.xlu0 %2727
      %2729 = vrot.lane.b32.xlu0 %v1894, 31
      %v2730 = vpop.permute.xlu0 %2729
      %2731 = vrot.lane.b32.xlu0 %v1895, 31
      %v2732 = vpop.permute.xlu0 %2731
      %2733 = vrot.lane.b32.xlu0 %v1896, 31
      %v2734 = vpop.permute.xlu0 %2733
      %2735 = vrot.lane.b32.xlu0 %v1897, 31
      %v2736 = vpop.permute.xlu0 %2735
      %2737 = vrot.lane.b32.xlu0 %v1940, 31
      %v2738 = vpop.permute.xlu0 %2737
      %2739 = vrot.lane.b32.xlu0 %v1941, 31
      %v2740 = vpop.permute.xlu0 %2739
      %2741 = vrot.lane.b32.xlu0 %v1942, 31
      %v2742 = vpop.permute.xlu0 %2741
      %2743 = vrot.lane.b32.xlu0 %v1943, 31
      %v2744 = vpop.permute.xlu0 %2743
      %2745 = vrot.lane.b32.xlu0 %v1944, 31
      %v2746 = vpop.permute.xlu0 %2745
      %2747 = vrot.lane.b32.xlu0 %v2662, 31
      %v2748 = vpop.permute.xlu0 %2747
      %2749 = vrot.lane.b32.xlu0 %v2659, 31
      %v2750 = vpop.permute.xlu0 %2749
      %2751 = vrot.lane.b32.xlu0 %v1945, 31
      %v2752 = vpop.permute.xlu0 %2751
      %2753 = vrot.lane.b32.xlu0 %v1946, 31
      %v2754 = vpop.permute.xlu0 %2753
      %2755 = vrot.lane.b32.xlu0 %v1947, 31
      %v2756 = vpop.permute.xlu0 %2755
      %2757 = vrot.lane.b32.xlu0 %v1948, 31
      %v2758 = vpop.permute.xlu0 %2757
      %2759 = vrot.lane.b32.xlu0 %v1949, 31
      %v2760 = vpop.permute.xlu0 %2759
      %2761 = vrot.lane.b32.xlu0 %v2663, 31
      %v2762 = vpop.permute.xlu0 %2761
      %2763 = vrot.lane.b32.xlu0 %v2661, 31
      %v2764 = vpop.permute.xlu0 %2763
      %2765 = vrot.lane.b32.xlu0 %v1985, 31
      %v2766 = vpop.permute.xlu0 %2765
      %2767 = vrot.lane.b32.xlu0 %v1986, 31
      %v2768 = vpop.permute.xlu0 %2767
      %2769 = vrot.lane.b32.xlu0 %v1987, 31
      %v2770 = vpop.permute.xlu0 %2769
      %2771 = vrot.lane.b32.xlu0 %v1988, 31
      %v2772 = vpop.permute.xlu0 %2771
      %2773 = vrot.lane.b32.xlu0 %v1989, 31
      %v2774 = vpop.permute.xlu0 %2773
      %2775 = vrot.lane.b32.xlu0 %v2668, 31
      %v2776 = vpop.permute.xlu0 %2775
      %2777 = vrot.lane.b32.xlu0 %v2665, 31
      %v2778 = vpop.permute.xlu0 %2777
      %2779 = vrot.lane.b32.xlu0 %v1990, 31
      %v2780 = vpop.permute.xlu0 %2779
      %2781 = vrot.lane.b32.xlu0 %v1991, 31
      %v2782 = vpop.permute.xlu0 %2781
      %2783 = vrot.lane.b32.xlu0 %v1992, 31
      %v2784 = vpop.permute.xlu0 %2783
      %2785 = vrot.lane.b32.xlu0 %v1993, 31
      %v2786 = vpop.permute.xlu0 %2785
      %2787 = vrot.lane.b32.xlu0 %v1994, 31
      %v2788 = vpop.permute.xlu0 %2787
      %2789 = vrot.lane.b32.xlu0 %v2669, 31
      %v2790 = vpop.permute.xlu0 %2789
      %2791 = vrot.lane.b32.xlu0 %v2667, 31
      %v2792 = vpop.permute.xlu0 %2791
      %2793 = vrot.lane.b32.xlu0 %v2030, 31
      %v2794 = vpop.permute.xlu0 %2793
      %2795 = vrot.lane.b32.xlu0 %v2031, 31
      %v2796 = vpop.permute.xlu0 %2795
      %2797 = vrot.lane.b32.xlu0 %v2032, 31
      %v2798 = vpop.permute.xlu0 %2797
      %2799 = vrot.lane.b32.xlu0 %v2033, 31
      %v2800 = vpop.permute.xlu0 %2799
      %2801 = vrot.lane.b32.xlu0 %v2034, 31
      %v2802 = vpop.permute.xlu0 %2801
      %2803 = vrot.lane.b32.xlu0 %v2674, 31
      %v2804 = vpop.permute.xlu0 %2803
      %2805 = vrot.lane.b32.xlu0 %v2671, 31
      %v2806 = vpop.permute.xlu0 %2805
      %2807 = vrot.lane.b32.xlu0 %v2035, 31
      %v2808 = vpop.permute.xlu0 %2807
      %2809 = vrot.lane.b32.xlu0 %v2036, 31
      %v2810 = vpop.permute.xlu0 %2809
      %2811 = vrot.lane.b32.xlu0 %v2037, 31
      %v2812 = vpop.permute.xlu0 %2811
      %2813 = vrot.lane.b32.xlu0 %v2038, 31
      %v2814 = vpop.permute.xlu0 %2813
      %2815 = vrot.lane.b32.xlu0 %v2039, 31
      %v2816 = vpop.permute.xlu0 %2815
      %2817 = vrot.lane.b32.xlu0 %v2675, 31
      %v2818 = vpop.permute.xlu0 %2817
      %2819 = vrot.lane.b32.xlu0 %v2673, 31
      %v2820 = vpop.permute.xlu0 %2819
      %2821 = vrot.lane.b32.xlu0 %v2677, 31
      %v2822 = vpop.permute.xlu0 %2821
      %2823 = vrot.lane.b32.xlu0 %v2701, 31
      %v2824 = vpop.permute.xlu0 %2823
      %2825 = vrot.lane.b32.xlu0 %v2702, 31
      %v2826 = vpop.permute.xlu0 %2825
      %2827 = vrot.lane.b32.xlu0 %v2703, 31
      %v2828 = vpop.permute.xlu0 %2827
      %2829 = vrot.lane.b32.xlu0 %v2704, 31
      %v2830 = vpop.permute.xlu0 %2829
      %2831 = vrot.lane.b32.xlu0 %v2705, 31
      %v2832 = vpop.permute.xlu0 %2831
      %2833 = vrot.lane.b32.xlu0 %v2687, 31
      %v2834 = vpop.permute.xlu0 %2833
      %2835 = vrot.lane.b32.xlu0 %v2689, 31
      %v2836 = vpop.permute.xlu0 %2835
      %2837 = vrot.lane.b32.xlu0 %v2706, 31
      %v2838 = vpop.permute.xlu0 %2837
      %2839 = vrot.lane.b32.xlu0 %v2707, 31
      %v2840 = vpop.permute.xlu0 %2839
      %2841 = vrot.lane.b32.xlu0 %v2708, 31
      %v2842 = vpop.permute.xlu0 %2841
      %2843 = vrot.lane.b32.xlu0 %v2709, 31
      %v2844 = vpop.permute.xlu0 %2843
      %2845 = vrot.lane.b32.xlu0 %v2710, 31
      %v2846 = vpop.permute.xlu0 %2845
      %2847 = vrot.lane.b32.xlu0 %v2699, 31
      %v2848 = vpop.permute.xlu0 %2847
      %2849 = vrot.lane.b32.xlu0 %v2100, 31
      %v2850 = vpop.permute.xlu0 %2849
      %2851 = vrot.lane.b32.xlu0 %v2125, 31
      %v2852 = vpop.permute.xlu0 %2851
      %2853 = vrot.lane.b32.xlu0 %v2126, 31
      %v2854 = vpop.permute.xlu0 %2853
      %2855 = vrot.lane.b32.xlu0 %v2127, 31
      %v2856 = vpop.permute.xlu0 %2855
      %2857 = vrot.lane.b32.xlu0 %v2128, 31
      %v2858 = vpop.permute.xlu0 %2857
      %2859 = vrot.lane.b32.xlu0 %v2129, 31
      %v2860 = vpop.permute.xlu0 %2859
      %2861 = vrot.lane.b32.xlu0 %v2110, 31
      %v2862 = vpop.permute.xlu0 %2861
      %2863 = vrot.lane.b32.xlu0 %v2112, 31
      %v2864 = vpop.permute.xlu0 %2863
      %2865 = vrot.lane.b32.xlu0 %v2131, 31
      %v2866 = vpop.permute.xlu0 %2865
      %2867 = vrot.lane.b32.xlu0 %v2132, 31
      %v2868 = vpop.permute.xlu0 %2867
      %2869 = vrot.lane.b32.xlu0 %v2133, 31
      %v2870 = vpop.permute.xlu0 %2869
      %2871 = vrot.lane.b32.xlu0 %v2134, 31
      %v2872 = vpop.permute.xlu0 %2871
      %2873 = vrot.lane.b32.xlu0 %v2135, 31
      %v2874 = vpop.permute.xlu0 %2873
      %2875 = vrot.lane.b32.xlu0 %v2122, 31
      %v2876 = vpop.permute.xlu0 %2875
      %2877 = vrot.lane.b32.xlu0 %v2151, 31
      %v2878 = vpop.permute.xlu0 %2877
      %2879 = vrot.lane.b32.xlu0 %v2176, 31
      %v2880 = vpop.permute.xlu0 %2879
      %2881 = vrot.lane.b32.xlu0 %v2177, 31
      %v2882 = vpop.permute.xlu0 %2881
      %2883 = vrot.lane.b32.xlu0 %v2178, 31
      %v2884 = vpop.permute.xlu0 %2883
      %2885 = vrot.lane.b32.xlu0 %v2179, 31
      %v2886 = vpop.permute.xlu0 %2885
      %2887 = vrot.lane.b32.xlu0 %v2180, 31
      %v2888 = vpop.permute.xlu0 %2887
      %2889 = vrot.lane.b32.xlu0 %v2161, 31
      %v2890 = vpop.permute.xlu0 %2889
      %2891 = vrot.lane.b32.xlu0 %v2163, 31
      %v2892 = vpop.permute.xlu0 %2891
      %2893 = vrot.lane.b32.xlu0 %v2182, 31
      %v2894 = vpop.permute.xlu0 %2893
      %2895 = vrot.lane.b32.xlu0 %v2183, 31
      %v2896 = vpop.permute.xlu0 %2895
      %2897 = vrot.lane.b32.xlu0 %v2184, 31
      %v2898 = vpop.permute.xlu0 %2897
      %2899 = vrot.lane.b32.xlu0 %v2185, 31
      %v2900 = vpop.permute.xlu0 %2899
      %2901 = vrot.lane.b32.xlu0 %v2186, 31
      %v2902 = vpop.permute.xlu0 %2901
      %2903 = vrot.lane.b32.xlu0 %v2173, 31
      %v2904 = vpop.permute.xlu0 %2903
      %2905 = vrot.lane.b32.xlu0 %v2202, 31
      %v2906 = vpop.permute.xlu0 %2905
      %2907 = vrot.lane.b32.xlu0 %v2227, 31
      %v2908 = vpop.permute.xlu0 %2907
      %2909 = vrot.lane.b32.xlu0 %v2228, 31
      %v2910 = vpop.permute.xlu0 %2909
      %2911 = vrot.lane.b32.xlu0 %v2229, 31
      %v2912 = vpop.permute.xlu0 %2911
      %2913 = vrot.lane.b32.xlu0 %v2230, 31
      %v2914 = vpop.permute.xlu0 %2913
      %2915 = vrot.lane.b32.xlu0 %v2231, 31
      %v2916 = vpop.permute.xlu0 %2915
      %2917 = vrot.lane.b32.xlu0 %v2212, 31
      %v2918 = vpop.permute.xlu0 %2917
      %2919 = vrot.lane.b32.xlu0 %v2214, 31
      %v2920 = vpop.permute.xlu0 %2919
      %2921 = vrot.lane.b32.xlu0 %v2233, 31
      %v2922 = vpop.permute.xlu0 %2921
      %2923 = vrot.lane.b32.xlu0 %v2234, 31
      %v2924 = vpop.permute.xlu0 %2923
      %2925 = vrot.lane.b32.xlu0 %v2235, 31
      %v2926 = vpop.permute.xlu0 %2925
      %2927 = vrot.lane.b32.xlu0 %v2236, 31
      %v2928 = vpop.permute.xlu0 %2927
      %2929 = vrot.lane.b32.xlu0 %v2237, 31
      %v2930 = vpop.permute.xlu0 %2929
      %2931 = vrot.lane.b32.xlu0 %v2224, 31
      %v2932 = vpop.permute.xlu0 %2931
      %2933 = vrot.lane.b32.xlu0 %v2253, 31
      %v2934 = vpop.permute.xlu0 %2933
      %2935 = vrot.lane.b32.xlu0 %v2278, 31
      %v2936 = vpop.permute.xlu0 %2935
      %2937 = vrot.lane.b32.xlu0 %v2279, 31
      %v2938 = vpop.permute.xlu0 %2937
      %2939 = vrot.lane.b32.xlu0 %v2280, 31
      %v2940 = vpop.permute.xlu0 %2939
      %2941 = vrot.lane.b32.xlu0 %v2281, 31
      %v2942 = vpop.permute.xlu0 %2941
      %2943 = vrot.lane.b32.xlu0 %v2282, 31
      %v2944 = vpop.permute.xlu0 %2943
      %2945 = vrot.lane.b32.xlu0 %v2263, 31
      %v2946 = vpop.permute.xlu0 %2945
      %2947 = vrot.lane.b32.xlu0 %v2265, 31
      %v2948 = vpop.permute.xlu0 %2947
      %2949 = vrot.lane.b32.xlu0 %v2284, 31
      %v2950 = vpop.permute.xlu0 %2949
      %2951 = vrot.lane.b32.xlu0 %v2285, 31
      %v2952 = vpop.permute.xlu0 %2951
      %2953 = vrot.lane.b32.xlu0 %v2286, 31
      %v2954 = vpop.permute.xlu0 %2953
      %2955 = vrot.lane.b32.xlu0 %v2287, 31
      %v2956 = vpop.permute.xlu0 %2955
      %2957 = vrot.lane.b32.xlu0 %v2288, 31
      %v2958 = vpop.permute.xlu0 %2957
      %2959 = vrot.lane.b32.xlu0 %v2275, 31
      %v2960 = vpop.permute.xlu0 %2959
      %vm2961 = vcmask 252928
      %v2962 = vsel %vm2961, %v2712, %v2714
      %v2963 = vsel %vm2961, %v2714, %v2716
      %v2964 = vsel %vm2961, %v2716, %v2718
      %v2965 = vsel %vm2961, %v2718, %v2720
      %v2966 = vsel %vm2961, %v2720, %v2722
      %v2967 = vsel %vm2961, %v2722, %v2724
      %v2968 = vsel %vm2961, %v2712, %v2726
      %v2969 = vsel %vm2961, %v2726, %v2728
      %v2970 = vsel %vm2961, %v2728, %v2730
      %v2971 = vsel %vm2961, %v2730, %v2732
      %v2972 = vsel %vm2961, %v2732, %v2734
      %v2973 = vsel %vm2961, %v2734, %v2736
      %v2974 = vsel %vm2961, %v2738, %v2740
      %v2975 = vsel %vm2961, %v2740, %v2742
      %v2976 = vsel %vm2961, %v2742, %v2744
      %v2977 = vsel %vm2961, %v2744, %v2746
      %v2978 = vsel %vm2961, %v2746, %v2748
      %v2979 = vsel %vm2961, %v2748, %v2750
      %v2980 = vsel %vm2961, %v2752, %v2754
      %v2981 = vsel %vm2961, %v2754, %v2756
      %v2982 = vsel %vm2961, %v2756, %v2758
      %v2983 = vsel %vm2961, %v2758, %v2760
      %v2984 = vsel %vm2961, %v2760, %v2762
      %v2985 = vsel %vm2961, %v2762, %v2764
      %v2986 = vsel %vm2961, %v2766, %v2768
      %v2987 = vsel %vm2961, %v2768, %v2770
      %v2988 = vsel %vm2961, %v2770, %v2772
      %v2989 = vsel %vm2961, %v2772, %v2774
      %v2990 = vsel %vm2961, %v2774, %v2776
      %v2991 = vsel %vm2961, %v2776, %v2778
      %v2992 = vsel %vm2961, %v2780, %v2782
      %v2993 = vsel %vm2961, %v2782, %v2784
      %v2994 = vsel %vm2961, %v2784, %v2786
      %v2995 = vsel %vm2961, %v2786, %v2788
      %v2996 = vsel %vm2961, %v2788, %v2790
      %v2997 = vsel %vm2961, %v2790, %v2792
      %v2998 = vsel %vm2961, %v2794, %v2796
      %v2999 = vsel %vm2961, %v2796, %v2798
      %v3000 = vsel %vm2961, %v2798, %v2800
      %v3001 = vsel %vm2961, %v2800, %v2802
      %v3002 = vsel %vm2961, %v2802, %v2804
      %v3003 = vsel %vm2961, %v2804, %v2806
      %v3004 = vsel %vm2961, %v2808, %v2810
      %v3005 = vsel %vm2961, %v2810, %v2812
      %v3006 = vsel %vm2961, %v2812, %v2814
      %v3007 = vsel %vm2961, %v2814, %v2816
      %v3008 = vsel %vm2961, %v2816, %v2818
      %v3009 = vsel %vm2961, %v2818, %v2820
      %v3010 = vsel %vm2961, %v2822, %v2824
      %v3011 = vsel %vm2961, %v2824, %v2826
      %v3012 = vsel %vm2961, %v2826, %v2828
      %v3013 = vsel %vm2961, %v2828, %v2830
      %v3014 = vsel %vm2961, %v2830, %v2832
      %v3015 = vsel %vm2961, %v2832, %v2834
      %v3016 = vsel %vm2961, %v2836, %v2838
      %v3017 = vsel %vm2961, %v2838, %v2840
      %v3018 = vsel %vm2961, %v2840, %v2842
      %v3019 = vsel %vm2961, %v2842, %v2844
      %v3020 = vsel %vm2961, %v2844, %v2846
      %v3021 = vsel %vm2961, %v2846, %v2848
      %v3022 = vsel %vm2961, %v2850, %v2852
      %v3023 = vsel %vm2961, %v2852, %v2854
      %v3024 = vsel %vm2961, %v2854, %v2856
      %v3025 = vsel %vm2961, %v2856, %v2858
      %v3026 = vsel %vm2961, %v2858, %v2860
      %v3027 = vsel %vm2961, %v2860, %v2862
      %v3028 = vsel %vm2961, %v2864, %v2866
      %v3029 = vsel %vm2961, %v2866, %v2868
      %v3030 = vsel %vm2961, %v2868, %v2870
      %v3031 = vsel %vm2961, %v2870, %v2872
      %v3032 = vsel %vm2961, %v2872, %v2874
      %v3033 = vsel %vm2961, %v2874, %v2876
      %v3034 = vsel %vm2961, %v2878, %v2880
      %v3035 = vsel %vm2961, %v2880, %v2882
      %v3036 = vsel %vm2961, %v2882, %v2884
      %v3037 = vsel %vm2961, %v2884, %v2886
      %v3038 = vsel %vm2961, %v2886, %v2888
      %v3039 = vsel %vm2961, %v2888, %v2890
      %v3040 = vsel %vm2961, %v2892, %v2894
      %v3041 = vsel %vm2961, %v2894, %v2896
      %v3042 = vsel %vm2961, %v2896, %v2898
      %v3043 = vsel %vm2961, %v2898, %v2900
      %v3044 = vsel %vm2961, %v2900, %v2902
      %v3045 = vsel %vm2961, %v2902, %v2904
      %v3046 = vsel %vm2961, %v2906, %v2908
      %v3047 = vsel %vm2961, %v2908, %v2910
      %v3048 = vsel %vm2961, %v2910, %v2912
      %v3049 = vsel %vm2961, %v2912, %v2914
      %v3050 = vsel %vm2961, %v2914, %v2916
      %v3051 = vsel %vm2961, %v2916, %v2918
      %v3052 = vsel %vm2961, %v2920, %v2922
      %v3053 = vsel %vm2961, %v2922, %v2924
      %v3054 = vsel %vm2961, %v2924, %v2926
      %v3055 = vsel %vm2961, %v2926, %v2928
      %v3056 = vsel %vm2961, %v2928, %v2930
      %v3057 = vsel %vm2961, %v2930, %v2932
      %v3058 = vsel %vm2961, %v2934, %v2936
      %v3059 = vsel %vm2961, %v2936, %v2938
      %v3060 = vsel %vm2961, %v2938, %v2940
      %v3061 = vsel %vm2961, %v2940, %v2942
      %v3062 = vsel %vm2961, %v2942, %v2944
      %v3063 = vsel %vm2961, %v2944, %v2946
      %v3064 = vsel %vm2961, %v2948, %v2950
      %v3065 = vsel %vm2961, %v2950, %v2952
      %v3066 = vsel %vm2961, %v2952, %v2954
      %v3067 = vsel %vm2961, %v2954, %v2956
      %v3068 = vsel %vm2961, %v2956, %v2958
      %v3069 = vsel %vm2961, %v2958, %v2960
      %v3178 = vld [vmem:[%s4] sm:$0xff]
      %v3179 = vld [vmem:[%s4 + $0x8] sm:$0xff]
      %v3180 = vld [vmem:[%s4 + $0x10] sm:$0xff]
      %v3181 = vld [vmem:[%s4 + $0x18] sm:$0xf]
      %v3182 = vld [vmem:[%s4 + $0x1c] sm:$0xff]
      %v3183 = vld [vmem:[%s4 + $0x24] sm:$0xff]
      %v3184 = vld [vmem:[%s4 + $0x2c] sm:$0xff]
      %v3185 = vld [vmem:[%s4 + $0x34] sm:$0xf]
      %v3186 = vld [vmem:[%s5] sm:$0xff]
      %v3187 = vld [vmem:[%s5 + $0x8] sm:$0xff]
      %3189 = vset.pattern.permute.xlu0 0
      %3190 = vperm.xlu0 %3189, %v3186
      %v3191 = vpop.permute.xlu0 %3190
      %3194 = vset.pattern.permute.xlu0 0
      %3195 = vperm.xlu0 %3194, %v3187
      %v3196 = vpop.permute.xlu0 %3195
      %v3206 = vunpack.c.l.b16 %v3178
      %v3207 = vunpack.c.h.b16 %v3178
      %v3208 = vunpack.c.l.b16 %v3179
      %v3209 = vunpack.c.h.b16 %v3179
      %v3210 = vunpack.c.l.b16 %v3180
      %v3211 = vunpack.c.h.b16 %v3180
      %v3212 = vunpack.c.l.b16 %v3181
      %v3213 = vunpack.c.l.b16 %v3182
      %v3214 = vunpack.c.h.b16 %v3182
      %v3215 = vunpack.c.l.b16 %v3183
      %v3216 = vunpack.c.h.b16 %v3183
      %v3217 = vunpack.c.l.b16 %v3184
      %v3218 = vunpack.c.h.b16 %v3184
      %v3219 = vunpack.c.l.b16 %v3185
      %v3220 = vpack.c.b16 %v3213, %v3206
      %v3221 = vpack.c.b16 %v3214, %v3207
      %v3222 = vpack.c.b16 %v3215, %v3208
      %v3223 = vpack.c.b16 %v3216, %v3209
      %v3224 = vpack.c.b16 %v3217, %v3210
      %v3225 = vpack.c.b16 %v3218, %v3211
      %v3226 = vpack.c.b16 %v3219, %v3212
      %vm3233 = vcmask 261120
      %v3235 = vsel %vm3233, %v3226, 0
      %3237 = vmatprep.subr.bf16.mxu0 %v2036
      %3238 = vmatpush1.bf16.msra.mxu0 %v2035
      %3239 = vmatprep.subr.bf16.mxu0 %v2031
      %3240 = vmatpush1.bf16.msra.mxu0 %v2030
      %3241 = vmatprep.subr.bf16.mxu0 %v1991
      %3242 = vmatpush1.bf16.msra.mxu0 %v1990
      %3243 = vmatprep.subr.bf16.mxu0 %v1986
      %3244 = vmatpush1.bf16.msra.mxu0 %v1985
      %3245 = vmatprep.subr.bf16.mxu0 %v1946
      %3246 = vmatpush1.bf16.msra.mxu0 %v1945
      %3247 = vmatprep.subr.bf16.mxu0 %v1941
      %3248 = vmatpush1.bf16.msra.mxu0 %v1940
      %3249 = vmatprep.subr.bf16.mxu0 %v1912
      %3250 = vmatpush1.bf16.msra.mxu0 0
      %3251 = vmatprep.subr.bf16.mxu0 %v1909
      %3252 = vmatpush1.bf16.msra.mxu0 0
      %3253 = vmatprep.subr.bf16.mxu0 %v2233
      %3254 = vmatpush2.bf16.msra.mxu0 %v2232
      %3255 = vmatprep.subr.bf16.mxu0 %v2227
      %3256 = vmatpush2.bf16.msra.mxu0 %v2226
      %3257 = vmatprep.subr.bf16.mxu0 %v2182
      %3258 = vmatpush2.bf16.msra.mxu0 %v2181
      %3259 = vmatprep.subr.bf16.mxu0 %v2176
      %3260 = vmatpush2.bf16.msra.mxu0 %v2175
      %3261 = vmatprep.subr.bf16.mxu0 %v2131
      %3262 = vmatpush2.bf16.msra.mxu0 %v2130
      %3263 = vmatprep.subr.bf16.mxu0 %v2125
      %3264 = vmatpush2.bf16.msra.mxu0 %v2124
      %3265 = vmatprep.subr.bf16.mxu0 %v2081
      %3266 = vmatpush2.bf16.msra.mxu0 %v2080
      %3267 = vmatprep.subr.bf16.mxu0 %v2076
      %3268 = vmatpush2.bf16.msra.mxu0 %v2075
      %3269 = vmatprep.mubr.bf16.mxu0 %v3221
      %3270 = vmatmul.mubr.bf16.gmra.mxu0 %v3220
      %v3271 = vpop.f32.mrf.mxu0
      %v3272 = vadd.f32 %v3191, %v3271
      %v3273 = vpop.f32.mrf.mxu0
      %v3274 = vadd.f32 %v3191, %v3273
      %v3275 = vpop.f32.mrf.mxu0
      %v3276 = vadd.f32 %v3196, %v3275
      %v3277 = vpop.f32.mrf.mxu0
      %v3278 = vadd.f32 %v3196, %v3277
      %3279 = vdwg.mxu0
      %3280 = vmatprep.subr.bf16.mxu0 %v2437
      %3281 = vmatpush1.bf16.msra.mxu0 %v2436
      %3282 = vmatprep.subr.bf16.mxu0 %v2431
      %3283 = vmatpush1.bf16.msra.mxu0 %v2430
      %3284 = vmatprep.subr.bf16.mxu0 %v2386
      %3285 = vmatpush1.bf16.msra.mxu0 %v2385
      %3286 = vmatprep.subr.bf16.mxu0 %v2380
      %3287 = vmatpush1.bf16.msra.mxu0 %v2379
      %3288 = vmatprep.subr.bf16.mxu0 %v2335
      %3289 = vmatpush1.bf16.msra.mxu0 %v2334
      %3290 = vmatprep.subr.bf16.mxu0 %v2329
      %3291 = vmatpush1.bf16.msra.mxu0 %v2328
      %3292 = vmatprep.subr.bf16.mxu0 %v2284
      %3293 = vmatpush1.bf16.msra.mxu0 %v2283
      %3294 = vmatprep.subr.bf16.mxu0 %v2278
      %3295 = vmatpush1.bf16.msra.mxu0 %v2277
      %3296 = vmatprep.subr.bf16.mxu0 %v2641
      %3297 = vmatpush2.bf16.msra.mxu0 %v2640
      %3298 = vmatprep.subr.bf16.mxu0 %v2635
      %3299 = vmatpush2.bf16.msra.mxu0 %v2634
      %3300 = vmatprep.subr.bf16.mxu0 %v2590
      %3301 = vmatpush2.bf16.msra.mxu0 %v2589
      %3302 = vmatprep.subr.bf16.mxu0 %v2584
      %3303 = vmatpush2.bf16.msra.mxu0 %v2583
      %3304 = vmatprep.subr.bf16.mxu0 %v2539
      %3305 = vmatpush2.bf16.msra.mxu0 %v2538
      %3306 = vmatprep.subr.bf16.mxu0 %v2533
      %3307 = vmatpush2.bf16.msra.mxu0 %v2532
      %3308 = vmatprep.subr.bf16.mxu0 %v2488
      %3309 = vmatpush2.bf16.msra.mxu0 %v2487
      %3310 = vmatprep.subr.bf16.mxu0 %v2482
      %3311 = vmatpush2.bf16.msra.mxu0 %v2481
      %3312 = vmatprep.mubr.bf16.mxu0 %v3223
      %3313 = vmatmul.mubr.bf16.gmra.mxu0 %v3222
      %v3314 = vpop.f32.mrf.mxu0
      %v3315 = vadd.f32 %v3272, %v3314
      %v3316 = vpop.f32.mrf.mxu0
      %v3317 = vadd.f32 %v3274, %v3316
      %v3318 = vpop.f32.mrf.mxu0
      %v3319 = vadd.f32 %v3276, %v3318
      %v3320 = vpop.f32.mrf.mxu0
      %v3321 = vadd.f32 %v3278, %v3320
      %3322 = vdwg.mxu0
      %3323 = vmatprep.subr.bf16.mxu0 %v3005
      %3324 = vmatpush1.bf16.msra.mxu0 %v3004
      %3325 = vmatprep.subr.bf16.mxu0 %v2999
      %3326 = vmatpush1.bf16.msra.mxu0 %v2998
      %3327 = vmatprep.subr.bf16.mxu0 %v2993
      %3328 = vmatpush1.bf16.msra.mxu0 %v2992
      %3329 = vmatprep.subr.bf16.mxu0 %v2987
      %3330 = vmatpush1.bf16.msra.mxu0 %v2986
      %3331 = vmatprep.subr.bf16.mxu0 %v2981
      %3332 = vmatpush1.bf16.msra.mxu0 %v2980
      %3333 = vmatprep.subr.bf16.mxu0 %v2975
      %3334 = vmatpush1.bf16.msra.mxu0 %v2974
      %3335 = vmatprep.subr.bf16.mxu0 %v2969
      %3336 = vmatpush1.bf16.msra.mxu0 %v2968
      %3337 = vmatprep.subr.bf16.mxu0 %v2963
      %3338 = vmatpush1.bf16.msra.mxu0 %v2962
      %3339 = vmatprep.subr.bf16.mxu0 %v3053
      %3340 = vmatpush2.bf16.msra.mxu0 %v3052
      %3341 = vmatprep.subr.bf16.mxu0 %v3047
      %3342 = vmatpush2.bf16.msra.mxu0 %v3046
      %3343 = vmatprep.subr.bf16.mxu0 %v3041
      %3344 = vmatpush2.bf16.msra.mxu0 %v3040
      %3345 = vmatprep.subr.bf16.mxu0 %v3035
      %3346 = vmatpush2.bf16.msra.mxu0 %v3034
      %3347 = vmatprep.subr.bf16.mxu0 %v3029
      %3348 = vmatpush2.bf16.msra.mxu0 %v3028
      %3349 = vmatprep.subr.bf16.mxu0 %v3023
      %3350 = vmatpush2.bf16.msra.mxu0 %v3022
      %3351 = vmatprep.subr.bf16.mxu0 %v3017
      %3352 = vmatpush2.bf16.msra.mxu0 %v3016
      %3353 = vmatprep.subr.bf16.mxu0 %v3011
      %3354 = vmatpush2.bf16.msra.mxu0 %v3010
      %3355 = vmatprep.mubr.bf16.mxu0 %v3225
      %3356 = vmatmul.mubr.bf16.gmra.mxu0 %v3224
      %v3357 = vpop.f32.mrf.mxu0
      %v3358 = vadd.f32 %v3315, %v3357
      %v3359 = vpop.f32.mrf.mxu0
      %v3360 = vadd.f32 %v3317, %v3359
      %v3361 = vpop.f32.mrf.mxu0
      %v3362 = vadd.f32 %v3319, %v3361
      %v3363 = vpop.f32.mrf.mxu0
      %v3364 = vadd.f32 %v3321, %v3363
      %3365 = vdwg.mxu0
      %3366 = vmatprep.subr.bf16.mxu0 0
      %3367 = vmatpush1.bf16.msra.mxu0 0
      %3368 = vmatprep.subr.bf16.mxu0 0
      %3369 = vmatpush1.bf16.msra.mxu0 0
      %3370 = vmatprep.subr.bf16.mxu0 0
      %3371 = vmatpush1.bf16.msra.mxu0 0
      %3372 = vmatprep.subr.bf16.mxu0 0
      %3373 = vmatpush1.bf16.msra.mxu0 0
      %3374 = vmatprep.subr.bf16.mxu0 0
      %3375 = vmatpush1.bf16.msra.mxu0 0
      %3376 = vmatprep.subr.bf16.mxu0 0
      %3377 = vmatpush1.bf16.msra.mxu0 0
      %3378 = vmatprep.subr.bf16.mxu0 %v3065
      %3379 = vmatpush1.bf16.msra.mxu0 %v3064
      %3380 = vmatprep.subr.bf16.mxu0 %v3059
      %3381 = vmatpush1.bf16.msra.mxu0 %v3058
      %3382 = vmatprep.subr.bf16.mxu0 0
      %3383 = vmatpush2.bf16.msra.mxu0 0
      %3384 = vmatprep.subr.bf16.mxu0 0
      %3385 = vmatpush2.bf16.msra.mxu0 0
      %3386 = vmatprep.subr.bf16.mxu0 0
      %3387 = vmatpush2.bf16.msra.mxu0 0
      %3388 = vmatprep.subr.bf16.mxu0 0
      %3389 = vmatpush2.bf16.msra.mxu0 0
      %3390 = vmatprep.subr.bf16.mxu0 0
      %3391 = vmatpush2.bf16.msra.mxu0 0
      %3392 = vmatprep.subr.bf16.mxu0 0
      %3393 = vmatpush2.bf16.msra.mxu0 0
      %3394 = vmatprep.subr.bf16.mxu0 0
      %3395 = vmatpush2.bf16.msra.mxu0 0
      %3396 = vmatprep.subr.bf16.mxu0 0
      %3397 = vmatpush2.bf16.msra.mxu0 0
      %3398 = vmatprep.mubr.bf16.mxu0 0
      %3399 = vmatmul.mubr.bf16.gmra.mxu0 %v3235
      %v3400 = vpop.f32.mrf.mxu0
      %v3401 = vadd.f32 %v3358, %v3400
      %v3402 = vpop.f32.mrf.mxu0
      %v3403 = vadd.f32 %v3360, %v3402
      %v3404 = vpop.f32.mrf.mxu0
      %v3405 = vadd.f32 %v3362, %v3404
      %v3406 = vpop.f32.mrf.mxu0
      %v3407 = vadd.f32 %v3364, %v3406
      %3408 = vdwg.mxu0
      %3409 = vmatprep.subr.bf16.mxu0 %v2038
      %3410 = vmatpush1.bf16.msra.mxu0 %v2037
      %3411 = vmatprep.subr.bf16.mxu0 %v2033
      %3412 = vmatpush1.bf16.msra.mxu0 %v2032
      %3413 = vmatprep.subr.bf16.mxu0 %v1993
      %3414 = vmatpush1.bf16.msra.mxu0 %v1992
      %3415 = vmatprep.subr.bf16.mxu0 %v1988
      %3416 = vmatpush1.bf16.msra.mxu0 %v1987
      %3417 = vmatprep.subr.bf16.mxu0 %v1948
      %3418 = vmatpush1.bf16.msra.mxu0 %v1947
      %3419 = vmatprep.subr.bf16.mxu0 %v1943
      %3420 = vmatpush1.bf16.msra.mxu0 %v1942
      %3421 = vmatprep.subr.bf16.mxu0 %v1894
      %3422 = vmatpush1.bf16.msra.mxu0 %v1893
      %3423 = vmatprep.subr.bf16.mxu0 %v1889
      %3424 = vmatpush1.bf16.msra.mxu0 %v1888
      %3425 = vmatprep.subr.bf16.mxu0 %v2235
      %3426 = vmatpush2.bf16.msra.mxu0 %v2234
      %3427 = vmatprep.subr.bf16.mxu0 %v2229
      %3428 = vmatpush2.bf16.msra.mxu0 %v2228
      %3429 = vmatprep.subr.bf16.mxu0 %v2184
      %3430 = vmatpush2.bf16.msra.mxu0 %v2183
      %3431 = vmatprep.subr.bf16.mxu0 %v2178
      %3432 = vmatpush2.bf16.msra.mxu0 %v2177
      %3433 = vmatprep.subr.bf16.mxu0 %v2133
      %3434 = vmatpush2.bf16.msra.mxu0 %v2132
      %3435 = vmatprep.subr.bf16.mxu0 %v2127
      %3436 = vmatpush2.bf16.msra.mxu0 %v2126
      %3437 = vmatprep.subr.bf16.mxu0 %v2083
      %3438 = vmatpush2.bf16.msra.mxu0 %v2082
      %3439 = vmatprep.subr.bf16.mxu0 %v2078
      %3440 = vmatpush2.bf16.msra.mxu0 %v2077
      %3441 = vmatprep.mubr.bf16.mxu0 %v3221
      %3442 = vmatmul.mubr.bf16.gmra.mxu0 %v3220
      %v3443 = vpop.f32.mrf.mxu0
      %v3444 = vadd.f32 %v3191, %v3443
      %v3445 = vpop.f32.mrf.mxu0
      %v3446 = vadd.f32 %v3191, %v3445
      %v3447 = vpop.f32.mrf.mxu0
      %v3448 = vadd.f32 %v3196, %v3447
      %v3449 = vpop.f32.mrf.mxu0
      %v3450 = vadd.f32 %v3196, %v3449
      %3451 = vdwg.mxu0
      %3452 = vmatprep.subr.bf16.mxu0 %v2439
      %3453 = vmatpush1.bf16.msra.mxu0 %v2438
      %3454 = vmatprep.subr.bf16.mxu0 %v2433
      %3455 = vmatpush1.bf16.msra.mxu0 %v2432
      %3456 = vmatprep.subr.bf16.mxu0 %v2388
      %3457 = vmatpush1.bf16.msra.mxu0 %v2387
      %3458 = vmatprep.subr.bf16.mxu0 %v2382
      %3459 = vmatpush1.bf16.msra.mxu0 %v2381
      %3460 = vmatprep.subr.bf16.mxu0 %v2337
      %3461 = vmatpush1.bf16.msra.mxu0 %v2336
      %3462 = vmatprep.subr.bf16.mxu0 %v2331
      %3463 = vmatpush1.bf16.msra.mxu0 %v2330
      %3464 = vmatprep.subr.bf16.mxu0 %v2286
      %3465 = vmatpush1.bf16.msra.mxu0 %v2285
      %3466 = vmatprep.subr.bf16.mxu0 %v2280
      %3467 = vmatpush1.bf16.msra.mxu0 %v2279
      %3468 = vmatprep.subr.bf16.mxu0 %v2643
      %3469 = vmatpush2.bf16.msra.mxu0 %v2642
      %3470 = vmatprep.subr.bf16.mxu0 %v2637
      %3471 = vmatpush2.bf16.msra.mxu0 %v2636
      %3472 = vmatprep.subr.bf16.mxu0 %v2592
      %3473 = vmatpush2.bf16.msra.mxu0 %v2591
      %3474 = vmatprep.subr.bf16.mxu0 %v2586
      %3475 = vmatpush2.bf16.msra.mxu0 %v2585
      %3476 = vmatprep.subr.bf16.mxu0 %v2541
      %3477 = vmatpush2.bf16.msra.mxu0 %v2540
      %3478 = vmatprep.subr.bf16.mxu0 %v2535
      %3479 = vmatpush2.bf16.msra.mxu0 %v2534
      %3480 = vmatprep.subr.bf16.mxu0 %v2490
      %3481 = vmatpush2.bf16.msra.mxu0 %v2489
      %3482 = vmatprep.subr.bf16.mxu0 %v2484
      %3483 = vmatpush2.bf16.msra.mxu0 %v2483
      %3484 = vmatprep.mubr.bf16.mxu0 %v3223
      %3485 = vmatmul.mubr.bf16.gmra.mxu0 %v3222
      %v3486 = vpop.f32.mrf.mxu0
      %v3487 = vadd.f32 %v3444, %v3486
      %v3488 = vpop.f32.mrf.mxu0
      %v3489 = vadd.f32 %v3446, %v3488
      %v3490 = vpop.f32.mrf.mxu0
      %v3491 = vadd.f32 %v3448, %v3490
      %v3492 = vpop.f32.mrf.mxu0
      %v3493 = vadd.f32 %v3450, %v3492
      %3494 = vdwg.mxu0
      %3495 = vmatprep.subr.bf16.mxu0 %v3007
      %3496 = vmatpush1.bf16.msra.mxu0 %v3006
      %3497 = vmatprep.subr.bf16.mxu0 %v3001
      %3498 = vmatpush1.bf16.msra.mxu0 %v3000
      %3499 = vmatprep.subr.bf16.mxu0 %v2995
      %3500 = vmatpush1.bf16.msra.mxu0 %v2994
      %3501 = vmatprep.subr.bf16.mxu0 %v2989
      %3502 = vmatpush1.bf16.msra.mxu0 %v2988
      %3503 = vmatprep.subr.bf16.mxu0 %v2983
      %3504 = vmatpush1.bf16.msra.mxu0 %v2982
      %3505 = vmatprep.subr.bf16.mxu0 %v2977
      %3506 = vmatpush1.bf16.msra.mxu0 %v2976
      %3507 = vmatprep.subr.bf16.mxu0 %v2971
      %3508 = vmatpush1.bf16.msra.mxu0 %v2970
      %3509 = vmatprep.subr.bf16.mxu0 %v2965
      %3510 = vmatpush1.bf16.msra.mxu0 %v2964
      %3511 = vmatprep.subr.bf16.mxu0 %v3055
      %3512 = vmatpush2.bf16.msra.mxu0 %v3054
      %3513 = vmatprep.subr.bf16.mxu0 %v3049
      %3514 = vmatpush2.bf16.msra.mxu0 %v3048
      %3515 = vmatprep.subr.bf16.mxu0 %v3043
      %3516 = vmatpush2.bf16.msra.mxu0 %v3042
      %3517 = vmatprep.subr.bf16.mxu0 %v3037
      %3518 = vmatpush2.bf16.msra.mxu0 %v3036
      %3519 = vmatprep.subr.bf16.mxu0 %v3031
      %3520 = vmatpush2.bf16.msra.mxu0 %v3030
      %3521 = vmatprep.subr.bf16.mxu0 %v3025
      %3522 = vmatpush2.bf16.msra.mxu0 %v3024
      %3523 = vmatprep.subr.bf16.mxu0 %v3019
      %3524 = vmatpush2.bf16.msra.mxu0 %v3018
      %3525 = vmatprep.subr.bf16.mxu0 %v3013
      %3526 = vmatpush2.bf16.msra.mxu0 %v3012
      %3527 = vmatprep.mubr.bf16.mxu0 %v3225
      %3528 = vmatmul.mubr.bf16.gmra.mxu0 %v3224
      %v3529 = vpop.f32.mrf.mxu0
      %v3530 = vadd.f32 %v3487, %v3529
      %v3531 = vpop.f32.mrf.mxu0
      %v3532 = vadd.f32 %v3489, %v3531
      %v3533 = vpop.f32.mrf.mxu0
      %v3534 = vadd.f32 %v3491, %v3533
      %v3535 = vpop.f32.mrf.mxu0
      %v3536 = vadd.f32 %v3493, %v3535
      %3537 = vdwg.mxu0
      %3538 = vmatprep.subr.bf16.mxu0 0
      %3539 = vmatpush1.bf16.msra.mxu0 0
      %3540 = vmatprep.subr.bf16.mxu0 0
      %3541 = vmatpush1.bf16.msra.mxu0 0
      %3542 = vmatprep.subr.bf16.mxu0 0
      %3543 = vmatpush1.bf16.msra.mxu0 0
      %3544 = vmatprep.subr.bf16.mxu0 0
      %3545 = vmatpush1.bf16.msra.mxu0 0
      %3546 = vmatprep.subr.bf16.mxu0 0
      %3547 = vmatpush1.bf16.msra.mxu0 0
      %3548 = vmatprep.subr.bf16.mxu0 0
      %3549 = vmatpush1.bf16.msra.mxu0 0
      %3550 = vmatprep.subr.bf16.mxu0 %v3067
      %3551 = vmatpush1.bf16.msra.mxu0 %v3066
      %3552 = vmatprep.subr.bf16.mxu0 %v3061
      %3553 = vmatpush1.bf16.msra.mxu0 %v3060
      %3554 = vmatprep.subr.bf16.mxu0 0
      %3555 = vmatpush2.bf16.msra.mxu0 0
      %3556 = vmatprep.subr.bf16.mxu0 0
      %3557 = vmatpush2.bf16.msra.mxu0 0
      %3558 = vmatprep.subr.bf16.mxu0 0
      %3559 = vmatpush2.bf16.msra.mxu0 0
      %3560 = vmatprep.subr.bf16.mxu0 0
      %3561 = vmatpush2.bf16.msra.mxu0 0
      %3562 = vmatprep.subr.bf16.mxu0 0
      %3563 = vmatpush2.bf16.msra.mxu0 0
      %3564 = vmatprep.subr.bf16.mxu0 0
      %3565 = vmatpush2.bf16.msra.mxu0 0
      %3566 = vmatprep.subr.bf16.mxu0 0
      %3567 = vmatpush2.bf16.msra.mxu0 0
      %3568 = vmatprep.subr.bf16.mxu0 0
      %3569 = vmatpush2.bf16.msra.mxu0 0
      %3570 = vmatprep.mubr.bf16.mxu0 0
      %3571 = vmatmul.mubr.bf16.gmra.mxu0 %v3235
      %v3572 = vpop.f32.mrf.mxu0
      %v3573 = vadd.f32 %v3530, %v3572
      %v3574 = vpop.f32.mrf.mxu0
      %v3575 = vadd.f32 %v3532, %v3574
      %v3576 = vpop.f32.mrf.mxu0
      %v3577 = vadd.f32 %v3534, %v3576
      %v3578 = vpop.f32.mrf.mxu0
      %v3579 = vadd.f32 %v3536, %v3578
      %3580 = vdwg.mxu0
      %3581 = vmatprep.subr.bf16.mxu0 %v2028
      %3582 = vmatpush1.bf16.msra.mxu0 %v2039
      %3583 = vmatprep.subr.bf16.mxu0 %v2018
      %3584 = vmatpush1.bf16.msra.mxu0 %v2034
      %3585 = vmatprep.subr.bf16.mxu0 %v1983
      %3586 = vmatpush1.bf16.msra.mxu0 %v1994
      %3587 = vmatprep.subr.bf16.mxu0 %v1973
      %3588 = vmatpush1.bf16.msra.mxu0 %v1989
      %3589 = vmatprep.subr.bf16.mxu0 %v1938
      %3590 = vmatpush1.bf16.msra.mxu0 %v1949
      %3591 = vmatprep.subr.bf16.mxu0 %v1928
      %3592 = vmatpush1.bf16.msra.mxu0 %v1944
      %3593 = vmatprep.subr.bf16.mxu0 %v1896
      %3594 = vmatpush1.bf16.msra.mxu0 %v1895
      %3595 = vmatprep.subr.bf16.mxu0 %v1891
      %3596 = vmatpush1.bf16.msra.mxu0 %v1890
      %3597 = vmatprep.subr.bf16.mxu0 %v2237
      %3598 = vmatpush2.bf16.msra.mxu0 %v2236
      %3599 = vmatprep.subr.bf16.mxu0 %v2231
      %3600 = vmatpush2.bf16.msra.mxu0 %v2230
      %3601 = vmatprep.subr.bf16.mxu0 %v2186
      %3602 = vmatpush2.bf16.msra.mxu0 %v2185
      %3603 = vmatprep.subr.bf16.mxu0 %v2180
      %3604 = vmatpush2.bf16.msra.mxu0 %v2179
      %3605 = vmatprep.subr.bf16.mxu0 %v2135
      %3606 = vmatpush2.bf16.msra.mxu0 %v2134
      %3607 = vmatprep.subr.bf16.mxu0 %v2129
      %3608 = vmatpush2.bf16.msra.mxu0 %v2128
      %3609 = vmatprep.subr.bf16.mxu0 %v2073
      %3610 = vmatpush2.bf16.msra.mxu0 %v2084
      %3611 = vmatprep.subr.bf16.mxu0 %v2063
      %3612 = vmatpush2.bf16.msra.mxu0 %v2079
      %3613 = vmatprep.mubr.bf16.mxu0 %v3221
      %3614 = vmatmul.mubr.bf16.gmra.mxu0 %v3220
      %v3615 = vpop.f32.mrf.mxu0
      %v3616 = vadd.f32 %v3191, %v3615
      %v3617 = vpop.f32.mrf.mxu0
      %v3618 = vadd.f32 %v3191, %v3617
      %v3619 = vpop.f32.mrf.mxu0
      %v3620 = vadd.f32 %v3196, %v3619
      %v3621 = vpop.f32.mrf.mxu0
      %v3622 = vadd.f32 %v3196, %v3621
      %3623 = vdwg.mxu0
      %3624 = vmatprep.subr.bf16.mxu0 %v2441
      %3625 = vmatpush1.bf16.msra.mxu0 %v2440
      %3626 = vmatprep.subr.bf16.mxu0 %v2435
      %3627 = vmatpush1.bf16.msra.mxu0 %v2434
      %3628 = vmatprep.subr.bf16.mxu0 %v2390
      %3629 = vmatpush1.bf16.msra.mxu0 %v2389
      %3630 = vmatprep.subr.bf16.mxu0 %v2384
      %3631 = vmatpush1.bf16.msra.mxu0 %v2383
      %3632 = vmatprep.subr.bf16.mxu0 %v2339
      %3633 = vmatpush1.bf16.msra.mxu0 %v2338
      %3634 = vmatprep.subr.bf16.mxu0 %v2333
      %3635 = vmatpush1.bf16.msra.mxu0 %v2332
      %3636 = vmatprep.subr.bf16.mxu0 %v2288
      %3637 = vmatpush1.bf16.msra.mxu0 %v2287
      %3638 = vmatprep.subr.bf16.mxu0 %v2282
      %3639 = vmatpush1.bf16.msra.mxu0 %v2281
      %3640 = vmatprep.subr.bf16.mxu0 %v2645
      %3641 = vmatpush2.bf16.msra.mxu0 %v2644
      %3642 = vmatprep.subr.bf16.mxu0 %v2639
      %3643 = vmatpush2.bf16.msra.mxu0 %v2638
      %3644 = vmatprep.subr.bf16.mxu0 %v2594
      %3645 = vmatpush2.bf16.msra.mxu0 %v2593
      %3646 = vmatprep.subr.bf16.mxu0 %v2588
      %3647 = vmatpush2.bf16.msra.mxu0 %v2587
      %3648 = vmatprep.subr.bf16.mxu0 %v2543
      %3649 = vmatpush2.bf16.msra.mxu0 %v2542
      %3650 = vmatprep.subr.bf16.mxu0 %v2537
      %3651 = vmatpush2.bf16.msra.mxu0 %v2536
      %3652 = vmatprep.subr.bf16.mxu0 %v2492
      %3653 = vmatpush2.bf16.msra.mxu0 %v2491
      %3654 = vmatprep.subr.bf16.mxu0 %v2486
      %3655 = vmatpush2.bf16.msra.mxu0 %v2485
      %3656 = vmatprep.mubr.bf16.mxu0 %v3223
      %3657 = vmatmul.mubr.bf16.gmra.mxu0 %v3222
      %v3658 = vpop.f32.mrf.mxu0
      %v3659 = vadd.f32 %v3616, %v3658
      %v3660 = vpop.f32.mrf.mxu0
      %v3661 = vadd.f32 %v3618, %v3660
      %v3662 = vpop.f32.mrf.mxu0
      %v3663 = vadd.f32 %v3620, %v3662
      %v3664 = vpop.f32.mrf.mxu0
      %v3665 = vadd.f32 %v3622, %v3664
      %3666 = vdwg.mxu0
      %3667 = vmatprep.subr.bf16.mxu0 %v3009
      %3668 = vmatpush1.bf16.msra.mxu0 %v3008
      %3669 = vmatprep.subr.bf16.mxu0 %v3003
      %3670 = vmatpush1.bf16.msra.mxu0 %v3002
      %3671 = vmatprep.subr.bf16.mxu0 %v2997
      %3672 = vmatpush1.bf16.msra.mxu0 %v2996
      %3673 = vmatprep.subr.bf16.mxu0 %v2991
      %3674 = vmatpush1.bf16.msra.mxu0 %v2990
      %3675 = vmatprep.subr.bf16.mxu0 %v2985
      %3676 = vmatpush1.bf16.msra.mxu0 %v2984
      %3677 = vmatprep.subr.bf16.mxu0 %v2979
      %3678 = vmatpush1.bf16.msra.mxu0 %v2978
      %3679 = vmatprep.subr.bf16.mxu0 %v2973
      %3680 = vmatpush1.bf16.msra.mxu0 %v2972
      %3681 = vmatprep.subr.bf16.mxu0 %v2967
      %3682 = vmatpush1.bf16.msra.mxu0 %v2966
      %3683 = vmatprep.subr.bf16.mxu0 %v3057
      %3684 = vmatpush2.bf16.msra.mxu0 %v3056
      %3685 = vmatprep.subr.bf16.mxu0 %v3051
      %3686 = vmatpush2.bf16.msra.mxu0 %v3050
      %3687 = vmatprep.subr.bf16.mxu0 %v3045
      %3688 = vmatpush2.bf16.msra.mxu0 %v3044
      %3689 = vmatprep.subr.bf16.mxu0 %v3039
      %3690 = vmatpush2.bf16.msra.mxu0 %v3038
      %3691 = vmatprep.subr.bf16.mxu0 %v3033
      %3692 = vmatpush2.bf16.msra.mxu0 %v3032
      %3693 = vmatprep.subr.bf16.mxu0 %v3027
      %3694 = vmatpush2.bf16.msra.mxu0 %v3026
      %3695 = vmatprep.subr.bf16.mxu0 %v3021
      %3696 = vmatpush2.bf16.msra.mxu0 %v3020
      %3697 = vmatprep.subr.bf16.mxu0 %v3015
      %3698 = vmatpush2.bf16.msra.mxu0 %v3014
      %3699 = vmatprep.mubr.bf16.mxu0 %v3225
      %3700 = vmatmul.mubr.bf16.gmra.mxu0 %v3224
      %v3701 = vpop.f32.mrf.mxu0
      %v3702 = vadd.f32 %v3659, %v3701
      %v3703 = vpop.f32.mrf.mxu0
      %v3704 = vadd.f32 %v3661, %v3703
      %v3705 = vpop.f32.mrf.mxu0
      %v3706 = vadd.f32 %v3663, %v3705
      %v3707 = vpop.f32.mrf.mxu0
      %v3708 = vadd.f32 %v3665, %v3707
      %3709 = vdwg.mxu0
      %3710 = vmatprep.subr.bf16.mxu0 0
      %3711 = vmatpush1.bf16.msra.mxu0 0
      %3712 = vmatprep.subr.bf16.mxu0 0
      %3713 = vmatpush1.bf16.msra.mxu0 0
      %3714 = vmatprep.subr.bf16.mxu0 0
      %3715 = vmatpush1.bf16.msra.mxu0 0
      %3716 = vmatprep.subr.bf16.mxu0 0
      %3717 = vmatpush1.bf16.msra.mxu0 0
      %3718 = vmatprep.subr.bf16.mxu0 0
      %3719 = vmatpush1.bf16.msra.mxu0 0
      %3720 = vmatprep.subr.bf16.mxu0 0
      %3721 = vmatpush1.bf16.msra.mxu0 0
      %3722 = vmatprep.subr.bf16.mxu0 %v3069
      %3723 = vmatpush1.bf16.msra.mxu0 %v3068
      %3724 = vmatprep.subr.bf16.mxu0 %v3063
      %3725 = vmatpush1.bf16.msra.mxu0 %v3062
      %3726 = vmatprep.subr.bf16.mxu0 0
      %3727 = vmatpush2.bf16.msra.mxu0 0
      %3728 = vmatprep.subr.bf16.mxu0 0
      %3729 = vmatpush2.bf16.msra.mxu0 0
      %3730 = vmatprep.subr.bf16.mxu0 0
      %3731 = vmatpush2.bf16.msra.mxu0 0
      %3732 = vmatprep.subr.bf16.mxu0 0
      %3733 = vmatpush2.bf16.msra.mxu0 0
      %3734 = vmatprep.subr.bf16.mxu0 0
      %3735 = vmatpush2.bf16.msra.mxu0 0
      %3736 = vmatprep.subr.bf16.mxu0 0
      %3737 = vmatpush2.bf16.msra.mxu0 0
      %3738 = vmatprep.subr.bf16.mxu0 0
      %3739 = vmatpush2.bf16.msra.mxu0 0
      %3740 = vmatprep.subr.bf16.mxu0 0
      %3741 = vmatpush2.bf16.msra.mxu0 0
      %3742 = vmatprep.mubr.bf16.mxu0 0
      %3743 = vmatmul.mubr.bf16.gmra.mxu0 %v3235
      %v3744 = vpop.f32.mrf.mxu0
      %v3745 = vadd.f32 %v3702, %v3744
      %v3746 = vpop.f32.mrf.mxu0
      %v3747 = vadd.f32 %v3704, %v3746
      %v3748 = vpop.f32.mrf.mxu0
      %v3749 = vadd.f32 %v3706, %v3748
      %v3750 = vpop.f32.mrf.mxu0
      %v3751 = vadd.f32 %v3708, %v3750
      %3752 = vdwg.mxu0
      %v3753 = vmax.f32 %v3401, 0.0
      %v3754 = vmax.f32 %v3403, 0.0
      %v3755 = vmax.f32 %v3573, 0.0
      %v3756 = vmax.f32 %v3575, 0.0
      %v3757 = vmax.f32 %v3745, 0.0
      %v3758 = vmax.f32 %v3747, 0.0
      %v3759 = vmax.f32 %v3405, 0.0
      %v3760 = vmax.f32 %v3407, 0.0
      %v3761 = vmax.f32 %v3577, 0.0
      %v3762 = vmax.f32 %v3579, 0.0
      %v3763 = vmax.f32 %v3749, 0.0
      %v3764 = vmax.f32 %v3751, 0.0
      %v3765 = vld [vmem:[%s6] sm:$0x3f]
      %v3767 = vlaneseq
      %v3768 = vshrl.u32 %v3767, 7
      %v3769 = vsub.s32 0, %v3768
      %v3770 = vrot.slane %v3765, %v3769
      %v3771 = vlaneseq
      %v3772 = vshrl.u32 %v3771, 7
      %v3773 = vsub.s32 1, %v3772
      %v3774 = vrot.slane %v3765, %v3773
      %v3775 = vlaneseq
      %v3776 = vshrl.u32 %v3775, 7
      %v3777 = vsub.s32 2, %v3776
      %v3778 = vrot.slane %v3765, %v3777
      %v3779 = vlaneseq
      %v3780 = vshrl.u32 %v3779, 7
      %v3781 = vsub.s32 3, %v3780
      %v3782 = vrot.slane %v3765, %v3781
      %v3783 = vlaneseq
      %v3784 = vshrl.u32 %v3783, 7
      %v3785 = vsub.s32 4, %v3784
      %v3786 = vrot.slane %v3765, %v3785
      %v3787 = vlaneseq
      %v3788 = vshrl.u32 %v3787, 7
      %v3789 = vsub.s32 5, %v3788
      %v3790 = vrot.slane %v3765, %v3789
      %v3797 = vmul.f32 %v3753, %v3770
      %v3798 = vmul.f32 %v3754, %v3774
      %v3799 = vmul.f32 %v3755, %v3778
      %v3800 = vmul.f32 %v3756, %v3782
      %v3801 = vmul.f32 %v3757, %v3786
      %v3802 = vmul.f32 %v3758, %v3790
      %v3803 = vmul.f32 %v3759, %v3770
      %v3804 = vmul.f32 %v3760, %v3774
      %v3805 = vmul.f32 %v3761, %v3778
      %v3806 = vmul.f32 %v3762, %v3782
      %v3807 = vmul.f32 %v3763, %v3786
      %v3808 = vmul.f32 %v3764, %v3790
      %v3809 = vpack.c.bf16 %v3803, %v3797
      %v3810 = vpack.c.bf16 %v3804, %v3798
      %v3811 = vpack.c.bf16 %v3805, %v3799
      %v3812 = vpack.c.bf16 %v3806, %v3800
      %v3813 = vpack.c.bf16 %v3807, %v3801
      %v3814 = vpack.c.bf16 %v3808, %v3802
      %3821 = vrot.lane.b32.xlu0 %v3809, 4
      %v3822 = vpop.permute.xlu0 %3821
      %3823 = vrot.lane.b32.xlu0 %v3810, 4
      %v3824 = vpop.permute.xlu0 %3823
      %3825 = vrot.lane.b32.xlu0 %v3811, 4
      %v3826 = vpop.permute.xlu0 %3825
      %3827 = vrot.lane.b32.xlu0 %v3812, 4
      %v3828 = vpop.permute.xlu0 %3827
      %3829 = vrot.lane.b32.xlu0 %v3813, 4
      %v3830 = vpop.permute.xlu0 %3829
      %3831 = vrot.lane.b32.xlu0 %v3814, 4
      %v3832 = vpop.permute.xlu0 %3831
      %v3833 = vsel %vm1887, %v3822, %v3824
      %v3834 = vsel %vm1887, %v3824, %v3826
      %v3835 = vsel %vm1887, %v3826, %v3828
      %v3836 = vsel %vm1887, %v3828, %v3830
      %v3837 = vsel %vm1887, %v3830, %v3832
      %v3843 = vsel %vm1906, 0, %v3822
      %vm3845 = vcmask 1014784
      %v3847 = vsel %vm3845, %v3837, 0
      %3851 = vrot.lane.b32.xlu0 %v3843, 127
      %v3852 = vpop.permute.xlu0 %3851
      %3853 = vrot.lane.b32.xlu0 %v3833, 127
      %v3854 = vpop.permute.xlu0 %3853
      %3855 = vrot.lane.b32.xlu0 %v3834, 127
      %v3856 = vpop.permute.xlu0 %3855
      %3857 = vrot.lane.b32.xlu0 %v3835, 127
      %v3858 = vpop.permute.xlu0 %3857
      %3859 = vrot.lane.b32.xlu0 %v3836, 127
      %v3860 = vpop.permute.xlu0 %3859
      %3861 = vrot.lane.b32.xlu0 %v3847, 127
      %v3862 = vpop.permute.xlu0 %3861
      %v3863 = vsel %vm1939, %v1918, %v3852
      %v3864 = vsel %vm1939, %v3852, %v3854
      %v3865 = vsel %vm1939, %v3854, %v3856
      %v3866 = vsel %vm1939, %v3856, %v3858
      %v3867 = vsel %vm1939, %v3858, %v3860
      %v3868 = vsel %vm1939, %v3860, %v3862
      %v3869 = vsel %vm1939, %v3862, %v1918
      %3877 = vrot.lane.b32.xlu0 %v3843, 126
      %v3878 = vpop.permute.xlu0 %3877
      %3879 = vrot.lane.b32.xlu0 %v3833, 126
      %v3880 = vpop.permute.xlu0 %3879
      %3881 = vrot.lane.b32.xlu0 %v3834, 126
      %v3882 = vpop.permute.xlu0 %3881
      %3883 = vrot.lane.b32.xlu0 %v3835, 126
      %v3884 = vpop.permute.xlu0 %3883
      %3885 = vrot.lane.b32.xlu0 %v3836, 126
      %v3886 = vpop.permute.xlu0 %3885
      %3887 = vrot.lane.b32.xlu0 %v3847, 126
      %v3888 = vpop.permute.xlu0 %3887
      %v3889 = vsel %vm1984, %v1963, %v3878
      %v3890 = vsel %vm1984, %v3878, %v3880
      %v3891 = vsel %vm1984, %v3880, %v3882
      %v3892 = vsel %vm1984, %v3882, %v3884
      %v3893 = vsel %vm1984, %v3884, %v3886
      %v3894 = vsel %vm1984, %v3886, %v3888
      %v3895 = vsel %vm1984, %v3888, %v1963
      %3903 = vrot.lane.b32.xlu0 %v3843, 125
      %v3904 = vpop.permute.xlu0 %3903
      %3905 = vrot.lane.b32.xlu0 %v3833, 125
      %v3906 = vpop.permute.xlu0 %3905
      %3907 = vrot.lane.b32.xlu0 %v3834, 125
      %v3908 = vpop.permute.xlu0 %3907
      %3909 = vrot.lane.b32.xlu0 %v3835, 125
      %v3910 = vpop.permute.xlu0 %3909
      %3911 = vrot.lane.b32.xlu0 %v3836, 125
      %v3912 = vpop.permute.xlu0 %3911
      %3913 = vrot.lane.b32.xlu0 %v3847, 125
      %v3914 = vpop.permute.xlu0 %3913
      %v3915 = vsel %vm2029, %v2008, %v3904
      %v3916 = vsel %vm2029, %v3904, %v3906
      %v3917 = vsel %vm2029, %v3906, %v3908
      %v3918 = vsel %vm2029, %v3908, %v3910
      %v3919 = vsel %vm2029, %v3910, %v3912
      %v3920 = vsel %vm2029, %v3912, %v3914
      %v3921 = vsel %vm2029, %v3914, %v2008
      %3929 = vrot.lane.b32.xlu0 %v3843, 124
      %v3930 = vpop.permute.xlu0 %3929
      %3931 = vrot.lane.b32.xlu0 %v3833, 124
      %v3932 = vpop.permute.xlu0 %3931
      %3933 = vrot.lane.b32.xlu0 %v3834, 124
      %v3934 = vpop.permute.xlu0 %3933
      %3935 = vrot.lane.b32.xlu0 %v3835, 124
      %v3936 = vpop.permute.xlu0 %3935
      %3937 = vrot.lane.b32.xlu0 %v3836, 124
      %v3938 = vpop.permute.xlu0 %3937
      %3939 = vrot.lane.b32.xlu0 %v3847, 124
      %v3940 = vpop.permute.xlu0 %3939
      %v3941 = vsel %vm2074, %v2053, %v3930
      %v3942 = vsel %vm2074, %v3930, %v3932
      %v3943 = vsel %vm2074, %v3932, %v3934
      %v3944 = vsel %vm2074, %v3934, %v3936
      %v3945 = vsel %vm2074, %v3936, %v3938
      %v3946 = vsel %vm2074, %v3938, %v3940
      %v3947 = vsel %vm2074, %v3940, %v2053
      %3955 = vrot.lane.b32.xlu0 %v3843, 96
      %v3956 = vpop.permute.xlu0 %3955
      %3957 = vrot.lane.b32.xlu0 %v3833, 96
      %v3958 = vpop.permute.xlu0 %3957
      %3959 = vrot.lane.b32.xlu0 %v3834, 96
      %v3960 = vpop.permute.xlu0 %3959
      %3961 = vrot.lane.b32.xlu0 %v3835, 96
      %v3962 = vpop.permute.xlu0 %3961
      %3963 = vrot.lane.b32.xlu0 %v3836, 96
      %v3964 = vpop.permute.xlu0 %3963
      %3965 = vrot.lane.b32.xlu0 %v3847, 96
      %v3966 = vpop.permute.xlu0 %3965
      %v3967 = vsel %vm2123, %v2098, %v3956
      %v3968 = vsel %vm2123, %v3956, %v3958
      %v3969 = vsel %vm2123, %v3958, %v3960
      %v3970 = vsel %vm2123, %v3960, %v3962
      %v3971 = vsel %vm2123, %v3962, %v3964
      %v3972 = vsel %vm2123, %v3964, %v3966
      %v3973 = vsel %vm2123, %v3966, %v2098
      %3981 = vrot.lane.b32.xlu0 %v3843, 95
      %v3982 = vpop.permute.xlu0 %3981
      %3983 = vrot.lane.b32.xlu0 %v3833, 95
      %v3984 = vpop.permute.xlu0 %3983
      %3985 = vrot.lane.b32.xlu0 %v3834, 95
      %v3986 = vpop.permute.xlu0 %3985
      %3987 = vrot.lane.b32.xlu0 %v3835, 95
      %v3988 = vpop.permute.xlu0 %3987
      %3989 = vrot.lane.b32.xlu0 %v3836, 95
      %v3990 = vpop.permute.xlu0 %3989
      %3991 = vrot.lane.b32.xlu0 %v3847, 95
      %v3992 = vpop.permute.xlu0 %3991
      %v3993 = vsel %vm2174, %v2149, %v3982
      %v3994 = vsel %vm2174, %v3982, %v3984
      %v3995 = vsel %vm2174, %v3984, %v3986
      %v3996 = vsel %vm2174, %v3986, %v3988
      %v3997 = vsel %vm2174, %v3988, %v3990
      %v3998 = vsel %vm2174, %v3990, %v3992
      %v3999 = vsel %vm2174, %v3992, %v2149
      %4007 = vrot.lane.b32.xlu0 %v3843, 94
      %v4008 = vpop.permute.xlu0 %4007
      %4009 = vrot.lane.b32.xlu0 %v3833, 94
      %v4010 = vpop.permute.xlu0 %4009
      %4011 = vrot.lane.b32.xlu0 %v3834, 94
      %v4012 = vpop.permute.xlu0 %4011
      %4013 = vrot.lane.b32.xlu0 %v3835, 94
      %v4014 = vpop.permute.xlu0 %4013
      %4015 = vrot.lane.b32.xlu0 %v3836, 94
      %v4016 = vpop.permute.xlu0 %4015
      %4017 = vrot.lane.b32.xlu0 %v3847, 94
      %v4018 = vpop.permute.xlu0 %4017
      %v4019 = vsel %vm2225, %v2200, %v4008
      %v4020 = vsel %vm2225, %v4008, %v4010
      %v4021 = vsel %vm2225, %v4010, %v4012
      %v4022 = vsel %vm2225, %v4012, %v4014
      %v4023 = vsel %vm2225, %v4014, %v4016
      %v4024 = vsel %vm2225, %v4016, %v4018
      %v4025 = vsel %vm2225, %v4018, %v2200
      %4033 = vrot.lane.b32.xlu0 %v3843, 93
      %v4034 = vpop.permute.xlu0 %4033
      %4035 = vrot.lane.b32.xlu0 %v3833, 93
      %v4036 = vpop.permute.xlu0 %4035
      %4037 = vrot.lane.b32.xlu0 %v3834, 93
      %v4038 = vpop.permute.xlu0 %4037
      %4039 = vrot.lane.b32.xlu0 %v3835, 93
      %v4040 = vpop.permute.xlu0 %4039
      %4041 = vrot.lane.b32.xlu0 %v3836, 93
      %v4042 = vpop.permute.xlu0 %4041
      %4043 = vrot.lane.b32.xlu0 %v3847, 93
      %v4044 = vpop.permute.xlu0 %4043
      %v4045 = vsel %vm2276, %v2251, %v4034
      %v4046 = vsel %vm2276, %v4034, %v4036
      %v4047 = vsel %vm2276, %v4036, %v4038
      %v4048 = vsel %vm2276, %v4038, %v4040
      %v4049 = vsel %vm2276, %v4040, %v4042
      %v4050 = vsel %vm2276, %v4042, %v4044
      %v4051 = vsel %vm2276, %v4044, %v2251
      %4059 = vrot.lane.b32.xlu0 %v3843, 92
      %v4060 = vpop.permute.xlu0 %4059
      %4061 = vrot.lane.b32.xlu0 %v3833, 92
      %v4062 = vpop.permute.xlu0 %4061
      %4063 = vrot.lane.b32.xlu0 %v3834, 92
      %v4064 = vpop.permute.xlu0 %4063
      %4065 = vrot.lane.b32.xlu0 %v3835, 92
      %v4066 = vpop.permute.xlu0 %4065
      %4067 = vrot.lane.b32.xlu0 %v3836, 92
      %v4068 = vpop.permute.xlu0 %4067
      %4069 = vrot.lane.b32.xlu0 %v3847, 92
      %v4070 = vpop.permute.xlu0 %4069
      %v4071 = vsel %vm2327, %v2302, %v4060
      %v4072 = vsel %vm2327, %v4060, %v4062
      %v4073 = vsel %vm2327, %v4062, %v4064
      %v4074 = vsel %vm2327, %v4064, %v4066
      %v4075 = vsel %vm2327, %v4066, %v4068
      %v4076 = vsel %vm2327, %v4068, %v4070
      %v4077 = vsel %vm2327, %v4070, %v2302
      %4085 = vrot.lane.b32.xlu0 %v3843, 64
      %v4086 = vpop.permute.xlu0 %4085
      %4087 = vrot.lane.b32.xlu0 %v3833, 64
      %v4088 = vpop.permute.xlu0 %4087
      %4089 = vrot.lane.b32.xlu0 %v3834, 64
      %v4090 = vpop.permute.xlu0 %4089
      %4091 = vrot.lane.b32.xlu0 %v3835, 64
      %v4092 = vpop.permute.xlu0 %4091
      %4093 = vrot.lane.b32.xlu0 %v3836, 64
      %v4094 = vpop.permute.xlu0 %4093
      %4095 = vrot.lane.b32.xlu0 %v3847, 64
      %v4096 = vpop.permute.xlu0 %4095
      %v4097 = vsel %vm2378, %v2353, %v4086
      %v4098 = vsel %vm2378, %v4086, %v4088
      %v4099 = vsel %vm2378, %v4088, %v4090
      %v4100 = vsel %vm2378, %v4090, %v4092
      %v4101 = vsel %vm2378, %v4092, %v4094
      %v4102 = vsel %vm2378, %v4094, %v4096
      %v4103 = vsel %vm2378, %v4096, %v2353
      %4111 = vrot.lane.b32.xlu0 %v3843, 63
      %v4112 = vpop.permute.xlu0 %4111
      %4113 = vrot.lane.b32.xlu0 %v3833, 63
      %v4114 = vpop.permute.xlu0 %4113
      %4115 = vrot.lane.b32.xlu0 %v3834, 63
      %v4116 = vpop.permute.xlu0 %4115
      %4117 = vrot.lane.b32.xlu0 %v3835, 63
      %v4118 = vpop.permute.xlu0 %4117
      %4119 = vrot.lane.b32.xlu0 %v3836, 63
      %v4120 = vpop.permute.xlu0 %4119
      %4121 = vrot.lane.b32.xlu0 %v3847, 63
      %v4122 = vpop.permute.xlu0 %4121
      %v4123 = vsel %vm2429, %v2404, %v4112
      %v4124 = vsel %vm2429, %v4112, %v4114
      %v4125 = vsel %vm2429, %v4114, %v4116
      %v4126 = vsel %vm2429, %v4116, %v4118
      %v4127 = vsel %vm2429, %v4118, %v4120
      %v4128 = vsel %vm2429, %v4120, %v4122
      %v4129 = vsel %vm2429, %v4122, %v2404
      %4137 = vrot.lane.b32.xlu0 %v3843, 62
      %v4138 = vpop.permute.xlu0 %4137
      %4139 = vrot.lane.b32.xlu0 %v3833, 62
      %v4140 = vpop.permute.xlu0 %4139
      %4141 = vrot.lane.b32.xlu0 %v3834, 62
      %v4142 = vpop.permute.xlu0 %4141
      %4143 = vrot.lane.b32.xlu0 %v3835, 62
      %v4144 = vpop.permute.xlu0 %4143
      %4145 = vrot.lane.b32.xlu0 %v3836, 62
      %v4146 = vpop.permute.xlu0 %4145
      %4147 = vrot.lane.b32.xlu0 %v3847, 62
      %v4148 = vpop.permute.xlu0 %4147
      %v4149 = vsel %vm2480, %v2455, %v4138
      %v4150 = vsel %vm2480, %v4138, %v4140
      %v4151 = vsel %vm2480, %v4140, %v4142
      %v4152 = vsel %vm2480, %v4142, %v4144
      %v4153 = vsel %vm2480, %v4144, %v4146
      %v4154 = vsel %vm2480, %v4146, %v4148
      %v4155 = vsel %vm2480, %v4148, %v2455
      %4163 = vrot.lane.b32.xlu0 %v3843, 61
      %v4164 = vpop.permute.xlu0 %4163
      %4165 = vrot.lane.b32.xlu0 %v3833, 61
      %v4166 = vpop.permute.xlu0 %4165
      %4167 = vrot.lane.b32.xlu0 %v3834, 61
      %v4168 = vpop.permute.xlu0 %4167
      %4169 = vrot.lane.b32.xlu0 %v3835, 61
      %v4170 = vpop.permute.xlu0 %4169
      %4171 = vrot.lane.b32.xlu0 %v3836, 61
      %v4172 = vpop.permute.xlu0 %4171
      %4173 = vrot.lane.b32.xlu0 %v3847, 61
      %v4174 = vpop.permute.xlu0 %4173
      %v4175 = vsel %vm2531, %v2506, %v4164
      %v4176 = vsel %vm2531, %v4164, %v4166
      %v4177 = vsel %vm2531, %v4166, %v4168
      %v4178 = vsel %vm2531, %v4168, %v4170
      %v4179 = vsel %vm2531, %v4170, %v4172
      %v4180 = vsel %vm2531, %v4172, %v4174
      %v4181 = vsel %vm2531, %v4174, %v2506
      %4189 = vrot.lane.b32.xlu0 %v3843, 60
      %v4190 = vpop.permute.xlu0 %4189
      %4191 = vrot.lane.b32.xlu0 %v3833, 60
      %v4192 = vpop.permute.xlu0 %4191
      %4193 = vrot.lane.b32.xlu0 %v3834, 60
      %v4194 = vpop.permute.xlu0 %4193
      %4195 = vrot.lane.b32.xlu0 %v3835, 60
      %v4196 = vpop.permute.xlu0 %4195
      %4197 = vrot.lane.b32.xlu0 %v3836, 60
      %v4198 = vpop.permute.xlu0 %4197
      %4199 = vrot.lane.b32.xlu0 %v3847, 60
      %v4200 = vpop.permute.xlu0 %4199
      %v4201 = vsel %vm2582, %v2557, %v4190
      %v4202 = vsel %vm2582, %v4190, %v4192
      %v4203 = vsel %vm2582, %v4192, %v4194
      %v4204 = vsel %vm2582, %v4194, %v4196
      %v4205 = vsel %vm2582, %v4196, %v4198
      %v4206 = vsel %vm2582, %v4198, %v4200
      %v4207 = vsel %vm2582, %v4200, %v2557
      %4215 = vrot.lane.b32.xlu0 %v3843, 32
      %v4216 = vpop.permute.xlu0 %4215
      %4217 = vrot.lane.b32.xlu0 %v3833, 32
      %v4218 = vpop.permute.xlu0 %4217
      %4219 = vrot.lane.b32.xlu0 %v3834, 32
      %v4220 = vpop.permute.xlu0 %4219
      %4221 = vrot.lane.b32.xlu0 %v3835, 32
      %v4222 = vpop.permute.xlu0 %4221
      %4223 = vrot.lane.b32.xlu0 %v3836, 32
      %v4224 = vpop.permute.xlu0 %4223
      %4225 = vrot.lane.b32.xlu0 %v3847, 32
      %v4226 = vpop.permute.xlu0 %4225
      %v4227 = vsel %vm2633, %v2608, %v4216
      %v4228 = vsel %vm2633, %v4216, %v4218
      %v4229 = vsel %vm2633, %v4218, %v4220
      %v4230 = vsel %vm2633, %v4220, %v4222
      %v4231 = vsel %vm2633, %v4222, %v4224
      %v4232 = vsel %vm2633, %v4224, %v4226
      %v4233 = vsel %vm2633, %v4226, %v2608
      %4241 = vrot.lane.b32.xlu0 %v3843, 97
      %v4242 = vpop.permute.xlu0 %4241
      %4243 = vrot.lane.b32.xlu0 %v3833, 97
      %v4244 = vpop.permute.xlu0 %4243
      %4245 = vrot.lane.b32.xlu0 %v3834, 97
      %v4246 = vpop.permute.xlu0 %4245
      %4247 = vrot.lane.b32.xlu0 %v3835, 97
      %v4248 = vpop.permute.xlu0 %4247
      %4249 = vrot.lane.b32.xlu0 %v3836, 97
      %v4250 = vpop.permute.xlu0 %4249
      %4251 = vrot.lane.b32.xlu0 %v3847, 97
      %v4252 = vpop.permute.xlu0 %4251
      %4253 = vrot.lane.b32.xlu0 0, 97
      %v4254 = vpop.permute.xlu0 %4253
      %v4255 = vsel %vm2700, %v4242, %v4244
      %v4256 = vsel %vm2700, %v4244, %v4246
      %v4257 = vsel %vm2700, %v4246, %v4248
      %v4258 = vsel %vm2700, %v4248, %v4250
      %v4259 = vsel %vm2700, %v4250, %v4252
      %v4260 = vsel %vm2700, %v4252, %v4254
      %4261 = vrot.lane.b32.xlu0 %v3843, 31
      %v4262 = vpop.permute.xlu0 %4261
      %4263 = vrot.lane.b32.xlu0 %v3833, 31
      %v4264 = vpop.permute.xlu0 %4263
      %4265 = vrot.lane.b32.xlu0 %v3834, 31
      %v4266 = vpop.permute.xlu0 %4265
      %4267 = vrot.lane.b32.xlu0 %v3835, 31
      %v4268 = vpop.permute.xlu0 %4267
      %4269 = vrot.lane.b32.xlu0 %v3836, 31
      %v4270 = vpop.permute.xlu0 %4269
      %4271 = vrot.lane.b32.xlu0 %v3847, 31
      %v4272 = vpop.permute.xlu0 %4271
      %4273 = vrot.lane.b32.xlu0 %v3863, 31
      %v4274 = vpop.permute.xlu0 %4273
      %4275 = vrot.lane.b32.xlu0 %v3864, 31
      %v4276 = vpop.permute.xlu0 %4275
      %4277 = vrot.lane.b32.xlu0 %v3865, 31
      %v4278 = vpop.permute.xlu0 %4277
      %4279 = vrot.lane.b32.xlu0 %v3866, 31
      %v4280 = vpop.permute.xlu0 %4279
      %4281 = vrot.lane.b32.xlu0 %v3867, 31
      %v4282 = vpop.permute.xlu0 %4281
      %4283 = vrot.lane.b32.xlu0 %v3868, 31
      %v4284 = vpop.permute.xlu0 %4283
      %4285 = vrot.lane.b32.xlu0 %v3869, 31
      %v4286 = vpop.permute.xlu0 %4285
      %4287 = vrot.lane.b32.xlu0 %v1918, 31
      %v4288 = vpop.permute.xlu0 %4287
      %4289 = vrot.lane.b32.xlu0 %v3889, 31
      %v4290 = vpop.permute.xlu0 %4289
      %4291 = vrot.lane.b32.xlu0 %v3890, 31
      %v4292 = vpop.permute.xlu0 %4291
      %4293 = vrot.lane.b32.xlu0 %v3891, 31
      %v4294 = vpop.permute.xlu0 %4293
      %4295 = vrot.lane.b32.xlu0 %v3892, 31
      %v4296 = vpop.permute.xlu0 %4295
      %4297 = vrot.lane.b32.xlu0 %v3893, 31
      %v4298 = vpop.permute.xlu0 %4297
      %4299 = vrot.lane.b32.xlu0 %v3894, 31
      %v4300 = vpop.permute.xlu0 %4299
      %4301 = vrot.lane.b32.xlu0 %v3895, 31
      %v4302 = vpop.permute.xlu0 %4301
      %4303 = vrot.lane.b32.xlu0 %v1963, 31
      %v4304 = vpop.permute.xlu0 %4303
      %4305 = vrot.lane.b32.xlu0 %v3915, 31
      %v4306 = vpop.permute.xlu0 %4305
      %4307 = vrot.lane.b32.xlu0 %v3916, 31
      %v4308 = vpop.permute.xlu0 %4307
      %4309 = vrot.lane.b32.xlu0 %v3917, 31
      %v4310 = vpop.permute.xlu0 %4309
      %4311 = vrot.lane.b32.xlu0 %v3918, 31
      %v4312 = vpop.permute.xlu0 %4311
      %4313 = vrot.lane.b32.xlu0 %v3919, 31
      %v4314 = vpop.permute.xlu0 %4313
      %4315 = vrot.lane.b32.xlu0 %v3920, 31
      %v4316 = vpop.permute.xlu0 %4315
      %4317 = vrot.lane.b32.xlu0 %v3921, 31
      %v4318 = vpop.permute.xlu0 %4317
      %4319 = vrot.lane.b32.xlu0 %v2008, 31
      %v4320 = vpop.permute.xlu0 %4319
      %4321 = vrot.lane.b32.xlu0 %v4242, 31
      %v4322 = vpop.permute.xlu0 %4321
      %4323 = vrot.lane.b32.xlu0 %v4255, 31
      %v4324 = vpop.permute.xlu0 %4323
      %4325 = vrot.lane.b32.xlu0 %v4256, 31
      %v4326 = vpop.permute.xlu0 %4325
      %4327 = vrot.lane.b32.xlu0 %v4257, 31
      %v4328 = vpop.permute.xlu0 %4327
      %4329 = vrot.lane.b32.xlu0 %v4258, 31
      %v4330 = vpop.permute.xlu0 %4329
      %4331 = vrot.lane.b32.xlu0 %v4259, 31
      %v4332 = vpop.permute.xlu0 %4331
      %4333 = vrot.lane.b32.xlu0 %v4260, 31
      %v4334 = vpop.permute.xlu0 %4333
      %4335 = vrot.lane.b32.xlu0 %v4254, 31
      %v4336 = vpop.permute.xlu0 %4335
      %4337 = vrot.lane.b32.xlu0 %v3956, 31
      %v4338 = vpop.permute.xlu0 %4337
      %4339 = vrot.lane.b32.xlu0 %v3968, 31
      %v4340 = vpop.permute.xlu0 %4339
      %4341 = vrot.lane.b32.xlu0 %v3969, 31
      %v4342 = vpop.permute.xlu0 %4341
      %4343 = vrot.lane.b32.xlu0 %v3970, 31
      %v4344 = vpop.permute.xlu0 %4343
      %4345 = vrot.lane.b32.xlu0 %v3971, 31
      %v4346 = vpop.permute.xlu0 %4345
      %4347 = vrot.lane.b32.xlu0 %v3972, 31
      %v4348 = vpop.permute.xlu0 %4347
      %4349 = vrot.lane.b32.xlu0 %v3973, 31
      %v4350 = vpop.permute.xlu0 %4349
      %4351 = vrot.lane.b32.xlu0 %v2098, 31
      %v4352 = vpop.permute.xlu0 %4351
      %4353 = vrot.lane.b32.xlu0 %v3982, 31
      %v4354 = vpop.permute.xlu0 %4353
      %4355 = vrot.lane.b32.xlu0 %v3994, 31
      %v4356 = vpop.permute.xlu0 %4355
      %4357 = vrot.lane.b32.xlu0 %v3995, 31
      %v4358 = vpop.permute.xlu0 %4357
      %4359 = vrot.lane.b32.xlu0 %v3996, 31
      %v4360 = vpop.permute.xlu0 %4359
      %4361 = vrot.lane.b32.xlu0 %v3997, 31
      %v4362 = vpop.permute.xlu0 %4361
      %4363 = vrot.lane.b32.xlu0 %v3998, 31
      %v4364 = vpop.permute.xlu0 %4363
      %4365 = vrot.lane.b32.xlu0 %v3999, 31
      %v4366 = vpop.permute.xlu0 %4365
      %4367 = vrot.lane.b32.xlu0 %v2149, 31
      %v4368 = vpop.permute.xlu0 %4367
      %4369 = vrot.lane.b32.xlu0 %v4008, 31
      %v4370 = vpop.permute.xlu0 %4369
      %4371 = vrot.lane.b32.xlu0 %v4020, 31
      %v4372 = vpop.permute.xlu0 %4371
      %4373 = vrot.lane.b32.xlu0 %v4021, 31
      %v4374 = vpop.permute.xlu0 %4373
      %4375 = vrot.lane.b32.xlu0 %v4022, 31
      %v4376 = vpop.permute.xlu0 %4375
      %4377 = vrot.lane.b32.xlu0 %v4023, 31
      %v4378 = vpop.permute.xlu0 %4377
      %4379 = vrot.lane.b32.xlu0 %v4024, 31
      %v4380 = vpop.permute.xlu0 %4379
      %4381 = vrot.lane.b32.xlu0 %v4025, 31
      %v4382 = vpop.permute.xlu0 %4381
      %4383 = vrot.lane.b32.xlu0 %v2200, 31
      %v4384 = vpop.permute.xlu0 %4383
      %4385 = vrot.lane.b32.xlu0 %v4034, 31
      %v4386 = vpop.permute.xlu0 %4385
      %4387 = vrot.lane.b32.xlu0 %v4046, 31
      %v4388 = vpop.permute.xlu0 %4387
      %4389 = vrot.lane.b32.xlu0 %v4047, 31
      %v4390 = vpop.permute.xlu0 %4389
      %4391 = vrot.lane.b32.xlu0 %v4048, 31
      %v4392 = vpop.permute.xlu0 %4391
      %4393 = vrot.lane.b32.xlu0 %v4049, 31
      %v4394 = vpop.permute.xlu0 %4393
      %4395 = vrot.lane.b32.xlu0 %v4050, 31
      %v4396 = vpop.permute.xlu0 %4395
      %4397 = vrot.lane.b32.xlu0 %v4051, 31
      %v4398 = vpop.permute.xlu0 %4397
      %4399 = vrot.lane.b32.xlu0 %v2251, 31
      %v4400 = vpop.permute.xlu0 %4399
      %v4401 = vsel %vm2961, %v2712, %v4262
      %v4402 = vsel %vm2961, %v4262, %v4264
      %v4403 = vsel %vm2961, %v4264, %v4266
      %v4404 = vsel %vm2961, %v4266, %v4268
      %v4405 = vsel %vm2961, %v4268, %v4270
      %v4406 = vsel %vm2961, %v4270, %v4272
      %v4407 = vsel %vm2961, %v4272, %v2712
      %v4408 = vsel %vm2961, %v4274, %v4276
      %v4409 = vsel %vm2961, %v4276, %v4278
      %v4410 = vsel %vm2961, %v4278, %v4280
      %v4411 = vsel %vm2961, %v4280, %v4282
      %v4412 = vsel %vm2961, %v4282, %v4284
      %v4413 = vsel %vm2961, %v4284, %v4286
      %v4414 = vsel %vm2961, %v4286, %v4288
      %v4415 = vsel %vm2961, %v4290, %v4292
      %v4416 = vsel %vm2961, %v4292, %v4294
      %v4417 = vsel %vm2961, %v4294, %v4296
      %v4418 = vsel %vm2961, %v4296, %v4298
      %v4419 = vsel %vm2961, %v4298, %v4300
      %v4420 = vsel %vm2961, %v4300, %v4302
      %v4421 = vsel %vm2961, %v4302, %v4304
      %v4422 = vsel %vm2961, %v4306, %v4308
      %v4423 = vsel %vm2961, %v4308, %v4310
      %v4424 = vsel %vm2961, %v4310, %v4312
      %v4425 = vsel %vm2961, %v4312, %v4314
      %v4426 = vsel %vm2961, %v4314, %v4316
      %v4427 = vsel %vm2961, %v4316, %v4318
      %v4428 = vsel %vm2961, %v4318, %v4320
      %v4429 = vsel %vm2961, %v4322, %v4324
      %v4430 = vsel %vm2961, %v4324, %v4326
      %v4431 = vsel %vm2961, %v4326, %v4328
      %v4432 = vsel %vm2961, %v4328, %v4330
      %v4433 = vsel %vm2961, %v4330, %v4332
      %v4434 = vsel %vm2961, %v4332, %v4334
      %v4435 = vsel %vm2961, %v4334, %v4336
      %v4436 = vsel %vm2961, %v4338, %v4340
      %v4437 = vsel %vm2961, %v4340, %v4342
      %v4438 = vsel %vm2961, %v4342, %v4344
      %v4439 = vsel %vm2961, %v4344, %v4346
      %v4440 = vsel %vm2961, %v4346, %v4348
      %v4441 = vsel %vm2961, %v4348, %v4350
      %v4442 = vsel %vm2961, %v4350, %v4352
      %v4443 = vsel %vm2961, %v4354, %v4356
      %v4444 = vsel %vm2961, %v4356, %v4358
      %v4445 = vsel %vm2961, %v4358, %v4360
      %v4446 = vsel %vm2961, %v4360, %v4362
      %v4447 = vsel %vm2961, %v4362, %v4364
      %v4448 = vsel %vm2961, %v4364, %v4366
      %v4449 = vsel %vm2961, %v4366, %v4368
      %v4450 = vsel %vm2961, %v4370, %v4372
      %v4451 = vsel %vm2961, %v4372, %v4374
      %v4452 = vsel %vm2961, %v4374, %v4376
      %v4453 = vsel %vm2961, %v4376, %v4378
      %v4454 = vsel %vm2961, %v4378, %v4380
      %v4455 = vsel %vm2961, %v4380, %v4382
      %v4456 = vsel %vm2961, %v4382, %v4384
      %v4457 = vsel %vm2961, %v4386, %v4388
      %v4458 = vsel %vm2961, %v4388, %v4390
      %v4459 = vsel %vm2961, %v4390, %v4392
      %v4460 = vsel %vm2961, %v4392, %v4394
      %v4461 = vsel %vm2961, %v4394, %v4396
      %v4462 = vsel %vm2961, %v4396, %v4398
      %v4463 = vsel %vm2961, %v4398, %v4400
      %v4527 = vld [vmem:[%s7] sm:$0xff]
      %v4528 = vld [vmem:[%s7 + $0x8] sm:$0xff]
      %v4529 = vld [vmem:[%s8] sm:$0xff]
      %4531 = vset.pattern.permute.xlu0 0
      %4532 = vperm.xlu0 %4531, %v4529
      %v4533 = vpop.permute.xlu0 %4532
      %v4537 = vunpack.c.l.b16 %v4527
      %v4538 = vunpack.c.h.b16 %v4527
      %v4539 = vunpack.c.l.b16 %v4528
      %v4540 = vunpack.c.h.b16 %v4528
      %v4541 = vpack.c.b16 %v4537, %v4537
      %v4542 = vpack.c.b16 %v4538, %v4538
      %v4543 = vpack.c.b16 %v4539, %v4539
      %v4544 = vpack.c.b16 %v4540, %v4540
      %vm4548 = vcmask 130048
      %v4550 = vsel %vm4548, %v4544, 0
      %4552 = vmatprep.subr.bf16.mxu0 %v4020
      %4553 = vmatpush1.bf16.msra.mxu0 %v4019
      %4554 = vmatprep.subr.bf16.mxu0 %v3994
      %4555 = vmatpush1.bf16.msra.mxu0 %v3993
      %4556 = vmatprep.subr.bf16.mxu0 %v3968
      %4557 = vmatpush1.bf16.msra.mxu0 %v3967
      %4558 = vmatprep.subr.bf16.mxu0 %v3942
      %4559 = vmatpush1.bf16.msra.mxu0 %v3941
      %4560 = vmatprep.subr.bf16.mxu0 %v3916
      %4561 = vmatpush1.bf16.msra.mxu0 %v3915
      %4562 = vmatprep.subr.bf16.mxu0 %v3890
      %4563 = vmatpush1.bf16.msra.mxu0 %v3889
      %4564 = vmatprep.subr.bf16.mxu0 %v3864
      %4565 = vmatpush1.bf16.msra.mxu0 %v3863
      %4566 = vmatprep.subr.bf16.mxu0 %v3843
      %4567 = vmatpush1.bf16.msra.mxu0 0
      %4568 = vmatprep.subr.bf16.mxu0 %v4228
      %4569 = vmatpush2.bf16.msra.mxu0 %v4227
      %4570 = vmatprep.subr.bf16.mxu0 %v4202
      %4571 = vmatpush2.bf16.msra.mxu0 %v4201
      %4572 = vmatprep.subr.bf16.mxu0 %v4176
      %4573 = vmatpush2.bf16.msra.mxu0 %v4175
      %4574 = vmatprep.subr.bf16.mxu0 %v4150
      %4575 = vmatpush2.bf16.msra.mxu0 %v4149
      %4576 = vmatprep.subr.bf16.mxu0 %v4124
      %4577 = vmatpush2.bf16.msra.mxu0 %v4123
      %4578 = vmatprep.subr.bf16.mxu0 %v4098
      %4579 = vmatpush2.bf16.msra.mxu0 %v4097
      %4580 = vmatprep.subr.bf16.mxu0 %v4072
      %4581 = vmatpush2.bf16.msra.mxu0 %v4071
      %4582 = vmatprep.subr.bf16.mxu0 %v4046
      %4583 = vmatpush2.bf16.msra.mxu0 %v4045
      %4584 = vmatprep.mubr.bf16.mxu0 %v4542
      %4585 = vmatmul.mubr.bf16.gmra.mxu0 %v4541
      %v4586 = vpop.f32.mrf.mxu0
      %v4587 = vadd.f32 %v4533, %v4586
      %v4588 = vpop.f32.mrf.mxu0
      %v4589 = vadd.f32 %v4533, %v4588
      %v4590 = vpop.f32.mrf.mxu0
      %v4591 = vpop.f32.mrf.mxu0
      %4592 = vdwg.mxu0
      %4593 = vmatprep.subr.bf16.mxu0 %v4451
      %4594 = vmatpush1.bf16.msra.mxu0 %v4450
      %4595 = vmatprep.subr.bf16.mxu0 %v4444
      %4596 = vmatpush1.bf16.msra.mxu0 %v4443
      %4597 = vmatprep.subr.bf16.mxu0 %v4437
      %4598 = vmatpush1.bf16.msra.mxu0 %v4436
      %4599 = vmatprep.subr.bf16.mxu0 %v4430
      %4600 = vmatpush1.bf16.msra.mxu0 %v4429
      %4601 = vmatprep.subr.bf16.mxu0 %v4423
      %4602 = vmatpush1.bf16.msra.mxu0 %v4422
      %4603 = vmatprep.subr.bf16.mxu0 %v4416
      %4604 = vmatpush1.bf16.msra.mxu0 %v4415
      %4605 = vmatprep.subr.bf16.mxu0 %v4409
      %4606 = vmatpush1.bf16.msra.mxu0 %v4408
      %4607 = vmatprep.subr.bf16.mxu0 %v4402
      %4608 = vmatpush1.bf16.msra.mxu0 %v4401
      %4609 = vmatprep.subr.bf16.mxu0 0
      %4610 = vmatpush2.bf16.msra.mxu0 0
      %4611 = vmatprep.subr.bf16.mxu0 0
      %4612 = vmatpush2.bf16.msra.mxu0 0
      %4613 = vmatprep.subr.bf16.mxu0 0
      %4614 = vmatpush2.bf16.msra.mxu0 0
      %4615 = vmatprep.subr.bf16.mxu0 0
      %4616 = vmatpush2.bf16.msra.mxu0 0
      %4617 = vmatprep.subr.bf16.mxu0 0
      %4618 = vmatpush2.bf16.msra.mxu0 0
      %4619 = vmatprep.subr.bf16.mxu0 0
      %4620 = vmatpush2.bf16.msra.mxu0 0
      %4621 = vmatprep.subr.bf16.mxu0 0
      %4622 = vmatpush2.bf16.msra.mxu0 0
      %4623 = vmatprep.subr.bf16.mxu0 %v4458
      %4624 = vmatpush2.bf16.msra.mxu0 %v4457
      %4625 = vmatprep.mubr.bf16.mxu0 %v4550
      %4626 = vmatmul.mubr.bf16.gmra.mxu0 %v4543
      %v4627 = vpop.f32.mrf.mxu0
      %v4628 = vadd.f32 %v4587, %v4627
      %v4629 = vpop.f32.mrf.mxu0
      %v4630 = vadd.f32 %v4589, %v4629
      %v4631 = vpop.f32.mrf.mxu0
      %v4632 = vpop.f32.mrf.mxu0
      %4633 = vdwg.mxu0
      %4634 = vmatprep.subr.bf16.mxu0 %v4022
      %4635 = vmatpush1.bf16.msra.mxu0 %v4021
      %4636 = vmatprep.subr.bf16.mxu0 %v3996
      %4637 = vmatpush1.bf16.msra.mxu0 %v3995
      %4638 = vmatprep.subr.bf16.mxu0 %v3970
      %4639 = vmatpush1.bf16.msra.mxu0 %v3969
      %4640 = vmatprep.subr.bf16.mxu0 %v3944
      %4641 = vmatpush1.bf16.msra.mxu0 %v3943
      %4642 = vmatprep.subr.bf16.mxu0 %v3918
      %4643 = vmatpush1.bf16.msra.mxu0 %v3917
      %4644 = vmatprep.subr.bf16.mxu0 %v3892
      %4645 = vmatpush1.bf16.msra.mxu0 %v3891
      %4646 = vmatprep.subr.bf16.mxu0 %v3866
      %4647 = vmatpush1.bf16.msra.mxu0 %v3865
      %4648 = vmatprep.subr.bf16.mxu0 %v3834
      %4649 = vmatpush1.bf16.msra.mxu0 %v3833
      %4650 = vmatprep.subr.bf16.mxu0 %v4230
      %4651 = vmatpush2.bf16.msra.mxu0 %v4229
      %4652 = vmatprep.subr.bf16.mxu0 %v4204
      %4653 = vmatpush2.bf16.msra.mxu0 %v4203
      %4654 = vmatprep.subr.bf16.mxu0 %v4178
      %4655 = vmatpush2.bf16.msra.mxu0 %v4177
      %4656 = vmatprep.subr.bf16.mxu0 %v4152
      %4657 = vmatpush2.bf16.msra.mxu0 %v4151
      %4658 = vmatprep.subr.bf16.mxu0 %v4126
      %4659 = vmatpush2.bf16.msra.mxu0 %v4125
      %4660 = vmatprep.subr.bf16.mxu0 %v4100
      %4661 = vmatpush2.bf16.msra.mxu0 %v4099
      %4662 = vmatprep.subr.bf16.mxu0 %v4074
      %4663 = vmatpush2.bf16.msra.mxu0 %v4073
      %4664 = vmatprep.subr.bf16.mxu0 %v4048
      %4665 = vmatpush2.bf16.msra.mxu0 %v4047
      %4666 = vmatprep.mubr.bf16.mxu0 %v4542
      %4667 = vmatmul.mubr.bf16.gmra.mxu0 %v4541
      %v4668 = vpop.f32.mrf.mxu0
      %v4669 = vadd.f32 %v4533, %v4668
      %v4670 = vpop.f32.mrf.mxu0
      %v4671 = vadd.f32 %v4533, %v4670
      %v4672 = vpop.f32.mrf.mxu0
      %v4673 = vpop.f32.mrf.mxu0
      %4674 = vdwg.mxu0
      %4675 = vmatprep.subr.bf16.mxu0 %v4453
      %4676 = vmatpush1.bf16.msra.mxu0 %v4452
      %4677 = vmatprep.subr.bf16.mxu0 %v4446
      %4678 = vmatpush1.bf16.msra.mxu0 %v4445
      %4679 = vmatprep.subr.bf16.mxu0 %v4439
      %4680 = vmatpush1.bf16.msra.mxu0 %v4438
      %4681 = vmatprep.subr.bf16.mxu0 %v4432
      %4682 = vmatpush1.bf16.msra.mxu0 %v4431
      %4683 = vmatprep.subr.bf16.mxu0 %v4425
      %4684 = vmatpush1.bf16.msra.mxu0 %v4424
      %4685 = vmatprep.subr.bf16.mxu0 %v4418
      %4686 = vmatpush1.bf16.msra.mxu0 %v4417
      %4687 = vmatprep.subr.bf16.mxu0 %v4411
      %4688 = vmatpush1.bf16.msra.mxu0 %v4410
      %4689 = vmatprep.subr.bf16.mxu0 %v4404
      %4690 = vmatpush1.bf16.msra.mxu0 %v4403
      %4691 = vmatprep.subr.bf16.mxu0 0
      %4692 = vmatpush2.bf16.msra.mxu0 0
      %4693 = vmatprep.subr.bf16.mxu0 0
      %4694 = vmatpush2.bf16.msra.mxu0 0
      %4695 = vmatprep.subr.bf16.mxu0 0
      %4696 = vmatpush2.bf16.msra.mxu0 0
      %4697 = vmatprep.subr.bf16.mxu0 0
      %4698 = vmatpush2.bf16.msra.mxu0 0
      %4699 = vmatprep.subr.bf16.mxu0 0
      %4700 = vmatpush2.bf16.msra.mxu0 0
      %4701 = vmatprep.subr.bf16.mxu0 0
      %4702 = vmatpush2.bf16.msra.mxu0 0
      %4703 = vmatprep.subr.bf16.mxu0 0
      %4704 = vmatpush2.bf16.msra.mxu0 0
      %4705 = vmatprep.subr.bf16.mxu0 %v4460
      %4706 = vmatpush2.bf16.msra.mxu0 %v4459
      %4707 = vmatprep.mubr.bf16.mxu0 %v4550
      %4708 = vmatmul.mubr.bf16.gmra.mxu0 %v4543
      %v4709 = vpop.f32.mrf.mxu0
      %v4710 = vadd.f32 %v4669, %v4709
      %v4711 = vpop.f32.mrf.mxu0
      %v4712 = vadd.f32 %v4671, %v4711
      %v4713 = vpop.f32.mrf.mxu0
      %v4714 = vpop.f32.mrf.mxu0
      %4715 = vdwg.mxu0
      %4716 = vmatprep.subr.bf16.mxu0 %v4024
      %4717 = vmatpush1.bf16.msra.mxu0 %v4023
      %4718 = vmatprep.subr.bf16.mxu0 %v3998
      %4719 = vmatpush1.bf16.msra.mxu0 %v3997
      %4720 = vmatprep.subr.bf16.mxu0 %v3972
      %4721 = vmatpush1.bf16.msra.mxu0 %v3971
      %4722 = vmatprep.subr.bf16.mxu0 %v3946
      %4723 = vmatpush1.bf16.msra.mxu0 %v3945
      %4724 = vmatprep.subr.bf16.mxu0 %v3920
      %4725 = vmatpush1.bf16.msra.mxu0 %v3919
      %4726 = vmatprep.subr.bf16.mxu0 %v3894
      %4727 = vmatpush1.bf16.msra.mxu0 %v3893
      %4728 = vmatprep.subr.bf16.mxu0 %v3868
      %4729 = vmatpush1.bf16.msra.mxu0 %v3867
      %4730 = vmatprep.subr.bf16.mxu0 %v3836
      %4731 = vmatpush1.bf16.msra.mxu0 %v3835
      %4732 = vmatprep.subr.bf16.mxu0 %v4232
      %4733 = vmatpush2.bf16.msra.mxu0 %v4231
      %4734 = vmatprep.subr.bf16.mxu0 %v4206
      %4735 = vmatpush2.bf16.msra.mxu0 %v4205
      %4736 = vmatprep.subr.bf16.mxu0 %v4180
      %4737 = vmatpush2.bf16.msra.mxu0 %v4179
      %4738 = vmatprep.subr.bf16.mxu0 %v4154
      %4739 = vmatpush2.bf16.msra.mxu0 %v4153
      %4740 = vmatprep.subr.bf16.mxu0 %v4128
      %4741 = vmatpush2.bf16.msra.mxu0 %v4127
      %4742 = vmatprep.subr.bf16.mxu0 %v4102
      %4743 = vmatpush2.bf16.msra.mxu0 %v4101
      %4744 = vmatprep.subr.bf16.mxu0 %v4076
      %4745 = vmatpush2.bf16.msra.mxu0 %v4075
      %4746 = vmatprep.subr.bf16.mxu0 %v4050
      %4747 = vmatpush2.bf16.msra.mxu0 %v4049
      %4748 = vmatprep.mubr.bf16.mxu0 %v4542
      %4749 = vmatmul.mubr.bf16.gmra.mxu0 %v4541
      %v4750 = vpop.f32.mrf.mxu0
      %v4751 = vadd.f32 %v4533, %v4750
      %v4752 = vpop.f32.mrf.mxu0
      %v4753 = vadd.f32 %v4533, %v4752
      %v4754 = vpop.f32.mrf.mxu0
      %v4755 = vpop.f32.mrf.mxu0
      %4756 = vdwg.mxu0
      %4757 = vmatprep.subr.bf16.mxu0 %v4455
      %4758 = vmatpush1.bf16.msra.mxu0 %v4454
      %4759 = vmatprep.subr.bf16.mxu0 %v4448
      %4760 = vmatpush1.bf16.msra.mxu0 %v4447
      %4761 = vmatprep.subr.bf16.mxu0 %v4441
      %4762 = vmatpush1.bf16.msra.mxu0 %v4440
      %4763 = vmatprep.subr.bf16.mxu0 %v4434
      %4764 = vmatpush1.bf16.msra.mxu0 %v4433
      %4765 = vmatprep.subr.bf16.mxu0 %v4427
      %4766 = vmatpush1.bf16.msra.mxu0 %v4426
      %4767 = vmatprep.subr.bf16.mxu0 %v4420
      %4768 = vmatpush1.bf16.msra.mxu0 %v4419
      %4769 = vmatprep.subr.bf16.mxu0 %v4413
      %4770 = vmatpush1.bf16.msra.mxu0 %v4412
      %4771 = vmatprep.subr.bf16.mxu0 %v4406
      %4772 = vmatpush1.bf16.msra.mxu0 %v4405
      %4773 = vmatprep.subr.bf16.mxu0 0
      %4774 = vmatpush2.bf16.msra.mxu0 0
      %4775 = vmatprep.subr.bf16.mxu0 0
      %4776 = vmatpush2.bf16.msra.mxu0 0
      %4777 = vmatprep.subr.bf16.mxu0 0
      %4778 = vmatpush2.bf16.msra.mxu0 0
      %4779 = vmatprep.subr.bf16.mxu0 0
      %4780 = vmatpush2.bf16.msra.mxu0 0
      %4781 = vmatprep.subr.bf16.mxu0 0
      %4782 = vmatpush2.bf16.msra.mxu0 0
      %4783 = vmatprep.subr.bf16.mxu0 0
      %4784 = vmatpush2.bf16.msra.mxu0 0
      %4785 = vmatprep.subr.bf16.mxu0 0
      %4786 = vmatpush2.bf16.msra.mxu0 0
      %4787 = vmatprep.subr.bf16.mxu0 %v4462
      %4788 = vmatpush2.bf16.msra.mxu0 %v4461
      %4789 = vmatprep.mubr.bf16.mxu0 %v4550
      %4790 = vmatmul.mubr.bf16.gmra.mxu0 %v4543
      %v4791 = vpop.f32.mrf.mxu0
      %v4792 = vadd.f32 %v4751, %v4791
      %v4793 = vpop.f32.mrf.mxu0
      %v4794 = vadd.f32 %v4753, %v4793
      %v4795 = vpop.f32.mrf.mxu0
      %v4796 = vpop.f32.mrf.mxu0
      %4797 = vdwg.mxu0
      %4798 = vmatprep.subr.bf16.mxu0 0
      %4799 = vmatpush1.bf16.msra.mxu0 %v4025
      %4800 = vmatprep.subr.bf16.mxu0 0
      %4801 = vmatpush1.bf16.msra.mxu0 %v3999
      %4802 = vmatprep.subr.bf16.mxu0 0
      %4803 = vmatpush1.bf16.msra.mxu0 %v3973
      %4804 = vmatprep.subr.bf16.mxu0 0
      %4805 = vmatpush1.bf16.msra.mxu0 %v3947
      %4806 = vmatprep.subr.bf16.mxu0 0
      %4807 = vmatpush1.bf16.msra.mxu0 %v3921
      %4808 = vmatprep.subr.bf16.mxu0 0
      %4809 = vmatpush1.bf16.msra.mxu0 %v3895
      %4810 = vmatprep.subr.bf16.mxu0 0
      %4811 = vmatpush1.bf16.msra.mxu0 %v3869
      %4812 = vmatprep.subr.bf16.mxu0 0
      %4813 = vmatpush1.bf16.msra.mxu0 %v3847
      %4814 = vmatprep.subr.bf16.mxu0 0
      %4815 = vmatpush2.bf16.msra.mxu0 %v4233
      %4816 = vmatprep.subr.bf16.mxu0 0
      %4817 = vmatpush2.bf16.msra.mxu0 %v4207
      %4818 = vmatprep.subr.bf16.mxu0 0
      %4819 = vmatpush2.bf16.msra.mxu0 %v4181
      %4820 = vmatprep.subr.bf16.mxu0 0
      %4821 = vmatpush2.bf16.msra.mxu0 %v4155
      %4822 = vmatprep.subr.bf16.mxu0 0
      %4823 = vmatpush2.bf16.msra.mxu0 %v4129
      %4824 = vmatprep.subr.bf16.mxu0 0
      %4825 = vmatpush2.bf16.msra.mxu0 %v4103
      %4826 = vmatprep.subr.bf16.mxu0 0
      %4827 = vmatpush2.bf16.msra.mxu0 %v4077
      %4828 = vmatprep.subr.bf16.mxu0 0
      %4829 = vmatpush2.bf16.msra.mxu0 %v4051
      %4830 = vmatprep.mubr.bf16.mxu0 %v4542
      %4831 = vmatmul.mubr.bf16.gmra.mxu0 %v4541
      %v4832 = vpop.f32.mrf.mxu0
      %v4833 = vadd.f32 %v4533, %v4832
      %v4834 = vpop.f32.mrf.mxu0
      %v4835 = vpop.f32.mrf.mxu0
      %v4836 = vpop.f32.mrf.mxu0
      %4837 = vdwg.mxu0
      %4838 = vmatprep.subr.bf16.mxu0 0
      %4839 = vmatpush1.bf16.msra.mxu0 %v4456
      %4840 = vmatprep.subr.bf16.mxu0 0
      %4841 = vmatpush1.bf16.msra.mxu0 %v4449
      %4842 = vmatprep.subr.bf16.mxu0 0
      %4843 = vmatpush1.bf16.msra.mxu0 %v4442
      %4844 = vmatprep.subr.bf16.mxu0 0
      %4845 = vmatpush1.bf16.msra.mxu0 %v4435
      %4846 = vmatprep.subr.bf16.mxu0 0
      %4847 = vmatpush1.bf16.msra.mxu0 %v4428
      %4848 = vmatprep.subr.bf16.mxu0 0
      %4849 = vmatpush1.bf16.msra.mxu0 %v4421
      %4850 = vmatprep.subr.bf16.mxu0 0
      %4851 = vmatpush1.bf16.msra.mxu0 %v4414
      %4852 = vmatprep.subr.bf16.mxu0 0
      %4853 = vmatpush1.bf16.msra.mxu0 %v4407
      %4854 = vmatprep.subr.bf16.mxu0 0
      %4855 = vmatpush2.bf16.msra.mxu0 0
      %4856 = vmatprep.subr.bf16.mxu0 0
      %4857 = vmatpush2.bf16.msra.mxu0 0
      %4858 = vmatprep.subr.bf16.mxu0 0
      %4859 = vmatpush2.bf16.msra.mxu0 0
      %4860 = vmatprep.subr.bf16.mxu0 0
      %4861 = vmatpush2.bf16.msra.mxu0 0
      %4862 = vmatprep.subr.bf16.mxu0 0
      %4863 = vmatpush2.bf16.msra.mxu0 0
      %4864 = vmatprep.subr.bf16.mxu0 0
      %4865 = vmatpush2.bf16.msra.mxu0 0
      %4866 = vmatprep.subr.bf16.mxu0 0
      %4867 = vmatpush2.bf16.msra.mxu0 0
      %4868 = vmatprep.subr.bf16.mxu0 0
      %4869 = vmatpush2.bf16.msra.mxu0 %v4463
      %4870 = vmatprep.mubr.bf16.mxu0 %v4550
      %4871 = vmatmul.mubr.bf16.gmra.mxu0 %v4543
      %v4872 = vpop.f32.mrf.mxu0
      %v4873 = vadd.f32 %v4833, %v4872
      %v4874 = vpop.f32.mrf.mxu0
      %v4875 = vpop.f32.mrf.mxu0
      %v4876 = vpop.f32.mrf.mxu0
      %4877 = vdwg.mxu0
      %v4878 = vmax.f32 %v4628, 0.0
      %v4879 = vmax.f32 %v4630, 0.0
      %v4880 = vmax.f32 %v4710, 0.0
      %v4881 = vmax.f32 %v4712, 0.0
      %v4882 = vmax.f32 %v4792, 0.0
      %v4883 = vmax.f32 %v4794, 0.0
      %v4884 = vmax.f32 %v4873, 0.0
      %v4892 = vcombine.low %v4878, %v4879
      %v4893 = vcombine.low %v4880, %v4881
      %v4894 = vcombine.low %v4882, %v4883
      %v4896 = vunpack.c.l.s4 1966171168
      %v4897 = vunpack.c.0.s8 %v4896
      %v4898 = vlaneseq
      %v4899 = vshrl.u32 %v4898, 7
      %v4900 = vsub.s32 %v4897, %v4899
      %v4901 = vrot.slane %v4892, %v4900
      %v4903 = vunpack.c.l.s4 1966171168
      %v4904 = vunpack.c.0.s8 %v4903
      %v4905 = vlaneseq
      %v4906 = vshrl.u32 %v4905, 7
      %v4907 = vsub.s32 %v4904, %v4906
      %v4908 = vrot.slane %v4893, %v4907
      %v4910 = vunpack.c.l.s4 1966171168
      %v4911 = vunpack.c.0.s8 %v4910
      %v4912 = vlaneseq
      %v4913 = vshrl.u32 %v4912, 7
      %v4914 = vsub.s32 %v4911, %v4913
      %v4915 = vrot.slane %v4894, %v4914
      %v4917 = vunpack.c.l.s4 1966171168
      %v4918 = vunpack.c.0.s8 %v4917
      %v4919 = vlaneseq
      %v4920 = vshrl.u32 %v4919, 7
      %v4921 = vsub.s32 %v4918, %v4920
      %v4922 = vrot.slane %v4884, %v4921
      %v4923 = vcombine.low %v4901, %v4908
      %v4924 = vcombine.low %v4915, %v4922
      %v4926 = vunpack.c.l.s4 1966171168
      %v4927 = vunpack.c.0.s8 %v4926
      %v4928 = vlaneseq
      %v4929 = vshrl.u32 %v4928, 7
      %v4930 = vsub.s32 %v4927, %v4929
      %v4931 = vrot.slane %v4923, %v4930
      %v4933 = vunpack.c.l.s4 1966171168
      %v4934 = vunpack.c.0.s8 %v4933
      %v4935 = vlaneseq
      %v4936 = vshrl.u32 %v4935, 7
      %v4937 = vsub.s32 %v4934, %v4936
      %v4938 = vrot.slane %v4924, %v4937
      %v4939 = vcombine.low %v4931, %v4938
      %v4941 = vlaneseq
      %vm4942 = vcmp.ge.s32.totalorder %v4941, 0
      %vm4943 = vcmp.lt.s32.totalorder %v4941, 896
      %vm4944 = vmand %vm4942, %vm4943
      %4945 = vst.msk [vmem:[%s350] sm:$0x7f] %vm4944, %v4939
      %p4946 = scmp.lt.s32.totalorder %s20, 1
      %s4947 = scalar_select %p4946, %s20, 1
      %s4948 = smul.addr %s4947, 7
      %s4949 = scalar_lea.vmem %s9, %s4948
      // Predicated region
      $region57: #{vae_forward.3} parent=55 // pred_check
        %p4950 = pneg %p237
      $region58: #{vae_forward.3} parent=55 // pred_check_branch
        %4952 = sbr.rel (%p4950) target = $region60
      $region59: #{vae_forward.3} parent=55 // pred_region
        _
      $region60: #{vae_forward.3} parent=55 // pred_fallthru
        _
    $region56: #{vae_forward.3} parent=5 // pred_fallthru
      _
    %p4953 = scmp.le.s32.totalorder 2, %s15
    // Predicated region
    $region61: #{vae_forward.3} parent=5 // pred_check
      %p4954 = pneg %p4953
    $region62: #{vae_forward.3} parent=5 // pred_check_branch
      %4956 = sbr.rel (%p4954) target = $region64
    $region63: #{vae_forward.3} parent=5 // pred_region
      %s4957 = ssub.s32 %s15, 2
      // Predicated region
      $region65: #{vae_forward.3} parent=63 // pred_check
        %p4958 = pneg %p243
      $region66: #{vae_forward.3} parent=63 // pred_check_branch
        %4960 = sbr.rel (%p4958) target = $region68
      $region67: #{vae_forward.3} parent=63 // pred_region
        %p4961 = scmp.lt.s32.totalorder %s21, 1
        %s4962 = scalar_select %p4961, %s21, 1
        %s4963 = smul.addr %s4962, 7
        %s4964 = scalar_lea.vmem %s9, %s4963
      $region68: #{vae_forward.3} parent=63 // pred_fallthru
        _
    $region64: #{vae_forward.3} parent=5 // pred_fallthru
      _
  $region6: #{vae_forward.3} parent=0 // loop_footer
    %s19 = sadd.s32 1, %s15
  $region7: #{vae_forward.3} parent=0 // loop_footer_branch
    %14 = sbr.rel target = $region3
  $region8: #{vae_forward.3} parent=0 // loop_exit
    _

// kernel: vae_forward.2
$region0: #{vae_forward.2}
  #allocation0 [shape = 'u32[]', space=smem, size = 0x4, offset = 0x4, fixed_abs, tag = 'smem constant byte address 0x4 - core index']
  #allocation1 [shape = 'u32[144,128]{1,0:T(1,128)}', space=vmem, size = 0x12000, scoped, tag = 'internal scratch']
  %s0 = inlined_call_operand.vmem [shape: bf16[2,1,784], index: 0, kind: input, shape index: {}]
  %s1 = inlined_call_operand.hbm [shape: bf16[16,25], index: 1, kind: input, shape index: {}]
  %s2 = inlined_call_operand.vmem [shape: f32[16,1], index: 2, kind: input, shape index: {}]
  %s3 = inlined_call_operand.hbm [shape: bf16[32,400], index: 3, kind: input, shape index: {}]
  %s4 = inlined_call_operand.vmem [shape: f32[32,1], index: 4, kind: input, shape index: {}]
  %s5 = inlined_call_operand.hbm [shape: bf16[32,32,552], index: 5, kind: input, shape index: {}]
  %s6 = inlined_call_operand.vmem [shape: f32[32,1], index: 6, kind: input, shape index: {}]
  %s7 = inlined_call_operand.vmem [shape: f32[2,32,1], index: 7, kind: output, shape index: {}]
  %s8 = sld [smem:[#allocation0]]
  $region73: #{vae_forward.2} parent=0
    _
  %s10 = ssub.s32 1, %s8
  %s11 = scalar_select 0, %s10, %s8
  $region1: #{vae_forward.2} parent=0
    #allocation2 [shape = 'u8[4096]{0}', space=vmem, size = 0x1000, scoped, tag = 'input window, operand 1, single buffered']
    #allocation3 [shape = 's32[2]{0}', space=sflag, size = 0x8, scoped, tag = 'scoped memory for vae_forward.2']
    #allocation4 [shape = 'u8[32768]{0}', space=vmem, size = 0x8000, scoped, tag = 'input window, operand 3, single buffered']
    #allocation5 [shape = 's32[1]{0}', space=sflag, size = 0x4, scoped, tag = 'scoped memory for vae_forward.2']
    #allocation6 [shape = 'u8[1310720]{0}', space=vmem, size = 0x140000, scoped, tag = 'input window, operand 5, single buffered']
    %12 = vsyncpa [#allocation3], 0
    %13 = vsyncpa [#allocation5], 0
    loop: start=0, step=1, limit=4
    $region2: #{vae_forward.2} parent=1 // loop_pre_header
      _
    $region3: #{vae_forward.2} parent=1 // loop_header
      %s15 = sphi 0, %s19
      %p16 = scmp.ge.s32.totalorder %s15, 4
      %s25 = sphi 0, %s27
      %s28 = sphi 0, %s25
      %s29 = sphi 0, %s28
      %s45 = sphi 0, %s29
      %s49 = sphi 0, %s49
      %s51 = sphi 0, %s49
      %s52 = sphi 0, %s51
      %s66 = sphi 0, %s52
      %s70 = sphi 0, %s70
      %s72 = sphi 0, %s70
      %s73 = sphi 0, %s72
      %s87 = sphi 0, %s73
      %s91 = sphi 0, %s91
      %s93 = sphi 0, %s91
      %s94 = sphi 0, %s93
      %s108 = sphi 0, %s94
      %s112 = sphi 0, %s112
      %s114 = sphi 0, %s112
      %s115 = sphi 0, %s114
      %s129 = sphi 0, %s115
      %s133 = sphi 0, %s133
      %s135 = sphi 0, %s133
      %s136 = sphi 0, %s135
      %s150 = sphi 0, %s136
      %s154 = sphi 0, %s154
      %s156 = sphi 0, %s154
      %s157 = sphi 0, %s156
      %s171 = sphi 0, %s157
      %s177 = sphi 0, %s179
      %s180 = sphi 0, %s177
      %s181 = sphi 0, %s180
      %s197 = sphi 0, %s181
    $region4: #{vae_forward.2} parent=1 // loop_header_branch
      %18 = sbr.rel (%p16) target = $region8
    $region5: #{vae_forward.2} parent=1 // loop_body
      %s20 = ssub.s32 %s15, 1
      %s21 = ssub.s32 %s15, 2
      %s22 = sadd.s32 %s15, 1
      %s23 = ssub.s32 %s15, %s22
      %p24 = scmp.eq.s32.totalorder %s23, 0
      %s26 = sadd.s32 %s25, 1
      %s27 = scalar_select %p24, %s25, %s26
      %p30 = pneg %p24
      %p31 = scmp.eq.s32.totalorder %s15, 1
      %p32 = por %p30, %p31
      %p33 = scmp.ne.s32.totalorder %s25, %s28
      %p34 = scmp.eq.s32.totalorder %s15, 0
      %p35 = por %p33, %p34
      %p36 = scmp.ne.s32.totalorder %s25, %s28
      %p37 = scmp.eq.s32.totalorder %s20, 1
      %p38 = por %p36, %p37
      %p39 = scmp.ne.s32.totalorder %s28, %s29
      %p40 = scmp.eq.s32.totalorder %s20, 0
      %p41 = por %p39, %p40
      %p42 = scmp.ne.s32.totalorder %s28, %s29
      %p43 = scmp.eq.s32.totalorder %s21, 1
      %p44 = por %p42, %p43
      %p46 = scmp.ne.s32.totalorder %s29, %s45
      %p47 = scmp.eq.s32.totalorder %s21, 0
      %p48 = por %p46, %p47
      %s50 = sadd.s32 %s49, 1
      %p53 = scmp.eq.s32.totalorder %s15, 1
      %p54 = scmp.ne.s32.totalorder %s49, %s51
      %p55 = scmp.eq.s32.totalorder %s15, 0
      %p56 = por %p54, %p55
      %p57 = scmp.ne.s32.totalorder %s49, %s51
      %p58 = scmp.eq.s32.totalorder %s20, 1
      %p59 = por %p57, %p58
      %p60 = scmp.ne.s32.totalorder %s51, %s52
      %p61 = scmp.eq.s32.totalorder %s20, 0
      %p62 = por %p60, %p61
      %p63 = scmp.ne.s32.totalorder %s51, %s52
      %p64 = scmp.eq.s32.totalorder %s21, 1
      %p65 = por %p63, %p64
      %p67 = scmp.ne.s32.totalorder %s52, %s66
      %p68 = scmp.eq.s32.totalorder %s21, 0
      %p69 = por %p67, %p68
      %s71 = sadd.s32 %s70, 1
      %p74 = scmp.eq.s32.totalorder %s15, 1
      %p75 = scmp.ne.s32.totalorder %s70, %s72
      %p76 = scmp.eq.s32.totalorder %s15, 0
      %p77 = por %p75, %p76
      %p78 = scmp.ne.s32.totalorder %s70, %s72
      %p79 = scmp.eq.s32.totalorder %s20, 1
      %p80 = por %p78, %p79
      %p81 = scmp.ne.s32.totalorder %s72, %s73
      %p82 = scmp.eq.s32.totalorder %s20, 0
      %p83 = por %p81, %p82
      %p84 = scmp.ne.s32.totalorder %s72, %s73
      %p85 = scmp.eq.s32.totalorder %s21, 1
      %p86 = por %p84, %p85
      %p88 = scmp.ne.s32.totalorder %s73, %s87
      %p89 = scmp.eq.s32.totalorder %s21, 0
      %p90 = por %p88, %p89
      %s92 = sadd.s32 %s91, 1
      %p95 = scmp.eq.s32.totalorder %s15, 1
      %p96 = scmp.ne.s32.totalorder %s91, %s93
      %p97 = scmp.eq.s32.totalorder %s15, 0
      %p98 = por %p96, %p97
      %p99 = scmp.ne.s32.totalorder %s91, %s93
      %p100 = scmp.eq.s32.totalorder %s20, 1
      %p101 = por %p99, %p100
      %p102 = scmp.ne.s32.totalorder %s93, %s94
      %p103 = scmp.eq.s32.totalorder %s20, 0
      %p104 = por %p102, %p103
      %p105 = scmp.ne.s32.totalorder %s93, %s94
      %p106 = scmp.eq.s32.totalorder %s21, 1
      %p107 = por %p105, %p106
      %p109 = scmp.ne.s32.totalorder %s94, %s108
      %p110 = scmp.eq.s32.totalorder %s21, 0
      %p111 = por %p109, %p110
      %s113 = sadd.s32 %s112, 1
      %p116 = scmp.eq.s32.totalorder %s15, 1
      %p117 = scmp.ne.s32.totalorder %s112, %s114
      %p118 = scmp.eq.s32.totalorder %s15, 0
      %p119 = por %p117, %p118
      %p120 = scmp.ne.s32.totalorder %s112, %s114
      %p121 = scmp.eq.s32.totalorder %s20, 1
      %p122 = por %p120, %p121
      %p123 = scmp.ne.s32.totalorder %s114, %s115
      %p124 = scmp.eq.s32.totalorder %s20, 0
      %p125 = por %p123, %p124
      %p126 = scmp.ne.s32.totalorder %s114, %s115
      %p127 = scmp.eq.s32.totalorder %s21, 1
      %p128 = por %p126, %p127
      %p130 = scmp.ne.s32.totalorder %s115, %s129
      %p131 = scmp.eq.s32.totalorder %s21, 0
      %p132 = por %p130, %p131
      %s134 = sadd.s32 %s133, 1
      %p137 = scmp.eq.s32.totalorder %s15, 1
      %p138 = scmp.ne.s32.totalorder %s133, %s135
      %p139 = scmp.eq.s32.totalorder %s15, 0
      %p140 = por %p138, %p139
      %p141 = scmp.ne.s32.totalorder %s133, %s135
      %p142 = scmp.eq.s32.totalorder %s20, 1
      %p143 = por %p141, %p142
      %p144 = scmp.ne.s32.totalorder %s135, %s136
      %p145 = scmp.eq.s32.totalorder %s20, 0
      %p146 = por %p144, %p145
      %p147 = scmp.ne.s32.totalorder %s135, %s136
      %p148 = scmp.eq.s32.totalorder %s21, 1
      %p149 = por %p147, %p148
      %p151 = scmp.ne.s32.totalorder %s136, %s150
      %p152 = scmp.eq.s32.totalorder %s21, 0
      %p153 = por %p151, %p152
      %s155 = sadd.s32 %s154, 1
      %p158 = scmp.eq.s32.totalorder %s15, 1
      %p159 = scmp.ne.s32.totalorder %s154, %s156
      %p160 = scmp.eq.s32.totalorder %s15, 0
      %p161 = por %p159, %p160
      %p162 = scmp.ne.s32.totalorder %s154, %s156
      %p163 = scmp.eq.s32.totalorder %s20, 1
      %p164 = por %p162, %p163
      %p165 = scmp.ne.s32.totalorder %s156, %s157
      %p166 = scmp.eq.s32.totalorder %s20, 0
      %p167 = por %p165, %p166
      %p168 = scmp.ne.s32.totalorder %s156, %s157
      %p169 = scmp.eq.s32.totalorder %s21, 1
      %p170 = por %p168, %p169
      %p172 = scmp.ne.s32.totalorder %s157, %s171
      %p173 = scmp.eq.s32.totalorder %s21, 0
      %p174 = por %p172, %p173
      %s175 = ssub.s32 %s15, %s22
      %p176 = scmp.eq.s32.totalorder %s175, 0
      %s178 = sadd.s32 %s177, 1
      %s179 = scalar_select %p176, %s177, %s178
      %p182 = pneg %p176
      %p183 = scmp.eq.s32.totalorder %s15, 1
      %p184 = por %p182, %p183
      %p185 = scmp.ne.s32.totalorder %s177, %s180
      %p186 = scmp.eq.s32.totalorder %s15, 0
      %p187 = por %p185, %p186
      %p188 = scmp.ne.s32.totalorder %s177, %s180
      %p189 = scmp.eq.s32.totalorder %s20, 1
      %p190 = por %p188, %p189
      %p191 = scmp.ne.s32.totalorder %s180, %s181
      %p192 = scmp.eq.s32.totalorder %s20, 0
      %p193 = por %p191, %p192
      %p194 = scmp.ne.s32.totalorder %s180, %s181
      %p195 = scmp.eq.s32.totalorder %s21, 1
      %p196 = por %p194, %p195
      %p198 = scmp.ne.s32.totalorder %s181, %s197
      %p199 = scmp.eq.s32.totalorder %s21, 0
      %p200 = por %p198, %p199
      %p201 = scmp.le.s32.totalorder 1, %s15
      %p202 = scmp.lt.s32.totalorder %s15, 3
      %p203 = pnand %p201, %p202
      %p204 = pneg %p203
      // Predicated region
      $region9: #{vae_forward.2} parent=5 // pred_check
        _
      $region10: #{vae_forward.2} parent=5 // pred_check_branch
        %206 = sbr.rel (%p203) target = $region12
      $region11: #{vae_forward.2} parent=5 // pred_region
        %s207 = ssub.s32 %s15, 1
        // Predicated region
        $region13: #{vae_forward.2} parent=11 // pred_check
          %p208 = pneg %p62
        $region14: #{vae_forward.2} parent=11 // pred_check_branch
          %210 = sbr.rel (%p208) target = $region16
        $region15: #{vae_forward.2} parent=11 // pred_region
          %s212 = ssub.s32 128, 128
          %213 = vsyncadd [#allocation3], %s212
          %s214 = sshll.u32 [#allocation2], 4
          %s215 = int_to_ptr.vmem [resolvable:$true] %s214
          %220 = dma.hbm_to_vmem [thread:$0]  %s1, 128, %s215, [#allocation3], 64, 64, 4
        $region16: #{vae_forward.2} parent=11 // pred_fallthru
          _
        // Predicated region
        $region17: #{vae_forward.2} parent=11 // pred_check
          %p221 = pneg %p83
        $region18: #{vae_forward.2} parent=11 // pred_check_branch
          %223 = sbr.rel (%p221) target = $region20
        $region19: #{vae_forward.2} parent=11 // pred_region
          _
        $region20: #{vae_forward.2} parent=11 // pred_fallthru
          _
        // Predicated region
        $region21: #{vae_forward.2} parent=11 // pred_check
          %p224 = pneg %p104
        $region22: #{vae_forward.2} parent=11 // pred_check_branch
          %226 = sbr.rel (%p224) target = $region24
        $region23: #{vae_forward.2} parent=11 // pred_region
          %s228 = ssub.s32 1024, 1024
          %229 = vsyncadd [#allocation5], %s228
          %s230 = sshll.u32 [#allocation4], 4
          %s231 = int_to_ptr.vmem [resolvable:$true] %s230
          %236 = dma.hbm_to_vmem [thread:$0]  %s3, 1024, %s231, [#allocation5], 256, 256, 16
        $region24: #{vae_forward.2} parent=11 // pred_fallthru
          _
        // Predicated region
        $region25: #{vae_forward.2} parent=11 // pred_check
          %p237 = pneg %p125
        $region26: #{vae_forward.2} parent=11 // pred_check_branch
          %239 = sbr.rel (%p237) target = $region28
        $region27: #{vae_forward.2} parent=11 // pred_region
          _
        $region28: #{vae_forward.2} parent=11 // pred_fallthru
          _
        // Predicated region
        $region29: #{vae_forward.2} parent=11 // pred_check
          %p240 = pneg %p146
        $region30: #{vae_forward.2} parent=11 // pred_check_branch
          %242 = sbr.rel (%p240) target = $region32
        $region31: #{vae_forward.2} parent=11 // pred_region
          %s244 = ssub.s32 40960, 40960
          %245 = vsyncadd [#allocation5], %s244
          %s246 = sshll.u32 [#allocation6], 4
          %s247 = int_to_ptr.vmem [resolvable:$true] %s246
          %252 = dma.hbm_to_vmem [thread:$0]  %s5, 40960, %s247, [#allocation5], 320, 320, 20
        $region32: #{vae_forward.2} parent=11 // pred_fallthru
          _
        // Predicated region
        $region33: #{vae_forward.2} parent=11 // pred_check
          %p253 = pneg %p167
        $region34: #{vae_forward.2} parent=11 // pred_check_branch
          %255 = sbr.rel (%p253) target = $region36
        $region35: #{vae_forward.2} parent=11 // pred_region
          _
        $region36: #{vae_forward.2} parent=11 // pred_fallthru
          _
      $region12: #{vae_forward.2} parent=5 // pred_fallthru
        _
      %p256 = scmp.lt.s32.totalorder %s15, 2
      // Predicated region
      $region37: #{vae_forward.2} parent=5 // pred_check
        %p257 = pneg %p256
      $region38: #{vae_forward.2} parent=5 // pred_check_branch
        %259 = sbr.rel (%p257) target = $region40
      $region39: #{vae_forward.2} parent=5 // pred_region
        // Predicated region
        $region41: #{vae_forward.2} parent=39 // pred_check
          %p260 = pneg %p35
        $region42: #{vae_forward.2} parent=39 // pred_check_branch
          %262 = sbr.rel (%p260) target = $region44
        $region43: #{vae_forward.2} parent=39 // pred_region
          %p263 = scmp.lt.s32.totalorder %s15, 1
          %s264 = scalar_select %p263, %s15, 1
          %s265 = smul.addr %s264, 7
          %s266 = scalar_lea.vmem %s0, %s265
        $region44: #{vae_forward.2} parent=39 // pred_fallthru
          _
      $region40: #{vae_forward.2} parent=5 // pred_fallthru
        _
      %p267 = scmp.le.s32.totalorder 1, %s15
      %p268 = scmp.lt.s32.totalorder %s15, 3
      %p269 = pnand %p267, %p268
      %p270 = pneg %p269
      // Predicated region
      $region45: #{vae_forward.2} parent=5 // pred_check
        _
      $region46: #{vae_forward.2} parent=5 // pred_check_branch
        %272 = sbr.rel (%p269) target = $region48
      $region47: #{vae_forward.2} parent=5 // pred_region
        %s273 = ssub.s32 %s15, 1
        // Predicated region
        $region49: #{vae_forward.2} parent=47 // pred_check
          %p274 = pneg %p62
        $region50: #{vae_forward.2} parent=47 // pred_check_branch
          %276 = sbr.rel (%p274) target = $region52
        $region51: #{vae_forward.2} parent=47 // pred_region
          %277 = dma.done [#allocation3], 128
        $region52: #{vae_forward.2} parent=47 // pred_fallthru
          _
        // Predicated region
        $region53: #{vae_forward.2} parent=47 // pred_check
          %p278 = pneg %p104
        $region54: #{vae_forward.2} parent=47 // pred_check_branch
          %280 = sbr.rel (%p278) target = $region56
        $region55: #{vae_forward.2} parent=47 // pred_region
          %281 = dma.done [#allocation5], 1024
        $region56: #{vae_forward.2} parent=47 // pred_fallthru
          _
        // Predicated region
        $region57: #{vae_forward.2} parent=47 // pred_check
          %p282 = pneg %p146
        $region58: #{vae_forward.2} parent=47 // pred_check_branch
          %284 = sbr.rel (%p282) target = $region60
        $region59: #{vae_forward.2} parent=47 // pred_region
          %285 = dma.done [#allocation5], 40960
        $region60: #{vae_forward.2} parent=47 // pred_fallthru
          _
        %p286 = scmp.lt.s32.totalorder %s20, 1
        %s287 = scalar_select %p286, %s20, 1
        %s288 = smul.addr %s287, 7
        %s289 = scalar_lea.vmem %s0, %s288
        %p290 = pneg %p41
        %p291 = pneg %p38
        %p292 = pneg %p62
        %p293 = pneg %p59
        %p294 = pneg %p83
        %p295 = pneg %p80
        %p296 = pneg %p104
        %p297 = pneg %p101
        %p298 = pneg %p125
        %p299 = pneg %p122
        %p300 = pneg %p146
        %p301 = pneg %p143
        %p302 = pneg %p167
        %p303 = pneg %p164
        %p304 = pneg %p193
        %p305 = pneg %p190
        %p306 = scmp.lt.s32.totalorder %s20, 1
        %s307 = scalar_select %p306, %s20, 1
        %s308 = smul.addr %s307, 4
        %s309 = smul.addr %s308, 8
        %s310 = scalar_lea.vmem %s7, %s309
        %p311 = scmp.lt.s32.totalorder %s20, 1
        %s312 = scalar_select %p311, %s20, 1
        %s313 = smul.addr %s312, 7
        %s314 = scalar_lea.vmem %s0, %s313
        %p315 = scmp.lt.s32.totalorder %s20, 1
        %s316 = scalar_select %p315, %s20, 1
        %s317 = smul.addr %s316, 4
        %s318 = smul.addr %s317, 8
        %s319 = scalar_lea.vmem %s7, %s318
        %v321 = vld [vmem:[%s314] sm:$0x7f]
        %v323 = vcombine.high %v321, %v321
        %v325 = vunpack.c.l.s4 1966171168
        %v326 = vunpack.c.0.s8 %v325
        %v327 = vlaneseq
        %v328 = vshrl.u32 %v327, 7
        %v329 = vsub.s32 %v326, %v328
        %v330 = vrot.slane %v321, %v329
        %v332 = vunpack.c.l.s4 1966171168
        %v333 = vunpack.c.0.s8 %v332
        %v334 = vlaneseq
        %v335 = vshrl.u32 %v334, 7
        %v336 = vsub.s32 %v333, %v335
        %v337 = vrot.slane %v323, %v336
        %v338 = vcombine.high %v330, %v330
        %v339 = vcombine.high %v337, %v337
        %v341 = vunpack.c.l.s4 1966171168
        %v342 = vunpack.c.0.s8 %v341
        %v343 = vlaneseq
        %v344 = vshrl.u32 %v343, 7
        %v345 = vsub.s32 %v342, %v344
        %v346 = vrot.slane %v330, %v345
        %v348 = vunpack.c.l.s4 1966171168
        %v349 = vunpack.c.0.s8 %v348
        %v350 = vlaneseq
        %v351 = vshrl.u32 %v350, 7
        %v352 = vsub.s32 %v349, %v351
        %v353 = vrot.slane %v337, %v352
        %v355 = vunpack.c.l.s4 1966171168
        %v356 = vunpack.c.0.s8 %v355
        %v357 = vlaneseq
        %v358 = vshrl.u32 %v357, 7
        %v359 = vsub.s32 %v356, %v358
        %v360 = vrot.slane %v338, %v359
        %v362 = vunpack.c.l.s4 1966171168
        %v363 = vunpack.c.0.s8 %v362
        %v364 = vlaneseq
        %v365 = vshrl.u32 %v364, 7
        %v366 = vsub.s32 %v363, %v365
        %v367 = vrot.slane %v339, %v366
        %v368 = vcombine.high %v346, %v346
        %v369 = vcombine.high %v360, %v360
        %v377 = vshll.u32 %v346, 16
        %v380 = vshll.u32 %v360, 16
        %v383 = vshll.u32 %v368, 16
        %v386 = vshll.u32 %v369, 16
        %v389 = vshll.u32 %v353, 16
        %v392 = vshll.u32 %v367, 16
        %394 = vrot.lane.b32.xlu0 %v377, 127
        %v395 = vpop.permute.xlu0 %394
        %396 = vrot.lane.b32.xlu0 %v380, 127
        %v397 = vpop.permute.xlu0 %396
        %398 = vrot.lane.b32.xlu0 %v383, 127
        %v399 = vpop.permute.xlu0 %398
        %400 = vrot.lane.b32.xlu0 %v386, 127
        %v401 = vpop.permute.xlu0 %400
        %402 = vrot.lane.b32.xlu0 %v389, 127
        %v403 = vpop.permute.xlu0 %402
        %404 = vrot.lane.b32.xlu0 %v392, 127
        %v405 = vpop.permute.xlu0 %404
        %vm406 = vcmask 1039360
        %v407 = vsel %vm406, %v395, %v397
        %v408 = vsel %vm406, %v397, %v399
        %v409 = vsel %vm406, %v399, %v401
        %v410 = vsel %vm406, %v401, %v403
        %v411 = vsel %vm406, %v403, %v405
        %v418 = vcombine.low %v321, %v321
        %v420 = vunpack.c.l.s4 1966171168
        %v421 = vunpack.c.0.s8 %v420
        %v422 = vlaneseq
        %v423 = vshrl.u32 %v422, 7
        %v424 = vsub.s32 %v421, %v423
        %v425 = vrot.slane %v418, %v424
        %v426 = vcombine.high %v425, %v425
        %v428 = vunpack.c.l.s4 1966171168
        %v429 = vunpack.c.0.s8 %v428
        %v430 = vlaneseq
        %v431 = vshrl.u32 %v430, 7
        %v432 = vsub.s32 %v429, %v431
        %v433 = vrot.slane %v425, %v432
        %v435 = vunpack.c.l.s4 1966171168
        %v436 = vunpack.c.0.s8 %v435
        %v437 = vlaneseq
        %v438 = vshrl.u32 %v437, 7
        %v439 = vsub.s32 %v436, %v438
        %v440 = vrot.slane %v426, %v439
        %v441 = vcombine.high %v433, %v433
        %v442 = vcombine.high %v440, %v440
        %443 = vrot.lane.b32.xlu0 %v433, 126
        %v444 = vpop.permute.xlu0 %443
        %445 = vrot.lane.b32.xlu0 %v440, 126
        %v446 = vpop.permute.xlu0 %445
        %447 = vrot.lane.b32.xlu0 %v441, 126
        %v448 = vpop.permute.xlu0 %447
        %449 = vrot.lane.b32.xlu0 %v442, 126
        %v450 = vpop.permute.xlu0 %449
        %451 = vrot.lane.b32.xlu0 %v346, 126
        %v452 = vpop.permute.xlu0 %451
        %453 = vrot.lane.b32.xlu0 %v360, 126
        %v454 = vpop.permute.xlu0 %453
        %vm455 = vcmask 1031168
        %v456 = vsel %vm455, %v444, %v446
        %v457 = vsel %vm455, %v446, %v448
        %v458 = vsel %vm455, %v448, %v450
        %v459 = vsel %vm455, %v450, %v452
        %v460 = vsel %vm455, %v452, %v454
        %v461 = vrot.slane %v377, 7
        %v462 = vrot.slane %v380, 7
        %v463 = vrot.slane %v383, 7
        %v464 = vrot.slane %v386, 7
        %v465 = vrot.slane %v389, 7
        %v466 = vrot.slane %v392, 7
        %467 = vrot.lane.b32.xlu0 %v461, 125
        %v468 = vpop.permute.xlu0 %467
        %469 = vrot.lane.b32.xlu0 %v462, 125
        %v470 = vpop.permute.xlu0 %469
        %471 = vrot.lane.b32.xlu0 %v463, 125
        %v472 = vpop.permute.xlu0 %471
        %473 = vrot.lane.b32.xlu0 %v464, 125
        %v474 = vpop.permute.xlu0 %473
        %475 = vrot.lane.b32.xlu0 %v465, 125
        %v476 = vpop.permute.xlu0 %475
        %477 = vrot.lane.b32.xlu0 %v466, 125
        %v478 = vpop.permute.xlu0 %477
        %vm479 = vcmask 1022976
        %v480 = vsel %vm479, %v468, %v470
        %v481 = vsel %vm479, %v470, %v472
        %v482 = vsel %vm479, %v472, %v474
        %v483 = vsel %vm479, %v474, %v476
        %v484 = vsel %vm479, %v476, %v478
        %v491 = vcombine.low %v330, %v330
        %v492 = vcombine.low %v337, %v337
        %v494 = vunpack.c.l.s4 1966171168
        %v495 = vunpack.c.0.s8 %v494
        %v496 = vlaneseq
        %v497 = vshrl.u32 %v496, 7
        %v498 = vsub.s32 %v495, %v497
        %v499 = vrot.slane %v491, %v498
        %v501 = vunpack.c.l.s4 1966171168
        %v502 = vunpack.c.0.s8 %v501
        %v503 = vlaneseq
        %v504 = vshrl.u32 %v503, 7
        %v505 = vsub.s32 %v502, %v504
        %v506 = vrot.slane %v492, %v505
        %v507 = vcombine.high %v499, %v499
        %508 = vrot.lane.b32.xlu0 %v499, 124
        %v509 = vpop.permute.xlu0 %508
        %510 = vrot.lane.b32.xlu0 %v346, 124
        %v511 = vpop.permute.xlu0 %510
        %512 = vrot.lane.b32.xlu0 %v507, 124
        %v513 = vpop.permute.xlu0 %512
        %514 = vrot.lane.b32.xlu0 %v368, 124
        %v515 = vpop.permute.xlu0 %514
        %516 = vrot.lane.b32.xlu0 %v506, 124
        %v517 = vpop.permute.xlu0 %516
        %518 = vrot.lane.b32.xlu0 %v353, 124
        %v519 = vpop.permute.xlu0 %518
        %vm520 = vcmask 1014784
        %v521 = vsel %vm520, %v509, %v511
        %v522 = vsel %vm520, %v511, %v513
        %v523 = vsel %vm520, %v513, %v515
        %v524 = vsel %vm520, %v515, %v517
        %v525 = vsel %vm520, %v517, %v519
        %v526 = vrot.slane %v377, 6
        %v527 = vrot.slane %v380, 6
        %v528 = vrot.slane %v383, 6
        %v529 = vrot.slane %v386, 6
        %v530 = vrot.slane %v389, 6
        %v531 = vrot.slane %v392, 6
        %532 = vrot.lane.b32.xlu0 %v526, 100
        %v533 = vpop.permute.xlu0 %532
        %534 = vrot.lane.b32.xlu0 %v527, 100
        %v535 = vpop.permute.xlu0 %534
        %536 = vrot.lane.b32.xlu0 %v528, 100
        %v537 = vpop.permute.xlu0 %536
        %538 = vrot.lane.b32.xlu0 %v529, 100
        %v539 = vpop.permute.xlu0 %538
        %540 = vrot.lane.b32.xlu0 %v530, 100
        %v541 = vpop.permute.xlu0 %540
        %542 = vrot.lane.b32.xlu0 %v531, 100
        %v543 = vpop.permute.xlu0 %542
        %vm544 = vcmask 818176
        %v545 = vsel %vm544, %v533, %v535
        %v546 = vsel %vm544, %v535, %v537
        %v547 = vsel %vm544, %v537, %v539
        %v548 = vsel %vm544, %v539, %v541
        %v549 = vsel %vm544, %v541, %v543
        %v556 = vcombine.low %v425, %v425
        %v558 = vunpack.c.l.s4 1966171168
        %v559 = vunpack.c.0.s8 %v558
        %v560 = vlaneseq
        %v561 = vshrl.u32 %v560, 7
        %v562 = vsub.s32 %v559, %v561
        %v563 = vrot.slane %v556, %v562
        %v564 = vcombine.high %v563, %v563
        %565 = vrot.lane.b32.xlu0 %v563, 99
        %v566 = vpop.permute.xlu0 %565
        %567 = vrot.lane.b32.xlu0 %v433, 99
        %v568 = vpop.permute.xlu0 %567
        %569 = vrot.lane.b32.xlu0 %v564, 99
        %v570 = vpop.permute.xlu0 %569
        %571 = vrot.lane.b32.xlu0 %v441, 99
        %v572 = vpop.permute.xlu0 %571
        %573 = vrot.lane.b32.xlu0 %v499, 99
        %v574 = vpop.permute.xlu0 %573
        %575 = vrot.lane.b32.xlu0 %v346, 99
        %v576 = vpop.permute.xlu0 %575
        %vm577 = vcmask 809984
        %v578 = vsel %vm577, %v566, %v568
        %v579 = vsel %vm577, %v568, %v570
        %v580 = vsel %vm577, %v570, %v572
        %v581 = vsel %vm577, %v572, %v574
        %v582 = vsel %vm577, %v574, %v576
        %v583 = vrot.slane %v377, 5
        %v584 = vrot.slane %v380, 5
        %v585 = vrot.slane %v383, 5
        %v586 = vrot.slane %v386, 5
        %v587 = vrot.slane %v389, 5
        %v588 = vrot.slane %v392, 5
        %589 = vrot.lane.b32.xlu0 %v583, 98
        %v590 = vpop.permute.xlu0 %589
        %591 = vrot.lane.b32.xlu0 %v584, 98
        %v592 = vpop.permute.xlu0 %591
        %593 = vrot.lane.b32.xlu0 %v585, 98
        %v594 = vpop.permute.xlu0 %593
        %595 = vrot.lane.b32.xlu0 %v586, 98
        %v596 = vpop.permute.xlu0 %595
        %597 = vrot.lane.b32.xlu0 %v587, 98
        %v598 = vpop.permute.xlu0 %597
        %599 = vrot.lane.b32.xlu0 %v588, 98
        %v600 = vpop.permute.xlu0 %599
        %vm601 = vcmask 801792
        %v602 = vsel %vm601, %v590, %v592
        %v603 = vsel %vm601, %v592, %v594
        %v604 = vsel %vm601, %v594, %v596
        %v605 = vsel %vm601, %v596, %v598
        %v606 = vsel %vm601, %v598, %v600
        %v613 = vcombine.low %v346, %v346
        %v614 = vcombine.low %v353, %v353
        %v615 = vcombine.low %v360, %v360
        %v616 = vcombine.low %v367, %v367
        %617 = vrot.lane.b32.xlu0 %v613, 97
        %v618 = vpop.permute.xlu0 %617
        %619 = vrot.lane.b32.xlu0 %v615, 97
        %v620 = vpop.permute.xlu0 %619
        %621 = vrot.lane.b32.xlu0 %v346, 97
        %v622 = vpop.permute.xlu0 %621
        %623 = vrot.lane.b32.xlu0 %v360, 97
        %v624 = vpop.permute.xlu0 %623
        %625 = vrot.lane.b32.xlu0 %v614, 97
        %v626 = vpop.permute.xlu0 %625
        %627 = vrot.lane.b32.xlu0 %v616, 97
        %v628 = vpop.permute.xlu0 %627
        %vm629 = vcmask 793600
        %v630 = vsel %vm629, %v618, %v620
        %v631 = vsel %vm629, %v620, %v622
        %v632 = vsel %vm629, %v622, %v624
        %v633 = vsel %vm629, %v624, %v626
        %v634 = vsel %vm629, %v626, %v628
        %v635 = vrot.slane %v377, 4
        %v636 = vrot.slane %v380, 4
        %v637 = vrot.slane %v383, 4
        %v638 = vrot.slane %v386, 4
        %v639 = vrot.slane %v389, 4
        %v640 = vrot.slane %v392, 4
        %641 = vrot.lane.b32.xlu0 %v635, 96
        %v642 = vpop.permute.xlu0 %641
        %643 = vrot.lane.b32.xlu0 %v636, 96
        %v644 = vpop.permute.xlu0 %643
        %645 = vrot.lane.b32.xlu0 %v637, 96
        %v646 = vpop.permute.xlu0 %645
        %647 = vrot.lane.b32.xlu0 %v638, 96
        %v648 = vpop.permute.xlu0 %647
        %649 = vrot.lane.b32.xlu0 %v639, 96
        %v650 = vpop.permute.xlu0 %649
        %651 = vrot.lane.b32.xlu0 %v640, 96
        %v652 = vpop.permute.xlu0 %651
        %vm653 = vcmask 785408
        %v654 = vsel %vm653, %v642, %v644
        %v655 = vsel %vm653, %v644, %v646
        %v656 = vsel %vm653, %v646, %v648
        %v657 = vsel %vm653, %v648, %v650
        %v658 = vsel %vm653, %v650, %v652
        %v665 = vcombine.low %v433, %v433
        %v666 = vcombine.low %v440, %v440
        %667 = vrot.lane.b32.xlu0 %v665, 72
        %v668 = vpop.permute.xlu0 %667
        %669 = vrot.lane.b32.xlu0 %v666, 72
        %v670 = vpop.permute.xlu0 %669
        %671 = vrot.lane.b32.xlu0 %v433, 72
        %v672 = vpop.permute.xlu0 %671
        %673 = vrot.lane.b32.xlu0 %v440, 72
        %v674 = vpop.permute.xlu0 %673
        %675 = vrot.lane.b32.xlu0 %v613, 72
        %v676 = vpop.permute.xlu0 %675
        %677 = vrot.lane.b32.xlu0 %v615, 72
        %v678 = vpop.permute.xlu0 %677
        %vm679 = vcmask 588800
        %v680 = vsel %vm679, %v668, %v670
        %v681 = vsel %vm679, %v670, %v672
        %v682 = vsel %vm679, %v672, %v674
        %v683 = vsel %vm679, %v674, %v676
        %v684 = vsel %vm679, %v676, %v678
        %v685 = vrot.slane %v377, 3
        %v686 = vrot.slane %v380, 3
        %v687 = vrot.slane %v383, 3
        %v688 = vrot.slane %v386, 3
        %v689 = vrot.slane %v389, 3
        %v690 = vrot.slane %v392, 3
        %691 = vrot.lane.b32.xlu0 %v685, 71
        %v692 = vpop.permute.xlu0 %691
        %693 = vrot.lane.b32.xlu0 %v686, 71
        %v694 = vpop.permute.xlu0 %693
        %695 = vrot.lane.b32.xlu0 %v687, 71
        %v696 = vpop.permute.xlu0 %695
        %697 = vrot.lane.b32.xlu0 %v688, 71
        %v698 = vpop.permute.xlu0 %697
        %699 = vrot.lane.b32.xlu0 %v689, 71
        %v700 = vpop.permute.xlu0 %699
        %701 = vrot.lane.b32.xlu0 %v690, 71
        %v702 = vpop.permute.xlu0 %701
        %vm703 = vcmask 580608
        %v704 = vsel %vm703, %v692, %v694
        %v705 = vsel %vm703, %v694, %v696
        %v706 = vsel %vm703, %v696, %v698
        %v707 = vsel %vm703, %v698, %v700
        %v708 = vsel %vm703, %v700, %v702
        %v715 = vcombine.low %v499, %v499
        %v716 = vcombine.low %v506, %v506
        %717 = vrot.lane.b32.xlu0 %v715, 70
        %v718 = vpop.permute.xlu0 %717
        %719 = vrot.lane.b32.xlu0 %v613, 70
        %v720 = vpop.permute.xlu0 %719
        %721 = vrot.lane.b32.xlu0 %v499, 70
        %v722 = vpop.permute.xlu0 %721
        %723 = vrot.lane.b32.xlu0 %v346, 70
        %v724 = vpop.permute.xlu0 %723
        %725 = vrot.lane.b32.xlu0 %v716, 70
        %v726 = vpop.permute.xlu0 %725
        %727 = vrot.lane.b32.xlu0 %v614, 70
        %v728 = vpop.permute.xlu0 %727
        %vm729 = vcmask 572416
        %v730 = vsel %vm729, %v718, %v720
        %v731 = vsel %vm729, %v720, %v722
        %v732 = vsel %vm729, %v722, %v724
        %v733 = vsel %vm729, %v724, %v726
        %v734 = vsel %vm729, %v726, %v728
        %v735 = vrot.slane %v377, 2
        %v736 = vrot.slane %v380, 2
        %v737 = vrot.slane %v383, 2
        %v738 = vrot.slane %v386, 2
        %v739 = vrot.slane %v389, 2
        %v740 = vrot.slane %v392, 2
        %741 = vrot.lane.b32.xlu0 %v735, 69
        %v742 = vpop.permute.xlu0 %741
        %743 = vrot.lane.b32.xlu0 %v736, 69
        %v744 = vpop.permute.xlu0 %743
        %745 = vrot.lane.b32.xlu0 %v737, 69
        %v746 = vpop.permute.xlu0 %745
        %747 = vrot.lane.b32.xlu0 %v738, 69
        %v748 = vpop.permute.xlu0 %747
        %749 = vrot.lane.b32.xlu0 %v739, 69
        %v750 = vpop.permute.xlu0 %749
        %751 = vrot.lane.b32.xlu0 %v740, 69
        %v752 = vpop.permute.xlu0 %751
        %vm753 = vcmask 564224
        %v754 = vsel %vm753, %v742, %v744
        %v755 = vsel %vm753, %v744, %v746
        %v756 = vsel %vm753, %v746, %v748
        %v757 = vsel %vm753, %v748, %v750
        %v758 = vsel %vm753, %v750, %v752
        %v765 = vcombine.low %v563, %v563
        %766 = vrot.lane.b32.xlu0 %v765, 68
        %v767 = vpop.permute.xlu0 %766
        %768 = vrot.lane.b32.xlu0 %v665, 68
        %v769 = vpop.permute.xlu0 %768
        %770 = vrot.lane.b32.xlu0 %v563, 68
        %v771 = vpop.permute.xlu0 %770
        %772 = vrot.lane.b32.xlu0 %v433, 68
        %v773 = vpop.permute.xlu0 %772
        %774 = vrot.lane.b32.xlu0 %v715, 68
        %v775 = vpop.permute.xlu0 %774
        %776 = vrot.lane.b32.xlu0 %v613, 68
        %v777 = vpop.permute.xlu0 %776
        %vm778 = vcmask 556032
        %v779 = vsel %vm778, %v767, %v769
        %v780 = vsel %vm778, %v769, %v771
        %v781 = vsel %vm778, %v771, %v773
        %v782 = vsel %vm778, %v773, %v775
        %v783 = vsel %vm778, %v775, %v777
        %v784 = vrot.slane %v377, 1
        %v785 = vrot.slane %v380, 1
        %v786 = vrot.slane %v383, 1
        %v787 = vrot.slane %v386, 1
        %v788 = vrot.slane %v389, 1
        %v789 = vrot.slane %v392, 1
        %790 = vrot.lane.b32.xlu0 %v784, 44
        %v791 = vpop.permute.xlu0 %790
        %792 = vrot.lane.b32.xlu0 %v785, 44
        %v793 = vpop.permute.xlu0 %792
        %794 = vrot.lane.b32.xlu0 %v786, 44
        %v795 = vpop.permute.xlu0 %794
        %796 = vrot.lane.b32.xlu0 %v787, 44
        %v797 = vpop.permute.xlu0 %796
        %798 = vrot.lane.b32.xlu0 %v788, 44
        %v799 = vpop.permute.xlu0 %798
        %800 = vrot.lane.b32.xlu0 %v789, 44
        %v801 = vpop.permute.xlu0 %800
        %vm802 = vcmask 359424
        %v803 = vsel %vm802, %v791, %v793
        %v804 = vsel %vm802, %v793, %v795
        %v805 = vsel %vm802, %v795, %v797
        %v806 = vsel %vm802, %v797, %v799
        %v807 = vsel %vm802, %v799, %v801
        %vm814 = vcmask 1040384
        %vm815 = vsmask.f32 256
        %vm816 = vmand %vm814, %vm815
        %v817 = vsel %vm816, %v346, %v407
        %v818 = vsel %vm816, %v360, %v408
        %v819 = vsel %vm816, %v368, %v409
        %v820 = vsel %vm816, %v369, %v410
        %v821 = vsel %vm816, %v353, %v411
        %v822 = vsel %vm816, %v367, %v405
        %vm823 = vcmask 1040384
        %v826 = vsel %vm823, %v817, %v456
        %v830 = vsel %vm823, %v818, %v457
        %v834 = vsel %vm823, %v819, %v458
        %v838 = vsel %vm823, %v820, %v459
        %v842 = vsel %vm823, %v821, %v460
        %v846 = vsel %vm823, %v822, %v454
        %vm848 = vcmask 1041408
        %vm849 = vsmask.f32 1280
        %vm850 = vmand %vm848, %vm849
        %v851 = vsel %vm850, %v826, %v480
        %v852 = vsel %vm850, %v830, %v481
        %v853 = vsel %vm850, %v834, %v482
        %v854 = vsel %vm850, %v838, %v483
        %v855 = vsel %vm850, %v842, %v484
        %v856 = vsel %vm850, %v846, %v478
        %vm857 = vcmask 1041408
        %v860 = vsel %vm857, %v851, %v521
        %v864 = vsel %vm857, %v852, %v522
        %v868 = vsel %vm857, %v853, %v523
        %v872 = vsel %vm857, %v854, %v524
        %v876 = vsel %vm857, %v855, %v525
        %v880 = vsel %vm857, %v856, %v519
        %vm882 = vcmask 1042432
        %vm883 = vsmask.f32 2304
        %vm884 = vmand %vm882, %vm883
        %v885 = vsel %vm884, %v860, %v545
        %v886 = vsel %vm884, %v864, %v546
        %v887 = vsel %vm884, %v868, %v547
        %v888 = vsel %vm884, %v872, %v548
        %v889 = vsel %vm884, %v876, %v549
        %v890 = vsel %vm884, %v880, %v543
        %vm891 = vcmask 1042432
        %v894 = vsel %vm891, %v885, %v578
        %v898 = vsel %vm891, %v886, %v579
        %v902 = vsel %vm891, %v887, %v580
        %v906 = vsel %vm891, %v888, %v581
        %v910 = vsel %vm891, %v889, %v582
        %v914 = vsel %vm891, %v890, %v576
        %vm916 = vcmask 1043456
        %vm917 = vsmask.f32 3328
        %vm918 = vmand %vm916, %vm917
        %v919 = vsel %vm918, %v894, %v602
        %v920 = vsel %vm918, %v898, %v603
        %v921 = vsel %vm918, %v902, %v604
        %v922 = vsel %vm918, %v906, %v605
        %v923 = vsel %vm918, %v910, %v606
        %v924 = vsel %vm918, %v914, %v600
        %vm925 = vcmask 1043456
        %v928 = vsel %vm925, %v919, %v630
        %v932 = vsel %vm925, %v920, %v631
        %v936 = vsel %vm925, %v921, %v632
        %v940 = vsel %vm925, %v922, %v633
        %v944 = vsel %vm925, %v923, %v634
        %v948 = vsel %vm925, %v924, %v628
        %vm950 = vcmask 1044480
        %vm951 = vsmask.f32 4352
        %vm952 = vmand %vm950, %vm951
        %v953 = vsel %vm952, %v928, %v654
        %v954 = vsel %vm952, %v932, %v655
        %v955 = vsel %vm952, %v936, %v656
        %v956 = vsel %vm952, %v940, %v657
        %v957 = vsel %vm952, %v944, %v658
        %v958 = vsel %vm952, %v948, %v652
        %vm959 = vcmask 1044480
        %v962 = vsel %vm959, %v953, %v680
        %v966 = vsel %vm959, %v954, %v681
        %v970 = vsel %vm959, %v955, %v682
        %v974 = vsel %vm959, %v956, %v683
        %v978 = vsel %vm959, %v957, %v684
        %v982 = vsel %vm959, %v958, %v678
        %vm984 = vcmask 1045504
        %vm985 = vsmask.f32 5376
        %vm986 = vmand %vm984, %vm985
        %v987 = vsel %vm986, %v962, %v704
        %v988 = vsel %vm986, %v966, %v705
        %v989 = vsel %vm986, %v970, %v706
        %v990 = vsel %vm986, %v974, %v707
        %v991 = vsel %vm986, %v978, %v708
        %v992 = vsel %vm986, %v982, %v702
        %vm993 = vcmask 1045504
        %v996 = vsel %vm993, %v987, %v730
        %v1000 = vsel %vm993, %v988, %v731
        %v1004 = vsel %vm993, %v989, %v732
        %v1008 = vsel %vm993, %v990, %v733
        %v1012 = vsel %vm993, %v991, %v734
        %v1016 = vsel %vm993, %v992, %v728
        %vm1018 = vcmask 1046528
        %vm1019 = vsmask.f32 6400
        %vm1020 = vmand %vm1018, %vm1019
        %v1021 = vsel %vm1020, %v996, %v754
        %v1022 = vsel %vm1020, %v1000, %v755
        %v1023 = vsel %vm1020, %v1004, %v756
        %v1024 = vsel %vm1020, %v1008, %v757
        %v1025 = vsel %vm1020, %v1012, %v758
        %v1026 = vsel %vm1020, %v1016, %v752
        %vm1027 = vcmask 1046528
        %v1030 = vsel %vm1027, %v1021, %v779
        %v1034 = vsel %vm1027, %v1022, %v780
        %v1038 = vsel %vm1027, %v1023, %v781
        %v1042 = vsel %vm1027, %v1024, %v782
        %v1046 = vsel %vm1027, %v1025, %v783
        %v1050 = vsel %vm1027, %v1026, %v777
        %vm1052 = vcmask 1047552
        %vm1053 = vsmask.f32 7424
        %vm1054 = vmand %vm1052, %vm1053
        %v1055 = vsel %vm1054, %v1030, %v803
        %v1056 = vsel %vm1054, %v1034, %v804
        %v1057 = vsel %vm1054, %v1038, %v805
        %v1058 = vsel %vm1054, %v1042, %v806
        %v1059 = vsel %vm1054, %v1046, %v807
        %v1060 = vsel %vm1054, %v1050, %v801
        %v1061 = vcombine.high %v506, %v506
        %1062 = vrot.lane.b32.xlu0 %v499, 101
        %v1063 = vpop.permute.xlu0 %1062
        %1064 = vrot.lane.b32.xlu0 %v346, 101
        %v1065 = vpop.permute.xlu0 %1064
        %1066 = vrot.lane.b32.xlu0 %v507, 101
        %v1067 = vpop.permute.xlu0 %1066
        %1068 = vrot.lane.b32.xlu0 %v368, 101
        %v1069 = vpop.permute.xlu0 %1068
        %1070 = vrot.lane.b32.xlu0 %v506, 101
        %v1071 = vpop.permute.xlu0 %1070
        %1072 = vrot.lane.b32.xlu0 %v353, 101
        %v1073 = vpop.permute.xlu0 %1072
        %1074 = vrot.lane.b32.xlu0 %v1061, 101
        %v1075 = vpop.permute.xlu0 %1074
        %vm1076 = vcmask 826368
        %v1077 = vsel %vm1076, %v1063, %v1065
        %v1078 = vsel %vm1076, %v1065, %v1067
        %v1079 = vsel %vm1076, %v1067, %v1069
        %v1080 = vsel %vm1076, %v1069, %v1071
        %v1081 = vsel %vm1076, %v1071, %v1073
        %v1082 = vsel %vm1076, %v1073, %v1075
        %v1083 = vcombine.high %v353, %v353
        %v1085 = vshll.u32 %v1083, 16
        %v1087 = vrot.slane %v1085, 6
        %1088 = vrot.lane.b32.xlu0 %v1087, 100
        %v1089 = vpop.permute.xlu0 %1088
        %v1090 = vsel %vm544, %v543, %v1089
        %1092 = vrot.lane.b32.xlu0 %v507, 99
        %v1093 = vpop.permute.xlu0 %1092
        %v1094 = vsel %vm577, %v576, %v1093
        %v1095 = vrot.slane %v1085, 5
        %1096 = vrot.lane.b32.xlu0 %v1095, 98
        %v1097 = vpop.permute.xlu0 %1096
        %v1098 = vsel %vm601, %v600, %v1097
        %1100 = vrot.lane.b32.xlu0 %v353, 97
        %v1101 = vpop.permute.xlu0 %1100
        %v1102 = vsel %vm629, %v628, %v1101
        %v1104 = vsel %vm857, %v851, %v1077
        %v1107 = vsel %vm857, %v852, %v1078
        %v1110 = vsel %vm857, %v853, %v1079
        %v1113 = vsel %vm857, %v854, %v1080
        %v1116 = vsel %vm857, %v855, %v1081
        %v1119 = vsel %vm857, %v856, %v1082
        %v1121 = vsel %vm884, %v1104, %v545
        %v1122 = vsel %vm884, %v1107, %v546
        %v1123 = vsel %vm884, %v1110, %v547
        %v1124 = vsel %vm884, %v1113, %v548
        %v1125 = vsel %vm884, %v1116, %v549
        %v1126 = vsel %vm884, %v1119, %v1090
        %v1128 = vsel %vm891, %v1121, %v578
        %v1131 = vsel %vm891, %v1122, %v579
        %v1134 = vsel %vm891, %v1123, %v580
        %v1137 = vsel %vm891, %v1124, %v581
        %v1140 = vsel %vm891, %v1125, %v582
        %v1144 = vsel %vm891, %v1126, %v1094
        %v1146 = vsel %vm918, %v1128, %v602
        %v1147 = vsel %vm918, %v1131, %v603
        %v1148 = vsel %vm918, %v1134, %v604
        %v1149 = vsel %vm918, %v1137, %v605
        %v1150 = vsel %vm918, %v1140, %v606
        %v1151 = vsel %vm918, %v1144, %v1098
        %v1153 = vsel %vm925, %v1146, %v630
        %v1155 = vsel %vm925, %v1147, %v631
        %v1157 = vsel %vm925, %v1148, %v632
        %v1159 = vsel %vm925, %v1149, %v633
        %v1161 = vsel %vm925, %v1150, %v634
        %v1164 = vsel %vm925, %v1151, %v1102
        %1171 = vrot.lane.b32.xlu0 %v1153, 43
        %v1172 = vpop.permute.xlu0 %1171
        %1173 = vrot.lane.b32.xlu0 %v1155, 43
        %v1174 = vpop.permute.xlu0 %1173
        %1175 = vrot.lane.b32.xlu0 %v1157, 43
        %v1176 = vpop.permute.xlu0 %1175
        %1177 = vrot.lane.b32.xlu0 %v1159, 43
        %v1178 = vpop.permute.xlu0 %1177
        %1179 = vrot.lane.b32.xlu0 %v1161, 43
        %v1180 = vpop.permute.xlu0 %1179
        %1181 = vrot.lane.b32.xlu0 %v1164, 43
        %v1182 = vpop.permute.xlu0 %1181
        %vm1183 = vcmask 351232
        %v1184 = vsel %vm1183, %v1172, %v1174
        %v1185 = vsel %vm1183, %v1174, %v1176
        %v1186 = vsel %vm1183, %v1176, %v1178
        %v1187 = vsel %vm1183, %v1178, %v1180
        %v1188 = vsel %vm1183, %v1180, %v1182
        %v1189 = vld [vmem:[#allocation2] sm:$0xf]
        %v1190 = vld [vmem:[#allocation2 + $0x4] sm:$0xf]
        %v1191 = vld [vmem:[%s2] sm:$0xff]
        %v1192 = vld [vmem:[%s2 + $0x8] sm:$0xff]
        %1194 = vset.pattern.permute.xlu0 0
        %1195 = vperm.xlu0 %1194, %v1191
        %v1196 = vpop.permute.xlu0 %1195
        %1199 = vset.pattern.permute.xlu0 0
        %1200 = vperm.xlu0 %1199, %v1192
        %v1201 = vpop.permute.xlu0 %1200
        %v1205 = vunpack.c.l.b16 %v1189
        %v1206 = vunpack.c.l.b16 %v1190
        %v1207 = vpack.c.b16 %v1206, %v1205
        %vm1208 = vcmask 203776
        %v1210 = vsel %vm1208, %v1207, 0
        %v1212 = vsel %vm925, 4294967295, 65535
        %v1213 = vsel %vm959, %v1212, 0
        %v1215 = vand.u32 %v1184, %v1213
        %v1218 = vand.u32 %v1185, %v1213
        %v1221 = vand.u32 %v1186, %v1213
        %v1224 = vand.u32 %v1187, %v1213
        %v1227 = vand.u32 %v1188, %v1213
        %v1230 = vand.u32 %v1182, %v1213
        %1232 = vmatprep.subr.bf16.mxu0 0
        %1233 = vmatpush1.bf16.msra.mxu0 0
        %1234 = vmatprep.subr.bf16.mxu0 0
        %1235 = vmatpush1.bf16.msra.mxu0 0
        %1236 = vmatprep.subr.bf16.mxu0 0
        %1237 = vmatpush1.bf16.msra.mxu0 0
        %1238 = vmatprep.subr.bf16.mxu0 0
        %1239 = vmatpush1.bf16.msra.mxu0 0
        %1240 = vmatprep.subr.bf16.mxu0 0
        %1241 = vmatpush1.bf16.msra.mxu0 0
        %1242 = vmatprep.subr.bf16.mxu0 0
        %1243 = vmatpush1.bf16.msra.mxu0 0
        %1244 = vmatprep.subr.bf16.mxu0 %v1218
        %1245 = vmatpush1.bf16.msra.mxu0 %v1215
        %1246 = vmatprep.subr.bf16.mxu0 %v1056
        %1247 = vmatpush1.bf16.msra.mxu0 %v1055
        %1248 = vmatprep.subr.bf16.mxu0 0
        %1249 = vmatpush2.bf16.msra.mxu0 0
        %1250 = vmatprep.subr.bf16.mxu0 0
        %1251 = vmatpush2.bf16.msra.mxu0 0
        %1252 = vmatprep.subr.bf16.mxu0 0
        %1253 = vmatpush2.bf16.msra.mxu0 0
        %1254 = vmatprep.subr.bf16.mxu0 0
        %1255 = vmatpush2.bf16.msra.mxu0 0
        %1256 = vmatprep.subr.bf16.mxu0 0
        %1257 = vmatpush2.bf16.msra.mxu0 0
        %1258 = vmatprep.subr.bf16.mxu0 0
        %1259 = vmatpush2.bf16.msra.mxu0 0
        %1260 = vmatprep.subr.bf16.mxu0 0
        %1261 = vmatpush2.bf16.msra.mxu0 0
        %1262 = vmatprep.subr.bf16.mxu0 0
        %1263 = vmatpush2.bf16.msra.mxu0 0
        %1264 = vmatprep.mubr.bf16.mxu0 0
        %1265 = vmatmul.mubr.bf16.gmra.mxu0 %v1210
        %v1266 = vpop.f32.mrf.mxu0
        %v1267 = vadd.f32 %v1196, %v1266
        %v1268 = vpop.f32.mrf.mxu0
        %v1269 = vadd.f32 %v1196, %v1268
        %v1270 = vpop.f32.mrf.mxu0
        %v1271 = vadd.f32 %v1201, %v1270
        %v1272 = vpop.f32.mrf.mxu0
        %v1273 = vadd.f32 %v1201, %v1272
        %1274 = vdwg.mxu0
        %1275 = vmatprep.subr.bf16.mxu0 0
        %1276 = vmatpush1.bf16.msra.mxu0 0
        %1277 = vmatprep.subr.bf16.mxu0 0
        %1278 = vmatpush1.bf16.msra.mxu0 0
        %1279 = vmatprep.subr.bf16.mxu0 0
        %1280 = vmatpush1.bf16.msra.mxu0 0
        %1281 = vmatprep.subr.bf16.mxu0 0
        %1282 = vmatpush1.bf16.msra.mxu0 0
        %1283 = vmatprep.subr.bf16.mxu0 0
        %1284 = vmatpush1.bf16.msra.mxu0 0
        %1285 = vmatprep.subr.bf16.mxu0 0
        %1286 = vmatpush1.bf16.msra.mxu0 0
        %1287 = vmatprep.subr.bf16.mxu0 %v1224
        %1288 = vmatpush1.bf16.msra.mxu0 %v1221
        %1289 = vmatprep.subr.bf16.mxu0 %v1058
        %1290 = vmatpush1.bf16.msra.mxu0 %v1057
        %1291 = vmatprep.subr.bf16.mxu0 0
        %1292 = vmatpush2.bf16.msra.mxu0 0
        %1293 = vmatprep.subr.bf16.mxu0 0
        %1294 = vmatpush2.bf16.msra.mxu0 0
        %1295 = vmatprep.subr.bf16.mxu0 0
        %1296 = vmatpush2.bf16.msra.mxu0 0
        %1297 = vmatprep.subr.bf16.mxu0 0
        %1298 = vmatpush2.bf16.msra.mxu0 0
        %1299 = vmatprep.subr.bf16.mxu0 0
        %1300 = vmatpush2.bf16.msra.mxu0 0
        %1301 = vmatprep.subr.bf16.mxu0 0
        %1302 = vmatpush2.bf16.msra.mxu0 0
        %1303 = vmatprep.subr.bf16.mxu0 0
        %1304 = vmatpush2.bf16.msra.mxu0 0
        %1305 = vmatprep.subr.bf16.mxu0 0
        %1306 = vmatpush2.bf16.msra.mxu0 0
        %1307 = vmatprep.mubr.bf16.mxu0 0
        %1308 = vmatmul.mubr.bf16.gmra.mxu0 %v1210
        %v1309 = vpop.f32.mrf.mxu0
        %v1310 = vadd.f32 %v1196, %v1309
        %v1311 = vpop.f32.mrf.mxu0
        %v1312 = vadd.f32 %v1196, %v1311
        %v1313 = vpop.f32.mrf.mxu0
        %v1314 = vadd.f32 %v1201, %v1313
        %v1315 = vpop.f32.mrf.mxu0
        %v1316 = vadd.f32 %v1201, %v1315
        %1317 = vdwg.mxu0
        %1318 = vmatprep.subr.bf16.mxu0 0
        %1319 = vmatpush1.bf16.msra.mxu0 0
        %1320 = vmatprep.subr.bf16.mxu0 0
        %1321 = vmatpush1.bf16.msra.mxu0 0
        %1322 = vmatprep.subr.bf16.mxu0 0
        %1323 = vmatpush1.bf16.msra.mxu0 0
        %1324 = vmatprep.subr.bf16.mxu0 0
        %1325 = vmatpush1.bf16.msra.mxu0 0
        %1326 = vmatprep.subr.bf16.mxu0 0
        %1327 = vmatpush1.bf16.msra.mxu0 0
        %1328 = vmatprep.subr.bf16.mxu0 0
        %1329 = vmatpush1.bf16.msra.mxu0 0
        %1330 = vmatprep.subr.bf16.mxu0 %v1230
        %1331 = vmatpush1.bf16.msra.mxu0 %v1227
        %1332 = vmatprep.subr.bf16.mxu0 %v1060
        %1333 = vmatpush1.bf16.msra.mxu0 %v1059
        %1334 = vmatprep.subr.bf16.mxu0 0
        %1335 = vmatpush2.bf16.msra.mxu0 0
        %1336 = vmatprep.subr.bf16.mxu0 0
        %1337 = vmatpush2.bf16.msra.mxu0 0
        %1338 = vmatprep.subr.bf16.mxu0 0
        %1339 = vmatpush2.bf16.msra.mxu0 0
        %1340 = vmatprep.subr.bf16.mxu0 0
        %1341 = vmatpush2.bf16.msra.mxu0 0
        %1342 = vmatprep.subr.bf16.mxu0 0
        %1343 = vmatpush2.bf16.msra.mxu0 0
        %1344 = vmatprep.subr.bf16.mxu0 0
        %1345 = vmatpush2.bf16.msra.mxu0 0
        %1346 = vmatprep.subr.bf16.mxu0 0
        %1347 = vmatpush2.bf16.msra.mxu0 0
        %1348 = vmatprep.subr.bf16.mxu0 0
        %1349 = vmatpush2.bf16.msra.mxu0 0
        %1350 = vmatprep.mubr.bf16.mxu0 0
        %1351 = vmatmul.mubr.bf16.gmra.mxu0 %v1210
        %v1352 = vpop.f32.mrf.mxu0
        %v1353 = vadd.f32 %v1196, %v1352
        %v1354 = vpop.f32.mrf.mxu0
        %v1355 = vadd.f32 %v1196, %v1354
        %v1356 = vpop.f32.mrf.mxu0
        %v1357 = vadd.f32 %v1201, %v1356
        %v1358 = vpop.f32.mrf.mxu0
        %v1359 = vadd.f32 %v1201, %v1358
        %1360 = vdwg.mxu0
        %v1361 = vmax.f32 %v1267, 0.0
        %v1362 = vmax.f32 %v1269, 0.0
        %v1363 = vmax.f32 %v1310, 0.0
        %v1364 = vmax.f32 %v1312, 0.0
        %v1365 = vmax.f32 %v1353, 0.0
        %v1366 = vmax.f32 %v1355, 0.0
        %v1367 = vmax.f32 %v1271, 0.0
        %v1368 = vmax.f32 %v1273, 0.0
        %v1369 = vmax.f32 %v1314, 0.0
        %v1370 = vmax.f32 %v1316, 0.0
        %v1371 = vmax.f32 %v1357, 0.0
        %v1372 = vmax.f32 %v1359, 0.0
        %v1373 = vpack.c.bf16 %v1367, %v1361
        %v1374 = vpack.c.bf16 %v1368, %v1362
        %v1375 = vpack.c.bf16 %v1369, %v1363
        %v1376 = vpack.c.bf16 %v1370, %v1364
        %v1377 = vpack.c.bf16 %v1371, %v1365
        %v1378 = vpack.c.bf16 %v1372, %v1366
        %1384 = vrot.lane.b32.xlu0 %v1373, 127
        %v1385 = vpop.permute.xlu0 %1384
        %1386 = vrot.lane.b32.xlu0 %v1374, 127
        %v1387 = vpop.permute.xlu0 %1386
        %1388 = vrot.lane.b32.xlu0 %v1375, 127
        %v1389 = vpop.permute.xlu0 %1388
        %1390 = vrot.lane.b32.xlu0 %v1376, 127
        %v1391 = vpop.permute.xlu0 %1390
        %1392 = vrot.lane.b32.xlu0 %v1377, 127
        %v1393 = vpop.permute.xlu0 %1392
        %v1394 = vsel %vm406, %v1385, %v1387
        %v1395 = vsel %vm406, %v1387, %v1389
        %v1396 = vsel %vm406, %v1389, %v1391
        %v1397 = vsel %vm406, %v1391, %v1393
        %1403 = vrot.lane.b32.xlu0 %v1373, 126
        %v1404 = vpop.permute.xlu0 %1403
        %1405 = vrot.lane.b32.xlu0 %v1374, 126
        %v1406 = vpop.permute.xlu0 %1405
        %1407 = vrot.lane.b32.xlu0 %v1375, 126
        %v1408 = vpop.permute.xlu0 %1407
        %1409 = vrot.lane.b32.xlu0 %v1376, 126
        %v1410 = vpop.permute.xlu0 %1409
        %1411 = vrot.lane.b32.xlu0 %v1377, 126
        %v1412 = vpop.permute.xlu0 %1411
        %v1413 = vsel %vm455, %v1404, %v1406
        %v1414 = vsel %vm455, %v1406, %v1408
        %v1415 = vsel %vm455, %v1408, %v1410
        %v1416 = vsel %vm455, %v1410, %v1412
        %1422 = vrot.lane.b32.xlu0 %v1373, 125
        %v1423 = vpop.permute.xlu0 %1422
        %1424 = vrot.lane.b32.xlu0 %v1374, 125
        %v1425 = vpop.permute.xlu0 %1424
        %1426 = vrot.lane.b32.xlu0 %v1375, 125
        %v1427 = vpop.permute.xlu0 %1426
        %1428 = vrot.lane.b32.xlu0 %v1376, 125
        %v1429 = vpop.permute.xlu0 %1428
        %1430 = vrot.lane.b32.xlu0 %v1377, 125
        %v1431 = vpop.permute.xlu0 %1430
        %v1432 = vsel %vm479, %v1423, %v1425
        %v1433 = vsel %vm479, %v1425, %v1427
        %v1434 = vsel %vm479, %v1427, %v1429
        %v1435 = vsel %vm479, %v1429, %v1431
        %1441 = vrot.lane.b32.xlu0 %v1373, 124
        %v1442 = vpop.permute.xlu0 %1441
        %1443 = vrot.lane.b32.xlu0 %v1374, 124
        %v1444 = vpop.permute.xlu0 %1443
        %1445 = vrot.lane.b32.xlu0 %v1375, 124
        %v1446 = vpop.permute.xlu0 %1445
        %1447 = vrot.lane.b32.xlu0 %v1376, 124
        %v1448 = vpop.permute.xlu0 %1447
        %1449 = vrot.lane.b32.xlu0 %v1377, 124
        %v1450 = vpop.permute.xlu0 %1449
        %v1451 = vsel %vm520, %v1442, %v1444
        %v1452 = vsel %vm520, %v1444, %v1446
        %v1453 = vsel %vm520, %v1446, %v1448
        %v1454 = vsel %vm520, %v1448, %v1450
        %1460 = vrot.lane.b32.xlu0 %v1373, 100
        %v1461 = vpop.permute.xlu0 %1460
        %1462 = vrot.lane.b32.xlu0 %v1374, 100
        %v1463 = vpop.permute.xlu0 %1462
        %1464 = vrot.lane.b32.xlu0 %v1375, 100
        %v1465 = vpop.permute.xlu0 %1464
        %1466 = vrot.lane.b32.xlu0 %v1376, 100
        %v1467 = vpop.permute.xlu0 %1466
        %1468 = vrot.lane.b32.xlu0 %v1377, 100
        %v1469 = vpop.permute.xlu0 %1468
        %v1470 = vsel %vm544, %v1461, %v1463
        %v1471 = vsel %vm544, %v1463, %v1465
        %v1472 = vsel %vm544, %v1465, %v1467
        %v1473 = vsel %vm544, %v1467, %v1469
        %1479 = vrot.lane.b32.xlu0 %v1373, 99
        %v1480 = vpop.permute.xlu0 %1479
        %1481 = vrot.lane.b32.xlu0 %v1374, 99
        %v1482 = vpop.permute.xlu0 %1481
        %1483 = vrot.lane.b32.xlu0 %v1375, 99
        %v1484 = vpop.permute.xlu0 %1483
        %1485 = vrot.lane.b32.xlu0 %v1376, 99
        %v1486 = vpop.permute.xlu0 %1485
        %1487 = vrot.lane.b32.xlu0 %v1377, 99
        %v1488 = vpop.permute.xlu0 %1487
        %v1489 = vsel %vm577, %v1480, %v1482
        %v1490 = vsel %vm577, %v1482, %v1484
        %v1491 = vsel %vm577, %v1484, %v1486
        %v1492 = vsel %vm577, %v1486, %v1488
        %1498 = vrot.lane.b32.xlu0 %v1373, 98
        %v1499 = vpop.permute.xlu0 %1498
        %1500 = vrot.lane.b32.xlu0 %v1374, 98
        %v1501 = vpop.permute.xlu0 %1500
        %1502 = vrot.lane.b32.xlu0 %v1375, 98
        %v1503 = vpop.permute.xlu0 %1502
        %1504 = vrot.lane.b32.xlu0 %v1376, 98
        %v1505 = vpop.permute.xlu0 %1504
        %1506 = vrot.lane.b32.xlu0 %v1377, 98
        %v1507 = vpop.permute.xlu0 %1506
        %v1508 = vsel %vm601, %v1499, %v1501
        %v1509 = vsel %vm601, %v1501, %v1503
        %v1510 = vsel %vm601, %v1503, %v1505
        %v1511 = vsel %vm601, %v1505, %v1507
        %1517 = vrot.lane.b32.xlu0 %v1373, 97
        %v1518 = vpop.permute.xlu0 %1517
        %1519 = vrot.lane.b32.xlu0 %v1374, 97
        %v1520 = vpop.permute.xlu0 %1519
        %1521 = vrot.lane.b32.xlu0 %v1375, 97
        %v1522 = vpop.permute.xlu0 %1521
        %1523 = vrot.lane.b32.xlu0 %v1376, 97
        %v1524 = vpop.permute.xlu0 %1523
        %1525 = vrot.lane.b32.xlu0 %v1377, 97
        %v1526 = vpop.permute.xlu0 %1525
        %v1527 = vsel %vm629, %v1518, %v1520
        %v1528 = vsel %vm629, %v1520, %v1522
        %v1529 = vsel %vm629, %v1522, %v1524
        %v1530 = vsel %vm629, %v1524, %v1526
        %1536 = vrot.lane.b32.xlu0 %v1373, 96
        %v1537 = vpop.permute.xlu0 %1536
        %1538 = vrot.lane.b32.xlu0 %v1374, 96
        %v1539 = vpop.permute.xlu0 %1538
        %1540 = vrot.lane.b32.xlu0 %v1375, 96
        %v1541 = vpop.permute.xlu0 %1540
        %1542 = vrot.lane.b32.xlu0 %v1376, 96
        %v1543 = vpop.permute.xlu0 %1542
        %1544 = vrot.lane.b32.xlu0 %v1377, 96
        %v1545 = vpop.permute.xlu0 %1544
        %v1546 = vsel %vm653, %v1537, %v1539
        %v1547 = vsel %vm653, %v1539, %v1541
        %v1548 = vsel %vm653, %v1541, %v1543
        %v1549 = vsel %vm653, %v1543, %v1545
        %1555 = vrot.lane.b32.xlu0 %v1373, 72
        %v1556 = vpop.permute.xlu0 %1555
        %1557 = vrot.lane.b32.xlu0 %v1374, 72
        %v1558 = vpop.permute.xlu0 %1557
        %1559 = vrot.lane.b32.xlu0 %v1375, 72
        %v1560 = vpop.permute.xlu0 %1559
        %1561 = vrot.lane.b32.xlu0 %v1376, 72
        %v1562 = vpop.permute.xlu0 %1561
        %1563 = vrot.lane.b32.xlu0 %v1377, 72
        %v1564 = vpop.permute.xlu0 %1563
        %v1565 = vsel %vm679, %v1556, %v1558
        %v1566 = vsel %vm679, %v1558, %v1560
        %v1567 = vsel %vm679, %v1560, %v1562
        %v1568 = vsel %vm679, %v1562, %v1564
        %1574 = vrot.lane.b32.xlu0 %v1373, 71
        %v1575 = vpop.permute.xlu0 %1574
        %1576 = vrot.lane.b32.xlu0 %v1374, 71
        %v1577 = vpop.permute.xlu0 %1576
        %1578 = vrot.lane.b32.xlu0 %v1375, 71
        %v1579 = vpop.permute.xlu0 %1578
        %1580 = vrot.lane.b32.xlu0 %v1376, 71
        %v1581 = vpop.permute.xlu0 %1580
        %1582 = vrot.lane.b32.xlu0 %v1377, 71
        %v1583 = vpop.permute.xlu0 %1582
        %v1584 = vsel %vm703, %v1575, %v1577
        %v1585 = vsel %vm703, %v1577, %v1579
        %v1586 = vsel %vm703, %v1579, %v1581
        %v1587 = vsel %vm703, %v1581, %v1583
        %1593 = vrot.lane.b32.xlu0 %v1373, 70
        %v1594 = vpop.permute.xlu0 %1593
        %1595 = vrot.lane.b32.xlu0 %v1374, 70
        %v1596 = vpop.permute.xlu0 %1595
        %1597 = vrot.lane.b32.xlu0 %v1375, 70
        %v1598 = vpop.permute.xlu0 %1597
        %1599 = vrot.lane.b32.xlu0 %v1376, 70
        %v1600 = vpop.permute.xlu0 %1599
        %1601 = vrot.lane.b32.xlu0 %v1377, 70
        %v1602 = vpop.permute.xlu0 %1601
        %v1603 = vsel %vm729, %v1594, %v1596
        %v1604 = vsel %vm729, %v1596, %v1598
        %v1605 = vsel %vm729, %v1598, %v1600
        %v1606 = vsel %vm729, %v1600, %v1602
        %1612 = vrot.lane.b32.xlu0 %v1373, 69
        %v1613 = vpop.permute.xlu0 %1612
        %1614 = vrot.lane.b32.xlu0 %v1374, 69
        %v1615 = vpop.permute.xlu0 %1614
        %1616 = vrot.lane.b32.xlu0 %v1375, 69
        %v1617 = vpop.permute.xlu0 %1616
        %1618 = vrot.lane.b32.xlu0 %v1376, 69
        %v1619 = vpop.permute.xlu0 %1618
        %1620 = vrot.lane.b32.xlu0 %v1377, 69
        %v1621 = vpop.permute.xlu0 %1620
        %v1622 = vsel %vm753, %v1613, %v1615
        %v1623 = vsel %vm753, %v1615, %v1617
        %v1624 = vsel %vm753, %v1617, %v1619
        %v1625 = vsel %vm753, %v1619, %v1621
        %1631 = vrot.lane.b32.xlu0 %v1373, 68
        %v1632 = vpop.permute.xlu0 %1631
        %1633 = vrot.lane.b32.xlu0 %v1374, 68
        %v1634 = vpop.permute.xlu0 %1633
        %1635 = vrot.lane.b32.xlu0 %v1375, 68
        %v1636 = vpop.permute.xlu0 %1635
        %1637 = vrot.lane.b32.xlu0 %v1376, 68
        %v1638 = vpop.permute.xlu0 %1637
        %1639 = vrot.lane.b32.xlu0 %v1377, 68
        %v1640 = vpop.permute.xlu0 %1639
        %v1641 = vsel %vm778, %v1632, %v1634
        %v1642 = vsel %vm778, %v1634, %v1636
        %v1643 = vsel %vm778, %v1636, %v1638
        %v1644 = vsel %vm778, %v1638, %v1640
        %1650 = vrot.lane.b32.xlu0 %v1373, 44
        %v1651 = vpop.permute.xlu0 %1650
        %1652 = vrot.lane.b32.xlu0 %v1374, 44
        %v1653 = vpop.permute.xlu0 %1652
        %1654 = vrot.lane.b32.xlu0 %v1375, 44
        %v1655 = vpop.permute.xlu0 %1654
        %1656 = vrot.lane.b32.xlu0 %v1376, 44
        %v1657 = vpop.permute.xlu0 %1656
        %1658 = vrot.lane.b32.xlu0 %v1377, 44
        %v1659 = vpop.permute.xlu0 %1658
        %v1660 = vsel %vm802, %v1651, %v1653
        %v1661 = vsel %vm802, %v1653, %v1655
        %v1662 = vsel %vm802, %v1655, %v1657
        %v1663 = vsel %vm802, %v1657, %v1659
        %1670 = vrot.lane.b32.xlu0 %v1373, 101
        %v1671 = vpop.permute.xlu0 %1670
        %1672 = vrot.lane.b32.xlu0 %v1374, 101
        %v1673 = vpop.permute.xlu0 %1672
        %1674 = vrot.lane.b32.xlu0 %v1375, 101
        %v1675 = vpop.permute.xlu0 %1674
        %1676 = vrot.lane.b32.xlu0 %v1376, 101
        %v1677 = vpop.permute.xlu0 %1676
        %1678 = vrot.lane.b32.xlu0 %v1377, 101
        %v1679 = vpop.permute.xlu0 %1678
        %1680 = vrot.lane.b32.xlu0 %v1378, 101
        %v1681 = vpop.permute.xlu0 %1680
        %v1682 = vsel %vm1076, %v1671, %v1673
        %v1683 = vsel %vm1076, %v1673, %v1675
        %v1684 = vsel %vm1076, %v1675, %v1677
        %v1685 = vsel %vm1076, %v1677, %v1679
        %v1686 = vsel %vm1076, %v1679, %v1681
        %1687 = vrot.lane.b32.xlu0 %v1378, 100
        %v1688 = vpop.permute.xlu0 %1687
        %v1689 = vsel %vm544, %v1469, %v1688
        %1690 = vrot.lane.b32.xlu0 %v1378, 99
        %v1691 = vpop.permute.xlu0 %1690
        %v1692 = vsel %vm577, %v1488, %v1691
        %1693 = vrot.lane.b32.xlu0 %v1378, 98
        %v1694 = vpop.permute.xlu0 %1693
        %v1695 = vsel %vm601, %v1507, %v1694
        %1696 = vrot.lane.b32.xlu0 %v1378, 97
        %v1697 = vpop.permute.xlu0 %1696
        %v1698 = vsel %vm629, %v1526, %v1697
        %1699 = vrot.lane.b32.xlu0 %v1373, 43
        %v1700 = vpop.permute.xlu0 %1699
        %1701 = vrot.lane.b32.xlu0 %v1374, 43
        %v1702 = vpop.permute.xlu0 %1701
        %1703 = vrot.lane.b32.xlu0 %v1375, 43
        %v1704 = vpop.permute.xlu0 %1703
        %1705 = vrot.lane.b32.xlu0 %v1376, 43
        %v1706 = vpop.permute.xlu0 %1705
        %1707 = vrot.lane.b32.xlu0 %v1377, 43
        %v1708 = vpop.permute.xlu0 %1707
        %1709 = vrot.lane.b32.xlu0 %v1394, 43
        %v1710 = vpop.permute.xlu0 %1709
        %1711 = vrot.lane.b32.xlu0 %v1395, 43
        %v1712 = vpop.permute.xlu0 %1711
        %1713 = vrot.lane.b32.xlu0 %v1396, 43
        %v1714 = vpop.permute.xlu0 %1713
        %1715 = vrot.lane.b32.xlu0 %v1397, 43
        %v1716 = vpop.permute.xlu0 %1715
        %1717 = vrot.lane.b32.xlu0 %v1393, 43
        %v1718 = vpop.permute.xlu0 %1717
        %1719 = vrot.lane.b32.xlu0 %v1413, 43
        %v1720 = vpop.permute.xlu0 %1719
        %1721 = vrot.lane.b32.xlu0 %v1414, 43
        %v1722 = vpop.permute.xlu0 %1721
        %1723 = vrot.lane.b32.xlu0 %v1415, 43
        %v1724 = vpop.permute.xlu0 %1723
        %1725 = vrot.lane.b32.xlu0 %v1416, 43
        %v1726 = vpop.permute.xlu0 %1725
        %1727 = vrot.lane.b32.xlu0 %v1412, 43
        %v1728 = vpop.permute.xlu0 %1727
        %1729 = vrot.lane.b32.xlu0 %v1432, 43
        %v1730 = vpop.permute.xlu0 %1729
        %1731 = vrot.lane.b32.xlu0 %v1433, 43
        %v1732 = vpop.permute.xlu0 %1731
        %1733 = vrot.lane.b32.xlu0 %v1434, 43
        %v1734 = vpop.permute.xlu0 %1733
        %1735 = vrot.lane.b32.xlu0 %v1435, 43
        %v1736 = vpop.permute.xlu0 %1735
        %1737 = vrot.lane.b32.xlu0 %v1431, 43
        %v1738 = vpop.permute.xlu0 %1737
        %1739 = vrot.lane.b32.xlu0 %v1682, 43
        %v1740 = vpop.permute.xlu0 %1739
        %1741 = vrot.lane.b32.xlu0 %v1683, 43
        %v1742 = vpop.permute.xlu0 %1741
        %1743 = vrot.lane.b32.xlu0 %v1684, 43
        %v1744 = vpop.permute.xlu0 %1743
        %1745 = vrot.lane.b32.xlu0 %v1685, 43
        %v1746 = vpop.permute.xlu0 %1745
        %1747 = vrot.lane.b32.xlu0 %v1686, 43
        %v1748 = vpop.permute.xlu0 %1747
        %1749 = vrot.lane.b32.xlu0 %v1470, 43
        %v1750 = vpop.permute.xlu0 %1749
        %1751 = vrot.lane.b32.xlu0 %v1471, 43
        %v1752 = vpop.permute.xlu0 %1751
        %1753 = vrot.lane.b32.xlu0 %v1472, 43
        %v1754 = vpop.permute.xlu0 %1753
        %1755 = vrot.lane.b32.xlu0 %v1473, 43
        %v1756 = vpop.permute.xlu0 %1755
        %1757 = vrot.lane.b32.xlu0 %v1689, 43
        %v1758 = vpop.permute.xlu0 %1757
        %1759 = vrot.lane.b32.xlu0 %v1489, 43
        %v1760 = vpop.permute.xlu0 %1759
        %1761 = vrot.lane.b32.xlu0 %v1490, 43
        %v1762 = vpop.permute.xlu0 %1761
        %1763 = vrot.lane.b32.xlu0 %v1491, 43
        %v1764 = vpop.permute.xlu0 %1763
        %1765 = vrot.lane.b32.xlu0 %v1492, 43
        %v1766 = vpop.permute.xlu0 %1765
        %1767 = vrot.lane.b32.xlu0 %v1692, 43
        %v1768 = vpop.permute.xlu0 %1767
        %1769 = vrot.lane.b32.xlu0 %v1508, 43
        %v1770 = vpop.permute.xlu0 %1769
        %1771 = vrot.lane.b32.xlu0 %v1509, 43
        %v1772 = vpop.permute.xlu0 %1771
        %1773 = vrot.lane.b32.xlu0 %v1510, 43
        %v1774 = vpop.permute.xlu0 %1773
        %1775 = vrot.lane.b32.xlu0 %v1511, 43
        %v1776 = vpop.permute.xlu0 %1775
        %1777 = vrot.lane.b32.xlu0 %v1695, 43
        %v1778 = vpop.permute.xlu0 %1777
        %1779 = vrot.lane.b32.xlu0 %v1527, 43
        %v1780 = vpop.permute.xlu0 %1779
        %1781 = vrot.lane.b32.xlu0 %v1528, 43
        %v1782 = vpop.permute.xlu0 %1781
        %1783 = vrot.lane.b32.xlu0 %v1529, 43
        %v1784 = vpop.permute.xlu0 %1783
        %1785 = vrot.lane.b32.xlu0 %v1530, 43
        %v1786 = vpop.permute.xlu0 %1785
        %1787 = vrot.lane.b32.xlu0 %v1698, 43
        %v1788 = vpop.permute.xlu0 %1787
        %v1789 = vsel %vm1183, %v1700, %v1702
        %v1790 = vsel %vm1183, %v1702, %v1704
        %v1791 = vsel %vm1183, %v1704, %v1706
        %v1792 = vsel %vm1183, %v1706, %v1708
        %v1793 = vsel %vm1183, %v1710, %v1712
        %v1794 = vsel %vm1183, %v1712, %v1714
        %v1795 = vsel %vm1183, %v1714, %v1716
        %v1796 = vsel %vm1183, %v1716, %v1718
        %v1797 = vsel %vm1183, %v1720, %v1722
        %v1798 = vsel %vm1183, %v1722, %v1724
        %v1799 = vsel %vm1183, %v1724, %v1726
        %v1800 = vsel %vm1183, %v1726, %v1728
        %v1801 = vsel %vm1183, %v1730, %v1732
        %v1802 = vsel %vm1183, %v1732, %v1734
        %v1803 = vsel %vm1183, %v1734, %v1736
        %v1804 = vsel %vm1183, %v1736, %v1738
        %v1805 = vsel %vm1183, %v1740, %v1742
        %v1806 = vsel %vm1183, %v1742, %v1744
        %v1807 = vsel %vm1183, %v1744, %v1746
        %v1808 = vsel %vm1183, %v1746, %v1748
        %v1809 = vsel %vm1183, %v1750, %v1752
        %v1810 = vsel %vm1183, %v1752, %v1754
        %v1811 = vsel %vm1183, %v1754, %v1756
        %v1812 = vsel %vm1183, %v1756, %v1758
        %v1813 = vsel %vm1183, %v1760, %v1762
        %v1814 = vsel %vm1183, %v1762, %v1764
        %v1815 = vsel %vm1183, %v1764, %v1766
        %v1816 = vsel %vm1183, %v1766, %v1768
        %v1817 = vsel %vm1183, %v1770, %v1772
        %v1818 = vsel %vm1183, %v1772, %v1774
        %v1819 = vsel %vm1183, %v1774, %v1776
        %v1820 = vsel %vm1183, %v1776, %v1778
        %v1821 = vsel %vm1183, %v1780, %v1782
        %v1822 = vsel %vm1183, %v1782, %v1784
        %v1823 = vsel %vm1183, %v1784, %v1786
        %v1824 = vsel %vm1183, %v1786, %v1788
        %v1870 = vld [vmem:[#allocation4] sm:$0xff]
        %v1871 = vld [vmem:[#allocation4 + $0x8] sm:$0xff]
        %v1872 = vld [vmem:[#allocation4 + $0x10] sm:$0xff]
        %v1873 = vld [vmem:[#allocation4 + $0x18] sm:$0xff]
        %v1874 = vld [vmem:[#allocation4 + $0x20] sm:$0xff]
        %v1875 = vld [vmem:[#allocation4 + $0x28] sm:$0xff]
        %v1876 = vld [vmem:[#allocation4 + $0x30] sm:$0xff]
        %v1877 = vld [vmem:[#allocation4 + $0x38] sm:$0xff]
        %v1878 = vld [vmem:[%s4] sm:$0xff]
        %v1879 = vld [vmem:[%s4 + $0x8] sm:$0xff]
        %v1880 = vld [vmem:[%s4 + $0x10] sm:$0xff]
        %v1881 = vld [vmem:[%s4 + $0x18] sm:$0xff]
        %1883 = vset.pattern.permute.xlu0 0
        %1884 = vperm.xlu0 %1883, %v1878
        %v1885 = vpop.permute.xlu0 %1884
        %1888 = vset.pattern.permute.xlu0 0
        %1889 = vperm.xlu0 %1888, %v1879
        %v1890 = vpop.permute.xlu0 %1889
        %1893 = vset.pattern.permute.xlu0 0
        %1894 = vperm.xlu0 %1893, %v1880
        %v1895 = vpop.permute.xlu0 %1894
        %1898 = vset.pattern.permute.xlu0 0
        %1899 = vperm.xlu0 %1898, %v1881
        %v1900 = vpop.permute.xlu0 %1899
        %v1910 = vunpack.c.l.b16 %v1870
        %v1911 = vunpack.c.h.b16 %v1870
        %v1912 = vunpack.c.l.b16 %v1871
        %v1913 = vunpack.c.h.b16 %v1871
        %v1914 = vunpack.c.l.b16 %v1872
        %v1915 = vunpack.c.h.b16 %v1872
        %v1916 = vunpack.c.l.b16 %v1873
        %v1917 = vunpack.c.h.b16 %v1873
        %v1918 = vunpack.c.l.b16 %v1874
        %v1919 = vunpack.c.h.b16 %v1874
        %v1920 = vunpack.c.l.b16 %v1875
        %v1921 = vunpack.c.h.b16 %v1875
        %v1922 = vunpack.c.l.b16 %v1876
        %v1923 = vunpack.c.h.b16 %v1876
        %v1924 = vunpack.c.l.b16 %v1877
        %v1925 = vunpack.c.h.b16 %v1877
        %v1926 = vpack.c.b16 %v1914, %v1910
        %v1927 = vpack.c.b16 %v1915, %v1911
        %v1928 = vpack.c.b16 %v1916, %v1912
        %v1929 = vpack.c.b16 %v1917, %v1913
        %v1930 = vpack.c.b16 %v1922, %v1918
        %v1931 = vpack.c.b16 %v1923, %v1919
        %v1932 = vpack.c.b16 %v1924, %v1920
        %v1933 = vpack.c.b16 %v1925, %v1921
        %vm1940 = vcmask 130048
        %v1942 = vsel %vm1940, %v1929, 0
        %v1945 = vsel %vm1940, %v1933, 0
        %1947 = vmatprep.subr.bf16.mxu0 %v1509
        %1948 = vmatpush1.bf16.msra.mxu0 %v1508
        %1949 = vmatprep.subr.bf16.mxu0 %v1490
        %1950 = vmatpush1.bf16.msra.mxu0 %v1489
        %1951 = vmatprep.subr.bf16.mxu0 %v1471
        %1952 = vmatpush1.bf16.msra.mxu0 %v1470
        %1953 = vmatprep.subr.bf16.mxu0 %v1452
        %1954 = vmatpush1.bf16.msra.mxu0 %v1451
        %1955 = vmatprep.subr.bf16.mxu0 %v1433
        %1956 = vmatpush1.bf16.msra.mxu0 %v1432
        %1957 = vmatprep.subr.bf16.mxu0 %v1414
        %1958 = vmatpush1.bf16.msra.mxu0 %v1413
        %1959 = vmatprep.subr.bf16.mxu0 %v1395
        %1960 = vmatpush1.bf16.msra.mxu0 %v1394
        %1961 = vmatprep.subr.bf16.mxu0 %v1374
        %1962 = vmatpush1.bf16.msra.mxu0 %v1373
        %1963 = vmatprep.subr.bf16.mxu0 %v1661
        %1964 = vmatpush2.bf16.msra.mxu0 %v1660
        %1965 = vmatprep.subr.bf16.mxu0 %v1642
        %1966 = vmatpush2.bf16.msra.mxu0 %v1641
        %1967 = vmatprep.subr.bf16.mxu0 %v1623
        %1968 = vmatpush2.bf16.msra.mxu0 %v1622
        %1969 = vmatprep.subr.bf16.mxu0 %v1604
        %1970 = vmatpush2.bf16.msra.mxu0 %v1603
        %1971 = vmatprep.subr.bf16.mxu0 %v1585
        %1972 = vmatpush2.bf16.msra.mxu0 %v1584
        %1973 = vmatprep.subr.bf16.mxu0 %v1566
        %1974 = vmatpush2.bf16.msra.mxu0 %v1565
        %1975 = vmatprep.subr.bf16.mxu0 %v1547
        %1976 = vmatpush2.bf16.msra.mxu0 %v1546
        %1977 = vmatprep.subr.bf16.mxu0 %v1528
        %1978 = vmatpush2.bf16.msra.mxu0 %v1527
        %1979 = vmatprep.mubr.bf16.mxu0 %v1927
        %1980 = vmatmul.mubr.bf16.gmra.mxu0 %v1926
        %v1981 = vpop.f32.mrf.mxu0
        %v1982 = vadd.f32 %v1885, %v1981
        %v1983 = vpop.f32.mrf.mxu0
        %v1984 = vadd.f32 %v1885, %v1983
        %v1985 = vpop.f32.mrf.mxu0
        %v1986 = vadd.f32 %v1890, %v1985
        %v1987 = vpop.f32.mrf.mxu0
        %v1988 = vadd.f32 %v1890, %v1987
        %1989 = vmatprep.mubr.bf16.mxu0 %v1931
        %1990 = vmatmul.mubr.bf16.gmra.mxu0 %v1930
        %v1991 = vpop.f32.mrf.mxu0
        %v1992 = vadd.f32 %v1895, %v1991
        %v1993 = vpop.f32.mrf.mxu0
        %v1994 = vadd.f32 %v1895, %v1993
        %v1995 = vpop.f32.mrf.mxu0
        %v1996 = vadd.f32 %v1900, %v1995
        %v1997 = vpop.f32.mrf.mxu0
        %v1998 = vadd.f32 %v1900, %v1997
        %1999 = vdwg.mxu0
        %2000 = vmatprep.subr.bf16.mxu0 %v1818
        %2001 = vmatpush1.bf16.msra.mxu0 %v1817
        %2002 = vmatprep.subr.bf16.mxu0 %v1814
        %2003 = vmatpush1.bf16.msra.mxu0 %v1813
        %2004 = vmatprep.subr.bf16.mxu0 %v1810
        %2005 = vmatpush1.bf16.msra.mxu0 %v1809
        %2006 = vmatprep.subr.bf16.mxu0 %v1806
        %2007 = vmatpush1.bf16.msra.mxu0 %v1805
        %2008 = vmatprep.subr.bf16.mxu0 %v1802
        %2009 = vmatpush1.bf16.msra.mxu0 %v1801
        %2010 = vmatprep.subr.bf16.mxu0 %v1798
        %2011 = vmatpush1.bf16.msra.mxu0 %v1797
        %2012 = vmatprep.subr.bf16.mxu0 %v1794
        %2013 = vmatpush1.bf16.msra.mxu0 %v1793
        %2014 = vmatprep.subr.bf16.mxu0 %v1790
        %2015 = vmatpush1.bf16.msra.mxu0 %v1789
        %2016 = vmatprep.subr.bf16.mxu0 0
        %2017 = vmatpush2.bf16.msra.mxu0 0
        %2018 = vmatprep.subr.bf16.mxu0 0
        %2019 = vmatpush2.bf16.msra.mxu0 0
        %2020 = vmatprep.subr.bf16.mxu0 0
        %2021 = vmatpush2.bf16.msra.mxu0 0
        %2022 = vmatprep.subr.bf16.mxu0 0
        %2023 = vmatpush2.bf16.msra.mxu0 0
        %2024 = vmatprep.subr.bf16.mxu0 0
        %2025 = vmatpush2.bf16.msra.mxu0 0
        %2026 = vmatprep.subr.bf16.mxu0 0
        %2027 = vmatpush2.bf16.msra.mxu0 0
        %2028 = vmatprep.subr.bf16.mxu0 0
        %2029 = vmatpush2.bf16.msra.mxu0 0
        %2030 = vmatprep.subr.bf16.mxu0 %v1822
        %2031 = vmatpush2.bf16.msra.mxu0 %v1821
        %2032 = vmatprep.mubr.bf16.mxu0 %v1942
        %2033 = vmatmul.mubr.bf16.gmra.mxu0 %v1928
        %v2034 = vpop.f32.mrf.mxu0
        %v2035 = vadd.f32 %v1982, %v2034
        %v2036 = vpop.f32.mrf.mxu0
        %v2037 = vadd.f32 %v1984, %v2036
        %v2038 = vpop.f32.mrf.mxu0
        %v2039 = vadd.f32 %v1986, %v2038
        %v2040 = vpop.f32.mrf.mxu0
        %v2041 = vadd.f32 %v1988, %v2040
        %2042 = vmatprep.mubr.bf16.mxu0 %v1945
        %2043 = vmatmul.mubr.bf16.gmra.mxu0 %v1932
        %v2044 = vpop.f32.mrf.mxu0
        %v2045 = vadd.f32 %v1992, %v2044
        %v2046 = vpop.f32.mrf.mxu0
        %v2047 = vadd.f32 %v1994, %v2046
        %v2048 = vpop.f32.mrf.mxu0
        %v2049 = vadd.f32 %v1996, %v2048
        %v2050 = vpop.f32.mrf.mxu0
        %v2051 = vadd.f32 %v1998, %v2050
        %2052 = vdwg.mxu0
        %2053 = vmatprep.subr.bf16.mxu0 %v1511
        %2054 = vmatpush1.bf16.msra.mxu0 %v1510
        %2055 = vmatprep.subr.bf16.mxu0 %v1492
        %2056 = vmatpush1.bf16.msra.mxu0 %v1491
        %2057 = vmatprep.subr.bf16.mxu0 %v1473
        %2058 = vmatpush1.bf16.msra.mxu0 %v1472
        %2059 = vmatprep.subr.bf16.mxu0 %v1454
        %2060 = vmatpush1.bf16.msra.mxu0 %v1453
        %2061 = vmatprep.subr.bf16.mxu0 %v1435
        %2062 = vmatpush1.bf16.msra.mxu0 %v1434
        %2063 = vmatprep.subr.bf16.mxu0 %v1416
        %2064 = vmatpush1.bf16.msra.mxu0 %v1415
        %2065 = vmatprep.subr.bf16.mxu0 %v1397
        %2066 = vmatpush1.bf16.msra.mxu0 %v1396
        %2067 = vmatprep.subr.bf16.mxu0 %v1376
        %2068 = vmatpush1.bf16.msra.mxu0 %v1375
        %2069 = vmatprep.subr.bf16.mxu0 %v1663
        %2070 = vmatpush2.bf16.msra.mxu0 %v1662
        %2071 = vmatprep.subr.bf16.mxu0 %v1644
        %2072 = vmatpush2.bf16.msra.mxu0 %v1643
        %2073 = vmatprep.subr.bf16.mxu0 %v1625
        %2074 = vmatpush2.bf16.msra.mxu0 %v1624
        %2075 = vmatprep.subr.bf16.mxu0 %v1606
        %2076 = vmatpush2.bf16.msra.mxu0 %v1605
        %2077 = vmatprep.subr.bf16.mxu0 %v1587
        %2078 = vmatpush2.bf16.msra.mxu0 %v1586
        %2079 = vmatprep.subr.bf16.mxu0 %v1568
        %2080 = vmatpush2.bf16.msra.mxu0 %v1567
        %2081 = vmatprep.subr.bf16.mxu0 %v1549
        %2082 = vmatpush2.bf16.msra.mxu0 %v1548
        %2083 = vmatprep.subr.bf16.mxu0 %v1530
        %2084 = vmatpush2.bf16.msra.mxu0 %v1529
        %2085 = vmatprep.mubr.bf16.mxu0 %v1927
        %2086 = vmatmul.mubr.bf16.gmra.mxu0 %v1926
        %v2087 = vpop.f32.mrf.mxu0
        %v2088 = vadd.f32 %v1885, %v2087
        %v2089 = vpop.f32.mrf.mxu0
        %v2090 = vadd.f32 %v1885, %v2089
        %v2091 = vpop.f32.mrf.mxu0
        %v2092 = vadd.f32 %v1890, %v2091
        %v2093 = vpop.f32.mrf.mxu0
        %v2094 = vadd.f32 %v1890, %v2093
        %2095 = vmatprep.mubr.bf16.mxu0 %v1931
        %2096 = vmatmul.mubr.bf16.gmra.mxu0 %v1930
        %v2097 = vpop.f32.mrf.mxu0
        %v2098 = vadd.f32 %v1895, %v2097
        %v2099 = vpop.f32.mrf.mxu0
        %v2100 = vadd.f32 %v1895, %v2099
        %v2101 = vpop.f32.mrf.mxu0
        %v2102 = vadd.f32 %v1900, %v2101
        %v2103 = vpop.f32.mrf.mxu0
        %v2104 = vadd.f32 %v1900, %v2103
        %2105 = vdwg.mxu0
        %2106 = vmatprep.subr.bf16.mxu0 %v1820
        %2107 = vmatpush1.bf16.msra.mxu0 %v1819
        %2108 = vmatprep.subr.bf16.mxu0 %v1816
        %2109 = vmatpush1.bf16.msra.mxu0 %v1815
        %2110 = vmatprep.subr.bf16.mxu0 %v1812
        %2111 = vmatpush1.bf16.msra.mxu0 %v1811
        %2112 = vmatprep.subr.bf16.mxu0 %v1808
        %2113 = vmatpush1.bf16.msra.mxu0 %v1807
        %2114 = vmatprep.subr.bf16.mxu0 %v1804
        %2115 = vmatpush1.bf16.msra.mxu0 %v1803
        %2116 = vmatprep.subr.bf16.mxu0 %v1800
        %2117 = vmatpush1.bf16.msra.mxu0 %v1799
        %2118 = vmatprep.subr.bf16.mxu0 %v1796
        %2119 = vmatpush1.bf16.msra.mxu0 %v1795
        %2120 = vmatprep.subr.bf16.mxu0 %v1792
        %2121 = vmatpush1.bf16.msra.mxu0 %v1791
        %2122 = vmatprep.subr.bf16.mxu0 0
        %2123 = vmatpush2.bf16.msra.mxu0 0
        %2124 = vmatprep.subr.bf16.mxu0 0
        %2125 = vmatpush2.bf16.msra.mxu0 0
        %2126 = vmatprep.subr.bf16.mxu0 0
        %2127 = vmatpush2.bf16.msra.mxu0 0
        %2128 = vmatprep.subr.bf16.mxu0 0
        %2129 = vmatpush2.bf16.msra.mxu0 0
        %2130 = vmatprep.subr.bf16.mxu0 0
        %2131 = vmatpush2.bf16.msra.mxu0 0
        %2132 = vmatprep.subr.bf16.mxu0 0
        %2133 = vmatpush2.bf16.msra.mxu0 0
        %2134 = vmatprep.subr.bf16.mxu0 0
        %2135 = vmatpush2.bf16.msra.mxu0 0
        %2136 = vmatprep.subr.bf16.mxu0 %v1824
        %2137 = vmatpush2.bf16.msra.mxu0 %v1823
        %2138 = vmatprep.mubr.bf16.mxu0 %v1942
        %2139 = vmatmul.mubr.bf16.gmra.mxu0 %v1928
        %v2140 = vpop.f32.mrf.mxu0
        %v2141 = vadd.f32 %v2088, %v2140
        %v2142 = vpop.f32.mrf.mxu0
        %v2143 = vadd.f32 %v2090, %v2142
        %v2144 = vpop.f32.mrf.mxu0
        %v2145 = vadd.f32 %v2092, %v2144
        %v2146 = vpop.f32.mrf.mxu0
        %v2147 = vadd.f32 %v2094, %v2146
        %2148 = vmatprep.mubr.bf16.mxu0 %v1945
        %2149 = vmatmul.mubr.bf16.gmra.mxu0 %v1932
        %v2150 = vpop.f32.mrf.mxu0
        %v2151 = vadd.f32 %v2098, %v2150
        %v2152 = vpop.f32.mrf.mxu0
        %v2153 = vadd.f32 %v2100, %v2152
        %v2154 = vpop.f32.mrf.mxu0
        %v2155 = vadd.f32 %v2102, %v2154
        %v2156 = vpop.f32.mrf.mxu0
        %v2157 = vadd.f32 %v2104, %v2156
        %2158 = vdwg.mxu0
        %2159 = vmatprep.subr.bf16.mxu0 0
        %2160 = vmatpush1.bf16.msra.mxu0 %v1507
        %2161 = vmatprep.subr.bf16.mxu0 0
        %2162 = vmatpush1.bf16.msra.mxu0 %v1488
        %2163 = vmatprep.subr.bf16.mxu0 0
        %2164 = vmatpush1.bf16.msra.mxu0 %v1469
        %2165 = vmatprep.subr.bf16.mxu0 0
        %2166 = vmatpush1.bf16.msra.mxu0 %v1450
        %2167 = vmatprep.subr.bf16.mxu0 0
        %2168 = vmatpush1.bf16.msra.mxu0 %v1431
        %2169 = vmatprep.subr.bf16.mxu0 0
        %2170 = vmatpush1.bf16.msra.mxu0 %v1412
        %2171 = vmatprep.subr.bf16.mxu0 0
        %2172 = vmatpush1.bf16.msra.mxu0 %v1393
        %2173 = vmatprep.subr.bf16.mxu0 0
        %2174 = vmatpush1.bf16.msra.mxu0 %v1377
        %2175 = vmatprep.subr.bf16.mxu0 0
        %2176 = vmatpush2.bf16.msra.mxu0 %v1659
        %2177 = vmatprep.subr.bf16.mxu0 0
        %2178 = vmatpush2.bf16.msra.mxu0 %v1640
        %2179 = vmatprep.subr.bf16.mxu0 0
        %2180 = vmatpush2.bf16.msra.mxu0 %v1621
        %2181 = vmatprep.subr.bf16.mxu0 0
        %2182 = vmatpush2.bf16.msra.mxu0 %v1602
        %2183 = vmatprep.subr.bf16.mxu0 0
        %2184 = vmatpush2.bf16.msra.mxu0 %v1583
        %2185 = vmatprep.subr.bf16.mxu0 0
        %2186 = vmatpush2.bf16.msra.mxu0 %v1564
        %2187 = vmatprep.subr.bf16.mxu0 0
        %2188 = vmatpush2.bf16.msra.mxu0 %v1545
        %2189 = vmatprep.subr.bf16.mxu0 0
        %2190 = vmatpush2.bf16.msra.mxu0 %v1526
        %2191 = vmatprep.mubr.bf16.mxu0 %v1927
        %2192 = vmatmul.mubr.bf16.gmra.mxu0 %v1926
        %v2193 = vpop.f32.mrf.mxu0
        %v2194 = vadd.f32 %v1885, %v2193
        %v2195 = vpop.f32.mrf.mxu0
        %v2196 = vpop.f32.mrf.mxu0
        %v2197 = vadd.f32 %v1890, %v2196
        %v2198 = vpop.f32.mrf.mxu0
        %2199 = vmatprep.mubr.bf16.mxu0 %v1931
        %2200 = vmatmul.mubr.bf16.gmra.mxu0 %v1930
        %v2201 = vpop.f32.mrf.mxu0
        %v2202 = vadd.f32 %v1895, %v2201
        %v2203 = vpop.f32.mrf.mxu0
        %v2204 = vpop.f32.mrf.mxu0
        %v2205 = vadd.f32 %v1900, %v2204
        %v2206 = vpop.f32.mrf.mxu0
        %2207 = vdwg.mxu0
        %2208 = vmatprep.subr.bf16.mxu0 0
        %2209 = vmatpush1.bf16.msra.mxu0 %v1778
        %2210 = vmatprep.subr.bf16.mxu0 0
        %2211 = vmatpush1.bf16.msra.mxu0 %v1768
        %2212 = vmatprep.subr.bf16.mxu0 0
        %2213 = vmatpush1.bf16.msra.mxu0 %v1758
        %2214 = vmatprep.subr.bf16.mxu0 0
        %2215 = vmatpush1.bf16.msra.mxu0 %v1748
        %2216 = vmatprep.subr.bf16.mxu0 0
        %2217 = vmatpush1.bf16.msra.mxu0 %v1738
        %2218 = vmatprep.subr.bf16.mxu0 0
        %2219 = vmatpush1.bf16.msra.mxu0 %v1728
        %2220 = vmatprep.subr.bf16.mxu0 0
        %2221 = vmatpush1.bf16.msra.mxu0 %v1718
        %2222 = vmatprep.subr.bf16.mxu0 0
        %2223 = vmatpush1.bf16.msra.mxu0 %v1708
        %2224 = vmatprep.subr.bf16.mxu0 0
        %2225 = vmatpush2.bf16.msra.mxu0 0
        %2226 = vmatprep.subr.bf16.mxu0 0
        %2227 = vmatpush2.bf16.msra.mxu0 0
        %2228 = vmatprep.subr.bf16.mxu0 0
        %2229 = vmatpush2.bf16.msra.mxu0 0
        %2230 = vmatprep.subr.bf16.mxu0 0
        %2231 = vmatpush2.bf16.msra.mxu0 0
        %2232 = vmatprep.subr.bf16.mxu0 0
        %2233 = vmatpush2.bf16.msra.mxu0 0
        %2234 = vmatprep.subr.bf16.mxu0 0
        %2235 = vmatpush2.bf16.msra.mxu0 0
        %2236 = vmatprep.subr.bf16.mxu0 0
        %2237 = vmatpush2.bf16.msra.mxu0 0
        %2238 = vmatprep.subr.bf16.mxu0 0
        %2239 = vmatpush2.bf16.msra.mxu0 %v1788
        %2240 = vmatprep.mubr.bf16.mxu0 %v1942
        %2241 = vmatmul.mubr.bf16.gmra.mxu0 %v1928
        %v2242 = vpop.f32.mrf.mxu0
        %v2243 = vadd.f32 %v2194, %v2242
        %v2244 = vpop.f32.mrf.mxu0
        %v2245 = vpop.f32.mrf.mxu0
        %v2246 = vadd.f32 %v2197, %v2245
        %v2247 = vpop.f32.mrf.mxu0
        %2248 = vmatprep.mubr.bf16.mxu0 %v1945
        %2249 = vmatmul.mubr.bf16.gmra.mxu0 %v1932
        %v2250 = vpop.f32.mrf.mxu0
        %v2251 = vadd.f32 %v2202, %v2250
        %v2252 = vpop.f32.mrf.mxu0
        %v2253 = vpop.f32.mrf.mxu0
        %v2254 = vadd.f32 %v2205, %v2253
        %v2255 = vpop.f32.mrf.mxu0
        %2256 = vdwg.mxu0
        %v2257 = vmax.f32 %v2035, 0.0
        %v2258 = vmax.f32 %v2037, 0.0
        %v2259 = vmax.f32 %v2141, 0.0
        %v2260 = vmax.f32 %v2143, 0.0
        %v2261 = vmax.f32 %v2243, 0.0
        %v2262 = vmax.f32 %v2039, 0.0
        %v2263 = vmax.f32 %v2041, 0.0
        %v2264 = vmax.f32 %v2145, 0.0
        %v2265 = vmax.f32 %v2147, 0.0
        %v2266 = vmax.f32 %v2246, 0.0
        %v2267 = vmax.f32 %v2045, 0.0
        %v2268 = vmax.f32 %v2047, 0.0
        %v2269 = vmax.f32 %v2151, 0.0
        %v2270 = vmax.f32 %v2153, 0.0
        %v2271 = vmax.f32 %v2251, 0.0
        %v2272 = vmax.f32 %v2049, 0.0
        %v2273 = vmax.f32 %v2051, 0.0
        %v2274 = vmax.f32 %v2155, 0.0
        %v2275 = vmax.f32 %v2157, 0.0
        %v2276 = vmax.f32 %v2254, 0.0
        %v2277 = vld [vmem:[#allocation6] sm:$0xff]
        %v2278 = vld [vmem:[#allocation6 + $0x8] sm:$0xff]
        %v2279 = vld [vmem:[#allocation6 + $0x10] sm:$0xf]
        %v2280 = vld [vmem:[#allocation6 + $0x14] sm:$0xff]
        %v2281 = vld [vmem:[#allocation6 + $0x1c] sm:$0xff]
        %v2282 = vld [vmem:[#allocation6 + $0x24] sm:$0xf]
        %v2283 = vld [vmem:[#allocation6 + $0x28] sm:$0xff]
        %v2284 = vld [vmem:[#allocation6 + $0x30] sm:$0xff]
        %v2285 = vld [vmem:[#allocation6 + $0x38] sm:$0xf]
        %v2286 = vld [vmem:[#allocation6 + $0x3c] sm:$0xff]
        %v2287 = vld [vmem:[#allocation6 + $0x44] sm:$0xff]
        %v2288 = vld [vmem:[#allocation6 + $0x4c] sm:$0xf]
        %v2289 = vunpack.c.l.bf16 %v2277
        %v2290 = vunpack.c.h.bf16 %v2277
        %v2291 = vunpack.c.l.bf16 %v2278
        %v2292 = vunpack.c.h.bf16 %v2278
        %v2293 = vunpack.c.l.bf16 %v2279
        %v2294 = vunpack.c.l.bf16 %v2280
        %v2295 = vunpack.c.h.bf16 %v2280
        %v2296 = vunpack.c.l.bf16 %v2281
        %v2297 = vunpack.c.h.bf16 %v2281
        %v2298 = vunpack.c.l.bf16 %v2282
        %v2299 = vunpack.c.l.bf16 %v2283
        %v2300 = vunpack.c.h.bf16 %v2283
        %v2301 = vunpack.c.l.bf16 %v2284
        %v2302 = vunpack.c.h.bf16 %v2284
        %v2303 = vunpack.c.l.bf16 %v2285
        %v2304 = vunpack.c.l.bf16 %v2286
        %v2305 = vunpack.c.h.bf16 %v2286
        %v2306 = vunpack.c.l.bf16 %v2287
        %v2307 = vunpack.c.h.bf16 %v2287
        %v2308 = vunpack.c.l.bf16 %v2288
        %v2309 = vlaneseq
        %v2310 = vshrl.u32 %v2309, 7
        %v2311 = vsub.s32 0, %v2310
        %v2312 = vrot.slane %v2257, %v2311
        %v2313 = vlaneseq
        %v2314 = vshrl.u32 %v2313, 7
        %v2315 = vsub.s32 0, %v2314
        %v2316 = vrot.slane %v2258, %v2315
        %v2317 = vlaneseq
        %v2318 = vshrl.u32 %v2317, 7
        %v2319 = vsub.s32 0, %v2318
        %v2320 = vrot.slane %v2259, %v2319
        %v2321 = vlaneseq
        %v2322 = vshrl.u32 %v2321, 7
        %v2323 = vsub.s32 0, %v2322
        %v2324 = vrot.slane %v2260, %v2323
        %v2325 = vlaneseq
        %v2326 = vshrl.u32 %v2325, 7
        %v2327 = vsub.s32 0, %v2326
        %v2328 = vrot.slane %v2261, %v2327
        %v2329 = vmul.f32 %v2289, %v2312
        %v2330 = vmul.f32 %v2290, %v2316
        %v2331 = vmul.f32 %v2291, %v2320
        %v2332 = vmul.f32 %v2292, %v2324
        %v2333 = vmul.f32 %v2293, %v2328
        %v2334 = vmul.f32 %v2294, %v2312
        %v2335 = vmul.f32 %v2295, %v2316
        %v2336 = vmul.f32 %v2296, %v2320
        %v2337 = vmul.f32 %v2297, %v2324
        %v2338 = vmul.f32 %v2298, %v2328
        %v2339 = vmul.f32 %v2299, %v2312
        %v2340 = vmul.f32 %v2300, %v2316
        %v2341 = vmul.f32 %v2301, %v2320
        %v2342 = vmul.f32 %v2302, %v2324
        %v2343 = vmul.f32 %v2303, %v2328
        %v2344 = vmul.f32 %v2304, %v2312
        %v2345 = vmul.f32 %v2305, %v2316
        %v2346 = vmul.f32 %v2306, %v2320
        %v2347 = vmul.f32 %v2307, %v2324
        %v2348 = vmul.f32 %v2308, %v2328
        %v2349 = vadd.f32 %v2329, 0.0
        %v2350 = vadd.f32 %v2330, 0.0
        %v2351 = vadd.f32 %v2331, 0.0
        %v2352 = vadd.f32 %v2332, 0.0
        %v2353 = vadd.f32 %v2333, 0.0
        %v2354 = vadd.f32 %v2334, 0.0
        %v2355 = vadd.f32 %v2335, 0.0
        %v2356 = vadd.f32 %v2336, 0.0
        %v2357 = vadd.f32 %v2337, 0.0
        %v2358 = vadd.f32 %v2338, 0.0
        %v2359 = vadd.f32 %v2339, 0.0
        %v2360 = vadd.f32 %v2340, 0.0
        %v2361 = vadd.f32 %v2341, 0.0
        %v2362 = vadd.f32 %v2342, 0.0
        %v2363 = vadd.f32 %v2343, 0.0
        %v2364 = vadd.f32 %v2344, 0.0
        %v2365 = vadd.f32 %v2345, 0.0
        %v2366 = vadd.f32 %v2346, 0.0
        %v2367 = vadd.f32 %v2347, 0.0
        %v2368 = vadd.f32 %v2348, 0.0
        %s2369 = scalar_lea.vmem [#allocation6], 80
        %v2370 = vld [vmem:[%s2369] sm:$0xff]
        %v2371 = vld [vmem:[%s2369 + $0x8] sm:$0xff]
        %v2372 = vld [vmem:[%s2369 + $0x10] sm:$0xf]
        %v2373 = vld [vmem:[%s2369 + $0x14] sm:$0xff]
        %v2374 = vld [vmem:[%s2369 + $0x1c] sm:$0xff]
        %v2375 = vld [vmem:[%s2369 + $0x24] sm:$0xf]
        %v2376 = vld [vmem:[%s2369 + $0x28] sm:$0xff]
        %v2377 = vld [vmem:[%s2369 + $0x30] sm:$0xff]
        %v2378 = vld [vmem:[%s2369 + $0x38] sm:$0xf]
        %v2379 = vld [vmem:[%s2369 + $0x3c] sm:$0xff]
        %v2380 = vld [vmem:[%s2369 + $0x44] sm:$0xff]
        %v2381 = vld [vmem:[%s2369 + $0x4c] sm:$0xf]
        %v2382 = vunpack.c.l.bf16 %v2370
        %v2383 = vunpack.c.h.bf16 %v2370
        %v2384 = vunpack.c.l.bf16 %v2371
        %v2385 = vunpack.c.h.bf16 %v2371
        %v2386 = vunpack.c.l.bf16 %v2372
        %v2387 = vunpack.c.l.bf16 %v2373
        %v2388 = vunpack.c.h.bf16 %v2373
        %v2389 = vunpack.c.l.bf16 %v2374
        %v2390 = vunpack.c.h.bf16 %v2374
        %v2391 = vunpack.c.l.bf16 %v2375
        %v2392 = vunpack.c.l.bf16 %v2376
        %v2393 = vunpack.c.h.bf16 %v2376
        %v2394 = vunpack.c.l.bf16 %v2377
        %v2395 = vunpack.c.h.bf16 %v2377
        %v2396 = vunpack.c.l.bf16 %v2378
        %v2397 = vunpack.c.l.bf16 %v2379
        %v2398 = vunpack.c.h.bf16 %v2379
        %v2399 = vunpack.c.l.bf16 %v2380
        %v2400 = vunpack.c.h.bf16 %v2380
        %v2401 = vunpack.c.l.bf16 %v2381
        %v2402 = vlaneseq
        %v2403 = vshrl.u32 %v2402, 7
        %v2404 = vsub.s32 1, %v2403
        %v2405 = vrot.slane %v2257, %v2404
        %v2406 = vlaneseq
        %v2407 = vshrl.u32 %v2406, 7
        %v2408 = vsub.s32 1, %v2407
        %v2409 = vrot.slane %v2258, %v2408
        %v2410 = vlaneseq
        %v2411 = vshrl.u32 %v2410, 7
        %v2412 = vsub.s32 1, %v2411
        %v2413 = vrot.slane %v2259, %v2412
        %v2414 = vlaneseq
        %v2415 = vshrl.u32 %v2414, 7
        %v2416 = vsub.s32 1, %v2415
        %v2417 = vrot.slane %v2260, %v2416
        %v2418 = vlaneseq
        %v2419 = vshrl.u32 %v2418, 7
        %v2420 = vsub.s32 1, %v2419
        %v2421 = vrot.slane %v2261, %v2420
        %v2422 = vmul.f32 %v2382, %v2405
        %v2423 = vmul.f32 %v2383, %v2409
        %v2424 = vmul.f32 %v2384, %v2413
        %v2425 = vmul.f32 %v2385, %v2417
        %v2426 = vmul.f32 %v2386, %v2421
        %v2427 = vmul.f32 %v2387, %v2405
        %v2428 = vmul.f32 %v2388, %v2409
        %v2429 = vmul.f32 %v2389, %v2413
        %v2430 = vmul.f32 %v2390, %v2417
        %v2431 = vmul.f32 %v2391, %v2421
        %v2432 = vmul.f32 %v2392, %v2405
        %v2433 = vmul.f32 %v2393, %v2409
        %v2434 = vmul.f32 %v2394, %v2413
        %v2435 = vmul.f32 %v2395, %v2417
        %v2436 = vmul.f32 %v2396, %v2421
        %v2437 = vmul.f32 %v2397, %v2405
        %v2438 = vmul.f32 %v2398, %v2409
        %v2439 = vmul.f32 %v2399, %v2413
        %v2440 = vmul.f32 %v2400, %v2417
        %v2441 = vmul.f32 %v2401, %v2421
        %v2442 = vadd.f32 %v2349, %v2422
        %v2443 = vadd.f32 %v2350, %v2423
        %v2444 = vadd.f32 %v2351, %v2424
        %v2445 = vadd.f32 %v2352, %v2425
        %v2446 = vadd.f32 %v2353, %v2426
        %v2447 = vadd.f32 %v2354, %v2427
        %v2448 = vadd.f32 %v2355, %v2428
        %v2449 = vadd.f32 %v2356, %v2429
        %v2450 = vadd.f32 %v2357, %v2430
        %v2451 = vadd.f32 %v2358, %v2431
        %v2452 = vadd.f32 %v2359, %v2432
        %v2453 = vadd.f32 %v2360, %v2433
        %v2454 = vadd.f32 %v2361, %v2434
        %v2455 = vadd.f32 %v2362, %v2435
        %v2456 = vadd.f32 %v2363, %v2436
        %v2457 = vadd.f32 %v2364, %v2437
        %v2458 = vadd.f32 %v2365, %v2438
        %v2459 = vadd.f32 %v2366, %v2439
        %v2460 = vadd.f32 %v2367, %v2440
        %v2461 = vadd.f32 %v2368, %v2441
        %s2462 = scalar_lea.vmem [#allocation6], 160
        %v2463 = vld [vmem:[%s2462] sm:$0xff]
        %v2464 = vld [vmem:[%s2462 + $0x8] sm:$0xff]
        %v2465 = vld [vmem:[%s2462 + $0x10] sm:$0xf]
        %v2466 = vld [vmem:[%s2462 + $0x14] sm:$0xff]
        %v2467 = vld [vmem:[%s2462 + $0x1c] sm:$0xff]
        %v2468 = vld [vmem:[%s2462 + $0x24] sm:$0xf]
        %v2469 = vld [vmem:[%s2462 + $0x28] sm:$0xff]
        %v2470 = vld [vmem:[%s2462 + $0x30] sm:$0xff]
        %v2471 = vld [vmem:[%s2462 + $0x38] sm:$0xf]
        %v2472 = vld [vmem:[%s2462 + $0x3c] sm:$0xff]
        %v2473 = vld [vmem:[%s2462 + $0x44] sm:$0xff]
        %v2474 = vld [vmem:[%s2462 + $0x4c] sm:$0xf]
        %v2475 = vunpack.c.l.bf16 %v2463
        %v2476 = vunpack.c.h.bf16 %v2463
        %v2477 = vunpack.c.l.bf16 %v2464
        %v2478 = vunpack.c.h.bf16 %v2464
        %v2479 = vunpack.c.l.bf16 %v2465
        %v2480 = vunpack.c.l.bf16 %v2466
        %v2481 = vunpack.c.h.bf16 %v2466
        %v2482 = vunpack.c.l.bf16 %v2467
        %v2483 = vunpack.c.h.bf16 %v2467
        %v2484 = vunpack.c.l.bf16 %v2468
        %v2485 = vunpack.c.l.bf16 %v2469
        %v2486 = vunpack.c.h.bf16 %v2469
        %v2487 = vunpack.c.l.bf16 %v2470
        %v2488 = vunpack.c.h.bf16 %v2470
        %v2489 = vunpack.c.l.bf16 %v2471
        %v2490 = vunpack.c.l.bf16 %v2472
        %v2491 = vunpack.c.h.bf16 %v2472
        %v2492 = vunpack.c.l.bf16 %v2473
        %v2493 = vunpack.c.h.bf16 %v2473
        %v2494 = vunpack.c.l.bf16 %v2474
        %v2495 = vlaneseq
        %v2496 = vshrl.u32 %v2495, 7
        %v2497 = vsub.s32 2, %v2496
        %v2498 = vrot.slane %v2257, %v2497
        %v2499 = vlaneseq
        %v2500 = vshrl.u32 %v2499, 7
        %v2501 = vsub.s32 2, %v2500
        %v2502 = vrot.slane %v2258, %v2501
        %v2503 = vlaneseq
        %v2504 = vshrl.u32 %v2503, 7
        %v2505 = vsub.s32 2, %v2504
        %v2506 = vrot.slane %v2259, %v2505
        %v2507 = vlaneseq
        %v2508 = vshrl.u32 %v2507, 7
        %v2509 = vsub.s32 2, %v2508
        %v2510 = vrot.slane %v2260, %v2509
        %v2511 = vlaneseq
        %v2512 = vshrl.u32 %v2511, 7
        %v2513 = vsub.s32 2, %v2512
        %v2514 = vrot.slane %v2261, %v2513
        %v2515 = vmul.f32 %v2475, %v2498
        %v2516 = vmul.f32 %v2476, %v2502
        %v2517 = vmul.f32 %v2477, %v2506
        %v2518 = vmul.f32 %v2478, %v2510
        %v2519 = vmul.f32 %v2479, %v2514
        %v2520 = vmul.f32 %v2480, %v2498
        %v2521 = vmul.f32 %v2481, %v2502
        %v2522 = vmul.f32 %v2482, %v2506
        %v2523 = vmul.f32 %v2483, %v2510
        %v2524 = vmul.f32 %v2484, %v2514
        %v2525 = vmul.f32 %v2485, %v2498
        %v2526 = vmul.f32 %v2486, %v2502
        %v2527 = vmul.f32 %v2487, %v2506
        %v2528 = vmul.f32 %v2488, %v2510
        %v2529 = vmul.f32 %v2489, %v2514
        %v2530 = vmul.f32 %v2490, %v2498
        %v2531 = vmul.f32 %v2491, %v2502
        %v2532 = vmul.f32 %v2492, %v2506
        %v2533 = vmul.f32 %v2493, %v2510
        %v2534 = vmul.f32 %v2494, %v2514
        %v2535 = vadd.f32 %v2442, %v2515
        %v2536 = vadd.f32 %v2443, %v2516
        %v2537 = vadd.f32 %v2444, %v2517
        %v2538 = vadd.f32 %v2445, %v2518
        %v2539 = vadd.f32 %v2446, %v2519
        %v2540 = vadd.f32 %v2447, %v2520
        %v2541 = vadd.f32 %v2448, %v2521
        %v2542 = vadd.f32 %v2449, %v2522
        %v2543 = vadd.f32 %v2450, %v2523
        %v2544 = vadd.f32 %v2451, %v2524
        %v2545 = vadd.f32 %v2452, %v2525
        %v2546 = vadd.f32 %v2453, %v2526
        %v2547 = vadd.f32 %v2454, %v2527
        %v2548 = vadd.f32 %v2455, %v2528
        %v2549 = vadd.f32 %v2456, %v2529
        %v2550 = vadd.f32 %v2457, %v2530
        %v2551 = vadd.f32 %v2458, %v2531
        %v2552 = vadd.f32 %v2459, %v2532
        %v2553 = vadd.f32 %v2460, %v2533
        %v2554 = vadd.f32 %v2461, %v2534
        %s2555 = scalar_lea.vmem [#allocation6], 240
        %v2556 = vld [vmem:[%s2555] sm:$0xff]
        %v2557 = vld [vmem:[%s2555 + $0x8] sm:$0xff]
        %v2558 = vld [vmem:[%s2555 + $0x10] sm:$0xf]
        %v2559 = vld [vmem:[%s2555 + $0x14] sm:$0xff]
        %v2560 = vld [vmem:[%s2555 + $0x1c] sm:$0xff]
        %v2561 = vld [vmem:[%s2555 + $0x24] sm:$0xf]
        %v2562 = vld [vmem:[%s2555 + $0x28] sm:$0xff]
        %v2563 = vld [vmem:[%s2555 + $0x30] sm:$0xff]
        %v2564 = vld [vmem:[%s2555 + $0x38] sm:$0xf]
        %v2565 = vld [vmem:[%s2555 + $0x3c] sm:$0xff]
        %v2566 = vld [vmem:[%s2555 + $0x44] sm:$0xff]
        %v2567 = vld [vmem:[%s2555 + $0x4c] sm:$0xf]
        %v2568 = vunpack.c.l.bf16 %v2556
        %v2569 = vunpack.c.h.bf16 %v2556
        %v2570 = vunpack.c.l.bf16 %v2557
        %v2571 = vunpack.c.h.bf16 %v2557
        %v2572 = vunpack.c.l.bf16 %v2558
        %v2573 = vunpack.c.l.bf16 %v2559
        %v2574 = vunpack.c.h.bf16 %v2559
        %v2575 = vunpack.c.l.bf16 %v2560
        %v2576 = vunpack.c.h.bf16 %v2560
        %v2577 = vunpack.c.l.bf16 %v2561
        %v2578 = vunpack.c.l.bf16 %v2562
        %v2579 = vunpack.c.h.bf16 %v2562
        %v2580 = vunpack.c.l.bf16 %v2563
        %v2581 = vunpack.c.h.bf16 %v2563
        %v2582 = vunpack.c.l.bf16 %v2564
        %v2583 = vunpack.c.l.bf16 %v2565
        %v2584 = vunpack.c.h.bf16 %v2565
        %v2585 = vunpack.c.l.bf16 %v2566
        %v2586 = vunpack.c.h.bf16 %v2566
        %v2587 = vunpack.c.l.bf16 %v2567
        %v2588 = vlaneseq
        %v2589 = vshrl.u32 %v2588, 7
        %v2590 = vsub.s32 3, %v2589
        %v2591 = vrot.slane %v2257, %v2590
        %v2592 = vlaneseq
        %v2593 = vshrl.u32 %v2592, 7
        %v2594 = vsub.s32 3, %v2593
        %v2595 = vrot.slane %v2258, %v2594
        %v2596 = vlaneseq
        %v2597 = vshrl.u32 %v2596, 7
        %v2598 = vsub.s32 3, %v2597
        %v2599 = vrot.slane %v2259, %v2598
        %v2600 = vlaneseq
        %v2601 = vshrl.u32 %v2600, 7
        %v2602 = vsub.s32 3, %v2601
        %v2603 = vrot.slane %v2260, %v2602
        %v2604 = vlaneseq
        %v2605 = vshrl.u32 %v2604, 7
        %v2606 = vsub.s32 3, %v2605
        %v2607 = vrot.slane %v2261, %v2606
        %v2608 = vmul.f32 %v2568, %v2591
        %v2609 = vmul.f32 %v2569, %v2595
        %v2610 = vmul.f32 %v2570, %v2599
        %v2611 = vmul.f32 %v2571, %v2603
        %v2612 = vmul.f32 %v2572, %v2607
        %v2613 = vmul.f32 %v2573, %v2591
        %v2614 = vmul.f32 %v2574, %v2595
        %v2615 = vmul.f32 %v2575, %v2599
        %v2616 = vmul.f32 %v2576, %v2603
        %v2617 = vmul.f32 %v2577, %v2607
        %v2618 = vmul.f32 %v2578, %v2591
        %v2619 = vmul.f32 %v2579, %v2595
        %v2620 = vmul.f32 %v2580, %v2599
        %v2621 = vmul.f32 %v2581, %v2603
        %v2622 = vmul.f32 %v2582, %v2607
        %v2623 = vmul.f32 %v2583, %v2591
        %v2624 = vmul.f32 %v2584, %v2595
        %v2625 = vmul.f32 %v2585, %v2599
        %v2626 = vmul.f32 %v2586, %v2603
        %v2627 = vmul.f32 %v2587, %v2607
        %v2628 = vadd.f32 %v2535, %v2608
        %v2629 = vadd.f32 %v2536, %v2609
        %v2630 = vadd.f32 %v2537, %v2610
        %v2631 = vadd.f32 %v2538, %v2611
        %v2632 = vadd.f32 %v2539, %v2612
        %v2633 = vadd.f32 %v2540, %v2613
        %v2634 = vadd.f32 %v2541, %v2614
        %v2635 = vadd.f32 %v2542, %v2615
        %v2636 = vadd.f32 %v2543, %v2616
        %v2637 = vadd.f32 %v2544, %v2617
        %v2638 = vadd.f32 %v2545, %v2618
        %v2639 = vadd.f32 %v2546, %v2619
        %v2640 = vadd.f32 %v2547, %v2620
        %v2641 = vadd.f32 %v2548, %v2621
        %v2642 = vadd.f32 %v2549, %v2622
        %v2643 = vadd.f32 %v2550, %v2623
        %v2644 = vadd.f32 %v2551, %v2624
        %v2645 = vadd.f32 %v2552, %v2625
        %v2646 = vadd.f32 %v2553, %v2626
        %v2647 = vadd.f32 %v2554, %v2627
        %s2648 = scalar_lea.vmem [#allocation6], 320
        %v2649 = vld [vmem:[%s2648] sm:$0xff]
        %v2650 = vld [vmem:[%s2648 + $0x8] sm:$0xff]
        %v2651 = vld [vmem:[%s2648 + $0x10] sm:$0xf]
        %v2652 = vld [vmem:[%s2648 + $0x14] sm:$0xff]
        %v2653 = vld [vmem:[%s2648 + $0x1c] sm:$0xff]
        %v2654 = vld [vmem:[%s2648 + $0x24] sm:$0xf]
        %v2655 = vld [vmem:[%s2648 + $0x28] sm:$0xff]
        %v2656 = vld [vmem:[%s2648 + $0x30] sm:$0xff]
        %v2657 = vld [vmem:[%s2648 + $0x38] sm:$0xf]
        %v2658 = vld [vmem:[%s2648 + $0x3c] sm:$0xff]
        %v2659 = vld [vmem:[%s2648 + $0x44] sm:$0xff]
        %v2660 = vld [vmem:[%s2648 + $0x4c] sm:$0xf]
        %v2661 = vunpack.c.l.bf16 %v2649
        %v2662 = vunpack.c.h.bf16 %v2649
        %v2663 = vunpack.c.l.bf16 %v2650
        %v2664 = vunpack.c.h.bf16 %v2650
        %v2665 = vunpack.c.l.bf16 %v2651
        %v2666 = vunpack.c.l.bf16 %v2652
        %v2667 = vunpack.c.h.bf16 %v2652
        %v2668 = vunpack.c.l.bf16 %v2653
        %v2669 = vunpack.c.h.bf16 %v2653
        %v2670 = vunpack.c.l.bf16 %v2654
        %v2671 = vunpack.c.l.bf16 %v2655
        %v2672 = vunpack.c.h.bf16 %v2655
        %v2673 = vunpack.c.l.bf16 %v2656
        %v2674 = vunpack.c.h.bf16 %v2656
        %v2675 = vunpack.c.l.bf16 %v2657
        %v2676 = vunpack.c.l.bf16 %v2658
        %v2677 = vunpack.c.h.bf16 %v2658
        %v2678 = vunpack.c.l.bf16 %v2659
        %v2679 = vunpack.c.h.bf16 %v2659
        %v2680 = vunpack.c.l.bf16 %v2660
        %v2681 = vlaneseq
        %v2682 = vshrl.u32 %v2681, 7
        %v2683 = vsub.s32 4, %v2682
        %v2684 = vrot.slane %v2257, %v2683
        %v2685 = vlaneseq
        %v2686 = vshrl.u32 %v2685, 7
        %v2687 = vsub.s32 4, %v2686
        %v2688 = vrot.slane %v2258, %v2687
        %v2689 = vlaneseq
        %v2690 = vshrl.u32 %v2689, 7
        %v2691 = vsub.s32 4, %v2690
        %v2692 = vrot.slane %v2259, %v2691
        %v2693 = vlaneseq
        %v2694 = vshrl.u32 %v2693, 7
        %v2695 = vsub.s32 4, %v2694
        %v2696 = vrot.slane %v2260, %v2695
        %v2697 = vlaneseq
        %v2698 = vshrl.u32 %v2697, 7
        %v2699 = vsub.s32 4, %v2698
        %v2700 = vrot.slane %v2261, %v2699
        %v2701 = vmul.f32 %v2661, %v2684
        %v2702 = vmul.f32 %v2662, %v2688
        %v2703 = vmul.f32 %v2663, %v2692
        %v2704 = vmul.f32 %v2664, %v2696
        %v2705 = vmul.f32 %v2665, %v2700
        %v2706 = vmul.f32 %v2666, %v2684
        %v2707 = vmul.f32 %v2667, %v2688
        %v2708 = vmul.f32 %v2668, %v2692
        %v2709 = vmul.f32 %v2669, %v2696
        %v2710 = vmul.f32 %v2670, %v2700
        %v2711 = vmul.f32 %v2671, %v2684
        %v2712 = vmul.f32 %v2672, %v2688
        %v2713 = vmul.f32 %v2673, %v2692
        %v2714 = vmul.f32 %v2674, %v2696
        %v2715 = vmul.f32 %v2675, %v2700
        %v2716 = vmul.f32 %v2676, %v2684
        %v2717 = vmul.f32 %v2677, %v2688
        %v2718 = vmul.f32 %v2678, %v2692
        %v2719 = vmul.f32 %v2679, %v2696
        %v2720 = vmul.f32 %v2680, %v2700
        %v2721 = vadd.f32 %v2628, %v2701
        %v2722 = vadd.f32 %v2629, %v2702
        %v2723 = vadd.f32 %v2630, %v2703
        %v2724 = vadd.f32 %v2631, %v2704
        %v2725 = vadd.f32 %v2632, %v2705
        %v2726 = vadd.f32 %v2633, %v2706
        %v2727 = vadd.f32 %v2634, %v2707
        %v2728 = vadd.f32 %v2635, %v2708
        %v2729 = vadd.f32 %v2636, %v2709
        %v2730 = vadd.f32 %v2637, %v2710
        %v2731 = vadd.f32 %v2638, %v2711
        %v2732 = vadd.f32 %v2639, %v2712
        %v2733 = vadd.f32 %v2640, %v2713
        %v2734 = vadd.f32 %v2641, %v2714
        %v2735 = vadd.f32 %v2642, %v2715
        %v2736 = vadd.f32 %v2643, %v2716
        %v2737 = vadd.f32 %v2644, %v2717
        %v2738 = vadd.f32 %v2645, %v2718
        %v2739 = vadd.f32 %v2646, %v2719
        %v2740 = vadd.f32 %v2647, %v2720
        %s2741 = scalar_lea.vmem [#allocation6], 400
        %v2742 = vld [vmem:[%s2741] sm:$0xff]
        %v2743 = vld [vmem:[%s2741 + $0x8] sm:$0xff]
        %v2744 = vld [vmem:[%s2741 + $0x10] sm:$0xf]
        %v2745 = vld [vmem:[%s2741 + $0x14] sm:$0xff]
        %v2746 = vld [vmem:[%s2741 + $0x1c] sm:$0xff]
        %v2747 = vld [vmem:[%s2741 + $0x24] sm:$0xf]
        %v2748 = vld [vmem:[%s2741 + $0x28] sm:$0xff]
        %v2749 = vld [vmem:[%s2741 + $0x30] sm:$0xff]
        %v2750 = vld [vmem:[%s2741 + $0x38] sm:$0xf]
        %v2751 = vld [vmem:[%s2741 + $0x3c] sm:$0xff]
        %v2752 = vld [vmem:[%s2741 + $0x44] sm:$0xff]
        %v2753 = vld [vmem:[%s2741 + $0x4c] sm:$0xf]
        %v2754 = vunpack.c.l.bf16 %v2742
        %v2755 = vunpack.c.h.bf16 %v2742
        %v2756 = vunpack.c.l.bf16 %v2743
        %v2757 = vunpack.c.h.bf16 %v2743
        %v2758 = vunpack.c.l.bf16 %v2744
        %v2759 = vunpack.c.l.bf16 %v2745
        %v2760 = vunpack.c.h.bf16 %v2745
        %v2761 = vunpack.c.l.bf16 %v2746
        %v2762 = vunpack.c.h.bf16 %v2746
        %v2763 = vunpack.c.l.bf16 %v2747
        %v2764 = vunpack.c.l.bf16 %v2748
        %v2765 = vunpack.c.h.bf16 %v2748
        %v2766 = vunpack.c.l.bf16 %v2749
        %v2767 = vunpack.c.h.bf16 %v2749
        %v2768 = vunpack.c.l.bf16 %v2750
        %v2769 = vunpack.c.l.bf16 %v2751
        %v2770 = vunpack.c.h.bf16 %v2751
        %v2771 = vunpack.c.l.bf16 %v2752
        %v2772 = vunpack.c.h.bf16 %v2752
        %v2773 = vunpack.c.l.bf16 %v2753
        %v2774 = vlaneseq
        %v2775 = vshrl.u32 %v2774, 7
        %v2776 = vsub.s32 5, %v2775
        %v2777 = vrot.slane %v2257, %v2776
        %v2778 = vlaneseq
        %v2779 = vshrl.u32 %v2778, 7
        %v2780 = vsub.s32 5, %v2779
        %v2781 = vrot.slane %v2258, %v2780
        %v2782 = vlaneseq
        %v2783 = vshrl.u32 %v2782, 7
        %v2784 = vsub.s32 5, %v2783
        %v2785 = vrot.slane %v2259, %v2784
        %v2786 = vlaneseq
        %v2787 = vshrl.u32 %v2786, 7
        %v2788 = vsub.s32 5, %v2787
        %v2789 = vrot.slane %v2260, %v2788
        %v2790 = vlaneseq
        %v2791 = vshrl.u32 %v2790, 7
        %v2792 = vsub.s32 5, %v2791
        %v2793 = vrot.slane %v2261, %v2792
        %v2794 = vmul.f32 %v2754, %v2777
        %v2795 = vmul.f32 %v2755, %v2781
        %v2796 = vmul.f32 %v2756, %v2785
        %v2797 = vmul.f32 %v2757, %v2789
        %v2798 = vmul.f32 %v2758, %v2793
        %v2799 = vmul.f32 %v2759, %v2777
        %v2800 = vmul.f32 %v2760, %v2781
        %v2801 = vmul.f32 %v2761, %v2785
        %v2802 = vmul.f32 %v2762, %v2789
        %v2803 = vmul.f32 %v2763, %v2793
        %v2804 = vmul.f32 %v2764, %v2777
        %v2805 = vmul.f32 %v2765, %v2781
        %v2806 = vmul.f32 %v2766, %v2785
        %v2807 = vmul.f32 %v2767, %v2789
        %v2808 = vmul.f32 %v2768, %v2793
        %v2809 = vmul.f32 %v2769, %v2777
        %v2810 = vmul.f32 %v2770, %v2781
        %v2811 = vmul.f32 %v2771, %v2785
        %v2812 = vmul.f32 %v2772, %v2789
        %v2813 = vmul.f32 %v2773, %v2793
        %v2814 = vadd.f32 %v2721, %v2794
        %v2815 = vadd.f32 %v2722, %v2795
        %v2816 = vadd.f32 %v2723, %v2796
        %v2817 = vadd.f32 %v2724, %v2797
        %v2818 = vadd.f32 %v2725, %v2798
        %v2819 = vadd.f32 %v2726, %v2799
        %v2820 = vadd.f32 %v2727, %v2800
        %v2821 = vadd.f32 %v2728, %v2801
        %v2822 = vadd.f32 %v2729, %v2802
        %v2823 = vadd.f32 %v2730, %v2803
        %v2824 = vadd.f32 %v2731, %v2804
        %v2825 = vadd.f32 %v2732, %v2805
        %v2826 = vadd.f32 %v2733, %v2806
        %v2827 = vadd.f32 %v2734, %v2807
        %v2828 = vadd.f32 %v2735, %v2808
        %v2829 = vadd.f32 %v2736, %v2809
        %v2830 = vadd.f32 %v2737, %v2810
        %v2831 = vadd.f32 %v2738, %v2811
        %v2832 = vadd.f32 %v2739, %v2812
        %v2833 = vadd.f32 %v2740, %v2813
        %s2834 = scalar_lea.vmem [#allocation6], 480
        %v2835 = vld [vmem:[%s2834] sm:$0xff]
        %v2836 = vld [vmem:[%s2834 + $0x8] sm:$0xff]
        %v2837 = vld [vmem:[%s2834 + $0x10] sm:$0xf]
        %v2838 = vld [vmem:[%s2834 + $0x14] sm:$0xff]
        %v2839 = vld [vmem:[%s2834 + $0x1c] sm:$0xff]
        %v2840 = vld [vmem:[%s2834 + $0x24] sm:$0xf]
        %v2841 = vld [vmem:[%s2834 + $0x28] sm:$0xff]
        %v2842 = vld [vmem:[%s2834 + $0x30] sm:$0xff]
        %v2843 = vld [vmem:[%s2834 + $0x38] sm:$0xf]
        %v2844 = vld [vmem:[%s2834 + $0x3c] sm:$0xff]
        %v2845 = vld [vmem:[%s2834 + $0x44] sm:$0xff]
        %v2846 = vld [vmem:[%s2834 + $0x4c] sm:$0xf]
        %v2847 = vunpack.c.l.bf16 %v2835
        %v2848 = vunpack.c.h.bf16 %v2835
        %v2849 = vunpack.c.l.bf16 %v2836
        %v2850 = vunpack.c.h.bf16 %v2836
        %v2851 = vunpack.c.l.bf16 %v2837
        %v2852 = vunpack.c.l.bf16 %v2838
        %v2853 = vunpack.c.h.bf16 %v2838
        %v2854 = vunpack.c.l.bf16 %v2839
        %v2855 = vunpack.c.h.bf16 %v2839
        %v2856 = vunpack.c.l.bf16 %v2840
        %v2857 = vunpack.c.l.bf16 %v2841
        %v2858 = vunpack.c.h.bf16 %v2841
        %v2859 = vunpack.c.l.bf16 %v2842
        %v2860 = vunpack.c.h.bf16 %v2842
        %v2861 = vunpack.c.l.bf16 %v2843
        %v2862 = vunpack.c.l.bf16 %v2844
        %v2863 = vunpack.c.h.bf16 %v2844
        %v2864 = vunpack.c.l.bf16 %v2845
        %v2865 = vunpack.c.h.bf16 %v2845
        %v2866 = vunpack.c.l.bf16 %v2846
        %v2867 = vlaneseq
        %v2868 = vshrl.u32 %v2867, 7
        %v2869 = vsub.s32 6, %v2868
        %v2870 = vrot.slane %v2257, %v2869
        %v2871 = vlaneseq
        %v2872 = vshrl.u32 %v2871, 7
        %v2873 = vsub.s32 6, %v2872
        %v2874 = vrot.slane %v2258, %v2873
        %v2875 = vlaneseq
        %v2876 = vshrl.u32 %v2875, 7
        %v2877 = vsub.s32 6, %v2876
        %v2878 = vrot.slane %v2259, %v2877
        %v2879 = vlaneseq
        %v2880 = vshrl.u32 %v2879, 7
        %v2881 = vsub.s32 6, %v2880
        %v2882 = vrot.slane %v2260, %v2881
        %v2883 = vlaneseq
        %v2884 = vshrl.u32 %v2883, 7
        %v2885 = vsub.s32 6, %v2884
        %v2886 = vrot.slane %v2261, %v2885
        %v2887 = vmul.f32 %v2847, %v2870
        %v2888 = vmul.f32 %v2848, %v2874
        %v2889 = vmul.f32 %v2849, %v2878
        %v2890 = vmul.f32 %v2850, %v2882
        %v2891 = vmul.f32 %v2851, %v2886
        %v2892 = vmul.f32 %v2852, %v2870
        %v2893 = vmul.f32 %v2853, %v2874
        %v2894 = vmul.f32 %v2854, %v2878
        %v2895 = vmul.f32 %v2855, %v2882
        %v2896 = vmul.f32 %v2856, %v2886
        %v2897 = vmul.f32 %v2857, %v2870
        %v2898 = vmul.f32 %v2858, %v2874
        %v2899 = vmul.f32 %v2859, %v2878
        %v2900 = vmul.f32 %v2860, %v2882
        %v2901 = vmul.f32 %v2861, %v2886
        %v2902 = vmul.f32 %v2862, %v2870
        %v2903 = vmul.f32 %v2863, %v2874
        %v2904 = vmul.f32 %v2864, %v2878
        %v2905 = vmul.f32 %v2865, %v2882
        %v2906 = vmul.f32 %v2866, %v2886
        %v2907 = vadd.f32 %v2814, %v2887
        %v2908 = vadd.f32 %v2815, %v2888
        %v2909 = vadd.f32 %v2816, %v2889
        %v2910 = vadd.f32 %v2817, %v2890
        %v2911 = vadd.f32 %v2818, %v2891
        %v2912 = vadd.f32 %v2819, %v2892
        %v2913 = vadd.f32 %v2820, %v2893
        %v2914 = vadd.f32 %v2821, %v2894
        %v2915 = vadd.f32 %v2822, %v2895
        %v2916 = vadd.f32 %v2823, %v2896
        %v2917 = vadd.f32 %v2824, %v2897
        %v2918 = vadd.f32 %v2825, %v2898
        %v2919 = vadd.f32 %v2826, %v2899
        %v2920 = vadd.f32 %v2827, %v2900
        %v2921 = vadd.f32 %v2828, %v2901
        %v2922 = vadd.f32 %v2829, %v2902
        %v2923 = vadd.f32 %v2830, %v2903
        %v2924 = vadd.f32 %v2831, %v2904
        %v2925 = vadd.f32 %v2832, %v2905
        %v2926 = vadd.f32 %v2833, %v2906
        %s2927 = scalar_lea.vmem [#allocation6], 560
        %v2928 = vld [vmem:[%s2927] sm:$0xff]
        %v2929 = vld [vmem:[%s2927 + $0x8] sm:$0xff]
        %v2930 = vld [vmem:[%s2927 + $0x10] sm:$0xf]
        %v2931 = vld [vmem:[%s2927 + $0x14] sm:$0xff]
        %v2932 = vld [vmem:[%s2927 + $0x1c] sm:$0xff]
        %v2933 = vld [vmem:[%s2927 + $0x24] sm:$0xf]
        %v2934 = vld [vmem:[%s2927 + $0x28] sm:$0xff]
        %v2935 = vld [vmem:[%s2927 + $0x30] sm:$0xff]
        %v2936 = vld [vmem:[%s2927 + $0x38] sm:$0xf]
        %v2937 = vld [vmem:[%s2927 + $0x3c] sm:$0xff]
        %v2938 = vld [vmem:[%s2927 + $0x44] sm:$0xff]
        %v2939 = vld [vmem:[%s2927 + $0x4c] sm:$0xf]
        %v2940 = vunpack.c.l.bf16 %v2928
        %v2941 = vunpack.c.h.bf16 %v2928
        %v2942 = vunpack.c.l.bf16 %v2929
        %v2943 = vunpack.c.h.bf16 %v2929
        %v2944 = vunpack.c.l.bf16 %v2930
        %v2945 = vunpack.c.l.bf16 %v2931
        %v2946 = vunpack.c.h.bf16 %v2931
        %v2947 = vunpack.c.l.bf16 %v2932
        %v2948 = vunpack.c.h.bf16 %v2932
        %v2949 = vunpack.c.l.bf16 %v2933
        %v2950 = vunpack.c.l.bf16 %v2934
        %v2951 = vunpack.c.h.bf16 %v2934
        %v2952 = vunpack.c.l.bf16 %v2935
        %v2953 = vunpack.c.h.bf16 %v2935
        %v2954 = vunpack.c.l.bf16 %v2936
        %v2955 = vunpack.c.l.bf16 %v2937
        %v2956 = vunpack.c.h.bf16 %v2937
        %v2957 = vunpack.c.l.bf16 %v2938
        %v2958 = vunpack.c.h.bf16 %v2938
        %v2959 = vunpack.c.l.bf16 %v2939
        %v2960 = vlaneseq
        %v2961 = vshrl.u32 %v2960, 7
        %v2962 = vsub.s32 7, %v2961
        %v2963 = vrot.slane %v2257, %v2962
        %v2964 = vlaneseq
        %v2965 = vshrl.u32 %v2964, 7
        %v2966 = vsub.s32 7, %v2965
        %v2967 = vrot.slane %v2258, %v2966
        %v2968 = vlaneseq
        %v2969 = vshrl.u32 %v2968, 7
        %v2970 = vsub.s32 7, %v2969
        %v2971 = vrot.slane %v2259, %v2970
        %v2972 = vlaneseq
        %v2973 = vshrl.u32 %v2972, 7
        %v2974 = vsub.s32 7, %v2973
        %v2975 = vrot.slane %v2260, %v2974
        %v2976 = vlaneseq
        %v2977 = vshrl.u32 %v2976, 7
        %v2978 = vsub.s32 7, %v2977
        %v2979 = vrot.slane %v2261, %v2978
        %v2980 = vmul.f32 %v2940, %v2963
        %v2981 = vmul.f32 %v2941, %v2967
        %v2982 = vmul.f32 %v2942, %v2971
        %v2983 = vmul.f32 %v2943, %v2975
        %v2984 = vmul.f32 %v2944, %v2979
        %v2985 = vmul.f32 %v2945, %v2963
        %v2986 = vmul.f32 %v2946, %v2967
        %v2987 = vmul.f32 %v2947, %v2971
        %v2988 = vmul.f32 %v2948, %v2975
        %v2989 = vmul.f32 %v2949, %v2979
        %v2990 = vmul.f32 %v2950, %v2963
        %v2991 = vmul.f32 %v2951, %v2967
        %v2992 = vmul.f32 %v2952, %v2971
        %v2993 = vmul.f32 %v2953, %v2975
        %v2994 = vmul.f32 %v2954, %v2979
        %v2995 = vmul.f32 %v2955, %v2963
        %v2996 = vmul.f32 %v2956, %v2967
        %v2997 = vmul.f32 %v2957, %v2971
        %v2998 = vmul.f32 %v2958, %v2975
        %v2999 = vmul.f32 %v2959, %v2979
        %v3000 = vadd.f32 %v2907, %v2980
        %v3001 = vadd.f32 %v2908, %v2981
        %v3002 = vadd.f32 %v2909, %v2982
        %v3003 = vadd.f32 %v2910, %v2983
        %v3004 = vadd.f32 %v2911, %v2984
        %v3005 = vadd.f32 %v2912, %v2985
        %v3006 = vadd.f32 %v2913, %v2986
        %v3007 = vadd.f32 %v2914, %v2987
        %v3008 = vadd.f32 %v2915, %v2988
        %v3009 = vadd.f32 %v2916, %v2989
        %v3010 = vadd.f32 %v2917, %v2990
        %v3011 = vadd.f32 %v2918, %v2991
        %v3012 = vadd.f32 %v2919, %v2992
        %v3013 = vadd.f32 %v2920, %v2993
        %v3014 = vadd.f32 %v2921, %v2994
        %v3015 = vadd.f32 %v2922, %v2995
        %v3016 = vadd.f32 %v2923, %v2996
        %v3017 = vadd.f32 %v2924, %v2997
        %v3018 = vadd.f32 %v2925, %v2998
        %v3019 = vadd.f32 %v2926, %v2999
        %s3020 = scalar_lea.vmem [#allocation6], 640
        %v3021 = vld [vmem:[%s3020] sm:$0xff]
        %v3022 = vld [vmem:[%s3020 + $0x8] sm:$0xff]
        %v3023 = vld [vmem:[%s3020 + $0x10] sm:$0xf]
        %v3024 = vld [vmem:[%s3020 + $0x14] sm:$0xff]
        %v3025 = vld [vmem:[%s3020 + $0x1c] sm:$0xff]
        %v3026 = vld [vmem:[%s3020 + $0x24] sm:$0xf]
        %v3027 = vld [vmem:[%s3020 + $0x28] sm:$0xff]
        %v3028 = vld [vmem:[%s3020 + $0x30] sm:$0xff]
        %v3029 = vld [vmem:[%s3020 + $0x38] sm:$0xf]
        %v3030 = vld [vmem:[%s3020 + $0x3c] sm:$0xff]
        %v3031 = vld [vmem:[%s3020 + $0x44] sm:$0xff]
        %v3032 = vld [vmem:[%s3020 + $0x4c] sm:$0xf]
        %v3033 = vunpack.c.l.bf16 %v3021
        %v3034 = vunpack.c.h.bf16 %v3021
        %v3035 = vunpack.c.l.bf16 %v3022
        %v3036 = vunpack.c.h.bf16 %v3022
        %v3037 = vunpack.c.l.bf16 %v3023
        %v3038 = vunpack.c.l.bf16 %v3024
        %v3039 = vunpack.c.h.bf16 %v3024
        %v3040 = vunpack.c.l.bf16 %v3025
        %v3041 = vunpack.c.h.bf16 %v3025
        %v3042 = vunpack.c.l.bf16 %v3026
        %v3043 = vunpack.c.l.bf16 %v3027
        %v3044 = vunpack.c.h.bf16 %v3027
        %v3045 = vunpack.c.l.bf16 %v3028
        %v3046 = vunpack.c.h.bf16 %v3028
        %v3047 = vunpack.c.l.bf16 %v3029
        %v3048 = vunpack.c.l.bf16 %v3030
        %v3049 = vunpack.c.h.bf16 %v3030
        %v3050 = vunpack.c.l.bf16 %v3031
        %v3051 = vunpack.c.h.bf16 %v3031
        %v3052 = vunpack.c.l.bf16 %v3032
        %v3053 = vlaneseq
        %v3054 = vshrl.u32 %v3053, 7
        %v3055 = vsub.s32 0, %v3054
        %v3056 = vrot.slane %v2262, %v3055
        %v3057 = vlaneseq
        %v3058 = vshrl.u32 %v3057, 7
        %v3059 = vsub.s32 0, %v3058
        %v3060 = vrot.slane %v2263, %v3059
        %v3061 = vlaneseq
        %v3062 = vshrl.u32 %v3061, 7
        %v3063 = vsub.s32 0, %v3062
        %v3064 = vrot.slane %v2264, %v3063
        %v3065 = vlaneseq
        %v3066 = vshrl.u32 %v3065, 7
        %v3067 = vsub.s32 0, %v3066
        %v3068 = vrot.slane %v2265, %v3067
        %v3069 = vlaneseq
        %v3070 = vshrl.u32 %v3069, 7
        %v3071 = vsub.s32 0, %v3070
        %v3072 = vrot.slane %v2266, %v3071
        %v3073 = vmul.f32 %v3033, %v3056
        %v3074 = vmul.f32 %v3034, %v3060
        %v3075 = vmul.f32 %v3035, %v3064
        %v3076 = vmul.f32 %v3036, %v3068
        %v3077 = vmul.f32 %v3037, %v3072
        %v3078 = vmul.f32 %v3038, %v3056
        %v3079 = vmul.f32 %v3039, %v3060
        %v3080 = vmul.f32 %v3040, %v3064
        %v3081 = vmul.f32 %v3041, %v3068
        %v3082 = vmul.f32 %v3042, %v3072
        %v3083 = vmul.f32 %v3043, %v3056
        %v3084 = vmul.f32 %v3044, %v3060
        %v3085 = vmul.f32 %v3045, %v3064
        %v3086 = vmul.f32 %v3046, %v3068
        %v3087 = vmul.f32 %v3047, %v3072
        %v3088 = vmul.f32 %v3048, %v3056
        %v3089 = vmul.f32 %v3049, %v3060
        %v3090 = vmul.f32 %v3050, %v3064
        %v3091 = vmul.f32 %v3051, %v3068
        %v3092 = vmul.f32 %v3052, %v3072
        %v3093 = vadd.f32 %v3000, %v3073
        %v3094 = vadd.f32 %v3001, %v3074
        %v3095 = vadd.f32 %v3002, %v3075
        %v3096 = vadd.f32 %v3003, %v3076
        %v3097 = vadd.f32 %v3004, %v3077
        %v3098 = vadd.f32 %v3005, %v3078
        %v3099 = vadd.f32 %v3006, %v3079
        %v3100 = vadd.f32 %v3007, %v3080
        %v3101 = vadd.f32 %v3008, %v3081
        %v3102 = vadd.f32 %v3009, %v3082
        %v3103 = vadd.f32 %v3010, %v3083
        %v3104 = vadd.f32 %v3011, %v3084
        %v3105 = vadd.f32 %v3012, %v3085
        %v3106 = vadd.f32 %v3013, %v3086
        %v3107 = vadd.f32 %v3014, %v3087
        %v3108 = vadd.f32 %v3015, %v3088
        %v3109 = vadd.f32 %v3016, %v3089
        %v3110 = vadd.f32 %v3017, %v3090
        %v3111 = vadd.f32 %v3018, %v3091
        %v3112 = vadd.f32 %v3019, %v3092
        %s3113 = scalar_lea.vmem [#allocation6], 720
        %v3114 = vld [vmem:[%s3113] sm:$0xff]
        %v3115 = vld [vmem:[%s3113 + $0x8] sm:$0xff]
        %v3116 = vld [vmem:[%s3113 + $0x10] sm:$0xf]
        %v3117 = vld [vmem:[%s3113 + $0x14] sm:$0xff]
        %v3118 = vld [vmem:[%s3113 + $0x1c] sm:$0xff]
        %v3119 = vld [vmem:[%s3113 + $0x24] sm:$0xf]
        %v3120 = vld [vmem:[%s3113 + $0x28] sm:$0xff]
        %v3121 = vld [vmem:[%s3113 + $0x30] sm:$0xff]
        %v3122 = vld [vmem:[%s3113 + $0x38] sm:$0xf]
        %v3123 = vld [vmem:[%s3113 + $0x3c] sm:$0xff]
        %v3124 = vld [vmem:[%s3113 + $0x44] sm:$0xff]
        %v3125 = vld [vmem:[%s3113 + $0x4c] sm:$0xf]
        %v3126 = vunpack.c.l.bf16 %v3114
        %v3127 = vunpack.c.h.bf16 %v3114
        %v3128 = vunpack.c.l.bf16 %v3115
        %v3129 = vunpack.c.h.bf16 %v3115
        %v3130 = vunpack.c.l.bf16 %v3116
        %v3131 = vunpack.c.l.bf16 %v3117
        %v3132 = vunpack.c.h.bf16 %v3117
        %v3133 = vunpack.c.l.bf16 %v3118
        %v3134 = vunpack.c.h.bf16 %v3118
        %v3135 = vunpack.c.l.bf16 %v3119
        %v3136 = vunpack.c.l.bf16 %v3120
        %v3137 = vunpack.c.h.bf16 %v3120
        %v3138 = vunpack.c.l.bf16 %v3121
        %v3139 = vunpack.c.h.bf16 %v3121
        %v3140 = vunpack.c.l.bf16 %v3122
        %v3141 = vunpack.c.l.bf16 %v3123
        %v3142 = vunpack.c.h.bf16 %v3123
        %v3143 = vunpack.c.l.bf16 %v3124
        %v3144 = vunpack.c.h.bf16 %v3124
        %v3145 = vunpack.c.l.bf16 %v3125
        %v3146 = vlaneseq
        %v3147 = vshrl.u32 %v3146, 7
        %v3148 = vsub.s32 1, %v3147
        %v3149 = vrot.slane %v2262, %v3148
        %v3150 = vlaneseq
        %v3151 = vshrl.u32 %v3150, 7
        %v3152 = vsub.s32 1, %v3151
        %v3153 = vrot.slane %v2263, %v3152
        %v3154 = vlaneseq
        %v3155 = vshrl.u32 %v3154, 7
        %v3156 = vsub.s32 1, %v3155
        %v3157 = vrot.slane %v2264, %v3156
        %v3158 = vlaneseq
        %v3159 = vshrl.u32 %v3158, 7
        %v3160 = vsub.s32 1, %v3159
        %v3161 = vrot.slane %v2265, %v3160
        %v3162 = vlaneseq
        %v3163 = vshrl.u32 %v3162, 7
        %v3164 = vsub.s32 1, %v3163
        %v3165 = vrot.slane %v2266, %v3164
        %v3166 = vmul.f32 %v3126, %v3149
        %v3167 = vmul.f32 %v3127, %v3153
        %v3168 = vmul.f32 %v3128, %v3157
        %v3169 = vmul.f32 %v3129, %v3161
        %v3170 = vmul.f32 %v3130, %v3165
        %v3171 = vmul.f32 %v3131, %v3149
        %v3172 = vmul.f32 %v3132, %v3153
        %v3173 = vmul.f32 %v3133, %v3157
        %v3174 = vmul.f32 %v3134, %v3161
        %v3175 = vmul.f32 %v3135, %v3165
        %v3176 = vmul.f32 %v3136, %v3149
        %v3177 = vmul.f32 %v3137, %v3153
        %v3178 = vmul.f32 %v3138, %v3157
        %v3179 = vmul.f32 %v3139, %v3161
        %v3180 = vmul.f32 %v3140, %v3165
        %v3181 = vmul.f32 %v3141, %v3149
        %v3182 = vmul.f32 %v3142, %v3153
        %v3183 = vmul.f32 %v3143, %v3157
        %v3184 = vmul.f32 %v3144, %v3161
        %v3185 = vmul.f32 %v3145, %v3165
        %v3186 = vadd.f32 %v3093, %v3166
        %v3187 = vadd.f32 %v3094, %v3167
        %v3188 = vadd.f32 %v3095, %v3168
        %v3189 = vadd.f32 %v3096, %v3169
        %v3190 = vadd.f32 %v3097, %v3170
        %v3191 = vadd.f32 %v3098, %v3171
        %v3192 = vadd.f32 %v3099, %v3172
        %v3193 = vadd.f32 %v3100, %v3173
        %v3194 = vadd.f32 %v3101, %v3174
        %v3195 = vadd.f32 %v3102, %v3175
        %v3196 = vadd.f32 %v3103, %v3176
        %v3197 = vadd.f32 %v3104, %v3177
        %v3198 = vadd.f32 %v3105, %v3178
        %v3199 = vadd.f32 %v3106, %v3179
        %v3200 = vadd.f32 %v3107, %v3180
        %v3201 = vadd.f32 %v3108, %v3181
        %v3202 = vadd.f32 %v3109, %v3182
        %v3203 = vadd.f32 %v3110, %v3183
        %v3204 = vadd.f32 %v3111, %v3184
        %v3205 = vadd.f32 %v3112, %v3185
        %s3206 = scalar_lea.vmem [#allocation6], 800
        %v3207 = vld [vmem:[%s3206] sm:$0xff]
        %v3208 = vld [vmem:[%s3206 + $0x8] sm:$0xff]
        %v3209 = vld [vmem:[%s3206 + $0x10] sm:$0xf]
        %v3210 = vld [vmem:[%s3206 + $0x14] sm:$0xff]
        %v3211 = vld [vmem:[%s3206 + $0x1c] sm:$0xff]
        %v3212 = vld [vmem:[%s3206 + $0x24] sm:$0xf]
        %v3213 = vld [vmem:[%s3206 + $0x28] sm:$0xff]
        %v3214 = vld [vmem:[%s3206 + $0x30] sm:$0xff]
        %v3215 = vld [vmem:[%s3206 + $0x38] sm:$0xf]
        %v3216 = vld [vmem:[%s3206 + $0x3c] sm:$0xff]
        %v3217 = vld [vmem:[%s3206 + $0x44] sm:$0xff]
        %v3218 = vld [vmem:[%s3206 + $0x4c] sm:$0xf]
        %v3219 = vunpack.c.l.bf16 %v3207
        %v3220 = vunpack.c.h.bf16 %v3207
        %v3221 = vunpack.c.l.bf16 %v3208
        %v3222 = vunpack.c.h.bf16 %v3208
        %v3223 = vunpack.c.l.bf16 %v3209
        %v3224 = vunpack.c.l.bf16 %v3210
        %v3225 = vunpack.c.h.bf16 %v3210
        %v3226 = vunpack.c.l.bf16 %v3211
        %v3227 = vunpack.c.h.bf16 %v3211
        %v3228 = vunpack.c.l.bf16 %v3212
        %v3229 = vunpack.c.l.bf16 %v3213
        %v3230 = vunpack.c.h.bf16 %v3213
        %v3231 = vunpack.c.l.bf16 %v3214
        %v3232 = vunpack.c.h.bf16 %v3214
        %v3233 = vunpack.c.l.bf16 %v3215
        %v3234 = vunpack.c.l.bf16 %v3216
        %v3235 = vunpack.c.h.bf16 %v3216
        %v3236 = vunpack.c.l.bf16 %v3217
        %v3237 = vunpack.c.h.bf16 %v3217
        %v3238 = vunpack.c.l.bf16 %v3218
        %v3239 = vlaneseq
        %v3240 = vshrl.u32 %v3239, 7
        %v3241 = vsub.s32 2, %v3240
        %v3242 = vrot.slane %v2262, %v3241
        %v3243 = vlaneseq
        %v3244 = vshrl.u32 %v3243, 7
        %v3245 = vsub.s32 2, %v3244
        %v3246 = vrot.slane %v2263, %v3245
        %v3247 = vlaneseq
        %v3248 = vshrl.u32 %v3247, 7
        %v3249 = vsub.s32 2, %v3248
        %v3250 = vrot.slane %v2264, %v3249
        %v3251 = vlaneseq
        %v3252 = vshrl.u32 %v3251, 7
        %v3253 = vsub.s32 2, %v3252
        %v3254 = vrot.slane %v2265, %v3253
        %v3255 = vlaneseq
        %v3256 = vshrl.u32 %v3255, 7
        %v3257 = vsub.s32 2, %v3256
        %v3258 = vrot.slane %v2266, %v3257
        %v3259 = vmul.f32 %v3219, %v3242
        %v3260 = vmul.f32 %v3220, %v3246
        %v3261 = vmul.f32 %v3221, %v3250
        %v3262 = vmul.f32 %v3222, %v3254
        %v3263 = vmul.f32 %v3223, %v3258
        %v3264 = vmul.f32 %v3224, %v3242
        %v3265 = vmul.f32 %v3225, %v3246
        %v3266 = vmul.f32 %v3226, %v3250
        %v3267 = vmul.f32 %v3227, %v3254
        %v3268 = vmul.f32 %v3228, %v3258
        %v3269 = vmul.f32 %v3229, %v3242
        %v3270 = vmul.f32 %v3230, %v3246
        %v3271 = vmul.f32 %v3231, %v3250
        %v3272 = vmul.f32 %v3232, %v3254
        %v3273 = vmul.f32 %v3233, %v3258
        %v3274 = vmul.f32 %v3234, %v3242
        %v3275 = vmul.f32 %v3235, %v3246
        %v3276 = vmul.f32 %v3236, %v3250
        %v3277 = vmul.f32 %v3237, %v3254
        %v3278 = vmul.f32 %v3238, %v3258
        %v3279 = vadd.f32 %v3186, %v3259
        %v3280 = vadd.f32 %v3187, %v3260
        %v3281 = vadd.f32 %v3188, %v3261
        %v3282 = vadd.f32 %v3189, %v3262
        %v3283 = vadd.f32 %v3190, %v3263
        %v3284 = vadd.f32 %v3191, %v3264
        %v3285 = vadd.f32 %v3192, %v3265
        %v3286 = vadd.f32 %v3193, %v3266
        %v3287 = vadd.f32 %v3194, %v3267
        %v3288 = vadd.f32 %v3195, %v3268
        %v3289 = vadd.f32 %v3196, %v3269
        %v3290 = vadd.f32 %v3197, %v3270
        %v3291 = vadd.f32 %v3198, %v3271
        %v3292 = vadd.f32 %v3199, %v3272
        %v3293 = vadd.f32 %v3200, %v3273
        %v3294 = vadd.f32 %v3201, %v3274
        %v3295 = vadd.f32 %v3202, %v3275
        %v3296 = vadd.f32 %v3203, %v3276
        %v3297 = vadd.f32 %v3204, %v3277
        %v3298 = vadd.f32 %v3205, %v3278
        %s3299 = scalar_lea.vmem [#allocation6], 880
        %v3300 = vld [vmem:[%s3299] sm:$0xff]
        %v3301 = vld [vmem:[%s3299 + $0x8] sm:$0xff]
        %v3302 = vld [vmem:[%s3299 + $0x10] sm:$0xf]
        %v3303 = vld [vmem:[%s3299 + $0x14] sm:$0xff]
        %v3304 = vld [vmem:[%s3299 + $0x1c] sm:$0xff]
        %v3305 = vld [vmem:[%s3299 + $0x24] sm:$0xf]
        %v3306 = vld [vmem:[%s3299 + $0x28] sm:$0xff]
        %v3307 = vld [vmem:[%s3299 + $0x30] sm:$0xff]
        %v3308 = vld [vmem:[%s3299 + $0x38] sm:$0xf]
        %v3309 = vld [vmem:[%s3299 + $0x3c] sm:$0xff]
        %v3310 = vld [vmem:[%s3299 + $0x44] sm:$0xff]
        %v3311 = vld [vmem:[%s3299 + $0x4c] sm:$0xf]
        %v3312 = vunpack.c.l.bf16 %v3300
        %v3313 = vunpack.c.h.bf16 %v3300
        %v3314 = vunpack.c.l.bf16 %v3301
        %v3315 = vunpack.c.h.bf16 %v3301
        %v3316 = vunpack.c.l.bf16 %v3302
        %v3317 = vunpack.c.l.bf16 %v3303
        %v3318 = vunpack.c.h.bf16 %v3303
        %v3319 = vunpack.c.l.bf16 %v3304
        %v3320 = vunpack.c.h.bf16 %v3304
        %v3321 = vunpack.c.l.bf16 %v3305
        %v3322 = vunpack.c.l.bf16 %v3306
        %v3323 = vunpack.c.h.bf16 %v3306
        %v3324 = vunpack.c.l.bf16 %v3307
        %v3325 = vunpack.c.h.bf16 %v3307
        %v3326 = vunpack.c.l.bf16 %v3308
        %v3327 = vunpack.c.l.bf16 %v3309
        %v3328 = vunpack.c.h.bf16 %v3309
        %v3329 = vunpack.c.l.bf16 %v3310
        %v3330 = vunpack.c.h.bf16 %v3310
        %v3331 = vunpack.c.l.bf16 %v3311
        %v3332 = vlaneseq
        %v3333 = vshrl.u32 %v3332, 7
        %v3334 = vsub.s32 3, %v3333
        %v3335 = vrot.slane %v2262, %v3334
        %v3336 = vlaneseq
        %v3337 = vshrl.u32 %v3336, 7
        %v3338 = vsub.s32 3, %v3337
        %v3339 = vrot.slane %v2263, %v3338
        %v3340 = vlaneseq
        %v3341 = vshrl.u32 %v3340, 7
        %v3342 = vsub.s32 3, %v3341
        %v3343 = vrot.slane %v2264, %v3342
        %v3344 = vlaneseq
        %v3345 = vshrl.u32 %v3344, 7
        %v3346 = vsub.s32 3, %v3345
        %v3347 = vrot.slane %v2265, %v3346
        %v3348 = vlaneseq
        %v3349 = vshrl.u32 %v3348, 7
        %v3350 = vsub.s32 3, %v3349
        %v3351 = vrot.slane %v2266, %v3350
        %v3352 = vmul.f32 %v3312, %v3335
        %v3353 = vmul.f32 %v3313, %v3339
        %v3354 = vmul.f32 %v3314, %v3343
        %v3355 = vmul.f32 %v3315, %v3347
        %v3356 = vmul.f32 %v3316, %v3351
        %v3357 = vmul.f32 %v3317, %v3335
        %v3358 = vmul.f32 %v3318, %v3339
        %v3359 = vmul.f32 %v3319, %v3343
        %v3360 = vmul.f32 %v3320, %v3347
        %v3361 = vmul.f32 %v3321, %v3351
        %v3362 = vmul.f32 %v3322, %v3335
        %v3363 = vmul.f32 %v3323, %v3339
        %v3364 = vmul.f32 %v3324, %v3343
        %v3365 = vmul.f32 %v3325, %v3347
        %v3366 = vmul.f32 %v3326, %v3351
        %v3367 = vmul.f32 %v3327, %v3335
        %v3368 = vmul.f32 %v3328, %v3339
        %v3369 = vmul.f32 %v3329, %v3343
        %v3370 = vmul.f32 %v3330, %v3347
        %v3371 = vmul.f32 %v3331, %v3351
        %v3372 = vadd.f32 %v3279, %v3352
        %v3373 = vadd.f32 %v3280, %v3353
        %v3374 = vadd.f32 %v3281, %v3354
        %v3375 = vadd.f32 %v3282, %v3355
        %v3376 = vadd.f32 %v3283, %v3356
        %v3377 = vadd.f32 %v3284, %v3357
        %v3378 = vadd.f32 %v3285, %v3358
        %v3379 = vadd.f32 %v3286, %v3359
        %v3380 = vadd.f32 %v3287, %v3360
        %v3381 = vadd.f32 %v3288, %v3361
        %v3382 = vadd.f32 %v3289, %v3362
        %v3383 = vadd.f32 %v3290, %v3363
        %v3384 = vadd.f32 %v3291, %v3364
        %v3385 = vadd.f32 %v3292, %v3365
        %v3386 = vadd.f32 %v3293, %v3366
        %v3387 = vadd.f32 %v3294, %v3367
        %v3388 = vadd.f32 %v3295, %v3368
        %v3389 = vadd.f32 %v3296, %v3369
        %v3390 = vadd.f32 %v3297, %v3370
        %v3391 = vadd.f32 %v3298, %v3371
        %s3392 = scalar_lea.vmem [#allocation6], 960
        %v3393 = vld [vmem:[%s3392] sm:$0xff]
        %v3394 = vld [vmem:[%s3392 + $0x8] sm:$0xff]
        %v3395 = vld [vmem:[%s3392 + $0x10] sm:$0xf]
        %v3396 = vld [vmem:[%s3392 + $0x14] sm:$0xff]
        %v3397 = vld [vmem:[%s3392 + $0x1c] sm:$0xff]
        %v3398 = vld [vmem:[%s3392 + $0x24] sm:$0xf]
        %v3399 = vld [vmem:[%s3392 + $0x28] sm:$0xff]
        %v3400 = vld [vmem:[%s3392 + $0x30] sm:$0xff]
        %v3401 = vld [vmem:[%s3392 + $0x38] sm:$0xf]
        %v3402 = vld [vmem:[%s3392 + $0x3c] sm:$0xff]
        %v3403 = vld [vmem:[%s3392 + $0x44] sm:$0xff]
        %v3404 = vld [vmem:[%s3392 + $0x4c] sm:$0xf]
        %v3405 = vunpack.c.l.bf16 %v3393
        %v3406 = vunpack.c.h.bf16 %v3393
        %v3407 = vunpack.c.l.bf16 %v3394
        %v3408 = vunpack.c.h.bf16 %v3394
        %v3409 = vunpack.c.l.bf16 %v3395
        %v3410 = vunpack.c.l.bf16 %v3396
        %v3411 = vunpack.c.h.bf16 %v3396
        %v3412 = vunpack.c.l.bf16 %v3397
        %v3413 = vunpack.c.h.bf16 %v3397
        %v3414 = vunpack.c.l.bf16 %v3398
        %v3415 = vunpack.c.l.bf16 %v3399
        %v3416 = vunpack.c.h.bf16 %v3399
        %v3417 = vunpack.c.l.bf16 %v3400
        %v3418 = vunpack.c.h.bf16 %v3400
        %v3419 = vunpack.c.l.bf16 %v3401
        %v3420 = vunpack.c.l.bf16 %v3402
        %v3421 = vunpack.c.h.bf16 %v3402
        %v3422 = vunpack.c.l.bf16 %v3403
        %v3423 = vunpack.c.h.bf16 %v3403
        %v3424 = vunpack.c.l.bf16 %v3404
        %v3425 = vlaneseq
        %v3426 = vshrl.u32 %v3425, 7
        %v3427 = vsub.s32 4, %v3426
        %v3428 = vrot.slane %v2262, %v3427
        %v3429 = vlaneseq
        %v3430 = vshrl.u32 %v3429, 7
        %v3431 = vsub.s32 4, %v3430
        %v3432 = vrot.slane %v2263, %v3431
        %v3433 = vlaneseq
        %v3434 = vshrl.u32 %v3433, 7
        %v3435 = vsub.s32 4, %v3434
        %v3436 = vrot.slane %v2264, %v3435
        %v3437 = vlaneseq
        %v3438 = vshrl.u32 %v3437, 7
        %v3439 = vsub.s32 4, %v3438
        %v3440 = vrot.slane %v2265, %v3439
        %v3441 = vlaneseq
        %v3442 = vshrl.u32 %v3441, 7
        %v3443 = vsub.s32 4, %v3442
        %v3444 = vrot.slane %v2266, %v3443
        %v3445 = vmul.f32 %v3405, %v3428
        %v3446 = vmul.f32 %v3406, %v3432
        %v3447 = vmul.f32 %v3407, %v3436
        %v3448 = vmul.f32 %v3408, %v3440
        %v3449 = vmul.f32 %v3409, %v3444
        %v3450 = vmul.f32 %v3410, %v3428
        %v3451 = vmul.f32 %v3411, %v3432
        %v3452 = vmul.f32 %v3412, %v3436
        %v3453 = vmul.f32 %v3413, %v3440
        %v3454 = vmul.f32 %v3414, %v3444
        %v3455 = vmul.f32 %v3415, %v3428
        %v3456 = vmul.f32 %v3416, %v3432
        %v3457 = vmul.f32 %v3417, %v3436
        %v3458 = vmul.f32 %v3418, %v3440
        %v3459 = vmul.f32 %v3419, %v3444
        %v3460 = vmul.f32 %v3420, %v3428
        %v3461 = vmul.f32 %v3421, %v3432
        %v3462 = vmul.f32 %v3422, %v3436
        %v3463 = vmul.f32 %v3423, %v3440
        %v3464 = vmul.f32 %v3424, %v3444
        %v3465 = vadd.f32 %v3372, %v3445
        %v3466 = vadd.f32 %v3373, %v3446
        %v3467 = vadd.f32 %v3374, %v3447
        %v3468 = vadd.f32 %v3375, %v3448
        %v3469 = vadd.f32 %v3376, %v3449
        %v3470 = vadd.f32 %v3377, %v3450
        %v3471 = vadd.f32 %v3378, %v3451
        %v3472 = vadd.f32 %v3379, %v3452
        %v3473 = vadd.f32 %v3380, %v3453
        %v3474 = vadd.f32 %v3381, %v3454
        %v3475 = vadd.f32 %v3382, %v3455
        %v3476 = vadd.f32 %v3383, %v3456
        %v3477 = vadd.f32 %v3384, %v3457
        %v3478 = vadd.f32 %v3385, %v3458
        %v3479 = vadd.f32 %v3386, %v3459
        %v3480 = vadd.f32 %v3387, %v3460
        %v3481 = vadd.f32 %v3388, %v3461
        %v3482 = vadd.f32 %v3389, %v3462
        %v3483 = vadd.f32 %v3390, %v3463
        %v3484 = vadd.f32 %v3391, %v3464
        %s3485 = scalar_lea.vmem [#allocation6], 1040
        %v3486 = vld [vmem:[%s3485] sm:$0xff]
        %v3487 = vld [vmem:[%s3485 + $0x8] sm:$0xff]
        %v3488 = vld [vmem:[%s3485 + $0x10] sm:$0xf]
        %v3489 = vld [vmem:[%s3485 + $0x14] sm:$0xff]
        %v3490 = vld [vmem:[%s3485 + $0x1c] sm:$0xff]
        %v3491 = vld [vmem:[%s3485 + $0x24] sm:$0xf]
        %v3492 = vld [vmem:[%s3485 + $0x28] sm:$0xff]
        %v3493 = vld [vmem:[%s3485 + $0x30] sm:$0xff]
        %v3494 = vld [vmem:[%s3485 + $0x38] sm:$0xf]
        %v3495 = vld [vmem:[%s3485 + $0x3c] sm:$0xff]
        %v3496 = vld [vmem:[%s3485 + $0x44] sm:$0xff]
        %v3497 = vld [vmem:[%s3485 + $0x4c] sm:$0xf]
        %v3498 = vunpack.c.l.bf16 %v3486
        %v3499 = vunpack.c.h.bf16 %v3486
        %v3500 = vunpack.c.l.bf16 %v3487
        %v3501 = vunpack.c.h.bf16 %v3487
        %v3502 = vunpack.c.l.bf16 %v3488
        %v3503 = vunpack.c.l.bf16 %v3489
        %v3504 = vunpack.c.h.bf16 %v3489
        %v3505 = vunpack.c.l.bf16 %v3490
        %v3506 = vunpack.c.h.bf16 %v3490
        %v3507 = vunpack.c.l.bf16 %v3491
        %v3508 = vunpack.c.l.bf16 %v3492
        %v3509 = vunpack.c.h.bf16 %v3492
        %v3510 = vunpack.c.l.bf16 %v3493
        %v3511 = vunpack.c.h.bf16 %v3493
        %v3512 = vunpack.c.l.bf16 %v3494
        %v3513 = vunpack.c.l.bf16 %v3495
        %v3514 = vunpack.c.h.bf16 %v3495
        %v3515 = vunpack.c.l.bf16 %v3496
        %v3516 = vunpack.c.h.bf16 %v3496
        %v3517 = vunpack.c.l.bf16 %v3497
        %v3518 = vlaneseq
        %v3519 = vshrl.u32 %v3518, 7
        %v3520 = vsub.s32 5, %v3519
        %v3521 = vrot.slane %v2262, %v3520
        %v3522 = vlaneseq
        %v3523 = vshrl.u32 %v3522, 7
        %v3524 = vsub.s32 5, %v3523
        %v3525 = vrot.slane %v2263, %v3524
        %v3526 = vlaneseq
        %v3527 = vshrl.u32 %v3526, 7
        %v3528 = vsub.s32 5, %v3527
        %v3529 = vrot.slane %v2264, %v3528
        %v3530 = vlaneseq
        %v3531 = vshrl.u32 %v3530, 7
        %v3532 = vsub.s32 5, %v3531
        %v3533 = vrot.slane %v2265, %v3532
        %v3534 = vlaneseq
        %v3535 = vshrl.u32 %v3534, 7
        %v3536 = vsub.s32 5, %v3535
        %v3537 = vrot.slane %v2266, %v3536
        %v3538 = vmul.f32 %v3498, %v3521
        %v3539 = vmul.f32 %v3499, %v3525
        %v3540 = vmul.f32 %v3500, %v3529
        %v3541 = vmul.f32 %v3501, %v3533
        %v3542 = vmul.f32 %v3502, %v3537
        %v3543 = vmul.f32 %v3503, %v3521
        %v3544 = vmul.f32 %v3504, %v3525
        %v3545 = vmul.f32 %v3505, %v3529
        %v3546 = vmul.f32 %v3506, %v3533
        %v3547 = vmul.f32 %v3507, %v3537
        %v3548 = vmul.f32 %v3508, %v3521
        %v3549 = vmul.f32 %v3509, %v3525
        %v3550 = vmul.f32 %v3510, %v3529
        %v3551 = vmul.f32 %v3511, %v3533
        %v3552 = vmul.f32 %v3512, %v3537
        %v3553 = vmul.f32 %v3513, %v3521
        %v3554 = vmul.f32 %v3514, %v3525
        %v3555 = vmul.f32 %v3515, %v3529
        %v3556 = vmul.f32 %v3516, %v3533
        %v3557 = vmul.f32 %v3517, %v3537
        %v3558 = vadd.f32 %v3465, %v3538
        %v3559 = vadd.f32 %v3466, %v3539
        %v3560 = vadd.f32 %v3467, %v3540
        %v3561 = vadd.f32 %v3468, %v3541
        %v3562 = vadd.f32 %v3469, %v3542
        %v3563 = vadd.f32 %v3470, %v3543
        %v3564 = vadd.f32 %v3471, %v3544
        %v3565 = vadd.f32 %v3472, %v3545
        %v3566 = vadd.f32 %v3473, %v3546
        %v3567 = vadd.f32 %v3474, %v3547
        %v3568 = vadd.f32 %v3475, %v3548
        %v3569 = vadd.f32 %v3476, %v3549
        %v3570 = vadd.f32 %v3477, %v3550
        %v3571 = vadd.f32 %v3478, %v3551
        %v3572 = vadd.f32 %v3479, %v3552
        %v3573 = vadd.f32 %v3480, %v3553
        %v3574 = vadd.f32 %v3481, %v3554
        %v3575 = vadd.f32 %v3482, %v3555
        %v3576 = vadd.f32 %v3483, %v3556
        %v3577 = vadd.f32 %v3484, %v3557
        %s3578 = scalar_lea.vmem [#allocation6], 1120
        %v3579 = vld [vmem:[%s3578] sm:$0xff]
        %v3580 = vld [vmem:[%s3578 + $0x8] sm:$0xff]
        %v3581 = vld [vmem:[%s3578 + $0x10] sm:$0xf]
        %v3582 = vld [vmem:[%s3578 + $0x14] sm:$0xff]
        %v3583 = vld [vmem:[%s3578 + $0x1c] sm:$0xff]
        %v3584 = vld [vmem:[%s3578 + $0x24] sm:$0xf]
        %v3585 = vld [vmem:[%s3578 + $0x28] sm:$0xff]
        %v3586 = vld [vmem:[%s3578 + $0x30] sm:$0xff]
        %v3587 = vld [vmem:[%s3578 + $0x38] sm:$0xf]
        %v3588 = vld [vmem:[%s3578 + $0x3c] sm:$0xff]
        %v3589 = vld [vmem:[%s3578 + $0x44] sm:$0xff]
        %v3590 = vld [vmem:[%s3578 + $0x4c] sm:$0xf]
        %v3591 = vunpack.c.l.bf16 %v3579
        %v3592 = vunpack.c.h.bf16 %v3579
        %v3593 = vunpack.c.l.bf16 %v3580
        %v3594 = vunpack.c.h.bf16 %v3580
        %v3595 = vunpack.c.l.bf16 %v3581
        %v3596 = vunpack.c.l.bf16 %v3582
        %v3597 = vunpack.c.h.bf16 %v3582
        %v3598 = vunpack.c.l.bf16 %v3583
        %v3599 = vunpack.c.h.bf16 %v3583
        %v3600 = vunpack.c.l.bf16 %v3584
        %v3601 = vunpack.c.l.bf16 %v3585
        %v3602 = vunpack.c.h.bf16 %v3585
        %v3603 = vunpack.c.l.bf16 %v3586
        %v3604 = vunpack.c.h.bf16 %v3586
        %v3605 = vunpack.c.l.bf16 %v3587
        %v3606 = vunpack.c.l.bf16 %v3588
        %v3607 = vunpack.c.h.bf16 %v3588
        %v3608 = vunpack.c.l.bf16 %v3589
        %v3609 = vunpack.c.h.bf16 %v3589
        %v3610 = vunpack.c.l.bf16 %v3590
        %v3611 = vlaneseq
        %v3612 = vshrl.u32 %v3611, 7
        %v3613 = vsub.s32 6, %v3612
        %v3614 = vrot.slane %v2262, %v3613
        %v3615 = vlaneseq
        %v3616 = vshrl.u32 %v3615, 7
        %v3617 = vsub.s32 6, %v3616
        %v3618 = vrot.slane %v2263, %v3617
        %v3619 = vlaneseq
        %v3620 = vshrl.u32 %v3619, 7
        %v3621 = vsub.s32 6, %v3620
        %v3622 = vrot.slane %v2264, %v3621
        %v3623 = vlaneseq
        %v3624 = vshrl.u32 %v3623, 7
        %v3625 = vsub.s32 6, %v3624
        %v3626 = vrot.slane %v2265, %v3625
        %v3627 = vlaneseq
        %v3628 = vshrl.u32 %v3627, 7
        %v3629 = vsub.s32 6, %v3628
        %v3630 = vrot.slane %v2266, %v3629
        %v3631 = vmul.f32 %v3591, %v3614
        %v3632 = vmul.f32 %v3592, %v3618
        %v3633 = vmul.f32 %v3593, %v3622
        %v3634 = vmul.f32 %v3594, %v3626
        %v3635 = vmul.f32 %v3595, %v3630
        %v3636 = vmul.f32 %v3596, %v3614
        %v3637 = vmul.f32 %v3597, %v3618
        %v3638 = vmul.f32 %v3598, %v3622
        %v3639 = vmul.f32 %v3599, %v3626
        %v3640 = vmul.f32 %v3600, %v3630
        %v3641 = vmul.f32 %v3601, %v3614
        %v3642 = vmul.f32 %v3602, %v3618
        %v3643 = vmul.f32 %v3603, %v3622
        %v3644 = vmul.f32 %v3604, %v3626
        %v3645 = vmul.f32 %v3605, %v3630
        %v3646 = vmul.f32 %v3606, %v3614
        %v3647 = vmul.f32 %v3607, %v3618
        %v3648 = vmul.f32 %v3608, %v3622
        %v3649 = vmul.f32 %v3609, %v3626
        %v3650 = vmul.f32 %v3610, %v3630
        %v3651 = vadd.f32 %v3558, %v3631
        %v3652 = vadd.f32 %v3559, %v3632
        %v3653 = vadd.f32 %v3560, %v3633
        %v3654 = vadd.f32 %v3561, %v3634
        %v3655 = vadd.f32 %v3562, %v3635
        %v3656 = vadd.f32 %v3563, %v3636
        %v3657 = vadd.f32 %v3564, %v3637
        %v3658 = vadd.f32 %v3565, %v3638
        %v3659 = vadd.f32 %v3566, %v3639
        %v3660 = vadd.f32 %v3567, %v3640
        %v3661 = vadd.f32 %v3568, %v3641
        %v3662 = vadd.f32 %v3569, %v3642
        %v3663 = vadd.f32 %v3570, %v3643
        %v3664 = vadd.f32 %v3571, %v3644
        %v3665 = vadd.f32 %v3572, %v3645
        %v3666 = vadd.f32 %v3573, %v3646
        %v3667 = vadd.f32 %v3574, %v3647
        %v3668 = vadd.f32 %v3575, %v3648
        %v3669 = vadd.f32 %v3576, %v3649
        %v3670 = vadd.f32 %v3577, %v3650
        %s3671 = scalar_lea.vmem [#allocation6], 1200
        %v3672 = vld [vmem:[%s3671] sm:$0xff]
        %v3673 = vld [vmem:[%s3671 + $0x8] sm:$0xff]
        %v3674 = vld [vmem:[%s3671 + $0x10] sm:$0xf]
        %v3675 = vld [vmem:[%s3671 + $0x14] sm:$0xff]
        %v3676 = vld [vmem:[%s3671 + $0x1c] sm:$0xff]
        %v3677 = vld [vmem:[%s3671 + $0x24] sm:$0xf]
        %v3678 = vld [vmem:[%s3671 + $0x28] sm:$0xff]
        %v3679 = vld [vmem:[%s3671 + $0x30] sm:$0xff]
        %v3680 = vld [vmem:[%s3671 + $0x38] sm:$0xf]
        %v3681 = vld [vmem:[%s3671 + $0x3c] sm:$0xff]
        %v3682 = vld [vmem:[%s3671 + $0x44] sm:$0xff]
        %v3683 = vld [vmem:[%s3671 + $0x4c] sm:$0xf]
        %v3684 = vunpack.c.l.bf16 %v3672
        %v3685 = vunpack.c.h.bf16 %v3672
        %v3686 = vunpack.c.l.bf16 %v3673
        %v3687 = vunpack.c.h.bf16 %v3673
        %v3688 = vunpack.c.l.bf16 %v3674
        %v3689 = vunpack.c.l.bf16 %v3675
        %v3690 = vunpack.c.h.bf16 %v3675
        %v3691 = vunpack.c.l.bf16 %v3676
        %v3692 = vunpack.c.h.bf16 %v3676
        %v3693 = vunpack.c.l.bf16 %v3677
        %v3694 = vunpack.c.l.bf16 %v3678
        %v3695 = vunpack.c.h.bf16 %v3678
        %v3696 = vunpack.c.l.bf16 %v3679
        %v3697 = vunpack.c.h.bf16 %v3679
        %v3698 = vunpack.c.l.bf16 %v3680
        %v3699 = vunpack.c.l.bf16 %v3681
        %v3700 = vunpack.c.h.bf16 %v3681
        %v3701 = vunpack.c.l.bf16 %v3682
        %v3702 = vunpack.c.h.bf16 %v3682
        %v3703 = vunpack.c.l.bf16 %v3683
        %v3704 = vlaneseq
        %v3705 = vshrl.u32 %v3704, 7
        %v3706 = vsub.s32 7, %v3705
        %v3707 = vrot.slane %v2262, %v3706
        %v3708 = vlaneseq
        %v3709 = vshrl.u32 %v3708, 7
        %v3710 = vsub.s32 7, %v3709
        %v3711 = vrot.slane %v2263, %v3710
        %v3712 = vlaneseq
        %v3713 = vshrl.u32 %v3712, 7
        %v3714 = vsub.s32 7, %v3713
        %v3715 = vrot.slane %v2264, %v3714
        %v3716 = vlaneseq
        %v3717 = vshrl.u32 %v3716, 7
        %v3718 = vsub.s32 7, %v3717
        %v3719 = vrot.slane %v2265, %v3718
        %v3720 = vlaneseq
        %v3721 = vshrl.u32 %v3720, 7
        %v3722 = vsub.s32 7, %v3721
        %v3723 = vrot.slane %v2266, %v3722
        %v3724 = vmul.f32 %v3684, %v3707
        %v3725 = vmul.f32 %v3685, %v3711
        %v3726 = vmul.f32 %v3686, %v3715
        %v3727 = vmul.f32 %v3687, %v3719
        %v3728 = vmul.f32 %v3688, %v3723
        %v3729 = vmul.f32 %v3689, %v3707
        %v3730 = vmul.f32 %v3690, %v3711
        %v3731 = vmul.f32 %v3691, %v3715
        %v3732 = vmul.f32 %v3692, %v3719
        %v3733 = vmul.f32 %v3693, %v3723
        %v3734 = vmul.f32 %v3694, %v3707
        %v3735 = vmul.f32 %v3695, %v3711
        %v3736 = vmul.f32 %v3696, %v3715
        %v3737 = vmul.f32 %v3697, %v3719
        %v3738 = vmul.f32 %v3698, %v3723
        %v3739 = vmul.f32 %v3699, %v3707
        %v3740 = vmul.f32 %v3700, %v3711
        %v3741 = vmul.f32 %v3701, %v3715
        %v3742 = vmul.f32 %v3702, %v3719
        %v3743 = vmul.f32 %v3703, %v3723
        %v3744 = vadd.f32 %v3651, %v3724
        %v3745 = vadd.f32 %v3652, %v3725
        %v3746 = vadd.f32 %v3653, %v3726
        %v3747 = vadd.f32 %v3654, %v3727
        %v3748 = vadd.f32 %v3655, %v3728
        %v3749 = vadd.f32 %v3656, %v3729
        %v3750 = vadd.f32 %v3657, %v3730
        %v3751 = vadd.f32 %v3658, %v3731
        %v3752 = vadd.f32 %v3659, %v3732
        %v3753 = vadd.f32 %v3660, %v3733
        %v3754 = vadd.f32 %v3661, %v3734
        %v3755 = vadd.f32 %v3662, %v3735
        %v3756 = vadd.f32 %v3663, %v3736
        %v3757 = vadd.f32 %v3664, %v3737
        %v3758 = vadd.f32 %v3665, %v3738
        %v3759 = vadd.f32 %v3666, %v3739
        %v3760 = vadd.f32 %v3667, %v3740
        %v3761 = vadd.f32 %v3668, %v3741
        %v3762 = vadd.f32 %v3669, %v3742
        %v3763 = vadd.f32 %v3670, %v3743
        %s3764 = scalar_lea.vmem [#allocation6], 1280
        %v3765 = vld [vmem:[%s3764] sm:$0xff]
        %v3766 = vld [vmem:[%s3764 + $0x8] sm:$0xff]
        %v3767 = vld [vmem:[%s3764 + $0x10] sm:$0xf]
        %v3768 = vld [vmem:[%s3764 + $0x14] sm:$0xff]
        %v3769 = vld [vmem:[%s3764 + $0x1c] sm:$0xff]
        %v3770 = vld [vmem:[%s3764 + $0x24] sm:$0xf]
        %v3771 = vld [vmem:[%s3764 + $0x28] sm:$0xff]
        %v3772 = vld [vmem:[%s3764 + $0x30] sm:$0xff]
        %v3773 = vld [vmem:[%s3764 + $0x38] sm:$0xf]
        %v3774 = vld [vmem:[%s3764 + $0x3c] sm:$0xff]
        %v3775 = vld [vmem:[%s3764 + $0x44] sm:$0xff]
        %v3776 = vld [vmem:[%s3764 + $0x4c] sm:$0xf]
        %v3777 = vunpack.c.l.bf16 %v3765
        %v3778 = vunpack.c.h.bf16 %v3765
        %v3779 = vunpack.c.l.bf16 %v3766
        %v3780 = vunpack.c.h.bf16 %v3766
        %v3781 = vunpack.c.l.bf16 %v3767
        %v3782 = vunpack.c.l.bf16 %v3768
        %v3783 = vunpack.c.h.bf16 %v3768
        %v3784 = vunpack.c.l.bf16 %v3769
        %v3785 = vunpack.c.h.bf16 %v3769
        %v3786 = vunpack.c.l.bf16 %v3770
        %v3787 = vunpack.c.l.bf16 %v3771
        %v3788 = vunpack.c.h.bf16 %v3771
        %v3789 = vunpack.c.l.bf16 %v3772
        %v3790 = vunpack.c.h.bf16 %v3772
        %v3791 = vunpack.c.l.bf16 %v3773
        %v3792 = vunpack.c.l.bf16 %v3774
        %v3793 = vunpack.c.h.bf16 %v3774
        %v3794 = vunpack.c.l.bf16 %v3775
        %v3795 = vunpack.c.h.bf16 %v3775
        %v3796 = vunpack.c.l.bf16 %v3776
        %v3797 = vlaneseq
        %v3798 = vshrl.u32 %v3797, 7
        %v3799 = vsub.s32 0, %v3798
        %v3800 = vrot.slane %v2267, %v3799
        %v3801 = vlaneseq
        %v3802 = vshrl.u32 %v3801, 7
        %v3803 = vsub.s32 0, %v3802
        %v3804 = vrot.slane %v2268, %v3803
        %v3805 = vlaneseq
        %v3806 = vshrl.u32 %v3805, 7
        %v3807 = vsub.s32 0, %v3806
        %v3808 = vrot.slane %v2269, %v3807
        %v3809 = vlaneseq
        %v3810 = vshrl.u32 %v3809, 7
        %v3811 = vsub.s32 0, %v3810
        %v3812 = vrot.slane %v2270, %v3811
        %v3813 = vlaneseq
        %v3814 = vshrl.u32 %v3813, 7
        %v3815 = vsub.s32 0, %v3814
        %v3816 = vrot.slane %v2271, %v3815
        %v3817 = vmul.f32 %v3777, %v3800
        %v3818 = vmul.f32 %v3778, %v3804
        %v3819 = vmul.f32 %v3779, %v3808
        %v3820 = vmul.f32 %v3780, %v3812
        %v3821 = vmul.f32 %v3781, %v3816
        %v3822 = vmul.f32 %v3782, %v3800
        %v3823 = vmul.f32 %v3783, %v3804
        %v3824 = vmul.f32 %v3784, %v3808
        %v3825 = vmul.f32 %v3785, %v3812
        %v3826 = vmul.f32 %v3786, %v3816
        %v3827 = vmul.f32 %v3787, %v3800
        %v3828 = vmul.f32 %v3788, %v3804
        %v3829 = vmul.f32 %v3789, %v3808
        %v3830 = vmul.f32 %v3790, %v3812
        %v3831 = vmul.f32 %v3791, %v3816
        %v3832 = vmul.f32 %v3792, %v3800
        %v3833 = vmul.f32 %v3793, %v3804
        %v3834 = vmul.f32 %v3794, %v3808
        %v3835 = vmul.f32 %v3795, %v3812
        %v3836 = vmul.f32 %v3796, %v3816
        %v3837 = vadd.f32 %v3744, %v3817
        %v3838 = vadd.f32 %v3745, %v3818
        %v3839 = vadd.f32 %v3746, %v3819
        %v3840 = vadd.f32 %v3747, %v3820
        %v3841 = vadd.f32 %v3748, %v3821
        %v3842 = vadd.f32 %v3749, %v3822
        %v3843 = vadd.f32 %v3750, %v3823
        %v3844 = vadd.f32 %v3751, %v3824
        %v3845 = vadd.f32 %v3752, %v3825
        %v3846 = vadd.f32 %v3753, %v3826
        %v3847 = vadd.f32 %v3754, %v3827
        %v3848 = vadd.f32 %v3755, %v3828
        %v3849 = vadd.f32 %v3756, %v3829
        %v3850 = vadd.f32 %v3757, %v3830
        %v3851 = vadd.f32 %v3758, %v3831
        %v3852 = vadd.f32 %v3759, %v3832
        %v3853 = vadd.f32 %v3760, %v3833
        %v3854 = vadd.f32 %v3761, %v3834
        %v3855 = vadd.f32 %v3762, %v3835
        %v3856 = vadd.f32 %v3763, %v3836
        %s3857 = scalar_lea.vmem [#allocation6], 1360
        %v3858 = vld [vmem:[%s3857] sm:$0xff]
        %v3859 = vld [vmem:[%s3857 + $0x8] sm:$0xff]
        %v3860 = vld [vmem:[%s3857 + $0x10] sm:$0xf]
        %v3861 = vld [vmem:[%s3857 + $0x14] sm:$0xff]
        %v3862 = vld [vmem:[%s3857 + $0x1c] sm:$0xff]
        %v3863 = vld [vmem:[%s3857 + $0x24] sm:$0xf]
        %v3864 = vld [vmem:[%s3857 + $0x28] sm:$0xff]
        %v3865 = vld [vmem:[%s3857 + $0x30] sm:$0xff]
        %v3866 = vld [vmem:[%s3857 + $0x38] sm:$0xf]
        %v3867 = vld [vmem:[%s3857 + $0x3c] sm:$0xff]
        %v3868 = vld [vmem:[%s3857 + $0x44] sm:$0xff]
        %v3869 = vld [vmem:[%s3857 + $0x4c] sm:$0xf]
        %v3870 = vunpack.c.l.bf16 %v3858
        %v3871 = vunpack.c.h.bf16 %v3858
        %v3872 = vunpack.c.l.bf16 %v3859
        %v3873 = vunpack.c.h.bf16 %v3859
        %v3874 = vunpack.c.l.bf16 %v3860
        %v3875 = vunpack.c.l.bf16 %v3861
        %v3876 = vunpack.c.h.bf16 %v3861
        %v3877 = vunpack.c.l.bf16 %v3862
        %v3878 = vunpack.c.h.bf16 %v3862
        %v3879 = vunpack.c.l.bf16 %v3863
        %v3880 = vunpack.c.l.bf16 %v3864
        %v3881 = vunpack.c.h.bf16 %v3864
        %v3882 = vunpack.c.l.bf16 %v3865
        %v3883 = vunpack.c.h.bf16 %v3865
        %v3884 = vunpack.c.l.bf16 %v3866
        %v3885 = vunpack.c.l.bf16 %v3867
        %v3886 = vunpack.c.h.bf16 %v3867
        %v3887 = vunpack.c.l.bf16 %v3868
        %v3888 = vunpack.c.h.bf16 %v3868
        %v3889 = vunpack.c.l.bf16 %v3869
        %v3890 = vlaneseq
        %v3891 = vshrl.u32 %v3890, 7
        %v3892 = vsub.s32 1, %v3891
        %v3893 = vrot.slane %v2267, %v3892
        %v3894 = vlaneseq
        %v3895 = vshrl.u32 %v3894, 7
        %v3896 = vsub.s32 1, %v3895
        %v3897 = vrot.slane %v2268, %v3896
        %v3898 = vlaneseq
        %v3899 = vshrl.u32 %v3898, 7
        %v3900 = vsub.s32 1, %v3899
        %v3901 = vrot.slane %v2269, %v3900
        %v3902 = vlaneseq
        %v3903 = vshrl.u32 %v3902, 7
        %v3904 = vsub.s32 1, %v3903
        %v3905 = vrot.slane %v2270, %v3904
        %v3906 = vlaneseq
        %v3907 = vshrl.u32 %v3906, 7
        %v3908 = vsub.s32 1, %v3907
        %v3909 = vrot.slane %v2271, %v3908
        %v3910 = vmul.f32 %v3870, %v3893
        %v3911 = vmul.f32 %v3871, %v3897
        %v3912 = vmul.f32 %v3872, %v3901
        %v3913 = vmul.f32 %v3873, %v3905
        %v3914 = vmul.f32 %v3874, %v3909
        %v3915 = vmul.f32 %v3875, %v3893
        %v3916 = vmul.f32 %v3876, %v3897
        %v3917 = vmul.f32 %v3877, %v3901
        %v3918 = vmul.f32 %v3878, %v3905
        %v3919 = vmul.f32 %v3879, %v3909
        %v3920 = vmul.f32 %v3880, %v3893
        %v3921 = vmul.f32 %v3881, %v3897
        %v3922 = vmul.f32 %v3882, %v3901
        %v3923 = vmul.f32 %v3883, %v3905
        %v3924 = vmul.f32 %v3884, %v3909
        %v3925 = vmul.f32 %v3885, %v3893
        %v3926 = vmul.f32 %v3886, %v3897
        %v3927 = vmul.f32 %v3887, %v3901
        %v3928 = vmul.f32 %v3888, %v3905
        %v3929 = vmul.f32 %v3889, %v3909
        %v3930 = vadd.f32 %v3837, %v3910
        %v3931 = vadd.f32 %v3838, %v3911
        %v3932 = vadd.f32 %v3839, %v3912
        %v3933 = vadd.f32 %v3840, %v3913
        %v3934 = vadd.f32 %v3841, %v3914
        %v3935 = vadd.f32 %v3842, %v3915
        %v3936 = vadd.f32 %v3843, %v3916
        %v3937 = vadd.f32 %v3844, %v3917
        %v3938 = vadd.f32 %v3845, %v3918
        %v3939 = vadd.f32 %v3846, %v3919
        %v3940 = vadd.f32 %v3847, %v3920
        %v3941 = vadd.f32 %v3848, %v3921
        %v3942 = vadd.f32 %v3849, %v3922
        %v3943 = vadd.f32 %v3850, %v3923
        %v3944 = vadd.f32 %v3851, %v3924
        %v3945 = vadd.f32 %v3852, %v3925
        %v3946 = vadd.f32 %v3853, %v3926
        %v3947 = vadd.f32 %v3854, %v3927
        %v3948 = vadd.f32 %v3855, %v3928
        %v3949 = vadd.f32 %v3856, %v3929
        %s3950 = scalar_lea.vmem [#allocation6], 1440
        %v3951 = vld [vmem:[%s3950] sm:$0xff]
        %v3952 = vld [vmem:[%s3950 + $0x8] sm:$0xff]
        %v3953 = vld [vmem:[%s3950 + $0x10] sm:$0xf]
        %v3954 = vld [vmem:[%s3950 + $0x14] sm:$0xff]
        %v3955 = vld [vmem:[%s3950 + $0x1c] sm:$0xff]
        %v3956 = vld [vmem:[%s3950 + $0x24] sm:$0xf]
        %v3957 = vld [vmem:[%s3950 + $0x28] sm:$0xff]
        %v3958 = vld [vmem:[%s3950 + $0x30] sm:$0xff]
        %v3959 = vld [vmem:[%s3950 + $0x38] sm:$0xf]
        %v3960 = vld [vmem:[%s3950 + $0x3c] sm:$0xff]
        %v3961 = vld [vmem:[%s3950 + $0x44] sm:$0xff]
        %v3962 = vld [vmem:[%s3950 + $0x4c] sm:$0xf]
        %v3963 = vunpack.c.l.bf16 %v3951
        %v3964 = vunpack.c.h.bf16 %v3951
        %v3965 = vunpack.c.l.bf16 %v3952
        %v3966 = vunpack.c.h.bf16 %v3952
        %v3967 = vunpack.c.l.bf16 %v3953
        %v3968 = vunpack.c.l.bf16 %v3954
        %v3969 = vunpack.c.h.bf16 %v3954
        %v3970 = vunpack.c.l.bf16 %v3955
        %v3971 = vunpack.c.h.bf16 %v3955
        %v3972 = vunpack.c.l.bf16 %v3956
        %v3973 = vunpack.c.l.bf16 %v3957
        %v3974 = vunpack.c.h.bf16 %v3957
        %v3975 = vunpack.c.l.bf16 %v3958
        %v3976 = vunpack.c.h.bf16 %v3958
        %v3977 = vunpack.c.l.bf16 %v3959
        %v3978 = vunpack.c.l.bf16 %v3960
        %v3979 = vunpack.c.h.bf16 %v3960
        %v3980 = vunpack.c.l.bf16 %v3961
        %v3981 = vunpack.c.h.bf16 %v3961
        %v3982 = vunpack.c.l.bf16 %v3962
        %v3983 = vlaneseq
        %v3984 = vshrl.u32 %v3983, 7
        %v3985 = vsub.s32 2, %v3984
        %v3986 = vrot.slane %v2267, %v3985
        %v3987 = vlaneseq
        %v3988 = vshrl.u32 %v3987, 7
        %v3989 = vsub.s32 2, %v3988
        %v3990 = vrot.slane %v2268, %v3989
        %v3991 = vlaneseq
        %v3992 = vshrl.u32 %v3991, 7
        %v3993 = vsub.s32 2, %v3992
        %v3994 = vrot.slane %v2269, %v3993
        %v3995 = vlaneseq
        %v3996 = vshrl.u32 %v3995, 7
        %v3997 = vsub.s32 2, %v3996
        %v3998 = vrot.slane %v2270, %v3997
        %v3999 = vlaneseq
        %v4000 = vshrl.u32 %v3999, 7
        %v4001 = vsub.s32 2, %v4000
        %v4002 = vrot.slane %v2271, %v4001
        %v4003 = vmul.f32 %v3963, %v3986
        %v4004 = vmul.f32 %v3964, %v3990
        %v4005 = vmul.f32 %v3965, %v3994
        %v4006 = vmul.f32 %v3966, %v3998
        %v4007 = vmul.f32 %v3967, %v4002
        %v4008 = vmul.f32 %v3968, %v3986
        %v4009 = vmul.f32 %v3969, %v3990
        %v4010 = vmul.f32 %v3970, %v3994
        %v4011 = vmul.f32 %v3971, %v3998
        %v4012 = vmul.f32 %v3972, %v4002
        %v4013 = vmul.f32 %v3973, %v3986
        %v4014 = vmul.f32 %v3974, %v3990
        %v4015 = vmul.f32 %v3975, %v3994
        %v4016 = vmul.f32 %v3976, %v3998
        %v4017 = vmul.f32 %v3977, %v4002
        %v4018 = vmul.f32 %v3978, %v3986
        %v4019 = vmul.f32 %v3979, %v3990
        %v4020 = vmul.f32 %v3980, %v3994
        %v4021 = vmul.f32 %v3981, %v3998
        %v4022 = vmul.f32 %v3982, %v4002
        %v4023 = vadd.f32 %v3930, %v4003
        %v4024 = vadd.f32 %v3931, %v4004
        %v4025 = vadd.f32 %v3932, %v4005
        %v4026 = vadd.f32 %v3933, %v4006
        %v4027 = vadd.f32 %v3934, %v4007
        %v4028 = vadd.f32 %v3935, %v4008
        %v4029 = vadd.f32 %v3936, %v4009
        %v4030 = vadd.f32 %v3937, %v4010
        %v4031 = vadd.f32 %v3938, %v4011
        %v4032 = vadd.f32 %v3939, %v4012
        %v4033 = vadd.f32 %v3940, %v4013
        %v4034 = vadd.f32 %v3941, %v4014
        %v4035 = vadd.f32 %v3942, %v4015
        %v4036 = vadd.f32 %v3943, %v4016
        %v4037 = vadd.f32 %v3944, %v4017
        %v4038 = vadd.f32 %v3945, %v4018
        %v4039 = vadd.f32 %v3946, %v4019
        %v4040 = vadd.f32 %v3947, %v4020
        %v4041 = vadd.f32 %v3948, %v4021
        %v4042 = vadd.f32 %v3949, %v4022
        %s4043 = scalar_lea.vmem [#allocation6], 1520
        %v4044 = vld [vmem:[%s4043] sm:$0xff]
        %v4045 = vld [vmem:[%s4043 + $0x8] sm:$0xff]
        %v4046 = vld [vmem:[%s4043 + $0x10] sm:$0xf]
        %v4047 = vld [vmem:[%s4043 + $0x14] sm:$0xff]
        %v4048 = vld [vmem:[%s4043 + $0x1c] sm:$0xff]
        %v4049 = vld [vmem:[%s4043 + $0x24] sm:$0xf]
        %v4050 = vld [vmem:[%s4043 + $0x28] sm:$0xff]
        %v4051 = vld [vmem:[%s4043 + $0x30] sm:$0xff]
        %v4052 = vld [vmem:[%s4043 + $0x38] sm:$0xf]
        %v4053 = vld [vmem:[%s4043 + $0x3c] sm:$0xff]
        %v4054 = vld [vmem:[%s4043 + $0x44] sm:$0xff]
        %v4055 = vld [vmem:[%s4043 + $0x4c] sm:$0xf]
        %v4056 = vunpack.c.l.bf16 %v4044
        %v4057 = vunpack.c.h.bf16 %v4044
        %v4058 = vunpack.c.l.bf16 %v4045
        %v4059 = vunpack.c.h.bf16 %v4045
        %v4060 = vunpack.c.l.bf16 %v4046
        %v4061 = vunpack.c.l.bf16 %v4047
        %v4062 = vunpack.c.h.bf16 %v4047
        %v4063 = vunpack.c.l.bf16 %v4048
        %v4064 = vunpack.c.h.bf16 %v4048
        %v4065 = vunpack.c.l.bf16 %v4049
        %v4066 = vunpack.c.l.bf16 %v4050
        %v4067 = vunpack.c.h.bf16 %v4050
        %v4068 = vunpack.c.l.bf16 %v4051
        %v4069 = vunpack.c.h.bf16 %v4051
        %v4070 = vunpack.c.l.bf16 %v4052
        %v4071 = vunpack.c.l.bf16 %v4053
        %v4072 = vunpack.c.h.bf16 %v4053
        %v4073 = vunpack.c.l.bf16 %v4054
        %v4074 = vunpack.c.h.bf16 %v4054
        %v4075 = vunpack.c.l.bf16 %v4055
        %v4076 = vlaneseq
        %v4077 = vshrl.u32 %v4076, 7
        %v4078 = vsub.s32 3, %v4077
        %v4079 = vrot.slane %v2267, %v4078
        %v4080 = vlaneseq
        %v4081 = vshrl.u32 %v4080, 7
        %v4082 = vsub.s32 3, %v4081
        %v4083 = vrot.slane %v2268, %v4082
        %v4084 = vlaneseq
        %v4085 = vshrl.u32 %v4084, 7
        %v4086 = vsub.s32 3, %v4085
        %v4087 = vrot.slane %v2269, %v4086
        %v4088 = vlaneseq
        %v4089 = vshrl.u32 %v4088, 7
        %v4090 = vsub.s32 3, %v4089
        %v4091 = vrot.slane %v2270, %v4090
        %v4092 = vlaneseq
        %v4093 = vshrl.u32 %v4092, 7
        %v4094 = vsub.s32 3, %v4093
        %v4095 = vrot.slane %v2271, %v4094
        %v4096 = vmul.f32 %v4056, %v4079
        %v4097 = vmul.f32 %v4057, %v4083
        %v4098 = vmul.f32 %v4058, %v4087
        %v4099 = vmul.f32 %v4059, %v4091
        %v4100 = vmul.f32 %v4060, %v4095
        %v4101 = vmul.f32 %v4061, %v4079
        %v4102 = vmul.f32 %v4062, %v4083
        %v4103 = vmul.f32 %v4063, %v4087
        %v4104 = vmul.f32 %v4064, %v4091
        %v4105 = vmul.f32 %v4065, %v4095
        %v4106 = vmul.f32 %v4066, %v4079
        %v4107 = vmul.f32 %v4067, %v4083
        %v4108 = vmul.f32 %v4068, %v4087
        %v4109 = vmul.f32 %v4069, %v4091
        %v4110 = vmul.f32 %v4070, %v4095
        %v4111 = vmul.f32 %v4071, %v4079
        %v4112 = vmul.f32 %v4072, %v4083
        %v4113 = vmul.f32 %v4073, %v4087
        %v4114 = vmul.f32 %v4074, %v4091
        %v4115 = vmul.f32 %v4075, %v4095
        %v4116 = vadd.f32 %v4023, %v4096
        %v4117 = vadd.f32 %v4024, %v4097
        %v4118 = vadd.f32 %v4025, %v4098
        %v4119 = vadd.f32 %v4026, %v4099
        %v4120 = vadd.f32 %v4027, %v4100
        %v4121 = vadd.f32 %v4028, %v4101
        %v4122 = vadd.f32 %v4029, %v4102
        %v4123 = vadd.f32 %v4030, %v4103
        %v4124 = vadd.f32 %v4031, %v4104
        %v4125 = vadd.f32 %v4032, %v4105
        %v4126 = vadd.f32 %v4033, %v4106
        %v4127 = vadd.f32 %v4034, %v4107
        %v4128 = vadd.f32 %v4035, %v4108
        %v4129 = vadd.f32 %v4036, %v4109
        %v4130 = vadd.f32 %v4037, %v4110
        %v4131 = vadd.f32 %v4038, %v4111
        %v4132 = vadd.f32 %v4039, %v4112
        %v4133 = vadd.f32 %v4040, %v4113
        %v4134 = vadd.f32 %v4041, %v4114
        %v4135 = vadd.f32 %v4042, %v4115
        %s4136 = scalar_lea.vmem [#allocation6], 1600
        %v4137 = vld [vmem:[%s4136] sm:$0xff]
        %v4138 = vld [vmem:[%s4136 + $0x8] sm:$0xff]
        %v4139 = vld [vmem:[%s4136 + $0x10] sm:$0xf]
        %v4140 = vld [vmem:[%s4136 + $0x14] sm:$0xff]
        %v4141 = vld [vmem:[%s4136 + $0x1c] sm:$0xff]
        %v4142 = vld [vmem:[%s4136 + $0x24] sm:$0xf]
        %v4143 = vld [vmem:[%s4136 + $0x28] sm:$0xff]
        %v4144 = vld [vmem:[%s4136 + $0x30] sm:$0xff]
        %v4145 = vld [vmem:[%s4136 + $0x38] sm:$0xf]
        %v4146 = vld [vmem:[%s4136 + $0x3c] sm:$0xff]
        %v4147 = vld [vmem:[%s4136 + $0x44] sm:$0xff]
        %v4148 = vld [vmem:[%s4136 + $0x4c] sm:$0xf]
        %v4149 = vunpack.c.l.bf16 %v4137
        %v4150 = vunpack.c.h.bf16 %v4137
        %v4151 = vunpack.c.l.bf16 %v4138
        %v4152 = vunpack.c.h.bf16 %v4138
        %v4153 = vunpack.c.l.bf16 %v4139
        %v4154 = vunpack.c.l.bf16 %v4140
        %v4155 = vunpack.c.h.bf16 %v4140
        %v4156 = vunpack.c.l.bf16 %v4141
        %v4157 = vunpack.c.h.bf16 %v4141
        %v4158 = vunpack.c.l.bf16 %v4142
        %v4159 = vunpack.c.l.bf16 %v4143
        %v4160 = vunpack.c.h.bf16 %v4143
        %v4161 = vunpack.c.l.bf16 %v4144
        %v4162 = vunpack.c.h.bf16 %v4144
        %v4163 = vunpack.c.l.bf16 %v4145
        %v4164 = vunpack.c.l.bf16 %v4146
        %v4165 = vunpack.c.h.bf16 %v4146
        %v4166 = vunpack.c.l.bf16 %v4147
        %v4167 = vunpack.c.h.bf16 %v4147
        %v4168 = vunpack.c.l.bf16 %v4148
        %v4169 = vlaneseq
        %v4170 = vshrl.u32 %v4169, 7
        %v4171 = vsub.s32 4, %v4170
        %v4172 = vrot.slane %v2267, %v4171
        %v4173 = vlaneseq
        %v4174 = vshrl.u32 %v4173, 7
        %v4175 = vsub.s32 4, %v4174
        %v4176 = vrot.slane %v2268, %v4175
        %v4177 = vlaneseq
        %v4178 = vshrl.u32 %v4177, 7
        %v4179 = vsub.s32 4, %v4178
        %v4180 = vrot.slane %v2269, %v4179
        %v4181 = vlaneseq
        %v4182 = vshrl.u32 %v4181, 7
        %v4183 = vsub.s32 4, %v4182
        %v4184 = vrot.slane %v2270, %v4183
        %v4185 = vlaneseq
        %v4186 = vshrl.u32 %v4185, 7
        %v4187 = vsub.s32 4, %v4186
        %v4188 = vrot.slane %v2271, %v4187
        %v4189 = vmul.f32 %v4149, %v4172
        %v4190 = vmul.f32 %v4150, %v4176
        %v4191 = vmul.f32 %v4151, %v4180
        %v4192 = vmul.f32 %v4152, %v4184
        %v4193 = vmul.f32 %v4153, %v4188
        %v4194 = vmul.f32 %v4154, %v4172
        %v4195 = vmul.f32 %v4155, %v4176
        %v4196 = vmul.f32 %v4156, %v4180
        %v4197 = vmul.f32 %v4157, %v4184
        %v4198 = vmul.f32 %v4158, %v4188
        %v4199 = vmul.f32 %v4159, %v4172
        %v4200 = vmul.f32 %v4160, %v4176
        %v4201 = vmul.f32 %v4161, %v4180
        %v4202 = vmul.f32 %v4162, %v4184
        %v4203 = vmul.f32 %v4163, %v4188
        %v4204 = vmul.f32 %v4164, %v4172
        %v4205 = vmul.f32 %v4165, %v4176
        %v4206 = vmul.f32 %v4166, %v4180
        %v4207 = vmul.f32 %v4167, %v4184
        %v4208 = vmul.f32 %v4168, %v4188
        %v4209 = vadd.f32 %v4116, %v4189
        %v4210 = vadd.f32 %v4117, %v4190
        %v4211 = vadd.f32 %v4118, %v4191
        %v4212 = vadd.f32 %v4119, %v4192
        %v4213 = vadd.f32 %v4120, %v4193
        %v4214 = vadd.f32 %v4121, %v4194
        %v4215 = vadd.f32 %v4122, %v4195
        %v4216 = vadd.f32 %v4123, %v4196
        %v4217 = vadd.f32 %v4124, %v4197
        %v4218 = vadd.f32 %v4125, %v4198
        %v4219 = vadd.f32 %v4126, %v4199
        %v4220 = vadd.f32 %v4127, %v4200
        %v4221 = vadd.f32 %v4128, %v4201
        %v4222 = vadd.f32 %v4129, %v4202
        %v4223 = vadd.f32 %v4130, %v4203
        %v4224 = vadd.f32 %v4131, %v4204
        %v4225 = vadd.f32 %v4132, %v4205
        %v4226 = vadd.f32 %v4133, %v4206
        %v4227 = vadd.f32 %v4134, %v4207
        %v4228 = vadd.f32 %v4135, %v4208
        %s4229 = scalar_lea.vmem [#allocation6], 1680
        %v4230 = vld [vmem:[%s4229] sm:$0xff]
        %v4231 = vld [vmem:[%s4229 + $0x8] sm:$0xff]
        %v4232 = vld [vmem:[%s4229 + $0x10] sm:$0xf]
        %v4233 = vld [vmem:[%s4229 + $0x14] sm:$0xff]
        %v4234 = vld [vmem:[%s4229 + $0x1c] sm:$0xff]
        %v4235 = vld [vmem:[%s4229 + $0x24] sm:$0xf]
        %v4236 = vld [vmem:[%s4229 + $0x28] sm:$0xff]
        %v4237 = vld [vmem:[%s4229 + $0x30] sm:$0xff]
        %v4238 = vld [vmem:[%s4229 + $0x38] sm:$0xf]
        %v4239 = vld [vmem:[%s4229 + $0x3c] sm:$0xff]
        %v4240 = vld [vmem:[%s4229 + $0x44] sm:$0xff]
        %v4241 = vld [vmem:[%s4229 + $0x4c] sm:$0xf]
        %v4242 = vunpack.c.l.bf16 %v4230
        %v4243 = vunpack.c.h.bf16 %v4230
        %v4244 = vunpack.c.l.bf16 %v4231
        %v4245 = vunpack.c.h.bf16 %v4231
        %v4246 = vunpack.c.l.bf16 %v4232
        %v4247 = vunpack.c.l.bf16 %v4233
        %v4248 = vunpack.c.h.bf16 %v4233
        %v4249 = vunpack.c.l.bf16 %v4234
        %v4250 = vunpack.c.h.bf16 %v4234
        %v4251 = vunpack.c.l.bf16 %v4235
        %v4252 = vunpack.c.l.bf16 %v4236
        %v4253 = vunpack.c.h.bf16 %v4236
        %v4254 = vunpack.c.l.bf16 %v4237
        %v4255 = vunpack.c.h.bf16 %v4237
        %v4256 = vunpack.c.l.bf16 %v4238
        %v4257 = vunpack.c.l.bf16 %v4239
        %v4258 = vunpack.c.h.bf16 %v4239
        %v4259 = vunpack.c.l.bf16 %v4240
        %v4260 = vunpack.c.h.bf16 %v4240
        %v4261 = vunpack.c.l.bf16 %v4241
        %v4262 = vlaneseq
        %v4263 = vshrl.u32 %v4262, 7
        %v4264 = vsub.s32 5, %v4263
        %v4265 = vrot.slane %v2267, %v4264
        %v4266 = vlaneseq
        %v4267 = vshrl.u32 %v4266, 7
        %v4268 = vsub.s32 5, %v4267
        %v4269 = vrot.slane %v2268, %v4268
        %v4270 = vlaneseq
        %v4271 = vshrl.u32 %v4270, 7
        %v4272 = vsub.s32 5, %v4271
        %v4273 = vrot.slane %v2269, %v4272
        %v4274 = vlaneseq
        %v4275 = vshrl.u32 %v4274, 7
        %v4276 = vsub.s32 5, %v4275
        %v4277 = vrot.slane %v2270, %v4276
        %v4278 = vlaneseq
        %v4279 = vshrl.u32 %v4278, 7
        %v4280 = vsub.s32 5, %v4279
        %v4281 = vrot.slane %v2271, %v4280
        %v4282 = vmul.f32 %v4242, %v4265
        %v4283 = vmul.f32 %v4243, %v4269
        %v4284 = vmul.f32 %v4244, %v4273
        %v4285 = vmul.f32 %v4245, %v4277
        %v4286 = vmul.f32 %v4246, %v4281
        %v4287 = vmul.f32 %v4247, %v4265
        %v4288 = vmul.f32 %v4248, %v4269
        %v4289 = vmul.f32 %v4249, %v4273
        %v4290 = vmul.f32 %v4250, %v4277
        %v4291 = vmul.f32 %v4251, %v4281
        %v4292 = vmul.f32 %v4252, %v4265
        %v4293 = vmul.f32 %v4253, %v4269
        %v4294 = vmul.f32 %v4254, %v4273
        %v4295 = vmul.f32 %v4255, %v4277
        %v4296 = vmul.f32 %v4256, %v4281
        %v4297 = vmul.f32 %v4257, %v4265
        %v4298 = vmul.f32 %v4258, %v4269
        %v4299 = vmul.f32 %v4259, %v4273
        %v4300 = vmul.f32 %v4260, %v4277
        %v4301 = vmul.f32 %v4261, %v4281
        %v4302 = vadd.f32 %v4209, %v4282
        %v4303 = vadd.f32 %v4210, %v4283
        %v4304 = vadd.f32 %v4211, %v4284
        %v4305 = vadd.f32 %v4212, %v4285
        %v4306 = vadd.f32 %v4213, %v4286
        %v4307 = vadd.f32 %v4214, %v4287
        %v4308 = vadd.f32 %v4215, %v4288
        %v4309 = vadd.f32 %v4216, %v4289
        %v4310 = vadd.f32 %v4217, %v4290
        %v4311 = vadd.f32 %v4218, %v4291
        %v4312 = vadd.f32 %v4219, %v4292
        %v4313 = vadd.f32 %v4220, %v4293
        %v4314 = vadd.f32 %v4221, %v4294
        %v4315 = vadd.f32 %v4222, %v4295
        %v4316 = vadd.f32 %v4223, %v4296
        %v4317 = vadd.f32 %v4224, %v4297
        %v4318 = vadd.f32 %v4225, %v4298
        %v4319 = vadd.f32 %v4226, %v4299
        %v4320 = vadd.f32 %v4227, %v4300
        %v4321 = vadd.f32 %v4228, %v4301
        %s4322 = scalar_lea.vmem [#allocation6], 1760
        %v4323 = vld [vmem:[%s4322] sm:$0xff]
        %v4324 = vld [vmem:[%s4322 + $0x8] sm:$0xff]
        %v4325 = vld [vmem:[%s4322 + $0x10] sm:$0xf]
        %v4326 = vld [vmem:[%s4322 + $0x14] sm:$0xff]
        %v4327 = vld [vmem:[%s4322 + $0x1c] sm:$0xff]
        %v4328 = vld [vmem:[%s4322 + $0x24] sm:$0xf]
        %v4329 = vld [vmem:[%s4322 + $0x28] sm:$0xff]
        %v4330 = vld [vmem:[%s4322 + $0x30] sm:$0xff]
        %v4331 = vld [vmem:[%s4322 + $0x38] sm:$0xf]
        %v4332 = vld [vmem:[%s4322 + $0x3c] sm:$0xff]
        %v4333 = vld [vmem:[%s4322 + $0x44] sm:$0xff]
        %v4334 = vld [vmem:[%s4322 + $0x4c] sm:$0xf]
        %v4335 = vunpack.c.l.bf16 %v4323
        %v4336 = vunpack.c.h.bf16 %v4323
        %v4337 = vunpack.c.l.bf16 %v4324
        %v4338 = vunpack.c.h.bf16 %v4324
        %v4339 = vunpack.c.l.bf16 %v4325
        %v4340 = vunpack.c.l.bf16 %v4326
        %v4341 = vunpack.c.h.bf16 %v4326
        %v4342 = vunpack.c.l.bf16 %v4327
        %v4343 = vunpack.c.h.bf16 %v4327
        %v4344 = vunpack.c.l.bf16 %v4328
        %v4345 = vunpack.c.l.bf16 %v4329
        %v4346 = vunpack.c.h.bf16 %v4329
        %v4347 = vunpack.c.l.bf16 %v4330
        %v4348 = vunpack.c.h.bf16 %v4330
        %v4349 = vunpack.c.l.bf16 %v4331
        %v4350 = vunpack.c.l.bf16 %v4332
        %v4351 = vunpack.c.h.bf16 %v4332
        %v4352 = vunpack.c.l.bf16 %v4333
        %v4353 = vunpack.c.h.bf16 %v4333
        %v4354 = vunpack.c.l.bf16 %v4334
        %v4355 = vlaneseq
        %v4356 = vshrl.u32 %v4355, 7
        %v4357 = vsub.s32 6, %v4356
        %v4358 = vrot.slane %v2267, %v4357
        %v4359 = vlaneseq
        %v4360 = vshrl.u32 %v4359, 7
        %v4361 = vsub.s32 6, %v4360
        %v4362 = vrot.slane %v2268, %v4361
        %v4363 = vlaneseq
        %v4364 = vshrl.u32 %v4363, 7
        %v4365 = vsub.s32 6, %v4364
        %v4366 = vrot.slane %v2269, %v4365
        %v4367 = vlaneseq
        %v4368 = vshrl.u32 %v4367, 7
        %v4369 = vsub.s32 6, %v4368
        %v4370 = vrot.slane %v2270, %v4369
        %v4371 = vlaneseq
        %v4372 = vshrl.u32 %v4371, 7
        %v4373 = vsub.s32 6, %v4372
        %v4374 = vrot.slane %v2271, %v4373
        %v4375 = vmul.f32 %v4335, %v4358
        %v4376 = vmul.f32 %v4336, %v4362
        %v4377 = vmul.f32 %v4337, %v4366
        %v4378 = vmul.f32 %v4338, %v4370
        %v4379 = vmul.f32 %v4339, %v4374
        %v4380 = vmul.f32 %v4340, %v4358
        %v4381 = vmul.f32 %v4341, %v4362
        %v4382 = vmul.f32 %v4342, %v4366
        %v4383 = vmul.f32 %v4343, %v4370
        %v4384 = vmul.f32 %v4344, %v4374
        %v4385 = vmul.f32 %v4345, %v4358
        %v4386 = vmul.f32 %v4346, %v4362
        %v4387 = vmul.f32 %v4347, %v4366
        %v4388 = vmul.f32 %v4348, %v4370
        %v4389 = vmul.f32 %v4349, %v4374
        %v4390 = vmul.f32 %v4350, %v4358
        %v4391 = vmul.f32 %v4351, %v4362
        %v4392 = vmul.f32 %v4352, %v4366
        %v4393 = vmul.f32 %v4353, %v4370
        %v4394 = vmul.f32 %v4354, %v4374
        %v4395 = vadd.f32 %v4302, %v4375
        %v4396 = vadd.f32 %v4303, %v4376
        %v4397 = vadd.f32 %v4304, %v4377
        %v4398 = vadd.f32 %v4305, %v4378
        %v4399 = vadd.f32 %v4306, %v4379
        %v4400 = vadd.f32 %v4307, %v4380
        %v4401 = vadd.f32 %v4308, %v4381
        %v4402 = vadd.f32 %v4309, %v4382
        %v4403 = vadd.f32 %v4310, %v4383
        %v4404 = vadd.f32 %v4311, %v4384
        %v4405 = vadd.f32 %v4312, %v4385
        %v4406 = vadd.f32 %v4313, %v4386
        %v4407 = vadd.f32 %v4314, %v4387
        %v4408 = vadd.f32 %v4315, %v4388
        %v4409 = vadd.f32 %v4316, %v4389
        %v4410 = vadd.f32 %v4317, %v4390
        %v4411 = vadd.f32 %v4318, %v4391
        %v4412 = vadd.f32 %v4319, %v4392
        %v4413 = vadd.f32 %v4320, %v4393
        %v4414 = vadd.f32 %v4321, %v4394
        %s4415 = scalar_lea.vmem [#allocation6], 1840
        %v4416 = vld [vmem:[%s4415] sm:$0xff]
        %v4417 = vld [vmem:[%s4415 + $0x8] sm:$0xff]
        %v4418 = vld [vmem:[%s4415 + $0x10] sm:$0xf]
        %v4419 = vld [vmem:[%s4415 + $0x14] sm:$0xff]
        %v4420 = vld [vmem:[%s4415 + $0x1c] sm:$0xff]
        %v4421 = vld [vmem:[%s4415 + $0x24] sm:$0xf]
        %v4422 = vld [vmem:[%s4415 + $0x28] sm:$0xff]
        %v4423 = vld [vmem:[%s4415 + $0x30] sm:$0xff]
        %v4424 = vld [vmem:[%s4415 + $0x38] sm:$0xf]
        %v4425 = vld [vmem:[%s4415 + $0x3c] sm:$0xff]
        %v4426 = vld [vmem:[%s4415 + $0x44] sm:$0xff]
        %v4427 = vld [vmem:[%s4415 + $0x4c] sm:$0xf]
        %v4428 = vunpack.c.l.bf16 %v4416
        %v4429 = vunpack.c.h.bf16 %v4416
        %v4430 = vunpack.c.l.bf16 %v4417
        %v4431 = vunpack.c.h.bf16 %v4417
        %v4432 = vunpack.c.l.bf16 %v4418
        %v4433 = vunpack.c.l.bf16 %v4419
        %v4434 = vunpack.c.h.bf16 %v4419
        %v4435 = vunpack.c.l.bf16 %v4420
        %v4436 = vunpack.c.h.bf16 %v4420
        %v4437 = vunpack.c.l.bf16 %v4421
        %v4438 = vunpack.c.l.bf16 %v4422
        %v4439 = vunpack.c.h.bf16 %v4422
        %v4440 = vunpack.c.l.bf16 %v4423
        %v4441 = vunpack.c.h.bf16 %v4423
        %v4442 = vunpack.c.l.bf16 %v4424
        %v4443 = vunpack.c.l.bf16 %v4425
        %v4444 = vunpack.c.h.bf16 %v4425
        %v4445 = vunpack.c.l.bf16 %v4426
        %v4446 = vunpack.c.h.bf16 %v4426
        %v4447 = vunpack.c.l.bf16 %v4427
        %v4448 = vlaneseq
        %v4449 = vshrl.u32 %v4448, 7
        %v4450 = vsub.s32 7, %v4449
        %v4451 = vrot.slane %v2267, %v4450
        %v4452 = vlaneseq
        %v4453 = vshrl.u32 %v4452, 7
        %v4454 = vsub.s32 7, %v4453
        %v4455 = vrot.slane %v2268, %v4454
        %v4456 = vlaneseq
        %v4457 = vshrl.u32 %v4456, 7
        %v4458 = vsub.s32 7, %v4457
        %v4459 = vrot.slane %v2269, %v4458
        %v4460 = vlaneseq
        %v4461 = vshrl.u32 %v4460, 7
        %v4462 = vsub.s32 7, %v4461
        %v4463 = vrot.slane %v2270, %v4462
        %v4464 = vlaneseq
        %v4465 = vshrl.u32 %v4464, 7
        %v4466 = vsub.s32 7, %v4465
        %v4467 = vrot.slane %v2271, %v4466
        %v4468 = vmul.f32 %v4428, %v4451
        %v4469 = vmul.f32 %v4429, %v4455
        %v4470 = vmul.f32 %v4430, %v4459
        %v4471 = vmul.f32 %v4431, %v4463
        %v4472 = vmul.f32 %v4432, %v4467
        %v4473 = vmul.f32 %v4433, %v4451
        %v4474 = vmul.f32 %v4434, %v4455
        %v4475 = vmul.f32 %v4435, %v4459
        %v4476 = vmul.f32 %v4436, %v4463
        %v4477 = vmul.f32 %v4437, %v4467
        %v4478 = vmul.f32 %v4438, %v4451
        %v4479 = vmul.f32 %v4439, %v4455
        %v4480 = vmul.f32 %v4440, %v4459
        %v4481 = vmul.f32 %v4441, %v4463
        %v4482 = vmul.f32 %v4442, %v4467
        %v4483 = vmul.f32 %v4443, %v4451
        %v4484 = vmul.f32 %v4444, %v4455
        %v4485 = vmul.f32 %v4445, %v4459
        %v4486 = vmul.f32 %v4446, %v4463
        %v4487 = vmul.f32 %v4447, %v4467
        %v4488 = vadd.f32 %v4395, %v4468
        %v4489 = vadd.f32 %v4396, %v4469
        %v4490 = vadd.f32 %v4397, %v4470
        %v4491 = vadd.f32 %v4398, %v4471
        %v4492 = vadd.f32 %v4399, %v4472
        %v4493 = vadd.f32 %v4400, %v4473
        %v4494 = vadd.f32 %v4401, %v4474
        %v4495 = vadd.f32 %v4402, %v4475
        %v4496 = vadd.f32 %v4403, %v4476
        %v4497 = vadd.f32 %v4404, %v4477
        %v4498 = vadd.f32 %v4405, %v4478
        %v4499 = vadd.f32 %v4406, %v4479
        %v4500 = vadd.f32 %v4407, %v4480
        %v4501 = vadd.f32 %v4408, %v4481
        %v4502 = vadd.f32 %v4409, %v4482
        %v4503 = vadd.f32 %v4410, %v4483
        %v4504 = vadd.f32 %v4411, %v4484
        %v4505 = vadd.f32 %v4412, %v4485
        %v4506 = vadd.f32 %v4413, %v4486
        %v4507 = vadd.f32 %v4414, %v4487
        %s4508 = scalar_lea.vmem [#allocation6], 1920
        %v4509 = vld [vmem:[%s4508] sm:$0xff]
        %v4510 = vld [vmem:[%s4508 + $0x8] sm:$0xff]
        %v4511 = vld [vmem:[%s4508 + $0x10] sm:$0xf]
        %v4512 = vld [vmem:[%s4508 + $0x14] sm:$0xff]
        %v4513 = vld [vmem:[%s4508 + $0x1c] sm:$0xff]
        %v4514 = vld [vmem:[%s4508 + $0x24] sm:$0xf]
        %v4515 = vld [vmem:[%s4508 + $0x28] sm:$0xff]
        %v4516 = vld [vmem:[%s4508 + $0x30] sm:$0xff]
        %v4517 = vld [vmem:[%s4508 + $0x38] sm:$0xf]
        %v4518 = vld [vmem:[%s4508 + $0x3c] sm:$0xff]
        %v4519 = vld [vmem:[%s4508 + $0x44] sm:$0xff]
        %v4520 = vld [vmem:[%s4508 + $0x4c] sm:$0xf]
        %v4521 = vunpack.c.l.bf16 %v4509
        %v4522 = vunpack.c.h.bf16 %v4509
        %v4523 = vunpack.c.l.bf16 %v4510
        %v4524 = vunpack.c.h.bf16 %v4510
        %v4525 = vunpack.c.l.bf16 %v4511
        %v4526 = vunpack.c.l.bf16 %v4512
        %v4527 = vunpack.c.h.bf16 %v4512
        %v4528 = vunpack.c.l.bf16 %v4513
        %v4529 = vunpack.c.h.bf16 %v4513
        %v4530 = vunpack.c.l.bf16 %v4514
        %v4531 = vunpack.c.l.bf16 %v4515
        %v4532 = vunpack.c.h.bf16 %v4515
        %v4533 = vunpack.c.l.bf16 %v4516
        %v4534 = vunpack.c.h.bf16 %v4516
        %v4535 = vunpack.c.l.bf16 %v4517
        %v4536 = vunpack.c.l.bf16 %v4518
        %v4537 = vunpack.c.h.bf16 %v4518
        %v4538 = vunpack.c.l.bf16 %v4519
        %v4539 = vunpack.c.h.bf16 %v4519
        %v4540 = vunpack.c.l.bf16 %v4520
        %v4541 = vlaneseq
        %v4542 = vshrl.u32 %v4541, 7
        %v4543 = vsub.s32 0, %v4542
        %v4544 = vrot.slane %v2272, %v4543
        %v4545 = vlaneseq
        %v4546 = vshrl.u32 %v4545, 7
        %v4547 = vsub.s32 0, %v4546
        %v4548 = vrot.slane %v2273, %v4547
        %v4549 = vlaneseq
        %v4550 = vshrl.u32 %v4549, 7
        %v4551 = vsub.s32 0, %v4550
        %v4552 = vrot.slane %v2274, %v4551
        %v4553 = vlaneseq
        %v4554 = vshrl.u32 %v4553, 7
        %v4555 = vsub.s32 0, %v4554
        %v4556 = vrot.slane %v2275, %v4555
        %v4557 = vlaneseq
        %v4558 = vshrl.u32 %v4557, 7
        %v4559 = vsub.s32 0, %v4558
        %v4560 = vrot.slane %v2276, %v4559
        %v4561 = vmul.f32 %v4521, %v4544
        %v4562 = vmul.f32 %v4522, %v4548
        %v4563 = vmul.f32 %v4523, %v4552
        %v4564 = vmul.f32 %v4524, %v4556
        %v4565 = vmul.f32 %v4525, %v4560
        %v4566 = vmul.f32 %v4526, %v4544
        %v4567 = vmul.f32 %v4527, %v4548
        %v4568 = vmul.f32 %v4528, %v4552
        %v4569 = vmul.f32 %v4529, %v4556
        %v4570 = vmul.f32 %v4530, %v4560
        %v4571 = vmul.f32 %v4531, %v4544
        %v4572 = vmul.f32 %v4532, %v4548
        %v4573 = vmul.f32 %v4533, %v4552
        %v4574 = vmul.f32 %v4534, %v4556
        %v4575 = vmul.f32 %v4535, %v4560
        %v4576 = vmul.f32 %v4536, %v4544
        %v4577 = vmul.f32 %v4537, %v4548
        %v4578 = vmul.f32 %v4538, %v4552
        %v4579 = vmul.f32 %v4539, %v4556
        %v4580 = vmul.f32 %v4540, %v4560
        %v4581 = vadd.f32 %v4488, %v4561
        %v4582 = vadd.f32 %v4489, %v4562
        %v4583 = vadd.f32 %v4490, %v4563
        %v4584 = vadd.f32 %v4491, %v4564
        %v4585 = vadd.f32 %v4492, %v4565
        %v4586 = vadd.f32 %v4493, %v4566
        %v4587 = vadd.f32 %v4494, %v4567
        %v4588 = vadd.f32 %v4495, %v4568
        %v4589 = vadd.f32 %v4496, %v4569
        %v4590 = vadd.f32 %v4497, %v4570
        %v4591 = vadd.f32 %v4498, %v4571
        %v4592 = vadd.f32 %v4499, %v4572
        %v4593 = vadd.f32 %v4500, %v4573
        %v4594 = vadd.f32 %v4501, %v4574
        %v4595 = vadd.f32 %v4502, %v4575
        %v4596 = vadd.f32 %v4503, %v4576
        %v4597 = vadd.f32 %v4504, %v4577
        %v4598 = vadd.f32 %v4505, %v4578
        %v4599 = vadd.f32 %v4506, %v4579
        %v4600 = vadd.f32 %v4507, %v4580
        %s4601 = scalar_lea.vmem [#allocation6], 2000
        %v4602 = vld [vmem:[%s4601] sm:$0xff]
        %v4603 = vld [vmem:[%s4601 + $0x8] sm:$0xff]
        %v4604 = vld [vmem:[%s4601 + $0x10] sm:$0xf]
        %v4605 = vld [vmem:[%s4601 + $0x14] sm:$0xff]
        %v4606 = vld [vmem:[%s4601 + $0x1c] sm:$0xff]
        %v4607 = vld [vmem:[%s4601 + $0x24] sm:$0xf]
        %v4608 = vld [vmem:[%s4601 + $0x28] sm:$0xff]
        %v4609 = vld [vmem:[%s4601 + $0x30] sm:$0xff]
        %v4610 = vld [vmem:[%s4601 + $0x38] sm:$0xf]
        %v4611 = vld [vmem:[%s4601 + $0x3c] sm:$0xff]
        %v4612 = vld [vmem:[%s4601 + $0x44] sm:$0xff]
        %v4613 = vld [vmem:[%s4601 + $0x4c] sm:$0xf]
        %v4614 = vunpack.c.l.bf16 %v4602
        %v4615 = vunpack.c.h.bf16 %v4602
        %v4616 = vunpack.c.l.bf16 %v4603
        %v4617 = vunpack.c.h.bf16 %v4603
        %v4618 = vunpack.c.l.bf16 %v4604
        %v4619 = vunpack.c.l.bf16 %v4605
        %v4620 = vunpack.c.h.bf16 %v4605
        %v4621 = vunpack.c.l.bf16 %v4606
        %v4622 = vunpack.c.h.bf16 %v4606
        %v4623 = vunpack.c.l.bf16 %v4607
        %v4624 = vunpack.c.l.bf16 %v4608
        %v4625 = vunpack.c.h.bf16 %v4608
        %v4626 = vunpack.c.l.bf16 %v4609
        %v4627 = vunpack.c.h.bf16 %v4609
        %v4628 = vunpack.c.l.bf16 %v4610
        %v4629 = vunpack.c.l.bf16 %v4611
        %v4630 = vunpack.c.h.bf16 %v4611
        %v4631 = vunpack.c.l.bf16 %v4612
        %v4632 = vunpack.c.h.bf16 %v4612
        %v4633 = vunpack.c.l.bf16 %v4613
        %v4634 = vlaneseq
        %v4635 = vshrl.u32 %v4634, 7
        %v4636 = vsub.s32 1, %v4635
        %v4637 = vrot.slane %v2272, %v4636
        %v4638 = vlaneseq
        %v4639 = vshrl.u32 %v4638, 7
        %v4640 = vsub.s32 1, %v4639
        %v4641 = vrot.slane %v2273, %v4640
        %v4642 = vlaneseq
        %v4643 = vshrl.u32 %v4642, 7
        %v4644 = vsub.s32 1, %v4643
        %v4645 = vrot.slane %v2274, %v4644
        %v4646 = vlaneseq
        %v4647 = vshrl.u32 %v4646, 7
        %v4648 = vsub.s32 1, %v4647
        %v4649 = vrot.slane %v2275, %v4648
        %v4650 = vlaneseq
        %v4651 = vshrl.u32 %v4650, 7
        %v4652 = vsub.s32 1, %v4651
        %v4653 = vrot.slane %v2276, %v4652
        %v4654 = vmul.f32 %v4614, %v4637
        %v4655 = vmul.f32 %v4615, %v4641
        %v4656 = vmul.f32 %v4616, %v4645
        %v4657 = vmul.f32 %v4617, %v4649
        %v4658 = vmul.f32 %v4618, %v4653
        %v4659 = vmul.f32 %v4619, %v4637
        %v4660 = vmul.f32 %v4620, %v4641
        %v4661 = vmul.f32 %v4621, %v4645
        %v4662 = vmul.f32 %v4622, %v4649
        %v4663 = vmul.f32 %v4623, %v4653
        %v4664 = vmul.f32 %v4624, %v4637
        %v4665 = vmul.f32 %v4625, %v4641
        %v4666 = vmul.f32 %v4626, %v4645
        %v4667 = vmul.f32 %v4627, %v4649
        %v4668 = vmul.f32 %v4628, %v4653
        %v4669 = vmul.f32 %v4629, %v4637
        %v4670 = vmul.f32 %v4630, %v4641
        %v4671 = vmul.f32 %v4631, %v4645
        %v4672 = vmul.f32 %v4632, %v4649
        %v4673 = vmul.f32 %v4633, %v4653
        %v4674 = vadd.f32 %v4581, %v4654
        %v4675 = vadd.f32 %v4582, %v4655
        %v4676 = vadd.f32 %v4583, %v4656
        %v4677 = vadd.f32 %v4584, %v4657
        %v4678 = vadd.f32 %v4585, %v4658
        %v4679 = vadd.f32 %v4586, %v4659
        %v4680 = vadd.f32 %v4587, %v4660
        %v4681 = vadd.f32 %v4588, %v4661
        %v4682 = vadd.f32 %v4589, %v4662
        %v4683 = vadd.f32 %v4590, %v4663
        %v4684 = vadd.f32 %v4591, %v4664
        %v4685 = vadd.f32 %v4592, %v4665
        %v4686 = vadd.f32 %v4593, %v4666
        %v4687 = vadd.f32 %v4594, %v4667
        %v4688 = vadd.f32 %v4595, %v4668
        %v4689 = vadd.f32 %v4596, %v4669
        %v4690 = vadd.f32 %v4597, %v4670
        %v4691 = vadd.f32 %v4598, %v4671
        %v4692 = vadd.f32 %v4599, %v4672
        %v4693 = vadd.f32 %v4600, %v4673
        %s4694 = scalar_lea.vmem [#allocation6], 2080
        %v4695 = vld [vmem:[%s4694] sm:$0xff]
        %v4696 = vld [vmem:[%s4694 + $0x8] sm:$0xff]
        %v4697 = vld [vmem:[%s4694 + $0x10] sm:$0xf]
        %v4698 = vld [vmem:[%s4694 + $0x14] sm:$0xff]
        %v4699 = vld [vmem:[%s4694 + $0x1c] sm:$0xff]
        %v4700 = vld [vmem:[%s4694 + $0x24] sm:$0xf]
        %v4701 = vld [vmem:[%s4694 + $0x28] sm:$0xff]
        %v4702 = vld [vmem:[%s4694 + $0x30] sm:$0xff]
        %v4703 = vld [vmem:[%s4694 + $0x38] sm:$0xf]
        %v4704 = vld [vmem:[%s4694 + $0x3c] sm:$0xff]
        %v4705 = vld [vmem:[%s4694 + $0x44] sm:$0xff]
        %v4706 = vld [vmem:[%s4694 + $0x4c] sm:$0xf]
        %v4707 = vunpack.c.l.bf16 %v4695
        %v4708 = vunpack.c.h.bf16 %v4695
        %v4709 = vunpack.c.l.bf16 %v4696
        %v4710 = vunpack.c.h.bf16 %v4696
        %v4711 = vunpack.c.l.bf16 %v4697
        %v4712 = vunpack.c.l.bf16 %v4698
        %v4713 = vunpack.c.h.bf16 %v4698
        %v4714 = vunpack.c.l.bf16 %v4699
        %v4715 = vunpack.c.h.bf16 %v4699
        %v4716 = vunpack.c.l.bf16 %v4700
        %v4717 = vunpack.c.l.bf16 %v4701
        %v4718 = vunpack.c.h.bf16 %v4701
        %v4719 = vunpack.c.l.bf16 %v4702
        %v4720 = vunpack.c.h.bf16 %v4702
        %v4721 = vunpack.c.l.bf16 %v4703
        %v4722 = vunpack.c.l.bf16 %v4704
        %v4723 = vunpack.c.h.bf16 %v4704
        %v4724 = vunpack.c.l.bf16 %v4705
        %v4725 = vunpack.c.h.bf16 %v4705
        %v4726 = vunpack.c.l.bf16 %v4706
        %v4727 = vlaneseq
        %v4728 = vshrl.u32 %v4727, 7
        %v4729 = vsub.s32 2, %v4728
        %v4730 = vrot.slane %v2272, %v4729
        %v4731 = vlaneseq
        %v4732 = vshrl.u32 %v4731, 7
        %v4733 = vsub.s32 2, %v4732
        %v4734 = vrot.slane %v2273, %v4733
        %v4735 = vlaneseq
        %v4736 = vshrl.u32 %v4735, 7
        %v4737 = vsub.s32 2, %v4736
        %v4738 = vrot.slane %v2274, %v4737
        %v4739 = vlaneseq
        %v4740 = vshrl.u32 %v4739, 7
        %v4741 = vsub.s32 2, %v4740
        %v4742 = vrot.slane %v2275, %v4741
        %v4743 = vlaneseq
        %v4744 = vshrl.u32 %v4743, 7
        %v4745 = vsub.s32 2, %v4744
        %v4746 = vrot.slane %v2276, %v4745
        %v4747 = vmul.f32 %v4707, %v4730
        %v4748 = vmul.f32 %v4708, %v4734
        %v4749 = vmul.f32 %v4709, %v4738
        %v4750 = vmul.f32 %v4710, %v4742
        %v4751 = vmul.f32 %v4711, %v4746
        %v4752 = vmul.f32 %v4712, %v4730
        %v4753 = vmul.f32 %v4713, %v4734
        %v4754 = vmul.f32 %v4714, %v4738
        %v4755 = vmul.f32 %v4715, %v4742
        %v4756 = vmul.f32 %v4716, %v4746
        %v4757 = vmul.f32 %v4717, %v4730
        %v4758 = vmul.f32 %v4718, %v4734
        %v4759 = vmul.f32 %v4719, %v4738
        %v4760 = vmul.f32 %v4720, %v4742
        %v4761 = vmul.f32 %v4721, %v4746
        %v4762 = vmul.f32 %v4722, %v4730
        %v4763 = vmul.f32 %v4723, %v4734
        %v4764 = vmul.f32 %v4724, %v4738
        %v4765 = vmul.f32 %v4725, %v4742
        %v4766 = vmul.f32 %v4726, %v4746
        %v4767 = vadd.f32 %v4674, %v4747
        %v4768 = vadd.f32 %v4675, %v4748
        %v4769 = vadd.f32 %v4676, %v4749
        %v4770 = vadd.f32 %v4677, %v4750
        %v4771 = vadd.f32 %v4678, %v4751
        %v4772 = vadd.f32 %v4679, %v4752
        %v4773 = vadd.f32 %v4680, %v4753
        %v4774 = vadd.f32 %v4681, %v4754
        %v4775 = vadd.f32 %v4682, %v4755
        %v4776 = vadd.f32 %v4683, %v4756
        %v4777 = vadd.f32 %v4684, %v4757
        %v4778 = vadd.f32 %v4685, %v4758
        %v4779 = vadd.f32 %v4686, %v4759
        %v4780 = vadd.f32 %v4687, %v4760
        %v4781 = vadd.f32 %v4688, %v4761
        %v4782 = vadd.f32 %v4689, %v4762
        %v4783 = vadd.f32 %v4690, %v4763
        %v4784 = vadd.f32 %v4691, %v4764
        %v4785 = vadd.f32 %v4692, %v4765
        %v4786 = vadd.f32 %v4693, %v4766
        %s4787 = scalar_lea.vmem [#allocation6], 2160
        %v4788 = vld [vmem:[%s4787] sm:$0xff]
        %v4789 = vld [vmem:[%s4787 + $0x8] sm:$0xff]
        %v4790 = vld [vmem:[%s4787 + $0x10] sm:$0xf]
        %v4791 = vld [vmem:[%s4787 + $0x14] sm:$0xff]
        %v4792 = vld [vmem:[%s4787 + $0x1c] sm:$0xff]
        %v4793 = vld [vmem:[%s4787 + $0x24] sm:$0xf]
        %v4794 = vld [vmem:[%s4787 + $0x28] sm:$0xff]
        %v4795 = vld [vmem:[%s4787 + $0x30] sm:$0xff]
        %v4796 = vld [vmem:[%s4787 + $0x38] sm:$0xf]
        %v4797 = vld [vmem:[%s4787 + $0x3c] sm:$0xff]
        %v4798 = vld [vmem:[%s4787 + $0x44] sm:$0xff]
        %v4799 = vld [vmem:[%s4787 + $0x4c] sm:$0xf]
        %v4800 = vunpack.c.l.bf16 %v4788
        %v4801 = vunpack.c.h.bf16 %v4788
        %v4802 = vunpack.c.l.bf16 %v4789
        %v4803 = vunpack.c.h.bf16 %v4789
        %v4804 = vunpack.c.l.bf16 %v4790
        %v4805 = vunpack.c.l.bf16 %v4791
        %v4806 = vunpack.c.h.bf16 %v4791
        %v4807 = vunpack.c.l.bf16 %v4792
        %v4808 = vunpack.c.h.bf16 %v4792
        %v4809 = vunpack.c.l.bf16 %v4793
        %v4810 = vunpack.c.l.bf16 %v4794
        %v4811 = vunpack.c.h.bf16 %v4794
        %v4812 = vunpack.c.l.bf16 %v4795
        %v4813 = vunpack.c.h.bf16 %v4795
        %v4814 = vunpack.c.l.bf16 %v4796
        %v4815 = vunpack.c.l.bf16 %v4797
        %v4816 = vunpack.c.h.bf16 %v4797
        %v4817 = vunpack.c.l.bf16 %v4798
        %v4818 = vunpack.c.h.bf16 %v4798
        %v4819 = vunpack.c.l.bf16 %v4799
        %v4820 = vlaneseq
        %v4821 = vshrl.u32 %v4820, 7
        %v4822 = vsub.s32 3, %v4821
        %v4823 = vrot.slane %v2272, %v4822
        %v4824 = vlaneseq
        %v4825 = vshrl.u32 %v4824, 7
        %v4826 = vsub.s32 3, %v4825
        %v4827 = vrot.slane %v2273, %v4826
        %v4828 = vlaneseq
        %v4829 = vshrl.u32 %v4828, 7
        %v4830 = vsub.s32 3, %v4829
        %v4831 = vrot.slane %v2274, %v4830
        %v4832 = vlaneseq
        %v4833 = vshrl.u32 %v4832, 7
        %v4834 = vsub.s32 3, %v4833
        %v4835 = vrot.slane %v2275, %v4834
        %v4836 = vlaneseq
        %v4837 = vshrl.u32 %v4836, 7
        %v4838 = vsub.s32 3, %v4837
        %v4839 = vrot.slane %v2276, %v4838
        %v4840 = vmul.f32 %v4800, %v4823
        %v4841 = vmul.f32 %v4801, %v4827
        %v4842 = vmul.f32 %v4802, %v4831
        %v4843 = vmul.f32 %v4803, %v4835
        %v4844 = vmul.f32 %v4804, %v4839
        %v4845 = vmul.f32 %v4805, %v4823
        %v4846 = vmul.f32 %v4806, %v4827
        %v4847 = vmul.f32 %v4807, %v4831
        %v4848 = vmul.f32 %v4808, %v4835
        %v4849 = vmul.f32 %v4809, %v4839
        %v4850 = vmul.f32 %v4810, %v4823
        %v4851 = vmul.f32 %v4811, %v4827
        %v4852 = vmul.f32 %v4812, %v4831
        %v4853 = vmul.f32 %v4813, %v4835
        %v4854 = vmul.f32 %v4814, %v4839
        %v4855 = vmul.f32 %v4815, %v4823
        %v4856 = vmul.f32 %v4816, %v4827
        %v4857 = vmul.f32 %v4817, %v4831
        %v4858 = vmul.f32 %v4818, %v4835
        %v4859 = vmul.f32 %v4819, %v4839
        %v4860 = vadd.f32 %v4767, %v4840
        %v4861 = vadd.f32 %v4768, %v4841
        %v4862 = vadd.f32 %v4769, %v4842
        %v4863 = vadd.f32 %v4770, %v4843
        %v4864 = vadd.f32 %v4771, %v4844
        %v4865 = vadd.f32 %v4772, %v4845
        %v4866 = vadd.f32 %v4773, %v4846
        %v4867 = vadd.f32 %v4774, %v4847
        %v4868 = vadd.f32 %v4775, %v4848
        %v4869 = vadd.f32 %v4776, %v4849
        %v4870 = vadd.f32 %v4777, %v4850
        %v4871 = vadd.f32 %v4778, %v4851
        %v4872 = vadd.f32 %v4779, %v4852
        %v4873 = vadd.f32 %v4780, %v4853
        %v4874 = vadd.f32 %v4781, %v4854
        %v4875 = vadd.f32 %v4782, %v4855
        %v4876 = vadd.f32 %v4783, %v4856
        %v4877 = vadd.f32 %v4784, %v4857
        %v4878 = vadd.f32 %v4785, %v4858
        %v4879 = vadd.f32 %v4786, %v4859
        %s4880 = scalar_lea.vmem [#allocation6], 2240
        %v4881 = vld [vmem:[%s4880] sm:$0xff]
        %v4882 = vld [vmem:[%s4880 + $0x8] sm:$0xff]
        %v4883 = vld [vmem:[%s4880 + $0x10] sm:$0xf]
        %v4884 = vld [vmem:[%s4880 + $0x14] sm:$0xff]
        %v4885 = vld [vmem:[%s4880 + $0x1c] sm:$0xff]
        %v4886 = vld [vmem:[%s4880 + $0x24] sm:$0xf]
        %v4887 = vld [vmem:[%s4880 + $0x28] sm:$0xff]
        %v4888 = vld [vmem:[%s4880 + $0x30] sm:$0xff]
        %v4889 = vld [vmem:[%s4880 + $0x38] sm:$0xf]
        %v4890 = vld [vmem:[%s4880 + $0x3c] sm:$0xff]
        %v4891 = vld [vmem:[%s4880 + $0x44] sm:$0xff]
        %v4892 = vld [vmem:[%s4880 + $0x4c] sm:$0xf]
        %v4893 = vunpack.c.l.bf16 %v4881
        %v4894 = vunpack.c.h.bf16 %v4881
        %v4895 = vunpack.c.l.bf16 %v4882
        %v4896 = vunpack.c.h.bf16 %v4882
        %v4897 = vunpack.c.l.bf16 %v4883
        %v4898 = vunpack.c.l.bf16 %v4884
        %v4899 = vunpack.c.h.bf16 %v4884
        %v4900 = vunpack.c.l.bf16 %v4885
        %v4901 = vunpack.c.h.bf16 %v4885
        %v4902 = vunpack.c.l.bf16 %v4886
        %v4903 = vunpack.c.l.bf16 %v4887
        %v4904 = vunpack.c.h.bf16 %v4887
        %v4905 = vunpack.c.l.bf16 %v4888
        %v4906 = vunpack.c.h.bf16 %v4888
        %v4907 = vunpack.c.l.bf16 %v4889
        %v4908 = vunpack.c.l.bf16 %v4890
        %v4909 = vunpack.c.h.bf16 %v4890
        %v4910 = vunpack.c.l.bf16 %v4891
        %v4911 = vunpack.c.h.bf16 %v4891
        %v4912 = vunpack.c.l.bf16 %v4892
        %v4913 = vlaneseq
        %v4914 = vshrl.u32 %v4913, 7
        %v4915 = vsub.s32 4, %v4914
        %v4916 = vrot.slane %v2272, %v4915
        %v4917 = vlaneseq
        %v4918 = vshrl.u32 %v4917, 7
        %v4919 = vsub.s32 4, %v4918
        %v4920 = vrot.slane %v2273, %v4919
        %v4921 = vlaneseq
        %v4922 = vshrl.u32 %v4921, 7
        %v4923 = vsub.s32 4, %v4922
        %v4924 = vrot.slane %v2274, %v4923
        %v4925 = vlaneseq
        %v4926 = vshrl.u32 %v4925, 7
        %v4927 = vsub.s32 4, %v4926
        %v4928 = vrot.slane %v2275, %v4927
        %v4929 = vlaneseq
        %v4930 = vshrl.u32 %v4929, 7
        %v4931 = vsub.s32 4, %v4930
        %v4932 = vrot.slane %v2276, %v4931
        %v4933 = vmul.f32 %v4893, %v4916
        %v4934 = vmul.f32 %v4894, %v4920
        %v4935 = vmul.f32 %v4895, %v4924
        %v4936 = vmul.f32 %v4896, %v4928
        %v4937 = vmul.f32 %v4897, %v4932
        %v4938 = vmul.f32 %v4898, %v4916
        %v4939 = vmul.f32 %v4899, %v4920
        %v4940 = vmul.f32 %v4900, %v4924
        %v4941 = vmul.f32 %v4901, %v4928
        %v4942 = vmul.f32 %v4902, %v4932
        %v4943 = vmul.f32 %v4903, %v4916
        %v4944 = vmul.f32 %v4904, %v4920
        %v4945 = vmul.f32 %v4905, %v4924
        %v4946 = vmul.f32 %v4906, %v4928
        %v4947 = vmul.f32 %v4907, %v4932
        %v4948 = vmul.f32 %v4908, %v4916
        %v4949 = vmul.f32 %v4909, %v4920
        %v4950 = vmul.f32 %v4910, %v4924
        %v4951 = vmul.f32 %v4911, %v4928
        %v4952 = vmul.f32 %v4912, %v4932
        %v4953 = vadd.f32 %v4860, %v4933
        %v4954 = vadd.f32 %v4861, %v4934
        %v4955 = vadd.f32 %v4862, %v4935
        %v4956 = vadd.f32 %v4863, %v4936
        %v4957 = vadd.f32 %v4864, %v4937
        %v4958 = vadd.f32 %v4865, %v4938
        %v4959 = vadd.f32 %v4866, %v4939
        %v4960 = vadd.f32 %v4867, %v4940
        %v4961 = vadd.f32 %v4868, %v4941
        %v4962 = vadd.f32 %v4869, %v4942
        %v4963 = vadd.f32 %v4870, %v4943
        %v4964 = vadd.f32 %v4871, %v4944
        %v4965 = vadd.f32 %v4872, %v4945
        %v4966 = vadd.f32 %v4873, %v4946
        %v4967 = vadd.f32 %v4874, %v4947
        %v4968 = vadd.f32 %v4875, %v4948
        %v4969 = vadd.f32 %v4876, %v4949
        %v4970 = vadd.f32 %v4877, %v4950
        %v4971 = vadd.f32 %v4878, %v4951
        %v4972 = vadd.f32 %v4879, %v4952
        %s4973 = scalar_lea.vmem [#allocation6], 2320
        %v4974 = vld [vmem:[%s4973] sm:$0xff]
        %v4975 = vld [vmem:[%s4973 + $0x8] sm:$0xff]
        %v4976 = vld [vmem:[%s4973 + $0x10] sm:$0xf]
        %v4977 = vld [vmem:[%s4973 + $0x14] sm:$0xff]
        %v4978 = vld [vmem:[%s4973 + $0x1c] sm:$0xff]
        %v4979 = vld [vmem:[%s4973 + $0x24] sm:$0xf]
        %v4980 = vld [vmem:[%s4973 + $0x28] sm:$0xff]
        %v4981 = vld [vmem:[%s4973 + $0x30] sm:$0xff]
        %v4982 = vld [vmem:[%s4973 + $0x38] sm:$0xf]
        %v4983 = vld [vmem:[%s4973 + $0x3c] sm:$0xff]
        %v4984 = vld [vmem:[%s4973 + $0x44] sm:$0xff]
        %v4985 = vld [vmem:[%s4973 + $0x4c] sm:$0xf]
        %v4986 = vunpack.c.l.bf16 %v4974
        %v4987 = vunpack.c.h.bf16 %v4974
        %v4988 = vunpack.c.l.bf16 %v4975
        %v4989 = vunpack.c.h.bf16 %v4975
        %v4990 = vunpack.c.l.bf16 %v4976
        %v4991 = vunpack.c.l.bf16 %v4977
        %v4992 = vunpack.c.h.bf16 %v4977
        %v4993 = vunpack.c.l.bf16 %v4978
        %v4994 = vunpack.c.h.bf16 %v4978
        %v4995 = vunpack.c.l.bf16 %v4979
        %v4996 = vunpack.c.l.bf16 %v4980
        %v4997 = vunpack.c.h.bf16 %v4980
        %v4998 = vunpack.c.l.bf16 %v4981
        %v4999 = vunpack.c.h.bf16 %v4981
        %v5000 = vunpack.c.l.bf16 %v4982
        %v5001 = vunpack.c.l.bf16 %v4983
        %v5002 = vunpack.c.h.bf16 %v4983
        %v5003 = vunpack.c.l.bf16 %v4984
        %v5004 = vunpack.c.h.bf16 %v4984
        %v5005 = vunpack.c.l.bf16 %v4985
        %v5006 = vlaneseq
        %v5007 = vshrl.u32 %v5006, 7
        %v5008 = vsub.s32 5, %v5007
        %v5009 = vrot.slane %v2272, %v5008
        %v5010 = vlaneseq
        %v5011 = vshrl.u32 %v5010, 7
        %v5012 = vsub.s32 5, %v5011
        %v5013 = vrot.slane %v2273, %v5012
        %v5014 = vlaneseq
        %v5015 = vshrl.u32 %v5014, 7
        %v5016 = vsub.s32 5, %v5015
        %v5017 = vrot.slane %v2274, %v5016
        %v5018 = vlaneseq
        %v5019 = vshrl.u32 %v5018, 7
        %v5020 = vsub.s32 5, %v5019
        %v5021 = vrot.slane %v2275, %v5020
        %v5022 = vlaneseq
        %v5023 = vshrl.u32 %v5022, 7
        %v5024 = vsub.s32 5, %v5023
        %v5025 = vrot.slane %v2276, %v5024
        %v5026 = vmul.f32 %v4986, %v5009
        %v5027 = vmul.f32 %v4987, %v5013
        %v5028 = vmul.f32 %v4988, %v5017
        %v5029 = vmul.f32 %v4989, %v5021
        %v5030 = vmul.f32 %v4990, %v5025
        %v5031 = vmul.f32 %v4991, %v5009
        %v5032 = vmul.f32 %v4992, %v5013
        %v5033 = vmul.f32 %v4993, %v5017
        %v5034 = vmul.f32 %v4994, %v5021
        %v5035 = vmul.f32 %v4995, %v5025
        %v5036 = vmul.f32 %v4996, %v5009
        %v5037 = vmul.f32 %v4997, %v5013
        %v5038 = vmul.f32 %v4998, %v5017
        %v5039 = vmul.f32 %v4999, %v5021
        %v5040 = vmul.f32 %v5000, %v5025
        %v5041 = vmul.f32 %v5001, %v5009
        %v5042 = vmul.f32 %v5002, %v5013
        %v5043 = vmul.f32 %v5003, %v5017
        %v5044 = vmul.f32 %v5004, %v5021
        %v5045 = vmul.f32 %v5005, %v5025
        %v5046 = vadd.f32 %v4953, %v5026
        %v5047 = vadd.f32 %v4954, %v5027
        %v5048 = vadd.f32 %v4955, %v5028
        %v5049 = vadd.f32 %v4956, %v5029
        %v5050 = vadd.f32 %v4957, %v5030
        %v5051 = vadd.f32 %v4958, %v5031
        %v5052 = vadd.f32 %v4959, %v5032
        %v5053 = vadd.f32 %v4960, %v5033
        %v5054 = vadd.f32 %v4961, %v5034
        %v5055 = vadd.f32 %v4962, %v5035
        %v5056 = vadd.f32 %v4963, %v5036
        %v5057 = vadd.f32 %v4964, %v5037
        %v5058 = vadd.f32 %v4965, %v5038
        %v5059 = vadd.f32 %v4966, %v5039
        %v5060 = vadd.f32 %v4967, %v5040
        %v5061 = vadd.f32 %v4968, %v5041
        %v5062 = vadd.f32 %v4969, %v5042
        %v5063 = vadd.f32 %v4970, %v5043
        %v5064 = vadd.f32 %v4971, %v5044
        %v5065 = vadd.f32 %v4972, %v5045
        %s5066 = scalar_lea.vmem [#allocation6], 2400
        %v5067 = vld [vmem:[%s5066] sm:$0xff]
        %v5068 = vld [vmem:[%s5066 + $0x8] sm:$0xff]
        %v5069 = vld [vmem:[%s5066 + $0x10] sm:$0xf]
        %v5070 = vld [vmem:[%s5066 + $0x14] sm:$0xff]
        %v5071 = vld [vmem:[%s5066 + $0x1c] sm:$0xff]
        %v5072 = vld [vmem:[%s5066 + $0x24] sm:$0xf]
        %v5073 = vld [vmem:[%s5066 + $0x28] sm:$0xff]
        %v5074 = vld [vmem:[%s5066 + $0x30] sm:$0xff]
        %v5075 = vld [vmem:[%s5066 + $0x38] sm:$0xf]
        %v5076 = vld [vmem:[%s5066 + $0x3c] sm:$0xff]
        %v5077 = vld [vmem:[%s5066 + $0x44] sm:$0xff]
        %v5078 = vld [vmem:[%s5066 + $0x4c] sm:$0xf]
        %v5079 = vunpack.c.l.bf16 %v5067
        %v5080 = vunpack.c.h.bf16 %v5067
        %v5081 = vunpack.c.l.bf16 %v5068
        %v5082 = vunpack.c.h.bf16 %v5068
        %v5083 = vunpack.c.l.bf16 %v5069
        %v5084 = vunpack.c.l.bf16 %v5070
        %v5085 = vunpack.c.h.bf16 %v5070
        %v5086 = vunpack.c.l.bf16 %v5071
        %v5087 = vunpack.c.h.bf16 %v5071
        %v5088 = vunpack.c.l.bf16 %v5072
        %v5089 = vunpack.c.l.bf16 %v5073
        %v5090 = vunpack.c.h.bf16 %v5073
        %v5091 = vunpack.c.l.bf16 %v5074
        %v5092 = vunpack.c.h.bf16 %v5074
        %v5093 = vunpack.c.l.bf16 %v5075
        %v5094 = vunpack.c.l.bf16 %v5076
        %v5095 = vunpack.c.h.bf16 %v5076
        %v5096 = vunpack.c.l.bf16 %v5077
        %v5097 = vunpack.c.h.bf16 %v5077
        %v5098 = vunpack.c.l.bf16 %v5078
        %v5099 = vlaneseq
        %v5100 = vshrl.u32 %v5099, 7
        %v5101 = vsub.s32 6, %v5100
        %v5102 = vrot.slane %v2272, %v5101
        %v5103 = vlaneseq
        %v5104 = vshrl.u32 %v5103, 7
        %v5105 = vsub.s32 6, %v5104
        %v5106 = vrot.slane %v2273, %v5105
        %v5107 = vlaneseq
        %v5108 = vshrl.u32 %v5107, 7
        %v5109 = vsub.s32 6, %v5108
        %v5110 = vrot.slane %v2274, %v5109
        %v5111 = vlaneseq
        %v5112 = vshrl.u32 %v5111, 7
        %v5113 = vsub.s32 6, %v5112
        %v5114 = vrot.slane %v2275, %v5113
        %v5115 = vlaneseq
        %v5116 = vshrl.u32 %v5115, 7
        %v5117 = vsub.s32 6, %v5116
        %v5118 = vrot.slane %v2276, %v5117
        %v5119 = vmul.f32 %v5079, %v5102
        %v5120 = vmul.f32 %v5080, %v5106
        %v5121 = vmul.f32 %v5081, %v5110
        %v5122 = vmul.f32 %v5082, %v5114
        %v5123 = vmul.f32 %v5083, %v5118
        %v5124 = vmul.f32 %v5084, %v5102
        %v5125 = vmul.f32 %v5085, %v5106
        %v5126 = vmul.f32 %v5086, %v5110
        %v5127 = vmul.f32 %v5087, %v5114
        %v5128 = vmul.f32 %v5088, %v5118
        %v5129 = vmul.f32 %v5089, %v5102
        %v5130 = vmul.f32 %v5090, %v5106
        %v5131 = vmul.f32 %v5091, %v5110
        %v5132 = vmul.f32 %v5092, %v5114
        %v5133 = vmul.f32 %v5093, %v5118
        %v5134 = vmul.f32 %v5094, %v5102
        %v5135 = vmul.f32 %v5095, %v5106
        %v5136 = vmul.f32 %v5096, %v5110
        %v5137 = vmul.f32 %v5097, %v5114
        %v5138 = vmul.f32 %v5098, %v5118
        %v5139 = vadd.f32 %v5046, %v5119
        %v5140 = vadd.f32 %v5047, %v5120
        %v5141 = vadd.f32 %v5048, %v5121
        %v5142 = vadd.f32 %v5049, %v5122
        %v5143 = vadd.f32 %v5050, %v5123
        %v5144 = vadd.f32 %v5051, %v5124
        %v5145 = vadd.f32 %v5052, %v5125
        %v5146 = vadd.f32 %v5053, %v5126
        %v5147 = vadd.f32 %v5054, %v5127
        %v5148 = vadd.f32 %v5055, %v5128
        %v5149 = vadd.f32 %v5056, %v5129
        %v5150 = vadd.f32 %v5057, %v5130
        %v5151 = vadd.f32 %v5058, %v5131
        %v5152 = vadd.f32 %v5059, %v5132
        %v5153 = vadd.f32 %v5060, %v5133
        %v5154 = vadd.f32 %v5061, %v5134
        %v5155 = vadd.f32 %v5062, %v5135
        %v5156 = vadd.f32 %v5063, %v5136
        %v5157 = vadd.f32 %v5064, %v5137
        %v5158 = vadd.f32 %v5065, %v5138
        %s5159 = scalar_lea.vmem [#allocation6], 2480
        %v5160 = vld [vmem:[%s5159] sm:$0xff]
        %v5161 = vld [vmem:[%s5159 + $0x8] sm:$0xff]
        %v5162 = vld [vmem:[%s5159 + $0x10] sm:$0xf]
        %v5163 = vld [vmem:[%s5159 + $0x14] sm:$0xff]
        %v5164 = vld [vmem:[%s5159 + $0x1c] sm:$0xff]
        %v5165 = vld [vmem:[%s5159 + $0x24] sm:$0xf]
        %v5166 = vld [vmem:[%s5159 + $0x28] sm:$0xff]
        %v5167 = vld [vmem:[%s5159 + $0x30] sm:$0xff]
        %v5168 = vld [vmem:[%s5159 + $0x38] sm:$0xf]
        %v5169 = vld [vmem:[%s5159 + $0x3c] sm:$0xff]
        %v5170 = vld [vmem:[%s5159 + $0x44] sm:$0xff]
        %v5171 = vld [vmem:[%s5159 + $0x4c] sm:$0xf]
        %v5172 = vunpack.c.l.bf16 %v5160
        %v5173 = vunpack.c.h.bf16 %v5160
        %v5174 = vunpack.c.l.bf16 %v5161
        %v5175 = vunpack.c.h.bf16 %v5161
        %v5176 = vunpack.c.l.bf16 %v5162
        %v5177 = vunpack.c.l.bf16 %v5163
        %v5178 = vunpack.c.h.bf16 %v5163
        %v5179 = vunpack.c.l.bf16 %v5164
        %v5180 = vunpack.c.h.bf16 %v5164
        %v5181 = vunpack.c.l.bf16 %v5165
        %v5182 = vunpack.c.l.bf16 %v5166
        %v5183 = vunpack.c.h.bf16 %v5166
        %v5184 = vunpack.c.l.bf16 %v5167
        %v5185 = vunpack.c.h.bf16 %v5167
        %v5186 = vunpack.c.l.bf16 %v5168
        %v5187 = vunpack.c.l.bf16 %v5169
        %v5188 = vunpack.c.h.bf16 %v5169
        %v5189 = vunpack.c.l.bf16 %v5170
        %v5190 = vunpack.c.h.bf16 %v5170
        %v5191 = vunpack.c.l.bf16 %v5171
        %v5192 = vlaneseq
        %v5193 = vshrl.u32 %v5192, 7
        %v5194 = vsub.s32 7, %v5193
        %v5195 = vrot.slane %v2272, %v5194
        %v5196 = vlaneseq
        %v5197 = vshrl.u32 %v5196, 7
        %v5198 = vsub.s32 7, %v5197
        %v5199 = vrot.slane %v2273, %v5198
        %v5200 = vlaneseq
        %v5201 = vshrl.u32 %v5200, 7
        %v5202 = vsub.s32 7, %v5201
        %v5203 = vrot.slane %v2274, %v5202
        %v5204 = vlaneseq
        %v5205 = vshrl.u32 %v5204, 7
        %v5206 = vsub.s32 7, %v5205
        %v5207 = vrot.slane %v2275, %v5206
        %v5208 = vlaneseq
        %v5209 = vshrl.u32 %v5208, 7
        %v5210 = vsub.s32 7, %v5209
        %v5211 = vrot.slane %v2276, %v5210
        %v5212 = vmul.f32 %v5172, %v5195
        %v5213 = vmul.f32 %v5173, %v5199
        %v5214 = vmul.f32 %v5174, %v5203
        %v5215 = vmul.f32 %v5175, %v5207
        %v5216 = vmul.f32 %v5176, %v5211
        %v5217 = vmul.f32 %v5177, %v5195
        %v5218 = vmul.f32 %v5178, %v5199
        %v5219 = vmul.f32 %v5179, %v5203
        %v5220 = vmul.f32 %v5180, %v5207
        %v5221 = vmul.f32 %v5181, %v5211
        %v5222 = vmul.f32 %v5182, %v5195
        %v5223 = vmul.f32 %v5183, %v5199
        %v5224 = vmul.f32 %v5184, %v5203
        %v5225 = vmul.f32 %v5185, %v5207
        %v5226 = vmul.f32 %v5186, %v5211
        %v5227 = vmul.f32 %v5187, %v5195
        %v5228 = vmul.f32 %v5188, %v5199
        %v5229 = vmul.f32 %v5189, %v5203
        %v5230 = vmul.f32 %v5190, %v5207
        %v5231 = vmul.f32 %v5191, %v5211
        %v5232 = vadd.f32 %v5139, %v5212
        %v5233 = vadd.f32 %v5140, %v5213
        %v5234 = vadd.f32 %v5141, %v5214
        %v5235 = vadd.f32 %v5142, %v5215
        %v5236 = vadd.f32 %v5143, %v5216
        %v5237 = vadd.f32 %v5144, %v5217
        %v5238 = vadd.f32 %v5145, %v5218
        %v5239 = vadd.f32 %v5146, %v5219
        %v5240 = vadd.f32 %v5147, %v5220
        %v5241 = vadd.f32 %v5148, %v5221
        %v5242 = vadd.f32 %v5149, %v5222
        %v5243 = vadd.f32 %v5150, %v5223
        %v5244 = vadd.f32 %v5151, %v5224
        %v5245 = vadd.f32 %v5152, %v5225
        %v5246 = vadd.f32 %v5153, %v5226
        %v5247 = vadd.f32 %v5154, %v5227
        %v5248 = vadd.f32 %v5155, %v5228
        %v5249 = vadd.f32 %v5156, %v5229
        %v5250 = vadd.f32 %v5157, %v5230
        %v5251 = vadd.f32 %v5158, %v5231
        %v5252 = vadd.f32 %v5232, %v5233
        %v5253 = vadd.f32 %v5252, %v5234
        %v5254 = vadd.f32 %v5253, %v5235
        %vm5255 = vcmask 326656
        %v5256 = vsel %vm5255, %v5236, 0.0
        %v5257 = vadd.f32 %v5254, %v5256
        %5258 = vadd.xlane.f32.xlu0 %v5257
        %v5259 = vpop.xlane.xlu0 %5258
        %v5260 = vadd.f32 %v5237, %v5238
        %v5261 = vadd.f32 %v5260, %v5239
        %v5262 = vadd.f32 %v5261, %v5240
        %v5263 = vsel %vm5255, %v5241, 0.0
        %v5264 = vadd.f32 %v5262, %v5263
        %5265 = vadd.xlane.f32.xlu0 %v5264
        %v5266 = vpop.xlane.xlu0 %5265
        %v5267 = vadd.f32 %v5242, %v5243
        %v5268 = vadd.f32 %v5267, %v5244
        %v5269 = vadd.f32 %v5268, %v5245
        %v5270 = vsel %vm5255, %v5246, 0.0
        %v5271 = vadd.f32 %v5269, %v5270
        %5272 = vadd.xlane.f32.xlu0 %v5271
        %v5273 = vpop.xlane.xlu0 %5272
        %v5274 = vadd.f32 %v5247, %v5248
        %v5275 = vadd.f32 %v5274, %v5249
        %v5276 = vadd.f32 %v5275, %v5250
        %v5277 = vsel %vm5255, %v5251, 0.0
        %v5278 = vadd.f32 %v5276, %v5277
        %5279 = vadd.xlane.f32.xlu0 %v5278
        %v5280 = vpop.xlane.xlu0 %5279
        %v5281 = vld [vmem:[%s6] sm:$0xff]
        %v5282 = vld [vmem:[%s6 + $0x8] sm:$0xff]
        %v5283 = vld [vmem:[%s6 + $0x10] sm:$0xff]
        %v5284 = vld [vmem:[%s6 + $0x18] sm:$0xff]
        %v5285 = vadd.f32 %v5259, %v5281
        %v5286 = vadd.f32 %v5266, %v5282
        %v5287 = vadd.f32 %v5273, %v5283
        %v5288 = vadd.f32 %v5280, %v5284
        %vm5289 = vcmask 7168
        %5290 = vst.msk [vmem:[%s319] sm:$0xff] %vm5289, %v5285
        %5291 = vst.msk [vmem:[%s319 + $0x8] sm:$0xff] %vm5289, %v5286
        %5292 = vst.msk [vmem:[%s319 + $0x10] sm:$0xff] %vm5289, %v5287
        %5293 = vst.msk [vmem:[%s319 + $0x18] sm:$0xff] %vm5289, %v5288
        %p5294 = scmp.lt.s32.totalorder %s20, 1
        %s5295 = scalar_select %p5294, %s20, 1
        %s5296 = smul.addr %s5295, 4
        %s5297 = smul.addr %s5296, 8
        %s5298 = scalar_lea.vmem %s7, %s5297
        // Predicated region
        $region61: #{vae_forward.2} parent=47 // pred_check
          %p5299 = pneg %p190
        $region62: #{vae_forward.2} parent=47 // pred_check_branch
          %5301 = sbr.rel (%p5299) target = $region64
        $region63: #{vae_forward.2} parent=47 // pred_region
          _
        $region64: #{vae_forward.2} parent=47 // pred_fallthru
          _
      $region48: #{vae_forward.2} parent=5 // pred_fallthru
        _
      %p5302 = scmp.le.s32.totalorder 2, %s15
      // Predicated region
      $region65: #{vae_forward.2} parent=5 // pred_check
        %p5303 = pneg %p5302
      $region66: #{vae_forward.2} parent=5 // pred_check_branch
        %5305 = sbr.rel (%p5303) target = $region68
      $region67: #{vae_forward.2} parent=5 // pred_region
        %s5306 = ssub.s32 %s15, 2
        // Predicated region
        $region69: #{vae_forward.2} parent=67 // pred_check
          %p5307 = pneg %p196
        $region70: #{vae_forward.2} parent=67 // pred_check_branch
          %5309 = sbr.rel (%p5307) target = $region72
        $region71: #{vae_forward.2} parent=67 // pred_region
          %p5310 = scmp.lt.s32.totalorder %s21, 1
          %s5311 = scalar_select %p5310, %s21, 1
          %s5312 = smul.addr %s5311, 4
          %s5313 = smul.addr %s5312, 8
          %s5314 = scalar_lea.vmem %s7, %s5313
        $region72: #{vae_forward.2} parent=67 // pred_fallthru
          _
      $region68: #{vae_forward.2} parent=5 // pred_fallthru
        _
    $region6: #{vae_forward.2} parent=1 // loop_footer
      %s19 = sadd.s32 1, %s15
    $region7: #{vae_forward.2} parent=1 // loop_footer_branch
      %14 = sbr.rel target = $region3
    $region8: #{vae_forward.2} parent=1 // loop_exit
      _
    %5315 = vsyncpa [#allocation3], 1
    %s5316 = scalar_lea.sflag [#allocation3], 1
    %5317 = vsyncpa %s5316, 1
    %5318 = vsyncpa [#allocation5], 1

</llo_original>
